<compile_context>
chip_gen: v7x
topology: tpu7x:2x2x1
jax: 0.10.0
libtpu: 0.0.40
codegen_flags: <defaults>
</compile_context>

<pallas_src>
import functools

import jax
import jax.numpy as jnp
from jax.experimental import pallas as pl
from jax.experimental.pallas import tpu as pltpu


# ---------------------------------------------------------------------------
# small helpers
# ---------------------------------------------------------------------------
def _silu(y):
    """y * sigmoid(y); EUP exp + approximate reciprocal, numerically safe."""
    z = jnp.exp(-jnp.abs(y))                     # in (0, 1], never overflows
    r = pl.reciprocal(1.0 + z, approx=True)      # 1 / (1 + z)
    return y * jnp.where(y >= 0, r, z * r)


def _round_up(x, m):
    return ((x + m - 1) // m) * m


def _vmem_limit(est_bytes):
    """Generation-aware VMEM budget: 3/4 of physical capacity, est-scaled."""
    try:
        cap = int(getattr(pltpu.get_tpu_info(), "vmem_capacity_bytes", 64 << 20))
    except Exception:  # pragma: no cover - conservative fallback
        cap = 64 << 20
    budget = (cap * 3) // 4
    want = int(1.5 * est_bytes) + (8 << 20)
    return int(max(min(want, budget), 32 << 20))


def _compiler_params(est_bytes):
    return pltpu.CompilerParams(
        dimension_semantics=("parallel", "parallel"),
        vmem_limit_bytes=_vmem_limit(est_bytes))


def _choose_row_tile(P, widest_channels, halo_p, target_bytes=2 << 20):
    """Rows per grid step sized by bytes (~2 MiB / bf16 activation block)."""
    row_bytes = 2 * max(widest_channels, 1)
    cap = max((target_bytes // row_bytes) // 8 * 8, 8)
    cap = max(cap, halo_p)
    n_steps = -(-P // cap)
    tm = 8 * (-(-P // (8 * n_steps)))     # spread evenly, multiple of 8
    return max(tm, halo_p)                # halo_p is already a multiple of 8


# ---------------------------------------------------------------------------
# kernel 1: cv1 + cv2 fused (1x1 conv + folded BN + SiLU, one 2c_ output)
# ---------------------------------------------------------------------------
def _cv12_kernel(x_ref, m_ref, w_ref, s_ref, b_ref, o_ref):
    acc = jnp.dot(x_ref[...], w_ref[...], preferred_element_type=jnp.float32)
    # mask zeroes spatial-pad / width-pad / tail rows so downstream 3x3 taps
    # and the final interior extraction see exact zero padding.
    y = _silu(acc * s_ref[...] + b_ref[...]) * m_ref[...]
    o_ref[...] = y.astype(o_ref.dtype)


def conv_cv12(x_p, mask, w, s, b, *, tm):
    N, Ppad, C1 = x_p.shape
    c2_ = w.shape[1]                       # = 2 * c_
    nt = Ppad // tm
    act_in = pl.BlockSpec((None, tm, C1), lambda n, i: (n, i, 0))
    act_out = pl.BlockSpec((None, tm, c2_), lambda n, i: (n, i, 0))
    msk = pl.BlockSpec((tm, 1), lambda n, i: (i, 0))
    rep = lambda a: pl.BlockSpec(a.shape, lambda n, i: (0, 0))
    est = 2 * (tm * C1 * 2 + tm * c2_ * 2 + tm * 4) + w.size * 2 + 3 * tm * c2_ * 4
    return pl.pallas_call(
        _cv12_kernel,
        out_shape=jax.ShapeDtypeStruct((N, Ppad, c2_), jnp.bfloat16),
        grid=(N, nt),
        in_specs=[act_in, msk, rep(w), rep(s), rep(b)],
        out_specs=act_out,
        compiler_params=_compiler_params(est),
    )(x_p, mask, w, s, b)


# ---------------------------------------------------------------------------
# kernel 2: res_unit (Bottleneck) — row-tiled, halo from neighbour blocks,
#           3x3 conv as a single im2col-in-VMEM matmul, shortcut, pass-through
# ---------------------------------------------------------------------------
def _bottleneck_kernel(yp_ref, yc_ref, yn_ref, mp_ref, mc_ref, mn_ref,
                       w1_ref, s1_ref, b1_ref, w2_ref, s2_ref, b2_ref,
                       o_ref, *, Wq, halo_p, c_, shortcut):
    tm = yc_ref.shape[0]

    xc = yc_ref[...]                      # (tm, 2c_) bf16, centre block
    x1 = xc[:, :c_]                       # cv1-branch channels (conv in / shortcut)
    mc = mc_ref[...]                      # (tm, 1) f32 interior mask
    w1 = w1_ref[...]
    s1 = s1_ref[...]
    b1 = b1_ref[...]

    def conv1x1(x, m):
        t = jnp.dot(x, w1, preferred_element_type=jnp.float32)
        return (_silu(t * s1 + b1) * m).astype(jnp.bfloat16)

    # m.cv1: 1x1 conv + BN + SiLU on the centre tile plus halo_p rows taken
    # from the clamped prev / next row blocks.  Halo rows that fall outside the
    # image only feed masked (non-interior) output rows, so clamping is safe.
    t_c = conv1x1(x1, mc)
    t_p = conv1x1(yp_ref[pl.ds(tm - halo_p, halo_p), :][:, :c_],
                  mp_ref[pl.ds(tm - halo_p, halo_p), :])
    t_n = conv1x1(yn_ref[pl.ds(0, halo_p), :][:, :c_],
                  mn_ref[pl.ds(0, halo_p), :])
    tw = jnp.concatenate([t_p, t_c, t_n], axis=0)     # (tm + 2*halo_p, c_) bf16

    # m.cv2: 3x3 conv as one im2col-in-VMEM matmul (K = 9*c_).  Tap (ky, kx)
    # is the constant row offset base + ky*Wq + kx of the haloed window.
    base = halo_p - (Wq + 1)
    taps = [tw[base + ky * Wq + kx: base + ky * Wq + kx + tm, :]
            for ky in range(3) for kx in range(3)]
    im2col = jnp.concatenate(taps, axis=1)            # (tm, 9*c_) bf16
    acc = jnp.dot(im2col, w2_ref[...], preferred_element_type=jnp.float32)
    y = _silu(acc * s2_ref[...] + b2_ref[...]) * mc
    if shortcut:
        y = y + x1.astype(jnp.float32)                # identity shortcut

    # Pass the cv2-branch channels through so every kernel sees a single
    # lane-dense (tm, 2c_) activation tensor.
    o_ref[...] = jnp.concatenate([y.astype(o_ref.dtype), xc[:, c_:]], axis=1)


def res_unit(y, mask, p1, p3, *, Wq, halo_p, tm, shortcut):
    N, Ppad, c2_ = y.shape
    c_ = c2_ // 2
    nt = Ppad // tm
    last = nt - 1
    w1, s1, b1 = p1
    w2, s2, b2 = p3

    prev = lambda i: jnp.maximum(i - 1, 0)
    cur = lambda i: i
    nxt = lambda i: jnp.minimum(i + 1, last)
    act = lambda f: pl.BlockSpec((None, tm, c2_), lambda n, i: (n, f(i), 0))
    msk = lambda f: pl.BlockSpec((tm, 1), lambda n, i: (f(i), 0))
    rep = lambda a: pl.BlockSpec(a.shape, lambda n, i: (0, 0))

    est = (2 * (3 * tm * c2_ * 2 + 3 * tm * 4 + tm * c2_ * 2)
           + (w1.size + w2.size) * 2
           + (tm + 2 * halo_p) * c_ * 2 + tm * 9 * c_ * 2 + 4 * tm * c_ * 4)
    return pl.pallas_call(
        functools.partial(_bottleneck_kernel, Wq=Wq, halo_p=halo_p, c_=c_,
                          shortcut=shortcut),
        out_shape=jax.ShapeDtypeStruct((N, Ppad, c2_), jnp.bfloat16),
        grid=(N, nt),
        in_specs=[act(prev), act(cur), act(nxt),
                  msk(prev), msk(cur), msk(nxt),
                  rep(w1), rep(s1), rep(b1), rep(w2), rep(s2), rep(b2)],
        out_specs=act(cur),
        compiler_params=_compiler_params(est),
    )(y, y, y, mask, mask, mask, w1, s1, b1, w2, s2, b2)


# ---------------------------------------------------------------------------
# kernel 3: concat + cv3 fused (single 1x1 conv with K = 2c_ + BN + SiLU)
# ---------------------------------------------------------------------------
def _cv3_kernel(y_ref, w_ref, s_ref, b_ref, o_ref):
    acc = jnp.dot(y_ref[...], w_ref[...], preferred_element_type=jnp.float32)
    o_ref[...] = _silu(acc * s_ref[...] + b_ref[...]).astype(o_ref.dtype)


def conv_cv3(y, w, s, b, *, tm):
    N, Ppad, c2_ = y.shape
    c2 = w.shape[1]
    nt = Ppad // tm
    rep = lambda a: pl.BlockSpec(a.shape, lambda n, i: (0, 0))
    est = 2 * (tm * c2_ * 2 + tm * c2 * 4) + w.size * 2 + 2 * tm * c2 * 4
    return pl.pallas_call(
        _cv3_kernel,
        out_shape=jax.ShapeDtypeStruct((N, Ppad, c2), jnp.float32),
        grid=(N, nt),
        in_specs=[pl.BlockSpec((None, tm, c2_), lambda n, i: (n, i, 0)),
                  rep(w), rep(s), rep(b)],
        out_specs=pl.BlockSpec((None, tm, c2), lambda n, i: (n, i, 0)),
        compiler_params=_compiler_params(est),
    )(y, w, s, b)


# ---------------------------------------------------------------------------
# Parameter construction (deterministic, synthetic) with BN eval-mode folding
# ---------------------------------------------------------------------------
def make_conv_params(key, cin, cout, k):
    kw, kg, kb, km, kv = jax.random.split(key, 5)
    w = jax.random.normal(kw, (cout, cin, k, k), jnp.float32) * 0.1
    gamma = jax.random.uniform(kg, (cout,), jnp.float32, 0.5, 1.5)
    beta = jax.random.normal(kb, (cout,), jnp.float32) * 0.1
    mean = jax.random.normal(km, (cout,), jnp.float32) * 0.1
    var = jax.random.uniform(kv, (cout,), jnp.float32, 0.5, 1.5)
    scale = gamma / jnp.sqrt(var + 1e-3)   # Ultralytics BatchNorm2d eps = 1e-3
    bias = beta - mean * scale
    # (cout, cin, kH, kW) -> (kH*kW*cin, cout): rows grouped tap-major (ky, kx),
    # matching the im2col column ordering in the bottleneck kernel.
    w2d = jnp.transpose(w, (2, 3, 1, 0)).reshape(k * k * cin, cout)
    return (w2d.astype(jnp.bfloat16),
            scale.reshape(1, cout).astype(jnp.float32),
            bias.reshape(1, cout).astype(jnp.float32))


def make_c3_params(key, c1, c2, n=1, e=0.5):
    c_ = int(c2 * e)
    keys = jax.random.split(key, 3 + 2 * n)
    p_cv1 = make_conv_params(keys[0], c1, c_, 1)
    p_cv2 = make_conv_params(keys[1], c1, c_, 1)
    # Fuse cv1/cv2 along output channels: one read of x, one lane-dense output.
    cv12 = tuple(jnp.concatenate([a, b], axis=-1) for a, b in zip(p_cv1, p_cv2))
    m = [(make_conv_params(keys[3 + 2 * i], c_, c_, 1),   # m.cv1 (1x1)
          make_conv_params(keys[4 + 2 * i], c_, c_, 3))   # m.cv2 (3x3)
         for i in range(n)]
    params = {"cv12": cv12, "cv3": make_conv_params(keys[2], 2 * c_, c2, 1), "m": m}
    return params, c_


# ---------------------------------------------------------------------------
# C3 forward
# ---------------------------------------------------------------------------
@functools.partial(jax.jit, static_argnames=("shortcut",))
def c3_forward(x_nchw, params, shortcut=True):
    N, C1, H, W = x_nchw.shape
    Hp = H + 2
    Wq = _round_up(W + 2, 8)        # width padded so ky*Wq offsets stay aligned
    P = Hp * Wq
    halo_p = Wq + 8                 # halo rows (>= Wq + 1), multiple of 8

    w12, s12, b12 = params["cv12"]
    c_ = w12.shape[1] // 2
    w3, s3, b3 = params["cv3"]
    c2 = w3.shape[1]

    widest = max(C1, 2 * c_, c2)
    tm = _choose_row_tile(P, widest, halo_p)
    nt = -(-P // tm)
    Ppad = nt * tm

    # NCHW -> zero-padded, width-aligned, flattened NHWC ("padded-flat"), bf16.
    x_nhwc = jnp.transpose(x_nchw, (0, 2, 3, 1))
    x_sp = jnp.pad(x_nhwc, ((0, 0), (1, 1), (1, Wq - W - 1), (0, 0)))
    x_p = jnp.pad(x_sp.reshape(N, P, C1), ((0, 0), (0, Ppad - P), (0, 0)))
    x_p = x_p.astype(jnp.bfloat16)

    # Interior-pixel mask computed once (hoisted out of the kernel epilogues).
    r = jnp.arange(Ppad, dtype=jnp.int32)
    h = r // Wq
    w = r % Wq
    mask = (((h >= 1) & (h <= H) & (w >= 1) & (w <= W))
            .astype(jnp.float32).reshape(Ppad, 1))

    # cv1 + cv2 fused: one pass over x, one (Ppad, 2c_) lane-dense output.
    y = conv_cv12(x_p, mask, w12, s12, b12, tm=tm)

    # m = res_unit chain (row-tiled, im2col-free-in-HBM 3x3 conv + shortcut).
    for p1, p3 in params["m"]:
        y = res_unit(y, mask, p1, p3, Wq=Wq, halo_p=halo_p, tm=tm,
                     shortcut=shortcut)

    # concat + cv3 fused: single K = 2c_ matmul over the combined channels.
    out_p = conv_cv3(y, w3, s3, b3, tm=tm)

    # padded-flat -> NCHW interior.
    out = out_p[:, :P, :].reshape(N, Hp, Wq, c2)[:, 1:H + 1, 1:W + 1, :]
    return jnp.transpose(out, (0, 3, 1, 2))


if __name__ == "__main__":
    key = jax.random.PRNGKey(0)
    kx, kp = jax.random.split(key)

    # Small shapes consistent with the module: c1=4, c2=8, n=1, e=0.5 -> c_=4
    N, C1, C2, H, W = 2, 4, 8, 16, 16
    x = jax.random.normal(kx, (N, C1, H, W), jnp.float32)

    params, c_hidden = make_c3_params(kp, C1, C2, n=1, e=0.5)

    out = c3_forward(x, params, shortcut=True)
    out = jax.block_until_ready(out)

    assert out.shape == (N, C2, H, W), out.shape
    assert bool(jnp.all(jnp.isfinite(out)))
    print("KERNEL_OK")
</pallas_src>

<mosaic_0001>
module attributes {stable_mosaic.version = 11 : i64} {
  func.func @_cv12_kernel(%arg0: i32, %arg1: i32, %arg2: memref<1x432x4xbf16, #tpu.memory_space<vmem>>, %arg3: memref<432x1xf32, #tpu.memory_space<vmem>>, %arg4: memref<4x8xbf16, #tpu.memory_space<vmem>>, %arg5: memref<1x8xf32, #tpu.memory_space<vmem>>, %arg6: memref<1x8xf32, #tpu.memory_space<vmem>>, %arg7: memref<1x432x8xbf16, #tpu.memory_space<vmem>>) attributes {dimension_semantics = [#tpu.dimension_semantics<parallel>, #tpu.dimension_semantics<parallel>], iteration_bounds = array<i64: 2, 1>, scalar_prefetch = 0 : i64, scratch_operands = 0 : i64, tpu.core_type = #tpu.core_type<tc>, window_params = [{transform_indices = @transform_0, window_bounds = array<i64: 1, 432, 4>}, {transform_indices = @transform_1, window_bounds = array<i64: 432, 1>}, {pipeline_mode = #tpu.pipeline_mode<synchronous>, transform_indices = @transform_2, window_bounds = array<i64: 4, 8>}, {pipeline_mode = #tpu.pipeline_mode<synchronous>, transform_indices = @transform_3, window_bounds = array<i64: 1, 8>}, {pipeline_mode = #tpu.pipeline_mode<synchronous>, transform_indices = @transform_4, window_bounds = array<i64: 1, 8>}, {transform_indices = @transform_5, window_bounds = array<i64: 1, 432, 8>}]} {
    %c0 = arith.constant 0 : index
    %c0_0 = arith.constant 0 : index
    %c0_1 = arith.constant 0 : index
    %0 = vector.load %arg2[%c0, %c0_0, %c0_1] : memref<1x432x4xbf16, #tpu.memory_space<vmem>>, vector<1x432x4xbf16>
    %1 = vector.shape_cast %0 : vector<1x432x4xbf16> to vector<432x4xbf16>
    %c0_2 = arith.constant 0 : index
    %c0_3 = arith.constant 0 : index
    %2 = vector.load %arg4[%c0_2, %c0_3] : memref<4x8xbf16, #tpu.memory_space<vmem>>, vector<4x8xbf16>
    %cst = arith.constant dense<0.000000e+00> : vector<432x8xf32>
    %3 = tpu.matmul %1, %2, %cst {dimension_numbers = #tpu.dot_dimension_numbers<[1], [0], [0], [1], [0, 0, 1, 1], [], []>} : vector<432x4xbf16>, vector<4x8xbf16>, vector<432x8xf32> -> vector<432x8xf32>
    %c0_4 = arith.constant 0 : index
    %c0_5 = arith.constant 0 : index
    %4 = vector.load %arg5[%c0_4, %c0_5] : memref<1x8xf32, #tpu.memory_space<vmem>>, vector<1x8xf32>
    %5 = vector.broadcast %4 : vector<1x8xf32> to vector<432x8xf32>
    %6 = arith.mulf %3, %5 : vector<432x8xf32>
    %c0_6 = arith.constant 0 : index
    %c0_7 = arith.constant 0 : index
    %7 = vector.load %arg6[%c0_6, %c0_7] : memref<1x8xf32, #tpu.memory_space<vmem>>, vector<1x8xf32>
    %8 = vector.broadcast %7 : vector<1x8xf32> to vector<432x8xf32>
    %9 = arith.addf %6, %8 : vector<432x8xf32>
    %10 = math.absf %9 : vector<432x8xf32>
    %cst_8 = arith.constant 0.000000e+00 : f32
    %11 = vector.broadcast %cst_8 : f32 to vector<432x8xf32>
    %12 = arith.subf %11, %10 : vector<432x8xf32>
    %13 = math.exp %12 : vector<432x8xf32>
    %cst_9 = arith.constant 1.000000e+00 : f32
    %14 = vector.broadcast %cst_9 : f32 to vector<432x8xf32>
    %15 = arith.addf %14, %13 : vector<432x8xf32>
    %16 = tpu.reciprocal %15 {approx = true} : vector<432x8xf32> -> vector<432x8xf32>
    %cst_10 = arith.constant 0.000000e+00 : f32
    %17 = vector.broadcast %cst_10 : f32 to vector<432x8xf32>
    %18 = arith.cmpf oge, %9, %17 : vector<432x8xf32>
    %19 = arith.mulf %13, %16 : vector<432x8xf32>
    %20 = arith.select %18, %16, %19 : vector<432x8xi1>, vector<432x8xf32>
    %21 = arith.mulf %9, %20 : vector<432x8xf32>
    %c0_11 = arith.constant 0 : index
    %c0_12 = arith.constant 0 : index
    %22 = vector.load %arg3[%c0_11, %c0_12] : memref<432x1xf32, #tpu.memory_space<vmem>>, vector<432x1xf32>
    %23 = vector.broadcast %22 : vector<432x1xf32> to vector<432x8xf32>
    %24 = arith.mulf %21, %23 : vector<432x8xf32>
    %25 = arith.truncf %24 : vector<432x8xf32> to vector<432x8xbf16>
    %c0_13 = arith.constant 0 : index
    %c0_14 = arith.constant 0 : index
    %c0_15 = arith.constant 0 : index
    %26 = vector.load %arg7[%c0_13, %c0_14, %c0_15] : memref<1x432x8xbf16, #tpu.memory_space<vmem>>, vector<1x432x8xbf16>
    %27 = vector.shape_cast %26 : vector<1x432x8xbf16> to vector<432x8xbf16>
    %28 = vector.shape_cast %25 : vector<432x8xbf16> to vector<1x432x8xbf16>
    tpu.vector_store %arg7[%c0_13, %c0_14, %c0_15], %28 {strides = array<i32>} : memref<1x432x8xbf16, #tpu.memory_space<vmem>>, vector<1x432x8xbf16>,
    return
  }
  func.func @transform_0(%arg0: i32, %arg1: i32) -> (i32, i32, i32) {
    %c0_i32 = arith.constant 0 : i32
    %c0_i32_0 = arith.constant 0 : i32
    return %arg0, %arg1, %c0_i32 : i32, i32, i32
  }
  func.func @transform_1(%arg0: i32, %arg1: i32) -> (i32, i32) {
    %c0_i32 = arith.constant 0 : i32
    %c0_i32_0 = arith.constant 0 : i32
    return %arg1, %c0_i32 : i32, i32
  }
  func.func @transform_2(%arg0: i32, %arg1: i32) -> (i32, i32) {
    %c0_i32 = arith.constant 0 : i32
    %c0_i32_0 = arith.constant 0 : i32
    %c0_i32_1 = arith.constant 0 : i32
    return %c0_i32, %c0_i32_0 : i32, i32
  }
  func.func @transform_3(%arg0: i32, %arg1: i32) -> (i32, i32) {
    %c0_i32 = arith.constant 0 : i32
    %c0_i32_0 = arith.constant 0 : i32
    %c0_i32_1 = arith.constant 0 : i32
    return %c0_i32, %c0_i32_0 : i32, i32
  }
  func.func @transform_4(%arg0: i32, %arg1: i32) -> (i32, i32) {
    %c0_i32 = arith.constant 0 : i32
    %c0_i32_0 = arith.constant 0 : i32
    %c0_i32_1 = arith.constant 0 : i32
    return %c0_i32, %c0_i32_0 : i32, i32
  }
  func.func @transform_5(%arg0: i32, %arg1: i32) -> (i32, i32, i32) {
    %c0_i32 = arith.constant 0 : i32
    %c0_i32_0 = arith.constant 0 : i32
    return %arg0, %arg1, %c0_i32 : i32, i32, i32
  }
}

module attributes {stable_mosaic.version = 11 : i64} {
  func.func @_cv3_kernel(%arg0: i32, %arg1: i32, %arg2: memref<1x432x8xbf16, #tpu.memory_space<vmem>>, %arg3: memref<8x8xbf16, #tpu.memory_space<vmem>>, %arg4: memref<1x8xf32, #tpu.memory_space<vmem>>, %arg5: memref<1x8xf32, #tpu.memory_space<vmem>>, %arg6: memref<1x432x8xf32, #tpu.memory_space<vmem>>) attributes {dimension_semantics = [#tpu.dimension_semantics<parallel>, #tpu.dimension_semantics<parallel>], iteration_bounds = array<i64: 2, 1>, scalar_prefetch = 0 : i64, scratch_operands = 0 : i64, tpu.core_type = #tpu.core_type<tc>, window_params = [{transform_indices = @transform_0, window_bounds = array<i64: 1, 432, 8>}, {pipeline_mode = #tpu.pipeline_mode<synchronous>, transform_indices = @transform_1, window_bounds = array<i64: 8, 8>}, {pipeline_mode = #tpu.pipeline_mode<synchronous>, transform_indices = @transform_2, window_bounds = array<i64: 1, 8>}, {pipeline_mode = #tpu.pipeline_mode<synchronous>, transform_indices = @transform_3, window_bounds = array<i64: 1, 8>}, {transform_indices = @transform_4, window_bounds = array<i64: 1, 432, 8>}]} {
    %c0 = arith.constant 0 : index
    %c0_0 = arith.constant 0 : index
    %c0_1 = arith.constant 0 : index
    %0 = vector.load %arg2[%c0, %c0_0, %c0_1] : memref<1x432x8xbf16, #tpu.memory_space<vmem>>, vector<1x432x8xbf16>
    %1 = vector.shape_cast %0 : vector<1x432x8xbf16> to vector<432x8xbf16>
    %c0_2 = arith.constant 0 : index
    %c0_3 = arith.constant 0 : index
    %2 = vector.load %arg3[%c0_2, %c0_3] : memref<8x8xbf16, #tpu.memory_space<vmem>>, vector<8x8xbf16>
    %cst = arith.constant dense<0.000000e+00> : vector<432x8xf32>
    %3 = tpu.matmul %1, %2, %cst {dimension_numbers = #tpu.dot_dimension_numbers<[1], [0], [0], [1], [0, 0, 1, 1], [], []>} : vector<432x8xbf16>, vector<8x8xbf16>, vector<432x8xf32> -> vector<432x8xf32>
    %c0_4 = arith.constant 0 : index
    %c0_5 = arith.constant 0 : index
    %4 = vector.load %arg4[%c0_4, %c0_5] : memref<1x8xf32, #tpu.memory_space<vmem>>, vector<1x8xf32>
    %5 = vector.broadcast %4 : vector<1x8xf32> to vector<432x8xf32>
    %6 = arith.mulf %3, %5 : vector<432x8xf32>
    %c0_6 = arith.constant 0 : index
    %c0_7 = arith.constant 0 : index
    %7 = vector.load %arg5[%c0_6, %c0_7] : memref<1x8xf32, #tpu.memory_space<vmem>>, vector<1x8xf32>
    %8 = vector.broadcast %7 : vector<1x8xf32> to vector<432x8xf32>
    %9 = arith.addf %6, %8 : vector<432x8xf32>
    %10 = math.absf %9 : vector<432x8xf32>
    %cst_8 = arith.constant 0.000000e+00 : f32
    %11 = vector.broadcast %cst_8 : f32 to vector<432x8xf32>
    %12 = arith.subf %11, %10 : vector<432x8xf32>
    %13 = math.exp %12 : vector<432x8xf32>
    %cst_9 = arith.constant 1.000000e+00 : f32
    %14 = vector.broadcast %cst_9 : f32 to vector<432x8xf32>
    %15 = arith.addf %14, %13 : vector<432x8xf32>
    %16 = tpu.reciprocal %15 {approx = true} : vector<432x8xf32> -> vector<432x8xf32>
    %cst_10 = arith.constant 0.000000e+00 : f32
    %17 = vector.broadcast %cst_10 : f32 to vector<432x8xf32>
    %18 = arith.cmpf oge, %9, %17 : vector<432x8xf32>
    %19 = arith.mulf %13, %16 : vector<432x8xf32>
    %20 = arith.select %18, %16, %19 : vector<432x8xi1>, vector<432x8xf32>
    %21 = arith.mulf %9, %20 : vector<432x8xf32>
    %c0_11 = arith.constant 0 : index
    %c0_12 = arith.constant 0 : index
    %c0_13 = arith.constant 0 : index
    %22 = vector.load %arg6[%c0_11, %c0_12, %c0_13] : memref<1x432x8xf32, #tpu.memory_space<vmem>>, vector<1x432x8xf32>
    %23 = vector.shape_cast %22 : vector<1x432x8xf32> to vector<432x8xf32>
    %24 = vector.shape_cast %21 : vector<432x8xf32> to vector<1x432x8xf32>
    tpu.vector_store %arg6[%c0_11, %c0_12, %c0_13], %24 {strides = array<i32>} : memref<1x432x8xf32, #tpu.memory_space<vmem>>, vector<1x432x8xf32>,
    return
  }
  func.func @transform_0(%arg0: i32, %arg1: i32) -> (i32, i32, i32) {
    %c0_i32 = arith.constant 0 : i32
    %c0_i32_0 = arith.constant 0 : i32
    return %arg0, %arg1, %c0_i32 : i32, i32, i32
  }
  func.func @transform_1(%arg0: i32, %arg1: i32) -> (i32, i32) {
    %c0_i32 = arith.constant 0 : i32
    %c0_i32_0 = arith.constant 0 : i32
    %c0_i32_1 = arith.constant 0 : i32
    return %c0_i32, %c0_i32_0 : i32, i32
  }
  func.func @transform_2(%arg0: i32, %arg1: i32) -> (i32, i32) {
    %c0_i32 = arith.constant 0 : i32
    %c0_i32_0 = arith.constant 0 : i32
    %c0_i32_1 = arith.constant 0 : i32
    return %c0_i32, %c0_i32_0 : i32, i32
  }
  func.func @transform_3(%arg0: i32, %arg1: i32) -> (i32, i32) {
    %c0_i32 = arith.constant 0 : i32
    %c0_i32_0 = arith.constant 0 : i32
    %c0_i32_1 = arith.constant 0 : i32
    return %c0_i32, %c0_i32_0 : i32, i32
  }
  func.func @transform_4(%arg0: i32, %arg1: i32) -> (i32, i32, i32) {
    %c0_i32 = arith.constant 0 : i32
    %c0_i32_0 = arith.constant 0 : i32
    return %arg0, %arg1, %c0_i32 : i32, i32, i32
  }
}

module attributes {stable_mosaic.version = 11 : i64} {
  func.func @_bottleneck_kernel(%arg0: i32, %arg1: i32, %arg2: memref<1x432x8xbf16, #tpu.memory_space<vmem>>, %arg3: memref<1x432x8xbf16, #tpu.memory_space<vmem>>, %arg4: memref<1x432x8xbf16, #tpu.memory_space<vmem>>, %arg5: memref<432x1xf32, #tpu.memory_space<vmem>>, %arg6: memref<432x1xf32, #tpu.memory_space<vmem>>, %arg7: memref<432x1xf32, #tpu.memory_space<vmem>>, %arg8: memref<4x4xbf16, #tpu.memory_space<vmem>>, %arg9: memref<1x4xf32, #tpu.memory_space<vmem>>, %arg10: memref<1x4xf32, #tpu.memory_space<vmem>>, %arg11: memref<36x4xbf16, #tpu.memory_space<vmem>>, %arg12: memref<1x4xf32, #tpu.memory_space<vmem>>, %arg13: memref<1x4xf32, #tpu.memory_space<vmem>>, %arg14: memref<1x432x8xbf16, #tpu.memory_space<vmem>>) attributes {dimension_semantics = [#tpu.dimension_semantics<parallel>, #tpu.dimension_semantics<parallel>], iteration_bounds = array<i64: 2, 1>, scalar_prefetch = 0 : i64, scratch_operands = 0 : i64, tpu.core_type = #tpu.core_type<tc>, window_params = [{transform_indices = @transform_0, window_bounds = array<i64: 1, 432, 8>}, {transform_indices = @transform_1, window_bounds = array<i64: 1, 432, 8>}, {transform_indices = @transform_2, window_bounds = array<i64: 1, 432, 8>}, {transform_indices = @transform_3, window_bounds = array<i64: 432, 1>}, {transform_indices = @transform_4, window_bounds = array<i64: 432, 1>}, {transform_indices = @transform_5, window_bounds = array<i64: 432, 1>}, {pipeline_mode = #tpu.pipeline_mode<synchronous>, transform_indices = @transform_6, window_bounds = array<i64: 4, 4>}, {pipeline_mode = #tpu.pipeline_mode<synchronous>, transform_indices = @transform_7, window_bounds = array<i64: 1, 4>}, {pipeline_mode = #tpu.pipeline_mode<synchronous>, transform_indices = @transform_8, window_bounds = array<i64: 1, 4>}, {pipeline_mode = #tpu.pipeline_mode<synchronous>, transform_indices = @transform_9, window_bounds = array<i64: 36, 4>}, {pipeline_mode = #tpu.pipeline_mode<synchronous>, transform_indices = @transform_10, window_bounds = array<i64: 1, 4>}, {pipeline_mode = #tpu.pipeline_mode<synchronous>, transform_indices = @transform_11, window_bounds = array<i64: 1, 4>}, {transform_indices = @transform_12, window_bounds = array<i64: 1, 432, 8>}]} {
    %c0 = arith.constant 0 : index
    %c0_0 = arith.constant 0 : index
    %c0_1 = arith.constant 0 : index
    %0 = vector.load %arg3[%c0, %c0_0, %c0_1] : memref<1x432x8xbf16, #tpu.memory_space<vmem>>, vector<1x432x8xbf16>
    %1 = vector.shape_cast %0 : vector<1x432x8xbf16> to vector<432x8xbf16>
    %2 = vector.extract_strided_slice %1 {offsets = [0, 0], sizes = [432, 4], strides = [1, 1]} : vector<432x8xbf16> to vector<432x4xbf16>
    %c0_2 = arith.constant 0 : index
    %c0_3 = arith.constant 0 : index
    %3 = vector.load %arg6[%c0_2, %c0_3] : memref<432x1xf32, #tpu.memory_space<vmem>>, vector<432x1xf32>
    %c0_4 = arith.constant 0 : index
    %c0_5 = arith.constant 0 : index
    %4 = vector.load %arg8[%c0_4, %c0_5] : memref<4x4xbf16, #tpu.memory_space<vmem>>, vector<4x4xbf16>
    %c0_6 = arith.constant 0 : index
    %c0_7 = arith.constant 0 : index
    %5 = vector.load %arg9[%c0_6, %c0_7] : memref<1x4xf32, #tpu.memory_space<vmem>>, vector<1x4xf32>
    %c0_8 = arith.constant 0 : index
    %c0_9 = arith.constant 0 : index
    %6 = vector.load %arg10[%c0_8, %c0_9] : memref<1x4xf32, #tpu.memory_space<vmem>>, vector<1x4xf32>
    %cst = arith.constant dense<0.000000e+00> : vector<432x4xf32>
    %7 = tpu.matmul %2, %4, %cst {dimension_numbers = #tpu.dot_dimension_numbers<[1], [0], [0], [1], [0, 0, 1, 1], [], []>} : vector<432x4xbf16>, vector<4x4xbf16>, vector<432x4xf32> -> vector<432x4xf32>
    %8 = vector.broadcast %5 : vector<1x4xf32> to vector<432x4xf32>
    %9 = arith.mulf %7, %8 : vector<432x4xf32>
    %10 = vector.broadcast %6 : vector<1x4xf32> to vector<432x4xf32>
    %11 = arith.addf %9, %10 : vector<432x4xf32>
    %12 = math.absf %11 : vector<432x4xf32>
    %cst_10 = arith.constant 0.000000e+00 : f32
    %13 = vector.broadcast %cst_10 : f32 to vector<432x4xf32>
    %14 = arith.subf %13, %12 : vector<432x4xf32>
    %15 = math.exp %14 : vector<432x4xf32>
    %cst_11 = arith.constant 1.000000e+00 : f32
    %16 = vector.broadcast %cst_11 : f32 to vector<432x4xf32>
    %17 = arith.addf %16, %15 : vector<432x4xf32>
    %18 = tpu.reciprocal %17 {approx = true} : vector<432x4xf32> -> vector<432x4xf32>
    %cst_12 = arith.constant 0.000000e+00 : f32
    %19 = vector.broadcast %cst_12 : f32 to vector<432x4xf32>
    %20 = arith.cmpf oge, %11, %19 : vector<432x4xf32>
    %21 = arith.mulf %15, %18 : vector<432x4xf32>
    %22 = arith.select %20, %18, %21 : vector<432x4xi1>, vector<432x4xf32>
    %23 = arith.mulf %11, %22 : vector<432x4xf32>
    %24 = vector.broadcast %3 : vector<432x1xf32> to vector<432x4xf32>
    %25 = arith.mulf %23, %24 : vector<432x4xf32>
    %26 = arith.truncf %25 : vector<432x4xf32> to vector<432x4xbf16>
    %c0_13 = arith.constant 0 : index
    %c400 = arith.constant 400 : index
    %c0_14 = arith.constant 0 : index
    %27 = vector.load %arg2[%c0_13, %c400, %c0_14] : memref<1x432x8xbf16, #tpu.memory_space<vmem>>, vector<1x32x8xbf16>
    %28 = vector.shape_cast %27 : vector<1x32x8xbf16> to vector<32x8xbf16>
    %29 = vector.extract_strided_slice %28 {offsets = [0, 0], sizes = [32, 4], strides = [1, 1]} : vector<32x8xbf16> to vector<32x4xbf16>
    %c400_15 = arith.constant 400 : index
    %c0_16 = arith.constant 0 : index
    %30 = vector.load %arg5[%c400_15, %c0_16] : memref<432x1xf32, #tpu.memory_space<vmem>>, vector<32x1xf32>
    %cst_17 = arith.constant dense<0.000000e+00> : vector<32x4xf32>
    %31 = tpu.matmul %29, %4, %cst_17 {dimension_numbers = #tpu.dot_dimension_numbers<[1], [0], [0], [1], [0, 0, 1, 1], [], []>} : vector<32x4xbf16>, vector<4x4xbf16>, vector<32x4xf32> -> vector<32x4xf32>
    %32 = vector.broadcast %5 : vector<1x4xf32> to vector<32x4xf32>
    %33 = arith.mulf %31, %32 : vector<32x4xf32>
    %34 = vector.broadcast %6 : vector<1x4xf32> to vector<32x4xf32>
    %35 = arith.addf %33, %34 : vector<32x4xf32>
    %36 = math.absf %35 : vector<32x4xf32>
    %cst_18 = arith.constant 0.000000e+00 : f32
    %37 = vector.broadcast %cst_18 : f32 to vector<32x4xf32>
    %38 = arith.subf %37, %36 : vector<32x4xf32>
    %39 = math.exp %38 : vector<32x4xf32>
    %cst_19 = arith.constant 1.000000e+00 : f32
    %40 = vector.broadcast %cst_19 : f32 to vector<32x4xf32>
    %41 = arith.addf %40, %39 : vector<32x4xf32>
    %42 = tpu.reciprocal %41 {approx = true} : vector<32x4xf32> -> vector<32x4xf32>
    %cst_20 = arith.constant 0.000000e+00 : f32
    %43 = vector.broadcast %cst_20 : f32 to vector<32x4xf32>
    %44 = arith.cmpf oge, %35, %43 : vector<32x4xf32>
    %45 = arith.mulf %39, %42 : vector<32x4xf32>
    %46 = arith.select %44, %42, %45 : vector<32x4xi1>, vector<32x4xf32>
    %47 = arith.mulf %35, %46 : vector<32x4xf32>
    %48 = vector.broadcast %30 : vector<32x1xf32> to vector<32x4xf32>
    %49 = arith.mulf %47, %48 : vector<32x4xf32>
    %50 = arith.truncf %49 : vector<32x4xf32> to vector<32x4xbf16>
    %c0_21 = arith.constant 0 : index
    %c0_22 = arith.constant 0 : index
    %c0_23 = arith.constant 0 : index
    %51 = vector.load %arg4[%c0_21, %c0_22, %c0_23] : memref<1x432x8xbf16, #tpu.memory_space<vmem>>, vector<1x32x8xbf16>
    %52 = vector.shape_cast %51 : vector<1x32x8xbf16> to vector<32x8xbf16>
    %53 = vector.extract_strided_slice %52 {offsets = [0, 0], sizes = [32, 4], strides = [1, 1]} : vector<32x8xbf16> to vector<32x4xbf16>
    %c0_24 = arith.constant 0 : index
    %c0_25 = arith.constant 0 : index
    %54 = vector.load %arg7[%c0_24, %c0_25] : memref<432x1xf32, #tpu.memory_space<vmem>>, vector<32x1xf32>
    %cst_26 = arith.constant dense<0.000000e+00> : vector<32x4xf32>
    %55 = tpu.matmul %53, %4, %cst_26 {dimension_numbers = #tpu.dot_dimension_numbers<[1], [0], [0], [1], [0, 0, 1, 1], [], []>} : vector<32x4xbf16>, vector<4x4xbf16>, vector<32x4xf32> -> vector<32x4xf32>
    %56 = vector.broadcast %5 : vector<1x4xf32> to vector<32x4xf32>
    %57 = arith.mulf %55, %56 : vector<32x4xf32>
    %58 = vector.broadcast %6 : vector<1x4xf32> to vector<32x4xf32>
    %59 = arith.addf %57, %58 : vector<32x4xf32>
    %60 = math.absf %59 : vector<32x4xf32>
    %cst_27 = arith.constant 0.000000e+00 : f32
    %61 = vector.broadcast %cst_27 : f32 to vector<32x4xf32>
    %62 = arith.subf %61, %60 : vector<32x4xf32>
    %63 = math.exp %62 : vector<32x4xf32>
    %cst_28 = arith.constant 1.000000e+00 : f32
    %64 = vector.broadcast %cst_28 : f32 to vector<32x4xf32>
    %65 = arith.addf %64, %63 : vector<32x4xf32>
    %66 = tpu.reciprocal %65 {approx = true} : vector<32x4xf32> -> vector<32x4xf32>
    %cst_29 = arith.constant 0.000000e+00 : f32
    %67 = vector.broadcast %cst_29 : f32 to vector<32x4xf32>
    %68 = arith.cmpf oge, %59, %67 : vector<32x4xf32>
    %69 = arith.mulf %63, %66 : vector<32x4xf32>
    %70 = arith.select %68, %66, %69 : vector<32x4xi1>, vector<32x4xf32>
    %71 = arith.mulf %59, %70 : vector<32x4xf32>
    %72 = vector.broadcast %54 : vector<32x1xf32> to vector<32x4xf32>
    %73 = arith.mulf %71, %72 : vector<32x4xf32>
    %74 = arith.truncf %73 : vector<32x4xf32> to vector<32x4xbf16>
    %75 = tpu.concatenate %50, %26, %74 in 0 : vector<32x4xbf16>, vector<432x4xbf16>, vector<32x4xbf16> -> vector<496x4xbf16>
    %76 = vector.extract_strided_slice %75 {offsets = [7, 0], sizes = [432, 4], strides = [1, 1]} : vector<496x4xbf16> to vector<432x4xbf16>
    %77 = vector.extract_strided_slice %75 {offsets = [8, 0], sizes = [432, 4], strides = [1, 1]} : vector<496x4xbf16> to vector<432x4xbf16>
    %78 = vector.extract_strided_slice %75 {offsets = [9, 0], sizes = [432, 4], strides = [1, 1]} : vector<496x4xbf16> to vector<432x4xbf16>
    %79 = vector.extract_strided_slice %75 {offsets = [31, 0], sizes = [432, 4], strides = [1, 1]} : vector<496x4xbf16> to vector<432x4xbf16>
    %80 = vector.extract_strided_slice %75 {offsets = [32, 0], sizes = [432, 4], strides = [1, 1]} : vector<496x4xbf16> to vector<432x4xbf16>
    %81 = vector.extract_strided_slice %75 {offsets = [33, 0], sizes = [432, 4], strides = [1, 1]} : vector<496x4xbf16> to vector<432x4xbf16>
    %82 = vector.extract_strided_slice %75 {offsets = [55, 0], sizes = [432, 4], strides = [1, 1]} : vector<496x4xbf16> to vector<432x4xbf16>
    %83 = vector.extract_strided_slice %75 {offsets = [56, 0], sizes = [432, 4], strides = [1, 1]} : vector<496x4xbf16> to vector<432x4xbf16>
    %84 = vector.extract_strided_slice %75 {offsets = [57, 0], sizes = [432, 4], strides = [1, 1]} : vector<496x4xbf16> to vector<432x4xbf16>
    %85 = tpu.concatenate %76, %77, %78, %79, %80, %81, %82, %83, %84 in 1 : vector<432x4xbf16>, vector<432x4xbf16>, vector<432x4xbf16>, vector<432x4xbf16>, vector<432x4xbf16>, vector<432x4xbf16>, vector<432x4xbf16>, vector<432x4xbf16>, vector<432x4xbf16> -> vector<432x36xbf16>
    %c0_30 = arith.constant 0 : index
    %c0_31 = arith.constant 0 : index
    %86 = vector.load %arg11[%c0_30, %c0_31] : memref<36x4xbf16, #tpu.memory_space<vmem>>, vector<36x4xbf16>
    %cst_32 = arith.constant dense<0.000000e+00> : vector<432x4xf32>
    %87 = tpu.matmul %85, %86, %cst_32 {dimension_numbers = #tpu.dot_dimension_numbers<[1], [0], [0], [1], [0, 0, 1, 1], [], []>} : vector<432x36xbf16>, vector<36x4xbf16>, vector<432x4xf32> -> vector<432x4xf32>
    %c0_33 = arith.constant 0 : index
    %c0_34 = arith.constant 0 : index
    %88 = vector.load %arg12[%c0_33, %c0_34] : memref<1x4xf32, #tpu.memory_space<vmem>>, vector<1x4xf32>
    %89 = vector.broadcast %88 : vector<1x4xf32> to vector<432x4xf32>
    %90 = arith.mulf %87, %89 : vector<432x4xf32>
    %c0_35 = arith.constant 0 : index
    %c0_36 = arith.constant 0 : index
    %91 = vector.load %arg13[%c0_35, %c0_36] : memref<1x4xf32, #tpu.memory_space<vmem>>, vector<1x4xf32>
    %92 = vector.broadcast %91 : vector<1x4xf32> to vector<432x4xf32>
    %93 = arith.addf %90, %92 : vector<432x4xf32>
    %94 = math.absf %93 : vector<432x4xf32>
    %cst_37 = arith.constant 0.000000e+00 : f32
    %95 = vector.broadcast %cst_37 : f32 to vector<432x4xf32>
    %96 = arith.subf %95, %94 : vector<432x4xf32>
    %97 = math.exp %96 : vector<432x4xf32>
    %cst_38 = arith.constant 1.000000e+00 : f32
    %98 = vector.broadcast %cst_38 : f32 to vector<432x4xf32>
    %99 = arith.addf %98, %97 : vector<432x4xf32>
    %100 = tpu.reciprocal %99 {approx = true} : vector<432x4xf32> -> vector<432x4xf32>
    %cst_39 = arith.constant 0.000000e+00 : f32
    %101 = vector.broadcast %cst_39 : f32 to vector<432x4xf32>
    %102 = arith.cmpf oge, %93, %101 : vector<432x4xf32>
    %103 = arith.mulf %97, %100 : vector<432x4xf32>
    %104 = arith.select %102, %100, %103 : vector<432x4xi1>, vector<432x4xf32>
    %105 = arith.mulf %93, %104 : vector<432x4xf32>
    %106 = vector.broadcast %3 : vector<432x1xf32> to vector<432x4xf32>
    %107 = arith.mulf %105, %106 : vector<432x4xf32>
    %108 = arith.extf %2 : vector<432x4xbf16> to vector<432x4xf32>
    %109 = arith.addf %107, %108 : vector<432x4xf32>
    %110 = arith.truncf %109 : vector<432x4xf32> to vector<432x4xbf16>
    %111 = vector.extract_strided_slice %1 {offsets = [0, 4], sizes = [432, 4], strides = [1, 1]} : vector<432x8xbf16> to vector<432x4xbf16>
    %112 = tpu.concatenate %110, %111 in 1 : vector<432x4xbf16>, vector<432x4xbf16> -> vector<432x8xbf16>
    %c0_40 = arith.constant 0 : index
    %c0_41 = arith.constant 0 : index
    %c0_42 = arith.constant 0 : index
    %113 = vector.load %arg14[%c0_40, %c0_41, %c0_42] : memref<1x432x8xbf16, #tpu.memory_space<vmem>>, vector<1x432x8xbf16>
    %114 = vector.shape_cast %113 : vector<1x432x8xbf16> to vector<432x8xbf16>
    %115 = vector.shape_cast %112 : vector<432x8xbf16> to vector<1x432x8xbf16>
    tpu.vector_store %arg14[%c0_40, %c0_41, %c0_42], %115 {strides = array<i32>} : memref<1x432x8xbf16, #tpu.memory_space<vmem>>, vector<1x432x8xbf16>,
    return
  }
  func.func @transform_0(%arg0: i32, %arg1: i32) -> (i32, i32, i32) {
    %c1_i32 = arith.constant 1 : i32
    %0 = arith.subi %arg1, %c1_i32 : i32
    %c0_i32 = arith.constant 0 : i32
    %1 = arith.maxsi %0, %c0_i32 : i32
    %c0_i32_0 = arith.constant 0 : i32
    %c0_i32_1 = arith.constant 0 : i32
    return %arg0, %1, %c0_i32_0 : i32, i32, i32
  }
  func.func @transform_1(%arg0: i32, %arg1: i32) -> (i32, i32, i32) {
    %c0_i32 = arith.constant 0 : i32
    %c0_i32_0 = arith.constant 0 : i32
    return %arg0, %arg1, %c0_i32 : i32, i32, i32
  }
  func.func @transform_2(%arg0: i32, %arg1: i32) -> (i32, i32, i32) {
    %c1_i32 = arith.constant 1 : i32
    %0 = arith.addi %arg1, %c1_i32 : i32
    %c0_i32 = arith.constant 0 : i32
    %1 = arith.minsi %0, %c0_i32 : i32
    %c0_i32_0 = arith.constant 0 : i32
    %c0_i32_1 = arith.constant 0 : i32
    return %arg0, %1, %c0_i32_0 : i32, i32, i32
  }
  func.func @transform_3(%arg0: i32, %arg1: i32) -> (i32, i32) {
    %c1_i32 = arith.constant 1 : i32
    %0 = arith.subi %arg1, %c1_i32 : i32
    %c0_i32 = arith.constant 0 : i32
    %1 = arith.maxsi %0, %c0_i32 : i32
    %c0_i32_0 = arith.constant 0 : i32
    %c0_i32_1 = arith.constant 0 : i32
    return %1, %c0_i32_0 : i32, i32
  }
  func.func @transform_4(%arg0: i32, %arg1: i32) -> (i32, i32) {
    %c0_i32 = arith.constant 0 : i32
    %c0_i32_0 = arith.constant 0 : i32
    return %arg1, %c0_i32 : i32, i32
  }
  func.func @transform_5(%arg0: i32, %arg1: i32) -> (i32, i32) {
    %c1_i32 = arith.constant 1 : i32
    %0 = arith.addi %arg1, %c1_i32 : i32
    %c0_i32 = arith.constant 0 : i32
    %1 = arith.minsi %0, %c0_i32 : i32
    %c0_i32_0 = arith.constant 0 : i32
    %c0_i32_1 = arith.constant 0 : i32
    return %1, %c0_i32_0 : i32, i32
  }
  func.func @transform_6(%arg0: i32, %arg1: i32) -> (i32, i32) {
    %c0_i32 = arith.constant 0 : i32
    %c0_i32_0 = arith.constant 0 : i32
    %c0_i32_1 = arith.constant 0 : i32
    return %c0_i32, %c0_i32_0 : i32, i32
  }
  func.func @transform_7(%arg0: i32, %arg1: i32) -> (i32, i32) {
    %c0_i32 = arith.constant 0 : i32
    %c0_i32_0 = arith.constant 0 : i32
    %c0_i32_1 = arith.constant 0 : i32
    return %c0_i32, %c0_i32_0 : i32, i32
  }
  func.func @transform_8(%arg0: i32, %arg1: i32) -> (i32, i32) {
    %c0_i32 = arith.constant 0 : i32
    %c0_i32_0 = arith.constant 0 : i32
    %c0_i32_1 = arith.constant 0 : i32
    return %c0_i32, %c0_i32_0 : i32, i32
  }
  func.func @transform_9(%arg0: i32, %arg1: i32) -> (i32, i32) {
    %c0_i32 = arith.constant 0 : i32
    %c0_i32_0 = arith.constant 0 : i32
    %c0_i32_1 = arith.constant 0 : i32
    return %c0_i32, %c0_i32_0 : i32, i32
  }
  func.func @transform_10(%arg0: i32, %arg1: i32) -> (i32, i32) {
    %c0_i32 = arith.constant 0 : i32
    %c0_i32_0 = arith.constant 0 : i32
    %c0_i32_1 = arith.constant 0 : i32
    return %c0_i32, %c0_i32_0 : i32, i32
  }
  func.func @transform_11(%arg0: i32, %arg1: i32) -> (i32, i32) {
    %c0_i32 = arith.constant 0 : i32
    %c0_i32_0 = arith.constant 0 : i32
    %c0_i32_1 = arith.constant 0 : i32
    return %c0_i32, %c0_i32_0 : i32, i32
  }
  func.func @transform_12(%arg0: i32, %arg1: i32) -> (i32, i32, i32) {
    %c0_i32 = arith.constant 0 : i32
    %c0_i32_0 = arith.constant 0 : i32
    return %arg0, %arg1, %c0_i32 : i32, i32, i32
  }
}

</mosaic_0001>

<llo_original>
// kernel: c3_forward.5
$region0: #{c3_forward.5}
  #allocation0 [shape = 'u32[]', space=smem, size = 0x4, offset = 0x4, fixed_abs, tag = 'smem constant byte address 0x4 - core index']
  #allocation1 [shape = 'u32[144,128]{1,0:T(1,128)}', space=vmem, size = 0x12000, scoped, tag = 'internal scratch']
  %s0 = inlined_call_operand.vmem [shape: bf16[2,432,8], index: 0, kind: input, shape index: {}]
  %s1 = inlined_call_operand.vmem [shape: bf16[8,8], index: 1, kind: input, shape index: {}]
  %s2 = inlined_call_operand.vmem [shape: f32[1,8], index: 2, kind: input, shape index: {}]
  %s3 = inlined_call_operand.vmem [shape: f32[1,8], index: 3, kind: input, shape index: {}]
  %s4 = inlined_call_operand.vmem [shape: f32[2,432,8], index: 4, kind: output, shape index: {}]
  %s5 = sld [smem:[#allocation0]]
  $region49: #{c3_forward.5} parent=0
    _
  %s7 = ssub.s32 1, %s5
  %s8 = scalar_select 0, %s7, %s5
  loop: start=0, step=1, limit=4
  $region2: #{c3_forward.5} parent=0 // loop_pre_header
    _
  $region3: #{c3_forward.5} parent=0 // loop_header
    %s10 = sphi 0, %s14
    %p11 = scmp.ge.s32.totalorder %s10, 4
    %s17 = sphi 0, %s29
    %s18 = sphi 0, %s25
    %s19 = sphi 0, %s17
    %s20 = sphi 0, %s18
    %s21 = sphi 0, %s19
    %s22 = sphi 0, %s20
    %s34 = sphi 0, %s36
    %s37 = sphi 0, %s34
    %s38 = sphi 0, %s37
    %s54 = sphi 0, %s38
    %s58 = sphi 0, %s58
    %s60 = sphi 0, %s58
    %s61 = sphi 0, %s60
    %s75 = sphi 0, %s61
    %s79 = sphi 0, %s79
    %s81 = sphi 0, %s79
    %s82 = sphi 0, %s81
    %s96 = sphi 0, %s82
    %s100 = sphi 0, %s100
    %s102 = sphi 0, %s100
    %s103 = sphi 0, %s102
    %s117 = sphi 0, %s103
    %s125 = sphi 0, %s127
    %s128 = sphi 0, %s125
    %s129 = sphi 0, %s128
    %s145 = sphi 0, %s129
  $region4: #{c3_forward.5} parent=0 // loop_header_branch
    %13 = sbr.rel (%p11) target = $region8
  $region5: #{c3_forward.5} parent=0 // loop_body
    %s15 = ssub.s32 %s10, 1
    %s16 = ssub.s32 %s10, 2
    %s23 = sadd.s32 1, %s18
    %p24 = scmp.ge.s32.totalorder %s23, 1
    %s25 = scalar_select %p24, 0, %s23
    %s26 = sadd.s32 1, %s17
    %s27 = scalar_select %p24, %s26, %s17
    %p28 = scmp.ge.s32.totalorder %s27, 2
    %s29 = scalar_select %p28, 0, %s27
    %s30 = ssub.s32 %s17, %s29
    %s31 = ssub.s32 %s18, %s25
    %s32 = sor.u32 %s30, %s31
    %p33 = scmp.eq.s32.totalorder %s32, 0
    %s35 = sadd.s32 %s34, 1
    %s36 = scalar_select %p33, %s34, %s35
    %p39 = pneg %p33
    %p40 = scmp.eq.s32.totalorder %s10, 1
    %p41 = por %p39, %p40
    %p42 = scmp.ne.s32.totalorder %s34, %s37
    %p43 = scmp.eq.s32.totalorder %s10, 0
    %p44 = por %p42, %p43
    %p45 = scmp.ne.s32.totalorder %s34, %s37
    %p46 = scmp.eq.s32.totalorder %s15, 1
    %p47 = por %p45, %p46
    %p48 = scmp.ne.s32.totalorder %s37, %s38
    %p49 = scmp.eq.s32.totalorder %s15, 0
    %p50 = por %p48, %p49
    %p51 = scmp.ne.s32.totalorder %s37, %s38
    %p52 = scmp.eq.s32.totalorder %s16, 1
    %p53 = por %p51, %p52
    %p55 = scmp.ne.s32.totalorder %s38, %s54
    %p56 = scmp.eq.s32.totalorder %s16, 0
    %p57 = por %p55, %p56
    %s59 = sadd.s32 %s58, 1
    %p62 = scmp.eq.s32.totalorder %s10, 1
    %p63 = scmp.ne.s32.totalorder %s58, %s60
    %p64 = scmp.eq.s32.totalorder %s10, 0
    %p65 = por %p63, %p64
    %p66 = scmp.ne.s32.totalorder %s58, %s60
    %p67 = scmp.eq.s32.totalorder %s15, 1
    %p68 = por %p66, %p67
    %p69 = scmp.ne.s32.totalorder %s60, %s61
    %p70 = scmp.eq.s32.totalorder %s15, 0
    %p71 = por %p69, %p70
    %p72 = scmp.ne.s32.totalorder %s60, %s61
    %p73 = scmp.eq.s32.totalorder %s16, 1
    %p74 = por %p72, %p73
    %p76 = scmp.ne.s32.totalorder %s61, %s75
    %p77 = scmp.eq.s32.totalorder %s16, 0
    %p78 = por %p76, %p77
    %s80 = sadd.s32 %s79, 1
    %p83 = scmp.eq.s32.totalorder %s10, 1
    %p84 = scmp.ne.s32.totalorder %s79, %s81
    %p85 = scmp.eq.s32.totalorder %s10, 0
    %p86 = por %p84, %p85
    %p87 = scmp.ne.s32.totalorder %s79, %s81
    %p88 = scmp.eq.s32.totalorder %s15, 1
    %p89 = por %p87, %p88
    %p90 = scmp.ne.s32.totalorder %s81, %s82
    %p91 = scmp.eq.s32.totalorder %s15, 0
    %p92 = por %p90, %p91
    %p93 = scmp.ne.s32.totalorder %s81, %s82
    %p94 = scmp.eq.s32.totalorder %s16, 1
    %p95 = por %p93, %p94
    %p97 = scmp.ne.s32.totalorder %s82, %s96
    %p98 = scmp.eq.s32.totalorder %s16, 0
    %p99 = por %p97, %p98
    %s101 = sadd.s32 %s100, 1
    %p104 = scmp.eq.s32.totalorder %s10, 1
    %p105 = scmp.ne.s32.totalorder %s100, %s102
    %p106 = scmp.eq.s32.totalorder %s10, 0
    %p107 = por %p105, %p106
    %p108 = scmp.ne.s32.totalorder %s100, %s102
    %p109 = scmp.eq.s32.totalorder %s15, 1
    %p110 = por %p108, %p109
    %p111 = scmp.ne.s32.totalorder %s102, %s103
    %p112 = scmp.eq.s32.totalorder %s15, 0
    %p113 = por %p111, %p112
    %p114 = scmp.ne.s32.totalorder %s102, %s103
    %p115 = scmp.eq.s32.totalorder %s16, 1
    %p116 = por %p114, %p115
    %p118 = scmp.ne.s32.totalorder %s103, %s117
    %p119 = scmp.eq.s32.totalorder %s16, 0
    %p120 = por %p118, %p119
    %s121 = ssub.s32 %s17, %s29
    %s122 = ssub.s32 %s18, %s25
    %s123 = sor.u32 %s121, %s122
    %p124 = scmp.eq.s32.totalorder %s123, 0
    %s126 = sadd.s32 %s125, 1
    %s127 = scalar_select %p124, %s125, %s126
    %p130 = pneg %p124
    %p131 = scmp.eq.s32.totalorder %s10, 1
    %p132 = por %p130, %p131
    %p133 = scmp.ne.s32.totalorder %s125, %s128
    %p134 = scmp.eq.s32.totalorder %s10, 0
    %p135 = por %p133, %p134
    %p136 = scmp.ne.s32.totalorder %s125, %s128
    %p137 = scmp.eq.s32.totalorder %s15, 1
    %p138 = por %p136, %p137
    %p139 = scmp.ne.s32.totalorder %s128, %s129
    %p140 = scmp.eq.s32.totalorder %s15, 0
    %p141 = por %p139, %p140
    %p142 = scmp.ne.s32.totalorder %s128, %s129
    %p143 = scmp.eq.s32.totalorder %s16, 1
    %p144 = por %p142, %p143
    %p146 = scmp.ne.s32.totalorder %s129, %s145
    %p147 = scmp.eq.s32.totalorder %s16, 0
    %p148 = por %p146, %p147
    %p149 = scmp.le.s32.totalorder 1, %s10
    %p150 = scmp.lt.s32.totalorder %s10, 3
    %p151 = pnand %p149, %p150
    %p152 = pneg %p151
    // Predicated region
    $region9: #{c3_forward.5} parent=5 // pred_check
      _
    $region10: #{c3_forward.5} parent=5 // pred_check_branch
      %154 = sbr.rel (%p151) target = $region12
    $region11: #{c3_forward.5} parent=5 // pred_region
      %s155 = ssub.s32 %s10, 1
      // Predicated region
      $region13: #{c3_forward.5} parent=11 // pred_check
        %p156 = pneg %p71
      $region14: #{c3_forward.5} parent=11 // pred_check_branch
        %158 = sbr.rel (%p156) target = $region16
      $region15: #{c3_forward.5} parent=11 // pred_region
        _
      $region16: #{c3_forward.5} parent=11 // pred_fallthru
        _
      // Predicated region
      $region17: #{c3_forward.5} parent=11 // pred_check
        %p159 = pneg %p92
      $region18: #{c3_forward.5} parent=11 // pred_check_branch
        %161 = sbr.rel (%p159) target = $region20
      $region19: #{c3_forward.5} parent=11 // pred_region
        _
      $region20: #{c3_forward.5} parent=11 // pred_fallthru
        _
      // Predicated region
      $region21: #{c3_forward.5} parent=11 // pred_check
        %p162 = pneg %p113
      $region22: #{c3_forward.5} parent=11 // pred_check_branch
        %164 = sbr.rel (%p162) target = $region24
      $region23: #{c3_forward.5} parent=11 // pred_region
        _
      $region24: #{c3_forward.5} parent=11 // pred_fallthru
        _
    $region12: #{c3_forward.5} parent=5 // pred_fallthru
      _
    %p165 = scmp.lt.s32.totalorder %s10, 2
    // Predicated region
    $region25: #{c3_forward.5} parent=5 // pred_check
      %p166 = pneg %p165
    $region26: #{c3_forward.5} parent=5 // pred_check_branch
      %168 = sbr.rel (%p166) target = $region28
    $region27: #{c3_forward.5} parent=5 // pred_region
      // Predicated region
      $region29: #{c3_forward.5} parent=27 // pred_check
        %p169 = pneg %p44
      $region30: #{c3_forward.5} parent=27 // pred_check_branch
        %171 = sbr.rel (%p169) target = $region32
      $region31: #{c3_forward.5} parent=27 // pred_region
        %s172 = smul.u32 54, %s18
        %p173 = scmp.lt.s32.totalorder %s17, 1
        %s174 = scalar_select %p173, %s17, 1
        %p175 = scmp.lt.s32.totalorder %s172, 53
        %s176 = scalar_select %p175, %s172, 53
        %s177 = smul.addr %s174, 54
        %s178 = sadd.s32 %s176, %s177
        %s179 = smul.addr %s178, 4
        %s180 = scalar_lea.vmem %s0, %s179
        %s181 = smul.u32 54, %s18
      $region32: #{c3_forward.5} parent=27 // pred_fallthru
        _
    $region28: #{c3_forward.5} parent=5 // pred_fallthru
      _
    %p182 = scmp.le.s32.totalorder 1, %s10
    %p183 = scmp.lt.s32.totalorder %s10, 3
    %p184 = pnand %p182, %p183
    %p185 = pneg %p184
    // Predicated region
    $region33: #{c3_forward.5} parent=5 // pred_check
      _
    $region34: #{c3_forward.5} parent=5 // pred_check_branch
      %187 = sbr.rel (%p184) target = $region36
    $region35: #{c3_forward.5} parent=5 // pred_region
      %s188 = ssub.s32 %s10, 1
      %s189 = smul.u32 54, %s20
      %p190 = scmp.lt.s32.totalorder %s19, 1
      %s191 = scalar_select %p190, %s19, 1
      %p192 = scmp.lt.s32.totalorder %s189, 53
      %s193 = scalar_select %p192, %s189, 53
      %s194 = smul.addr %s191, 54
      %s195 = sadd.s32 %s193, %s194
      %s196 = smul.addr %s195, 4
      %s197 = scalar_lea.vmem %s0, %s196
      %p198 = pneg %p50
      %p199 = pneg %p47
      %p200 = pneg %p71
      %p201 = pneg %p68
      %p202 = pneg %p92
      %p203 = pneg %p89
      %p204 = pneg %p113
      %p205 = pneg %p110
      %p206 = pneg %p141
      %p207 = pneg %p138
      %s208 = smul.u32 54, %s20
      %p209 = scmp.lt.s32.totalorder %s19, 1
      %s210 = scalar_select %p209, %s19, 1
      %p211 = scmp.lt.s32.totalorder %s208, 53
      %s212 = scalar_select %p211, %s208, 53
      %s213 = smul.addr %s210, 54
      %s214 = sadd.s32 %s212, %s213
      %s215 = smul.addr %s214, 8
      %s216 = scalar_lea.vmem %s4, %s215
      %s217 = smul.u32 54, %s20
      %p218 = scmp.lt.s32.totalorder %s19, 1
      %s219 = scalar_select %p218, %s19, 1
      %p220 = scmp.lt.s32.totalorder %s217, 53
      %s221 = scalar_select %p220, %s217, 53
      %s222 = smul.addr %s219, 54
      %s223 = sadd.s32 %s221, %s222
      %s224 = smul.addr %s223, 4
      %s225 = scalar_lea.vmem %s0, %s224
      %s226 = smul.u32 54, %s20
      %s227 = smul.u32 54, %s20
      %p228 = scmp.lt.s32.totalorder %s19, 1
      %s229 = scalar_select %p228, %s19, 1
      %p230 = scmp.lt.s32.totalorder %s227, 53
      %s231 = scalar_select %p230, %s227, 53
      %s232 = smul.addr %s229, 54
      %s233 = sadd.s32 %s231, %s232
      %s234 = smul.addr %s233, 8
      %s235 = scalar_lea.vmem %s4, %s234
      %s236 = smul.u32 54, %s20
      %v238 = vld [vmem:[%s225] sm:$0xf]
      %v239 = vld [vmem:[%s225 + $0x4] sm:$0xf]
      %v240 = vld [vmem:[%s225 + $0x8] sm:$0xf]
      %v241 = vld [vmem:[%s225 + $0xc] sm:$0xf]
      %v242 = vld [vmem:[%s225 + $0x10] sm:$0xf]
      %v243 = vld [vmem:[%s225 + $0x14] sm:$0xf]
      %v244 = vld [vmem:[%s225 + $0x18] sm:$0xf]
      %v245 = vld [vmem:[%s225 + $0x1c] sm:$0xf]
      %v246 = vld [vmem:[%s225 + $0x20] sm:$0xf]
      %v247 = vld [vmem:[%s225 + $0x24] sm:$0xf]
      %v248 = vld [vmem:[%s225 + $0x28] sm:$0xf]
      %v249 = vld [vmem:[%s225 + $0x2c] sm:$0xf]
      %v250 = vld [vmem:[%s225 + $0x30] sm:$0xf]
      %v251 = vld [vmem:[%s225 + $0x34] sm:$0xf]
      %v252 = vld [vmem:[%s225 + $0x38] sm:$0xf]
      %v253 = vld [vmem:[%s225 + $0x3c] sm:$0xf]
      %v254 = vld [vmem:[%s225 + $0x40] sm:$0xf]
      %v255 = vld [vmem:[%s225 + $0x44] sm:$0xf]
      %v256 = vld [vmem:[%s225 + $0x48] sm:$0xf]
      %v257 = vld [vmem:[%s225 + $0x4c] sm:$0xf]
      %v258 = vld [vmem:[%s225 + $0x50] sm:$0xf]
      %v259 = vld [vmem:[%s225 + $0x54] sm:$0xf]
      %v260 = vld [vmem:[%s225 + $0x58] sm:$0xf]
      %v261 = vld [vmem:[%s225 + $0x5c] sm:$0xf]
      %v262 = vld [vmem:[%s225 + $0x60] sm:$0xf]
      %v263 = vld [vmem:[%s225 + $0x64] sm:$0xf]
      %v264 = vld [vmem:[%s225 + $0x68] sm:$0xf]
      %v265 = vld [vmem:[%s225 + $0x6c] sm:$0xf]
      %v266 = vld [vmem:[%s225 + $0x70] sm:$0xf]
      %v267 = vld [vmem:[%s225 + $0x74] sm:$0xf]
      %v268 = vld [vmem:[%s225 + $0x78] sm:$0xf]
      %v269 = vld [vmem:[%s225 + $0x7c] sm:$0xf]
      %v270 = vld [vmem:[%s225 + $0x80] sm:$0xf]
      %v271 = vld [vmem:[%s225 + $0x84] sm:$0xf]
      %v272 = vld [vmem:[%s225 + $0x88] sm:$0xf]
      %v273 = vld [vmem:[%s225 + $0x8c] sm:$0xf]
      %v274 = vld [vmem:[%s225 + $0x90] sm:$0xf]
      %v275 = vld [vmem:[%s225 + $0x94] sm:$0xf]
      %v276 = vld [vmem:[%s225 + $0x98] sm:$0xf]
      %v277 = vld [vmem:[%s225 + $0x9c] sm:$0xf]
      %v278 = vld [vmem:[%s225 + $0xa0] sm:$0xf]
      %v279 = vld [vmem:[%s225 + $0xa4] sm:$0xf]
      %v280 = vld [vmem:[%s225 + $0xa8] sm:$0xf]
      %v281 = vld [vmem:[%s225 + $0xac] sm:$0xf]
      %v282 = vld [vmem:[%s225 + $0xb0] sm:$0xf]
      %v283 = vld [vmem:[%s225 + $0xb4] sm:$0xf]
      %v284 = vld [vmem:[%s225 + $0xb8] sm:$0xf]
      %v285 = vld [vmem:[%s225 + $0xbc] sm:$0xf]
      %v286 = vld [vmem:[%s225 + $0xc0] sm:$0xf]
      %v287 = vld [vmem:[%s225 + $0xc4] sm:$0xf]
      %v288 = vld [vmem:[%s225 + $0xc8] sm:$0xf]
      %v289 = vld [vmem:[%s225 + $0xcc] sm:$0xf]
      %v290 = vld [vmem:[%s225 + $0xd0] sm:$0xf]
      %v291 = vld [vmem:[%s225 + $0xd4] sm:$0xf]
      %v292 = vld [vmem:[%s1] sm:$0xf]
      %v347 = vunpack.c.l.b16 %v238
      %v348 = vunpack.c.l.b16 %v239
      %v349 = vunpack.c.l.b16 %v240
      %v350 = vunpack.c.l.b16 %v241
      %v351 = vunpack.c.l.b16 %v242
      %v352 = vunpack.c.l.b16 %v243
      %v353 = vunpack.c.l.b16 %v244
      %v354 = vunpack.c.l.b16 %v245
      %v355 = vunpack.c.l.b16 %v246
      %v356 = vunpack.c.l.b16 %v247
      %v357 = vunpack.c.l.b16 %v248
      %v358 = vunpack.c.l.b16 %v249
      %v359 = vunpack.c.l.b16 %v250
      %v360 = vunpack.c.l.b16 %v251
      %v361 = vunpack.c.l.b16 %v252
      %v362 = vunpack.c.l.b16 %v253
      %v363 = vunpack.c.l.b16 %v254
      %v364 = vunpack.c.l.b16 %v255
      %v365 = vunpack.c.l.b16 %v256
      %v366 = vunpack.c.l.b16 %v257
      %v367 = vunpack.c.l.b16 %v258
      %v368 = vunpack.c.l.b16 %v259
      %v369 = vunpack.c.l.b16 %v260
      %v370 = vunpack.c.l.b16 %v261
      %v371 = vunpack.c.l.b16 %v262
      %v372 = vunpack.c.l.b16 %v263
      %v373 = vunpack.c.l.b16 %v264
      %v374 = vunpack.c.l.b16 %v265
      %v375 = vunpack.c.l.b16 %v266
      %v376 = vunpack.c.l.b16 %v267
      %v377 = vunpack.c.l.b16 %v268
      %v378 = vunpack.c.l.b16 %v269
      %v379 = vunpack.c.l.b16 %v270
      %v380 = vunpack.c.l.b16 %v271
      %v381 = vunpack.c.l.b16 %v272
      %v382 = vunpack.c.l.b16 %v273
      %v383 = vunpack.c.l.b16 %v274
      %v384 = vunpack.c.l.b16 %v275
      %v385 = vunpack.c.l.b16 %v276
      %v386 = vunpack.c.l.b16 %v277
      %v387 = vunpack.c.l.b16 %v278
      %v388 = vunpack.c.l.b16 %v279
      %v389 = vunpack.c.l.b16 %v280
      %v390 = vunpack.c.l.b16 %v281
      %v391 = vunpack.c.l.b16 %v282
      %v392 = vunpack.c.l.b16 %v283
      %v393 = vunpack.c.l.b16 %v284
      %v394 = vunpack.c.l.b16 %v285
      %v395 = vunpack.c.l.b16 %v286
      %v396 = vunpack.c.l.b16 %v287
      %v397 = vunpack.c.l.b16 %v288
      %v398 = vunpack.c.l.b16 %v289
      %v399 = vunpack.c.l.b16 %v290
      %v400 = vunpack.c.l.b16 %v291
      %v401 = vpack.c.b16 %v348, %v347
      %v402 = vpack.c.b16 %v350, %v349
      %v403 = vpack.c.b16 %v352, %v351
      %v404 = vpack.c.b16 %v354, %v353
      %v405 = vpack.c.b16 %v356, %v355
      %v406 = vpack.c.b16 %v358, %v357
      %v407 = vpack.c.b16 %v360, %v359
      %v408 = vpack.c.b16 %v362, %v361
      %v409 = vpack.c.b16 %v364, %v363
      %v410 = vpack.c.b16 %v366, %v365
      %v411 = vpack.c.b16 %v368, %v367
      %v412 = vpack.c.b16 %v370, %v369
      %v413 = vpack.c.b16 %v372, %v371
      %v414 = vpack.c.b16 %v374, %v373
      %v415 = vpack.c.b16 %v376, %v375
      %v416 = vpack.c.b16 %v378, %v377
      %v417 = vpack.c.b16 %v380, %v379
      %v418 = vpack.c.b16 %v382, %v381
      %v419 = vpack.c.b16 %v384, %v383
      %v420 = vpack.c.b16 %v386, %v385
      %v421 = vpack.c.b16 %v388, %v387
      %v422 = vpack.c.b16 %v390, %v389
      %v423 = vpack.c.b16 %v392, %v391
      %v424 = vpack.c.b16 %v394, %v393
      %v425 = vpack.c.b16 %v396, %v395
      %v426 = vpack.c.b16 %v398, %v397
      %v427 = vpack.c.b16 %v400, %v399
      %vm428 = vcmask 64512
      %v430 = vsel %vm428, %v401, 0
      %v433 = vsel %vm428, %v402, 0
      %v436 = vsel %vm428, %v403, 0
      %v439 = vsel %vm428, %v404, 0
      %v442 = vsel %vm428, %v405, 0
      %v445 = vsel %vm428, %v406, 0
      %v448 = vsel %vm428, %v407, 0
      %v451 = vsel %vm428, %v408, 0
      %v454 = vsel %vm428, %v409, 0
      %v457 = vsel %vm428, %v410, 0
      %v460 = vsel %vm428, %v411, 0
      %v463 = vsel %vm428, %v412, 0
      %v466 = vsel %vm428, %v413, 0
      %v469 = vsel %vm428, %v414, 0
      %v472 = vsel %vm428, %v415, 0
      %v475 = vsel %vm428, %v416, 0
      %v478 = vsel %vm428, %v417, 0
      %v481 = vsel %vm428, %v418, 0
      %v484 = vsel %vm428, %v419, 0
      %v487 = vsel %vm428, %v420, 0
      %v490 = vsel %vm428, %v421, 0
      %v493 = vsel %vm428, %v422, 0
      %v496 = vsel %vm428, %v423, 0
      %v499 = vsel %vm428, %v424, 0
      %v502 = vsel %vm428, %v425, 0
      %v505 = vsel %vm428, %v426, 0
      %v508 = vsel %vm428, %v427, 0
      %vm510 = vcmask 1043456
      %v512 = vsel %vm510, %v292, 0
      %514 = vmatprep.subr.bf16.mxu0 0
      %515 = vmatpush1.bf16.msra.mxu0 %v512
      %516 = vmatprep.subr.bf16.mxu0 0
      %517 = vmatpush1.bf16.msra.mxu0 0
      %518 = vmatprep.subr.bf16.mxu0 0
      %519 = vmatpush1.bf16.msra.mxu0 0
      %520 = vmatprep.subr.bf16.mxu0 0
      %521 = vmatpush1.bf16.msra.mxu0 0
      %522 = vmatprep.subr.bf16.mxu0 0
      %523 = vmatpush1.bf16.msra.mxu0 0
      %524 = vmatprep.subr.bf16.mxu0 0
      %525 = vmatpush1.bf16.msra.mxu0 0
      %526 = vmatprep.subr.bf16.mxu0 0
      %527 = vmatpush1.bf16.msra.mxu0 0
      %528 = vmatprep.subr.bf16.mxu0 0
      %529 = vmatpush1.bf16.msra.mxu0 0
      %530 = vmatprep.subr.bf16.mxu0 0
      %531 = vmatpush1.bf16.msra.mxu0 0
      %532 = vmatprep.subr.bf16.mxu0 0
      %533 = vmatpush1.bf16.msra.mxu0 0
      %534 = vmatprep.subr.bf16.mxu0 0
      %535 = vmatpush1.bf16.msra.mxu0 0
      %536 = vmatprep.subr.bf16.mxu0 0
      %537 = vmatpush1.bf16.msra.mxu0 0
      %538 = vmatprep.subr.bf16.mxu0 0
      %539 = vmatpush1.bf16.msra.mxu0 0
      %540 = vmatprep.subr.bf16.mxu0 0
      %541 = vmatpush1.bf16.msra.mxu0 0
      %542 = vmatprep.subr.bf16.mxu0 0
      %543 = vmatpush1.bf16.msra.mxu0 0
      %544 = vmatprep.subr.bf16.mxu0 0
      %545 = vmatpush1.bf16.msra.mxu0 0
      %546 = vmatprep.mubr.bf16.mxu0 0
      %547 = vmatmul.mubr.bf16.gmra.mrb[0].mxu0 %v430
      %v548 = vpop.f32.mrb[0].mxu0
      %v549 = vadd.f32 0.0, %v548
      %v550 = vpop.f32.mrb[0].mxu0
      %v551 = vpop.f32.mrb[0].mxu0
      %v552 = vadd.f32 0.0, %v551
      %v553 = vpop.f32.mrb[0].mxu0
      %554 = vmatprep.mubr.bf16.mxu0 0
      %555 = vmatmul.mubr.bf16.gmra.mrb[0].mxu0 %v433
      %v556 = vpop.f32.mrb[0].mxu0
      %v557 = vadd.f32 0.0, %v556
      %v558 = vpop.f32.mrb[0].mxu0
      %v559 = vpop.f32.mrb[0].mxu0
      %v560 = vadd.f32 0.0, %v559
      %v561 = vpop.f32.mrb[0].mxu0
      %562 = vmatprep.mubr.bf16.mxu0 0
      %563 = vmatmul.mubr.bf16.gmra.mrb[0].mxu0 %v436
      %v564 = vpop.f32.mrb[0].mxu0
      %v565 = vadd.f32 0.0, %v564
      %v566 = vpop.f32.mrb[0].mxu0
      %v567 = vpop.f32.mrb[0].mxu0
      %v568 = vadd.f32 0.0, %v567
      %v569 = vpop.f32.mrb[0].mxu0
      %570 = vmatprep.mubr.bf16.mxu0 0
      %571 = vmatmul.mubr.bf16.gmra.mrb[0].mxu0 %v439
      %v572 = vpop.f32.mrb[0].mxu0
      %v573 = vadd.f32 0.0, %v572
      %v574 = vpop.f32.mrb[0].mxu0
      %v575 = vpop.f32.mrb[0].mxu0
      %v576 = vadd.f32 0.0, %v575
      %v577 = vpop.f32.mrb[0].mxu0
      %578 = vmatprep.mubr.bf16.mxu0 0
      %579 = vmatmul.mubr.bf16.gmra.mrb[0].mxu0 %v442
      %v580 = vpop.f32.mrb[0].mxu0
      %v581 = vadd.f32 0.0, %v580
      %v582 = vpop.f32.mrb[0].mxu0
      %v583 = vpop.f32.mrb[0].mxu0
      %v584 = vadd.f32 0.0, %v583
      %v585 = vpop.f32.mrb[0].mxu0
      %586 = vmatprep.mubr.bf16.mxu0 0
      %587 = vmatmul.mubr.bf16.gmra.mrb[0].mxu0 %v445
      %v588 = vpop.f32.mrb[0].mxu0
      %v589 = vadd.f32 0.0, %v588
      %v590 = vpop.f32.mrb[0].mxu0
      %v591 = vpop.f32.mrb[0].mxu0
      %v592 = vadd.f32 0.0, %v591
      %v593 = vpop.f32.mrb[0].mxu0
      %594 = vmatprep.mubr.bf16.mxu0 0
      %595 = vmatmul.mubr.bf16.gmra.mrb[0].mxu0 %v448
      %v596 = vpop.f32.mrb[0].mxu0
      %v597 = vadd.f32 0.0, %v596
      %v598 = vpop.f32.mrb[0].mxu0
      %v599 = vpop.f32.mrb[0].mxu0
      %v600 = vadd.f32 0.0, %v599
      %v601 = vpop.f32.mrb[0].mxu0
      %602 = vmatprep.mubr.bf16.mxu0 0
      %603 = vmatmul.mubr.bf16.gmra.mrb[0].mxu0 %v451
      %v604 = vpop.f32.mrb[0].mxu0
      %v605 = vadd.f32 0.0, %v604
      %v606 = vpop.f32.mrb[0].mxu0
      %v607 = vpop.f32.mrb[0].mxu0
      %v608 = vadd.f32 0.0, %v607
      %v609 = vpop.f32.mrb[0].mxu0
      %610 = vmatprep.mubr.bf16.mxu0 0
      %611 = vmatmul.mubr.bf16.gmra.mrb[0].mxu0 %v454
      %v612 = vpop.f32.mrb[0].mxu0
      %v613 = vadd.f32 0.0, %v612
      %v614 = vpop.f32.mrb[0].mxu0
      %v615 = vpop.f32.mrb[0].mxu0
      %v616 = vadd.f32 0.0, %v615
      %v617 = vpop.f32.mrb[0].mxu0
      %618 = vmatprep.mubr.bf16.mxu0 0
      %619 = vmatmul.mubr.bf16.gmra.mrb[0].mxu0 %v457
      %v620 = vpop.f32.mrb[0].mxu0
      %v621 = vadd.f32 0.0, %v620
      %v622 = vpop.f32.mrb[0].mxu0
      %v623 = vpop.f32.mrb[0].mxu0
      %v624 = vadd.f32 0.0, %v623
      %v625 = vpop.f32.mrb[0].mxu0
      %626 = vmatprep.mubr.bf16.mxu0 0
      %627 = vmatmul.mubr.bf16.gmra.mrb[0].mxu0 %v460
      %v628 = vpop.f32.mrb[0].mxu0
      %v629 = vadd.f32 0.0, %v628
      %v630 = vpop.f32.mrb[0].mxu0
      %v631 = vpop.f32.mrb[0].mxu0
      %v632 = vadd.f32 0.0, %v631
      %v633 = vpop.f32.mrb[0].mxu0
      %634 = vmatprep.mubr.bf16.mxu0 0
      %635 = vmatmul.mubr.bf16.gmra.mrb[0].mxu0 %v463
      %v636 = vpop.f32.mrb[0].mxu0
      %v637 = vadd.f32 0.0, %v636
      %v638 = vpop.f32.mrb[0].mxu0
      %v639 = vpop.f32.mrb[0].mxu0
      %v640 = vadd.f32 0.0, %v639
      %v641 = vpop.f32.mrb[0].mxu0
      %642 = vmatprep.mubr.bf16.mxu0 0
      %643 = vmatmul.mubr.bf16.gmra.mrb[0].mxu0 %v466
      %v644 = vpop.f32.mrb[0].mxu0
      %v645 = vadd.f32 0.0, %v644
      %v646 = vpop.f32.mrb[0].mxu0
      %v647 = vpop.f32.mrb[0].mxu0
      %v648 = vadd.f32 0.0, %v647
      %v649 = vpop.f32.mrb[0].mxu0
      %650 = vmatprep.mubr.bf16.mxu0 0
      %651 = vmatmul.mubr.bf16.gmra.mrb[0].mxu0 %v469
      %v652 = vpop.f32.mrb[0].mxu0
      %v653 = vadd.f32 0.0, %v652
      %v654 = vpop.f32.mrb[0].mxu0
      %v655 = vpop.f32.mrb[0].mxu0
      %v656 = vadd.f32 0.0, %v655
      %v657 = vpop.f32.mrb[0].mxu0
      %658 = vmatprep.mubr.bf16.mxu0 0
      %659 = vmatmul.mubr.bf16.gmra.mrb[0].mxu0 %v472
      %v660 = vpop.f32.mrb[0].mxu0
      %v661 = vadd.f32 0.0, %v660
      %v662 = vpop.f32.mrb[0].mxu0
      %v663 = vpop.f32.mrb[0].mxu0
      %v664 = vadd.f32 0.0, %v663
      %v665 = vpop.f32.mrb[0].mxu0
      %666 = vmatprep.mubr.bf16.mxu0 0
      %667 = vmatmul.mubr.bf16.gmra.mrb[0].mxu0 %v475
      %v668 = vpop.f32.mrb[0].mxu0
      %v669 = vadd.f32 0.0, %v668
      %v670 = vpop.f32.mrb[0].mxu0
      %v671 = vpop.f32.mrb[0].mxu0
      %v672 = vadd.f32 0.0, %v671
      %v673 = vpop.f32.mrb[0].mxu0
      %674 = vmatprep.mubr.bf16.mxu0 0
      %675 = vmatmul.mubr.bf16.gmra.mrb[0].mxu0 %v478
      %v676 = vpop.f32.mrb[0].mxu0
      %v677 = vadd.f32 0.0, %v676
      %v678 = vpop.f32.mrb[0].mxu0
      %v679 = vpop.f32.mrb[0].mxu0
      %v680 = vadd.f32 0.0, %v679
      %v681 = vpop.f32.mrb[0].mxu0
      %682 = vmatprep.mubr.bf16.mxu0 0
      %683 = vmatmul.mubr.bf16.gmra.mrb[0].mxu0 %v481
      %v684 = vpop.f32.mrb[0].mxu0
      %v685 = vadd.f32 0.0, %v684
      %v686 = vpop.f32.mrb[0].mxu0
      %v687 = vpop.f32.mrb[0].mxu0
      %v688 = vadd.f32 0.0, %v687
      %v689 = vpop.f32.mrb[0].mxu0
      %690 = vmatprep.mubr.bf16.mxu0 0
      %691 = vmatmul.mubr.bf16.gmra.mrb[0].mxu0 %v484
      %v692 = vpop.f32.mrb[0].mxu0
      %v693 = vadd.f32 0.0, %v692
      %v694 = vpop.f32.mrb[0].mxu0
      %v695 = vpop.f32.mrb[0].mxu0
      %v696 = vadd.f32 0.0, %v695
      %v697 = vpop.f32.mrb[0].mxu0
      %698 = vmatprep.mubr.bf16.mxu0 0
      %699 = vmatmul.mubr.bf16.gmra.mrb[0].mxu0 %v487
      %v700 = vpop.f32.mrb[0].mxu0
      %v701 = vadd.f32 0.0, %v700
      %v702 = vpop.f32.mrb[0].mxu0
      %v703 = vpop.f32.mrb[0].mxu0
      %v704 = vadd.f32 0.0, %v703
      %v705 = vpop.f32.mrb[0].mxu0
      %706 = vmatprep.mubr.bf16.mxu0 0
      %707 = vmatmul.mubr.bf16.gmra.mrb[0].mxu0 %v490
      %v708 = vpop.f32.mrb[0].mxu0
      %v709 = vadd.f32 0.0, %v708
      %v710 = vpop.f32.mrb[0].mxu0
      %v711 = vpop.f32.mrb[0].mxu0
      %v712 = vadd.f32 0.0, %v711
      %v713 = vpop.f32.mrb[0].mxu0
      %714 = vmatprep.mubr.bf16.mxu0 0
      %715 = vmatmul.mubr.bf16.gmra.mrb[0].mxu0 %v493
      %v716 = vpop.f32.mrb[0].mxu0
      %v717 = vadd.f32 0.0, %v716
      %v718 = vpop.f32.mrb[0].mxu0
      %v719 = vpop.f32.mrb[0].mxu0
      %v720 = vadd.f32 0.0, %v719
      %v721 = vpop.f32.mrb[0].mxu0
      %722 = vmatprep.mubr.bf16.mxu0 0
      %723 = vmatmul.mubr.bf16.gmra.mrb[0].mxu0 %v496
      %v724 = vpop.f32.mrb[0].mxu0
      %v725 = vadd.f32 0.0, %v724
      %v726 = vpop.f32.mrb[0].mxu0
      %v727 = vpop.f32.mrb[0].mxu0
      %v728 = vadd.f32 0.0, %v727
      %v729 = vpop.f32.mrb[0].mxu0
      %730 = vmatprep.mubr.bf16.mxu0 0
      %731 = vmatmul.mubr.bf16.gmra.mrb[0].mxu0 %v499
      %v732 = vpop.f32.mrb[0].mxu0
      %v733 = vadd.f32 0.0, %v732
      %v734 = vpop.f32.mrb[0].mxu0
      %v735 = vpop.f32.mrb[0].mxu0
      %v736 = vadd.f32 0.0, %v735
      %v737 = vpop.f32.mrb[0].mxu0
      %738 = vmatprep.mubr.bf16.mxu0 0
      %739 = vmatmul.mubr.bf16.gmra.mrb[0].mxu0 %v502
      %v740 = vpop.f32.mrb[0].mxu0
      %v741 = vadd.f32 0.0, %v740
      %v742 = vpop.f32.mrb[0].mxu0
      %v743 = vpop.f32.mrb[0].mxu0
      %v744 = vadd.f32 0.0, %v743
      %v745 = vpop.f32.mrb[0].mxu0
      %746 = vmatprep.mubr.bf16.mxu0 0
      %747 = vmatmul.mubr.bf16.gmra.mrb[0].mxu0 %v505
      %v748 = vpop.f32.mrb[0].mxu0
      %v749 = vadd.f32 0.0, %v748
      %v750 = vpop.f32.mrb[0].mxu0
      %v751 = vpop.f32.mrb[0].mxu0
      %v752 = vadd.f32 0.0, %v751
      %v753 = vpop.f32.mrb[0].mxu0
      %754 = vmatprep.mubr.bf16.mxu0 0
      %755 = vmatmul.mubr.bf16.gmra.mrb[0].mxu0 %v508
      %v756 = vpop.f32.mrb[0].mxu0
      %v757 = vadd.f32 0.0, %v756
      %v758 = vpop.f32.mrb[0].mxu0
      %v759 = vpop.f32.mrb[0].mxu0
      %v760 = vadd.f32 0.0, %v759
      %v761 = vpop.f32.mrb[0].mxu0
      %762 = vdwg.mxu0
      %v763 = vld [vmem:[%s2] sm:$0x1]
      %v765 = vlaneseq
      %v766 = vshrl.u32 %v765, 7
      %v767 = vsub.s32 0, %v766
      %v768 = vrot.slane %v763, %v767
      %v770 = vmul.f32 %v549, %v768
      %v771 = vmul.f32 %v552, %v768
      %v772 = vmul.f32 %v557, %v768
      %v773 = vmul.f32 %v560, %v768
      %v774 = vmul.f32 %v565, %v768
      %v775 = vmul.f32 %v568, %v768
      %v776 = vmul.f32 %v573, %v768
      %v777 = vmul.f32 %v576, %v768
      %v778 = vmul.f32 %v581, %v768
      %v779 = vmul.f32 %v584, %v768
      %v780 = vmul.f32 %v589, %v768
      %v781 = vmul.f32 %v592, %v768
      %v782 = vmul.f32 %v597, %v768
      %v783 = vmul.f32 %v600, %v768
      %v784 = vmul.f32 %v605, %v768
      %v785 = vmul.f32 %v608, %v768
      %v786 = vmul.f32 %v613, %v768
      %v787 = vmul.f32 %v616, %v768
      %v788 = vmul.f32 %v621, %v768
      %v789 = vmul.f32 %v624, %v768
      %v790 = vmul.f32 %v629, %v768
      %v791 = vmul.f32 %v632, %v768
      %v792 = vmul.f32 %v637, %v768
      %v793 = vmul.f32 %v640, %v768
      %v794 = vmul.f32 %v645, %v768
      %v795 = vmul.f32 %v648, %v768
      %v796 = vmul.f32 %v653, %v768
      %v797 = vmul.f32 %v656, %v768
      %v798 = vmul.f32 %v661, %v768
      %v799 = vmul.f32 %v664, %v768
      %v800 = vmul.f32 %v669, %v768
      %v801 = vmul.f32 %v672, %v768
      %v802 = vmul.f32 %v677, %v768
      %v803 = vmul.f32 %v680, %v768
      %v804 = vmul.f32 %v685, %v768
      %v805 = vmul.f32 %v688, %v768
      %v806 = vmul.f32 %v693, %v768
      %v807 = vmul.f32 %v696, %v768
      %v808 = vmul.f32 %v701, %v768
      %v809 = vmul.f32 %v704, %v768
      %v810 = vmul.f32 %v709, %v768
      %v811 = vmul.f32 %v712, %v768
      %v812 = vmul.f32 %v717, %v768
      %v813 = vmul.f32 %v720, %v768
      %v814 = vmul.f32 %v725, %v768
      %v815 = vmul.f32 %v728, %v768
      %v816 = vmul.f32 %v733, %v768
      %v817 = vmul.f32 %v736, %v768
      %v818 = vmul.f32 %v741, %v768
      %v819 = vmul.f32 %v744, %v768
      %v820 = vmul.f32 %v749, %v768
      %v821 = vmul.f32 %v752, %v768
      %v822 = vmul.f32 %v757, %v768
      %v823 = vmul.f32 %v760, %v768
      %v824 = vld [vmem:[%s3] sm:$0x1]
      %v826 = vlaneseq
      %v827 = vshrl.u32 %v826, 7
      %v828 = vsub.s32 0, %v827
      %v829 = vrot.slane %v824, %v828
      %v831 = vadd.f32 %v770, %v829
      %v832 = vadd.f32 %v771, %v829
      %v833 = vadd.f32 %v772, %v829
      %v834 = vadd.f32 %v773, %v829
      %v835 = vadd.f32 %v774, %v829
      %v836 = vadd.f32 %v775, %v829
      %v837 = vadd.f32 %v776, %v829
      %v838 = vadd.f32 %v777, %v829
      %v839 = vadd.f32 %v778, %v829
      %v840 = vadd.f32 %v779, %v829
      %v841 = vadd.f32 %v780, %v829
      %v842 = vadd.f32 %v781, %v829
      %v843 = vadd.f32 %v782, %v829
      %v844 = vadd.f32 %v783, %v829
      %v845 = vadd.f32 %v784, %v829
      %v846 = vadd.f32 %v785, %v829
      %v847 = vadd.f32 %v786, %v829
      %v848 = vadd.f32 %v787, %v829
      %v849 = vadd.f32 %v788, %v829
      %v850 = vadd.f32 %v789, %v829
      %v851 = vadd.f32 %v790, %v829
      %v852 = vadd.f32 %v791, %v829
      %v853 = vadd.f32 %v792, %v829
      %v854 = vadd.f32 %v793, %v829
      %v855 = vadd.f32 %v794, %v829
      %v856 = vadd.f32 %v795, %v829
      %v857 = vadd.f32 %v796, %v829
      %v858 = vadd.f32 %v797, %v829
      %v859 = vadd.f32 %v798, %v829
      %v860 = vadd.f32 %v799, %v829
      %v861 = vadd.f32 %v800, %v829
      %v862 = vadd.f32 %v801, %v829
      %v863 = vadd.f32 %v802, %v829
      %v864 = vadd.f32 %v803, %v829
      %v865 = vadd.f32 %v804, %v829
      %v866 = vadd.f32 %v805, %v829
      %v867 = vadd.f32 %v806, %v829
      %v868 = vadd.f32 %v807, %v829
      %v869 = vadd.f32 %v808, %v829
      %v870 = vadd.f32 %v809, %v829
      %v871 = vadd.f32 %v810, %v829
      %v872 = vadd.f32 %v811, %v829
      %v873 = vadd.f32 %v812, %v829
      %v874 = vadd.f32 %v813, %v829
      %v875 = vadd.f32 %v814, %v829
      %v876 = vadd.f32 %v815, %v829
      %v877 = vadd.f32 %v816, %v829
      %v878 = vadd.f32 %v817, %v829
      %v879 = vadd.f32 %v818, %v829
      %v880 = vadd.f32 %v819, %v829
      %v881 = vadd.f32 %v820, %v829
      %v882 = vadd.f32 %v821, %v829
      %v883 = vadd.f32 %v822, %v829
      %v884 = vadd.f32 %v823, %v829
      %v885 = vand.u32 2147483647, %v831
      %v886 = vand.u32 2147483647, %v832
      %v887 = vand.u32 2147483647, %v833
      %v888 = vand.u32 2147483647, %v834
      %v889 = vand.u32 2147483647, %v835
      %v890 = vand.u32 2147483647, %v836
      %v891 = vand.u32 2147483647, %v837
      %v892 = vand.u32 2147483647, %v838
      %v893 = vand.u32 2147483647, %v839
      %v894 = vand.u32 2147483647, %v840
      %v895 = vand.u32 2147483647, %v841
      %v896 = vand.u32 2147483647, %v842
      %v897 = vand.u32 2147483647, %v843
      %v898 = vand.u32 2147483647, %v844
      %v899 = vand.u32 2147483647, %v845
      %v900 = vand.u32 2147483647, %v846
      %v901 = vand.u32 2147483647, %v847
      %v902 = vand.u32 2147483647, %v848
      %v903 = vand.u32 2147483647, %v849
      %v904 = vand.u32 2147483647, %v850
      %v905 = vand.u32 2147483647, %v851
      %v906 = vand.u32 2147483647, %v852
      %v907 = vand.u32 2147483647, %v853
      %v908 = vand.u32 2147483647, %v854
      %v909 = vand.u32 2147483647, %v855
      %v910 = vand.u32 2147483647, %v856
      %v911 = vand.u32 2147483647, %v857
      %v912 = vand.u32 2147483647, %v858
      %v913 = vand.u32 2147483647, %v859
      %v914 = vand.u32 2147483647, %v860
      %v915 = vand.u32 2147483647, %v861
      %v916 = vand.u32 2147483647, %v862
      %v917 = vand.u32 2147483647, %v863
      %v918 = vand.u32 2147483647, %v864
      %v919 = vand.u32 2147483647, %v865
      %v920 = vand.u32 2147483647, %v866
      %v921 = vand.u32 2147483647, %v867
      %v922 = vand.u32 2147483647, %v868
      %v923 = vand.u32 2147483647, %v869
      %v924 = vand.u32 2147483647, %v870
      %v925 = vand.u32 2147483647, %v871
      %v926 = vand.u32 2147483647, %v872
      %v927 = vand.u32 2147483647, %v873
      %v928 = vand.u32 2147483647, %v874
      %v929 = vand.u32 2147483647, %v875
      %v930 = vand.u32 2147483647, %v876
      %v931 = vand.u32 2147483647, %v877
      %v932 = vand.u32 2147483647, %v878
      %v933 = vand.u32 2147483647, %v879
      %v934 = vand.u32 2147483647, %v880
      %v935 = vand.u32 2147483647, %v881
      %v936 = vand.u32 2147483647, %v882
      %v937 = vand.u32 2147483647, %v883
      %v938 = vand.u32 2147483647, %v884
      %v939 = vsub.f32 0.0, %v885
      %v940 = vsub.f32 0.0, %v886
      %v941 = vsub.f32 0.0, %v887
      %v942 = vsub.f32 0.0, %v888
      %v943 = vsub.f32 0.0, %v889
      %v944 = vsub.f32 0.0, %v890
      %v945 = vsub.f32 0.0, %v891
      %v946 = vsub.f32 0.0, %v892
      %v947 = vsub.f32 0.0, %v893
      %v948 = vsub.f32 0.0, %v894
      %v949 = vsub.f32 0.0, %v895
      %v950 = vsub.f32 0.0, %v896
      %v951 = vsub.f32 0.0, %v897
      %v952 = vsub.f32 0.0, %v898
      %v953 = vsub.f32 0.0, %v899
      %v954 = vsub.f32 0.0, %v900
      %v955 = vsub.f32 0.0, %v901
      %v956 = vsub.f32 0.0, %v902
      %v957 = vsub.f32 0.0, %v903
      %v958 = vsub.f32 0.0, %v904
      %v959 = vsub.f32 0.0, %v905
      %v960 = vsub.f32 0.0, %v906
      %v961 = vsub.f32 0.0, %v907
      %v962 = vsub.f32 0.0, %v908
      %v963 = vsub.f32 0.0, %v909
      %v964 = vsub.f32 0.0, %v910
      %v965 = vsub.f32 0.0, %v911
      %v966 = vsub.f32 0.0, %v912
      %v967 = vsub.f32 0.0, %v913
      %v968 = vsub.f32 0.0, %v914
      %v969 = vsub.f32 0.0, %v915
      %v970 = vsub.f32 0.0, %v916
      %v971 = vsub.f32 0.0, %v917
      %v972 = vsub.f32 0.0, %v918
      %v973 = vsub.f32 0.0, %v919
      %v974 = vsub.f32 0.0, %v920
      %v975 = vsub.f32 0.0, %v921
      %v976 = vsub.f32 0.0, %v922
      %v977 = vsub.f32 0.0, %v923
      %v978 = vsub.f32 0.0, %v924
      %v979 = vsub.f32 0.0, %v925
      %v980 = vsub.f32 0.0, %v926
      %v981 = vsub.f32 0.0, %v927
      %v982 = vsub.f32 0.0, %v928
      %v983 = vsub.f32 0.0, %v929
      %v984 = vsub.f32 0.0, %v930
      %v985 = vsub.f32 0.0, %v931
      %v986 = vsub.f32 0.0, %v932
      %v987 = vsub.f32 0.0, %v933
      %v988 = vsub.f32 0.0, %v934
      %v989 = vsub.f32 0.0, %v935
      %v990 = vsub.f32 0.0, %v936
      %v991 = vsub.f32 0.0, %v937
      %v992 = vsub.f32 0.0, %v938
      %v993 = vmul.f32 %v939, 1.442695
      %v994 = vpow.pop %v993
      %v995 = vmul.f32 %v940, 1.442695
      %v996 = vpow.pop %v995
      %v997 = vmul.f32 %v941, 1.442695
      %v998 = vpow.pop %v997
      %v999 = vmul.f32 %v942, 1.442695
      %v1000 = vpow.pop %v999
      %v1001 = vmul.f32 %v943, 1.442695
      %v1002 = vpow.pop %v1001
      %v1003 = vmul.f32 %v944, 1.442695
      %v1004 = vpow.pop %v1003
      %v1005 = vmul.f32 %v945, 1.442695
      %v1006 = vpow.pop %v1005
      %v1007 = vmul.f32 %v946, 1.442695
      %v1008 = vpow.pop %v1007
      %v1009 = vmul.f32 %v947, 1.442695
      %v1010 = vpow.pop %v1009
      %v1011 = vmul.f32 %v948, 1.442695
      %v1012 = vpow.pop %v1011
      %v1013 = vmul.f32 %v949, 1.442695
      %v1014 = vpow.pop %v1013
      %v1015 = vmul.f32 %v950, 1.442695
      %v1016 = vpow.pop %v1015
      %v1017 = vmul.f32 %v951, 1.442695
      %v1018 = vpow.pop %v1017
      %v1019 = vmul.f32 %v952, 1.442695
      %v1020 = vpow.pop %v1019
      %v1021 = vmul.f32 %v953, 1.442695
      %v1022 = vpow.pop %v1021
      %v1023 = vmul.f32 %v954, 1.442695
      %v1024 = vpow.pop %v1023
      %v1025 = vmul.f32 %v955, 1.442695
      %v1026 = vpow.pop %v1025
      %v1027 = vmul.f32 %v956, 1.442695
      %v1028 = vpow.pop %v1027
      %v1029 = vmul.f32 %v957, 1.442695
      %v1030 = vpow.pop %v1029
      %v1031 = vmul.f32 %v958, 1.442695
      %v1032 = vpow.pop %v1031
      %v1033 = vmul.f32 %v959, 1.442695
      %v1034 = vpow.pop %v1033
      %v1035 = vmul.f32 %v960, 1.442695
      %v1036 = vpow.pop %v1035
      %v1037 = vmul.f32 %v961, 1.442695
      %v1038 = vpow.pop %v1037
      %v1039 = vmul.f32 %v962, 1.442695
      %v1040 = vpow.pop %v1039
      %v1041 = vmul.f32 %v963, 1.442695
      %v1042 = vpow.pop %v1041
      %v1043 = vmul.f32 %v964, 1.442695
      %v1044 = vpow.pop %v1043
      %v1045 = vmul.f32 %v965, 1.442695
      %v1046 = vpow.pop %v1045
      %v1047 = vmul.f32 %v966, 1.442695
      %v1048 = vpow.pop %v1047
      %v1049 = vmul.f32 %v967, 1.442695
      %v1050 = vpow.pop %v1049
      %v1051 = vmul.f32 %v968, 1.442695
      %v1052 = vpow.pop %v1051
      %v1053 = vmul.f32 %v969, 1.442695
      %v1054 = vpow.pop %v1053
      %v1055 = vmul.f32 %v970, 1.442695
      %v1056 = vpow.pop %v1055
      %v1057 = vmul.f32 %v971, 1.442695
      %v1058 = vpow.pop %v1057
      %v1059 = vmul.f32 %v972, 1.442695
      %v1060 = vpow.pop %v1059
      %v1061 = vmul.f32 %v973, 1.442695
      %v1062 = vpow.pop %v1061
      %v1063 = vmul.f32 %v974, 1.442695
      %v1064 = vpow.pop %v1063
      %v1065 = vmul.f32 %v975, 1.442695
      %v1066 = vpow.pop %v1065
      %v1067 = vmul.f32 %v976, 1.442695
      %v1068 = vpow.pop %v1067
      %v1069 = vmul.f32 %v977, 1.442695
      %v1070 = vpow.pop %v1069
      %v1071 = vmul.f32 %v978, 1.442695
      %v1072 = vpow.pop %v1071
      %v1073 = vmul.f32 %v979, 1.442695
      %v1074 = vpow.pop %v1073
      %v1075 = vmul.f32 %v980, 1.442695
      %v1076 = vpow.pop %v1075
      %v1077 = vmul.f32 %v981, 1.442695
      %v1078 = vpow.pop %v1077
      %v1079 = vmul.f32 %v982, 1.442695
      %v1080 = vpow.pop %v1079
      %v1081 = vmul.f32 %v983, 1.442695
      %v1082 = vpow.pop %v1081
      %v1083 = vmul.f32 %v984, 1.442695
      %v1084 = vpow.pop %v1083
      %v1085 = vmul.f32 %v985, 1.442695
      %v1086 = vpow.pop %v1085
      %v1087 = vmul.f32 %v986, 1.442695
      %v1088 = vpow.pop %v1087
      %v1089 = vmul.f32 %v987, 1.442695
      %v1090 = vpow.pop %v1089
      %v1091 = vmul.f32 %v988, 1.442695
      %v1092 = vpow.pop %v1091
      %v1093 = vmul.f32 %v989, 1.442695
      %v1094 = vpow.pop %v1093
      %v1095 = vmul.f32 %v990, 1.442695
      %v1096 = vpow.pop %v1095
      %v1097 = vmul.f32 %v991, 1.442695
      %v1098 = vpow.pop %v1097
      %v1099 = vmul.f32 %v992, 1.442695
      %v1100 = vpow.pop %v1099
      %v1101 = vadd.f32 %v994, 1.0
      %v1102 = vadd.f32 %v996, 1.0
      %v1103 = vadd.f32 %v998, 1.0
      %v1104 = vadd.f32 %v1000, 1.0
      %v1105 = vadd.f32 %v1002, 1.0
      %v1106 = vadd.f32 %v1004, 1.0
      %v1107 = vadd.f32 %v1006, 1.0
      %v1108 = vadd.f32 %v1008, 1.0
      %v1109 = vadd.f32 %v1010, 1.0
      %v1110 = vadd.f32 %v1012, 1.0
      %v1111 = vadd.f32 %v1014, 1.0
      %v1112 = vadd.f32 %v1016, 1.0
      %v1113 = vadd.f32 %v1018, 1.0
      %v1114 = vadd.f32 %v1020, 1.0
      %v1115 = vadd.f32 %v1022, 1.0
      %v1116 = vadd.f32 %v1024, 1.0
      %v1117 = vadd.f32 %v1026, 1.0
      %v1118 = vadd.f32 %v1028, 1.0
      %v1119 = vadd.f32 %v1030, 1.0
      %v1120 = vadd.f32 %v1032, 1.0
      %v1121 = vadd.f32 %v1034, 1.0
      %v1122 = vadd.f32 %v1036, 1.0
      %v1123 = vadd.f32 %v1038, 1.0
      %v1124 = vadd.f32 %v1040, 1.0
      %v1125 = vadd.f32 %v1042, 1.0
      %v1126 = vadd.f32 %v1044, 1.0
      %v1127 = vadd.f32 %v1046, 1.0
      %v1128 = vadd.f32 %v1048, 1.0
      %v1129 = vadd.f32 %v1050, 1.0
      %v1130 = vadd.f32 %v1052, 1.0
      %v1131 = vadd.f32 %v1054, 1.0
      %v1132 = vadd.f32 %v1056, 1.0
      %v1133 = vadd.f32 %v1058, 1.0
      %v1134 = vadd.f32 %v1060, 1.0
      %v1135 = vadd.f32 %v1062, 1.0
      %v1136 = vadd.f32 %v1064, 1.0
      %v1137 = vadd.f32 %v1066, 1.0
      %v1138 = vadd.f32 %v1068, 1.0
      %v1139 = vadd.f32 %v1070, 1.0
      %v1140 = vadd.f32 %v1072, 1.0
      %v1141 = vadd.f32 %v1074, 1.0
      %v1142 = vadd.f32 %v1076, 1.0
      %v1143 = vadd.f32 %v1078, 1.0
      %v1144 = vadd.f32 %v1080, 1.0
      %v1145 = vadd.f32 %v1082, 1.0
      %v1146 = vadd.f32 %v1084, 1.0
      %v1147 = vadd.f32 %v1086, 1.0
      %v1148 = vadd.f32 %v1088, 1.0
      %v1149 = vadd.f32 %v1090, 1.0
      %v1150 = vadd.f32 %v1092, 1.0
      %v1151 = vadd.f32 %v1094, 1.0
      %v1152 = vadd.f32 %v1096, 1.0
      %v1153 = vadd.f32 %v1098, 1.0
      %v1154 = vadd.f32 %v1100, 1.0
      %v1155 = vrcp.pop %v1101
      %v1156 = vrcp.pop %v1102
      %v1157 = vrcp.pop %v1103
      %v1158 = vrcp.pop %v1104
      %v1159 = vrcp.pop %v1105
      %v1160 = vrcp.pop %v1106
      %v1161 = vrcp.pop %v1107
      %v1162 = vrcp.pop %v1108
      %v1163 = vrcp.pop %v1109
      %v1164 = vrcp.pop %v1110
      %v1165 = vrcp.pop %v1111
      %v1166 = vrcp.pop %v1112
      %v1167 = vrcp.pop %v1113
      %v1168 = vrcp.pop %v1114
      %v1169 = vrcp.pop %v1115
      %v1170 = vrcp.pop %v1116
      %v1171 = vrcp.pop %v1117
      %v1172 = vrcp.pop %v1118
      %v1173 = vrcp.pop %v1119
      %v1174 = vrcp.pop %v1120
      %v1175 = vrcp.pop %v1121
      %v1176 = vrcp.pop %v1122
      %v1177 = vrcp.pop %v1123
      %v1178 = vrcp.pop %v1124
      %v1179 = vrcp.pop %v1125
      %v1180 = vrcp.pop %v1126
      %v1181 = vrcp.pop %v1127
      %v1182 = vrcp.pop %v1128
      %v1183 = vrcp.pop %v1129
      %v1184 = vrcp.pop %v1130
      %v1185 = vrcp.pop %v1131
      %v1186 = vrcp.pop %v1132
      %v1187 = vrcp.pop %v1133
      %v1188 = vrcp.pop %v1134
      %v1189 = vrcp.pop %v1135
      %v1190 = vrcp.pop %v1136
      %v1191 = vrcp.pop %v1137
      %v1192 = vrcp.pop %v1138
      %v1193 = vrcp.pop %v1139
      %v1194 = vrcp.pop %v1140
      %v1195 = vrcp.pop %v1141
      %v1196 = vrcp.pop %v1142
      %v1197 = vrcp.pop %v1143
      %v1198 = vrcp.pop %v1144
      %v1199 = vrcp.pop %v1145
      %v1200 = vrcp.pop %v1146
      %v1201 = vrcp.pop %v1147
      %v1202 = vrcp.pop %v1148
      %v1203 = vrcp.pop %v1149
      %v1204 = vrcp.pop %v1150
      %v1205 = vrcp.pop %v1151
      %v1206 = vrcp.pop %v1152
      %v1207 = vrcp.pop %v1153
      %v1208 = vrcp.pop %v1154
      %vm1209 = vcmp.ge.f32.partialorder %v831, 0.0
      %vm1210 = vcmp.ge.f32.partialorder %v832, 0.0
      %vm1211 = vcmp.ge.f32.partialorder %v833, 0.0
      %vm1212 = vcmp.ge.f32.partialorder %v834, 0.0
      %vm1213 = vcmp.ge.f32.partialorder %v835, 0.0
      %vm1214 = vcmp.ge.f32.partialorder %v836, 0.0
      %vm1215 = vcmp.ge.f32.partialorder %v837, 0.0
      %vm1216 = vcmp.ge.f32.partialorder %v838, 0.0
      %vm1217 = vcmp.ge.f32.partialorder %v839, 0.0
      %vm1218 = vcmp.ge.f32.partialorder %v840, 0.0
      %vm1219 = vcmp.ge.f32.partialorder %v841, 0.0
      %vm1220 = vcmp.ge.f32.partialorder %v842, 0.0
      %vm1221 = vcmp.ge.f32.partialorder %v843, 0.0
      %vm1222 = vcmp.ge.f32.partialorder %v844, 0.0
      %vm1223 = vcmp.ge.f32.partialorder %v845, 0.0
      %vm1224 = vcmp.ge.f32.partialorder %v846, 0.0
      %vm1225 = vcmp.ge.f32.partialorder %v847, 0.0
      %vm1226 = vcmp.ge.f32.partialorder %v848, 0.0
      %vm1227 = vcmp.ge.f32.partialorder %v849, 0.0
      %vm1228 = vcmp.ge.f32.partialorder %v850, 0.0
      %vm1229 = vcmp.ge.f32.partialorder %v851, 0.0
      %vm1230 = vcmp.ge.f32.partialorder %v852, 0.0
      %vm1231 = vcmp.ge.f32.partialorder %v853, 0.0
      %vm1232 = vcmp.ge.f32.partialorder %v854, 0.0
      %vm1233 = vcmp.ge.f32.partialorder %v855, 0.0
      %vm1234 = vcmp.ge.f32.partialorder %v856, 0.0
      %vm1235 = vcmp.ge.f32.partialorder %v857, 0.0
      %vm1236 = vcmp.ge.f32.partialorder %v858, 0.0
      %vm1237 = vcmp.ge.f32.partialorder %v859, 0.0
      %vm1238 = vcmp.ge.f32.partialorder %v860, 0.0
      %vm1239 = vcmp.ge.f32.partialorder %v861, 0.0
      %vm1240 = vcmp.ge.f32.partialorder %v862, 0.0
      %vm1241 = vcmp.ge.f32.partialorder %v863, 0.0
      %vm1242 = vcmp.ge.f32.partialorder %v864, 0.0
      %vm1243 = vcmp.ge.f32.partialorder %v865, 0.0
      %vm1244 = vcmp.ge.f32.partialorder %v866, 0.0
      %vm1245 = vcmp.ge.f32.partialorder %v867, 0.0
      %vm1246 = vcmp.ge.f32.partialorder %v868, 0.0
      %vm1247 = vcmp.ge.f32.partialorder %v869, 0.0
      %vm1248 = vcmp.ge.f32.partialorder %v870, 0.0
      %vm1249 = vcmp.ge.f32.partialorder %v871, 0.0
      %vm1250 = vcmp.ge.f32.partialorder %v872, 0.0
      %vm1251 = vcmp.ge.f32.partialorder %v873, 0.0
      %vm1252 = vcmp.ge.f32.partialorder %v874, 0.0
      %vm1253 = vcmp.ge.f32.partialorder %v875, 0.0
      %vm1254 = vcmp.ge.f32.partialorder %v876, 0.0
      %vm1255 = vcmp.ge.f32.partialorder %v877, 0.0
      %vm1256 = vcmp.ge.f32.partialorder %v878, 0.0
      %vm1257 = vcmp.ge.f32.partialorder %v879, 0.0
      %vm1258 = vcmp.ge.f32.partialorder %v880, 0.0
      %vm1259 = vcmp.ge.f32.partialorder %v881, 0.0
      %vm1260 = vcmp.ge.f32.partialorder %v882, 0.0
      %vm1261 = vcmp.ge.f32.partialorder %v883, 0.0
      %vm1262 = vcmp.ge.f32.partialorder %v884, 0.0
      %v1263 = vmul.f32 %v994, %v1155
      %v1264 = vmul.f32 %v996, %v1156
      %v1265 = vmul.f32 %v998, %v1157
      %v1266 = vmul.f32 %v1000, %v1158
      %v1267 = vmul.f32 %v1002, %v1159
      %v1268 = vmul.f32 %v1004, %v1160
      %v1269 = vmul.f32 %v1006, %v1161
      %v1270 = vmul.f32 %v1008, %v1162
      %v1271 = vmul.f32 %v1010, %v1163
      %v1272 = vmul.f32 %v1012, %v1164
      %v1273 = vmul.f32 %v1014, %v1165
      %v1274 = vmul.f32 %v1016, %v1166
      %v1275 = vmul.f32 %v1018, %v1167
      %v1276 = vmul.f32 %v1020, %v1168
      %v1277 = vmul.f32 %v1022, %v1169
      %v1278 = vmul.f32 %v1024, %v1170
      %v1279 = vmul.f32 %v1026, %v1171
      %v1280 = vmul.f32 %v1028, %v1172
      %v1281 = vmul.f32 %v1030, %v1173
      %v1282 = vmul.f32 %v1032, %v1174
      %v1283 = vmul.f32 %v1034, %v1175
      %v1284 = vmul.f32 %v1036, %v1176
      %v1285 = vmul.f32 %v1038, %v1177
      %v1286 = vmul.f32 %v1040, %v1178
      %v1287 = vmul.f32 %v1042, %v1179
      %v1288 = vmul.f32 %v1044, %v1180
      %v1289 = vmul.f32 %v1046, %v1181
      %v1290 = vmul.f32 %v1048, %v1182
      %v1291 = vmul.f32 %v1050, %v1183
      %v1292 = vmul.f32 %v1052, %v1184
      %v1293 = vmul.f32 %v1054, %v1185
      %v1294 = vmul.f32 %v1056, %v1186
      %v1295 = vmul.f32 %v1058, %v1187
      %v1296 = vmul.f32 %v1060, %v1188
      %v1297 = vmul.f32 %v1062, %v1189
      %v1298 = vmul.f32 %v1064, %v1190
      %v1299 = vmul.f32 %v1066, %v1191
      %v1300 = vmul.f32 %v1068, %v1192
      %v1301 = vmul.f32 %v1070, %v1193
      %v1302 = vmul.f32 %v1072, %v1194
      %v1303 = vmul.f32 %v1074, %v1195
      %v1304 = vmul.f32 %v1076, %v1196
      %v1305 = vmul.f32 %v1078, %v1197
      %v1306 = vmul.f32 %v1080, %v1198
      %v1307 = vmul.f32 %v1082, %v1199
      %v1308 = vmul.f32 %v1084, %v1200
      %v1309 = vmul.f32 %v1086, %v1201
      %v1310 = vmul.f32 %v1088, %v1202
      %v1311 = vmul.f32 %v1090, %v1203
      %v1312 = vmul.f32 %v1092, %v1204
      %v1313 = vmul.f32 %v1094, %v1205
      %v1314 = vmul.f32 %v1096, %v1206
      %v1315 = vmul.f32 %v1098, %v1207
      %v1316 = vmul.f32 %v1100, %v1208
      %v1317 = vsel %vm1209, %v1155, %v1263
      %v1318 = vsel %vm1210, %v1156, %v1264
      %v1319 = vsel %vm1211, %v1157, %v1265
      %v1320 = vsel %vm1212, %v1158, %v1266
      %v1321 = vsel %vm1213, %v1159, %v1267
      %v1322 = vsel %vm1214, %v1160, %v1268
      %v1323 = vsel %vm1215, %v1161, %v1269
      %v1324 = vsel %vm1216, %v1162, %v1270
      %v1325 = vsel %vm1217, %v1163, %v1271
      %v1326 = vsel %vm1218, %v1164, %v1272
      %v1327 = vsel %vm1219, %v1165, %v1273
      %v1328 = vsel %vm1220, %v1166, %v1274
      %v1329 = vsel %vm1221, %v1167, %v1275
      %v1330 = vsel %vm1222, %v1168, %v1276
      %v1331 = vsel %vm1223, %v1169, %v1277
      %v1332 = vsel %vm1224, %v1170, %v1278
      %v1333 = vsel %vm1225, %v1171, %v1279
      %v1334 = vsel %vm1226, %v1172, %v1280
      %v1335 = vsel %vm1227, %v1173, %v1281
      %v1336 = vsel %vm1228, %v1174, %v1282
      %v1337 = vsel %vm1229, %v1175, %v1283
      %v1338 = vsel %vm1230, %v1176, %v1284
      %v1339 = vsel %vm1231, %v1177, %v1285
      %v1340 = vsel %vm1232, %v1178, %v1286
      %v1341 = vsel %vm1233, %v1179, %v1287
      %v1342 = vsel %vm1234, %v1180, %v1288
      %v1343 = vsel %vm1235, %v1181, %v1289
      %v1344 = vsel %vm1236, %v1182, %v1290
      %v1345 = vsel %vm1237, %v1183, %v1291
      %v1346 = vsel %vm1238, %v1184, %v1292
      %v1347 = vsel %vm1239, %v1185, %v1293
      %v1348 = vsel %vm1240, %v1186, %v1294
      %v1349 = vsel %vm1241, %v1187, %v1295
      %v1350 = vsel %vm1242, %v1188, %v1296
      %v1351 = vsel %vm1243, %v1189, %v1297
      %v1352 = vsel %vm1244, %v1190, %v1298
      %v1353 = vsel %vm1245, %v1191, %v1299
      %v1354 = vsel %vm1246, %v1192, %v1300
      %v1355 = vsel %vm1247, %v1193, %v1301
      %v1356 = vsel %vm1248, %v1194, %v1302
      %v1357 = vsel %vm1249, %v1195, %v1303
      %v1358 = vsel %vm1250, %v1196, %v1304
      %v1359 = vsel %vm1251, %v1197, %v1305
      %v1360 = vsel %vm1252, %v1198, %v1306
      %v1361 = vsel %vm1253, %v1199, %v1307
      %v1362 = vsel %vm1254, %v1200, %v1308
      %v1363 = vsel %vm1255, %v1201, %v1309
      %v1364 = vsel %vm1256, %v1202, %v1310
      %v1365 = vsel %vm1257, %v1203, %v1311
      %v1366 = vsel %vm1258, %v1204, %v1312
      %v1367 = vsel %vm1259, %v1205, %v1313
      %v1368 = vsel %vm1260, %v1206, %v1314
      %v1369 = vsel %vm1261, %v1207, %v1315
      %v1370 = vsel %vm1262, %v1208, %v1316
      %v1371 = vmul.f32 %v831, %v1317
      %v1372 = vmul.f32 %v832, %v1318
      %v1373 = vmul.f32 %v833, %v1319
      %v1374 = vmul.f32 %v834, %v1320
      %v1375 = vmul.f32 %v835, %v1321
      %v1376 = vmul.f32 %v836, %v1322
      %v1377 = vmul.f32 %v837, %v1323
      %v1378 = vmul.f32 %v838, %v1324
      %v1379 = vmul.f32 %v839, %v1325
      %v1380 = vmul.f32 %v840, %v1326
      %v1381 = vmul.f32 %v841, %v1327
      %v1382 = vmul.f32 %v842, %v1328
      %v1383 = vmul.f32 %v843, %v1329
      %v1384 = vmul.f32 %v844, %v1330
      %v1385 = vmul.f32 %v845, %v1331
      %v1386 = vmul.f32 %v846, %v1332
      %v1387 = vmul.f32 %v847, %v1333
      %v1388 = vmul.f32 %v848, %v1334
      %v1389 = vmul.f32 %v849, %v1335
      %v1390 = vmul.f32 %v850, %v1336
      %v1391 = vmul.f32 %v851, %v1337
      %v1392 = vmul.f32 %v852, %v1338
      %v1393 = vmul.f32 %v853, %v1339
      %v1394 = vmul.f32 %v854, %v1340
      %v1395 = vmul.f32 %v855, %v1341
      %v1396 = vmul.f32 %v856, %v1342
      %v1397 = vmul.f32 %v857, %v1343
      %v1398 = vmul.f32 %v858, %v1344
      %v1399 = vmul.f32 %v859, %v1345
      %v1400 = vmul.f32 %v860, %v1346
      %v1401 = vmul.f32 %v861, %v1347
      %v1402 = vmul.f32 %v862, %v1348
      %v1403 = vmul.f32 %v863, %v1349
      %v1404 = vmul.f32 %v864, %v1350
      %v1405 = vmul.f32 %v865, %v1351
      %v1406 = vmul.f32 %v866, %v1352
      %v1407 = vmul.f32 %v867, %v1353
      %v1408 = vmul.f32 %v868, %v1354
      %v1409 = vmul.f32 %v869, %v1355
      %v1410 = vmul.f32 %v870, %v1356
      %v1411 = vmul.f32 %v871, %v1357
      %v1412 = vmul.f32 %v872, %v1358
      %v1413 = vmul.f32 %v873, %v1359
      %v1414 = vmul.f32 %v874, %v1360
      %v1415 = vmul.f32 %v875, %v1361
      %v1416 = vmul.f32 %v876, %v1362
      %v1417 = vmul.f32 %v877, %v1363
      %v1418 = vmul.f32 %v878, %v1364
      %v1419 = vmul.f32 %v879, %v1365
      %v1420 = vmul.f32 %v880, %v1366
      %v1421 = vmul.f32 %v881, %v1367
      %v1422 = vmul.f32 %v882, %v1368
      %v1423 = vmul.f32 %v883, %v1369
      %v1424 = vmul.f32 %v884, %v1370
      %1425 = vst.msk [vmem:[%s235] sm:$0xff] %vm428, %v1371
      %1426 = vst.msk [vmem:[%s235 + $0x8] sm:$0xff] %vm428, %v1372
      %1427 = vst.msk [vmem:[%s235 + $0x10] sm:$0xff] %vm428, %v1373
      %1428 = vst.msk [vmem:[%s235 + $0x18] sm:$0xff] %vm428, %v1374
      %1429 = vst.msk [vmem:[%s235 + $0x20] sm:$0xff] %vm428, %v1375
      %1430 = vst.msk [vmem:[%s235 + $0x28] sm:$0xff] %vm428, %v1376
      %1431 = vst.msk [vmem:[%s235 + $0x30] sm:$0xff] %vm428, %v1377
      %1432 = vst.msk [vmem:[%s235 + $0x38] sm:$0xff] %vm428, %v1378
      %1433 = vst.msk [vmem:[%s235 + $0x40] sm:$0xff] %vm428, %v1379
      %1434 = vst.msk [vmem:[%s235 + $0x48] sm:$0xff] %vm428, %v1380
      %1435 = vst.msk [vmem:[%s235 + $0x50] sm:$0xff] %vm428, %v1381
      %1436 = vst.msk [vmem:[%s235 + $0x58] sm:$0xff] %vm428, %v1382
      %1437 = vst.msk [vmem:[%s235 + $0x60] sm:$0xff] %vm428, %v1383
      %1438 = vst.msk [vmem:[%s235 + $0x68] sm:$0xff] %vm428, %v1384
      %1439 = vst.msk [vmem:[%s235 + $0x70] sm:$0xff] %vm428, %v1385
      %1440 = vst.msk [vmem:[%s235 + $0x78] sm:$0xff] %vm428, %v1386
      %1441 = vst.msk [vmem:[%s235 + $0x80] sm:$0xff] %vm428, %v1387
      %1442 = vst.msk [vmem:[%s235 + $0x88] sm:$0xff] %vm428, %v1388
      %1443 = vst.msk [vmem:[%s235 + $0x90] sm:$0xff] %vm428, %v1389
      %1444 = vst.msk [vmem:[%s235 + $0x98] sm:$0xff] %vm428, %v1390
      %1445 = vst.msk [vmem:[%s235 + $0xa0] sm:$0xff] %vm428, %v1391
      %1446 = vst.msk [vmem:[%s235 + $0xa8] sm:$0xff] %vm428, %v1392
      %1447 = vst.msk [vmem:[%s235 + $0xb0] sm:$0xff] %vm428, %v1393
      %1448 = vst.msk [vmem:[%s235 + $0xb8] sm:$0xff] %vm428, %v1394
      %1449 = vst.msk [vmem:[%s235 + $0xc0] sm:$0xff] %vm428, %v1395
      %1450 = vst.msk [vmem:[%s235 + $0xc8] sm:$0xff] %vm428, %v1396
      %1451 = vst.msk [vmem:[%s235 + $0xd0] sm:$0xff] %vm428, %v1397
      %1452 = vst.msk [vmem:[%s235 + $0xd8] sm:$0xff] %vm428, %v1398
      %1453 = vst.msk [vmem:[%s235 + $0xe0] sm:$0xff] %vm428, %v1399
      %1454 = vst.msk [vmem:[%s235 + $0xe8] sm:$0xff] %vm428, %v1400
      %1455 = vst.msk [vmem:[%s235 + $0xf0] sm:$0xff] %vm428, %v1401
      %1456 = vst.msk [vmem:[%s235 + $0xf8] sm:$0xff] %vm428, %v1402
      %1457 = vst.msk [vmem:[%s235 + $0x100] sm:$0xff] %vm428, %v1403
      %1458 = vst.msk [vmem:[%s235 + $0x108] sm:$0xff] %vm428, %v1404
      %1459 = vst.msk [vmem:[%s235 + $0x110] sm:$0xff] %vm428, %v1405
      %1460 = vst.msk [vmem:[%s235 + $0x118] sm:$0xff] %vm428, %v1406
      %1461 = vst.msk [vmem:[%s235 + $0x120] sm:$0xff] %vm428, %v1407
      %1462 = vst.msk [vmem:[%s235 + $0x128] sm:$0xff] %vm428, %v1408
      %1463 = vst.msk [vmem:[%s235 + $0x130] sm:$0xff] %vm428, %v1409
      %1464 = vst.msk [vmem:[%s235 + $0x138] sm:$0xff] %vm428, %v1410
      %1465 = vst.msk [vmem:[%s235 + $0x140] sm:$0xff] %vm428, %v1411
      %1466 = vst.msk [vmem:[%s235 + $0x148] sm:$0xff] %vm428, %v1412
      %1467 = vst.msk [vmem:[%s235 + $0x150] sm:$0xff] %vm428, %v1413
      %1468 = vst.msk [vmem:[%s235 + $0x158] sm:$0xff] %vm428, %v1414
      %1469 = vst.msk [vmem:[%s235 + $0x160] sm:$0xff] %vm428, %v1415
      %1470 = vst.msk [vmem:[%s235 + $0x168] sm:$0xff] %vm428, %v1416
      %1471 = vst.msk [vmem:[%s235 + $0x170] sm:$0xff] %vm428, %v1417
      %1472 = vst.msk [vmem:[%s235 + $0x178] sm:$0xff] %vm428, %v1418
      %1473 = vst.msk [vmem:[%s235 + $0x180] sm:$0xff] %vm428, %v1419
      %1474 = vst.msk [vmem:[%s235 + $0x188] sm:$0xff] %vm428, %v1420
      %1475 = vst.msk [vmem:[%s235 + $0x190] sm:$0xff] %vm428, %v1421
      %1476 = vst.msk [vmem:[%s235 + $0x198] sm:$0xff] %vm428, %v1422
      %1477 = vst.msk [vmem:[%s235 + $0x1a0] sm:$0xff] %vm428, %v1423
      %1478 = vst.msk [vmem:[%s235 + $0x1a8] sm:$0xff] %vm428, %v1424
      %s1479 = smul.u32 54, %s20
      %p1480 = scmp.lt.s32.totalorder %s19, 1
      %s1481 = scalar_select %p1480, %s19, 1
      %p1482 = scmp.lt.s32.totalorder %s1479, 53
      %s1483 = scalar_select %p1482, %s1479, 53
      %s1484 = smul.addr %s1481, 54
      %s1485 = sadd.s32 %s1483, %s1484
      %s1486 = smul.addr %s1485, 8
      %s1487 = scalar_lea.vmem %s4, %s1486
      // Predicated region
      $region37: #{c3_forward.5} parent=35 // pred_check
        %p1488 = pneg %p138
      $region38: #{c3_forward.5} parent=35 // pred_check_branch
        %1490 = sbr.rel (%p1488) target = $region40
      $region39: #{c3_forward.5} parent=35 // pred_region
        %s1491 = smul.u32 54, %s20
      $region40: #{c3_forward.5} parent=35 // pred_fallthru
        _
    $region36: #{c3_forward.5} parent=5 // pred_fallthru
      _
    %p1492 = scmp.le.s32.totalorder 2, %s10
    // Predicated region
    $region41: #{c3_forward.5} parent=5 // pred_check
      %p1493 = pneg %p1492
    $region42: #{c3_forward.5} parent=5 // pred_check_branch
      %1495 = sbr.rel (%p1493) target = $region44
    $region43: #{c3_forward.5} parent=5 // pred_region
      %s1496 = ssub.s32 %s10, 2
      // Predicated region
      $region45: #{c3_forward.5} parent=43 // pred_check
        %p1497 = pneg %p144
      $region46: #{c3_forward.5} parent=43 // pred_check_branch
        %1499 = sbr.rel (%p1497) target = $region48
      $region47: #{c3_forward.5} parent=43 // pred_region
        %s1500 = smul.u32 54, %s22
        %p1501 = scmp.lt.s32.totalorder %s21, 1
        %s1502 = scalar_select %p1501, %s21, 1
        %p1503 = scmp.lt.s32.totalorder %s1500, 53
        %s1504 = scalar_select %p1503, %s1500, 53
        %s1505 = smul.addr %s1502, 54
        %s1506 = sadd.s32 %s1504, %s1505
        %s1507 = smul.addr %s1506, 8
        %s1508 = scalar_lea.vmem %s4, %s1507
      $region48: #{c3_forward.5} parent=43 // pred_fallthru
        _
    $region44: #{c3_forward.5} parent=5 // pred_fallthru
      _
  $region6: #{c3_forward.5} parent=0 // loop_footer
    %s14 = sadd.s32 1, %s10
  $region7: #{c3_forward.5} parent=0 // loop_footer_branch
    %9 = sbr.rel target = $region3
  $region8: #{c3_forward.5} parent=0 // loop_exit
    _

// kernel: c3_forward.3
$region0: #{c3_forward.3}
  #allocation0 [shape = 'u32[]', space=smem, size = 0x4, offset = 0x4, fixed_abs, tag = 'smem constant byte address 0x4 - core index']
  #allocation1 [shape = 'u32[144,128]{1,0:T(1,128)}', space=vmem, size = 0x12000, scoped, tag = 'internal scratch']
  %s0 = inlined_call_operand.vmem [shape: bf16[2,432,4], index: 0, kind: input, shape index: {}]
  %s1 = inlined_call_operand.vmem [shape: f32[432,1], index: 1, kind: input, shape index: {}]
  %s2 = inlined_call_operand.vmem [shape: bf16[4,8], index: 2, kind: input, shape index: {}]
  %s3 = inlined_call_operand.vmem [shape: f32[1,8], index: 3, kind: input, shape index: {}]
  %s4 = inlined_call_operand.vmem [shape: f32[1,8], index: 4, kind: input, shape index: {}]
  %s5 = inlined_call_operand.vmem [shape: bf16[2,432,8], index: 5, kind: output, shape index: {}]
  %s6 = sld [smem:[#allocation0]]
  $region53: #{c3_forward.3} parent=0
    _
  %s8 = ssub.s32 1, %s6
  %s9 = scalar_select 0, %s8, %s6
  loop: start=0, step=1, limit=4
  $region2: #{c3_forward.3} parent=0 // loop_pre_header
    _
  $region3: #{c3_forward.3} parent=0 // loop_header
    %s11 = sphi 0, %s15
    %p12 = scmp.ge.s32.totalorder %s11, 4
    %s18 = sphi 0, %s30
    %s19 = sphi 0, %s26
    %s20 = sphi 0, %s18
    %s21 = sphi 0, %s19
    %s22 = sphi 0, %s20
    %s23 = sphi 0, %s21
    %s35 = sphi 0, %s37
    %s38 = sphi 0, %s35
    %s39 = sphi 0, %s38
    %s55 = sphi 0, %s39
    %s61 = sphi 0, %s63
    %s64 = sphi 0, %s61
    %s65 = sphi 0, %s64
    %s81 = sphi 0, %s65
    %s85 = sphi 0, %s85
    %s87 = sphi 0, %s85
    %s88 = sphi 0, %s87
    %s102 = sphi 0, %s88
    %s106 = sphi 0, %s106
    %s108 = sphi 0, %s106
    %s109 = sphi 0, %s108
    %s123 = sphi 0, %s109
    %s127 = sphi 0, %s127
    %s129 = sphi 0, %s127
    %s130 = sphi 0, %s129
    %s144 = sphi 0, %s130
    %s152 = sphi 0, %s154
    %s155 = sphi 0, %s152
    %s156 = sphi 0, %s155
    %s172 = sphi 0, %s156
  $region4: #{c3_forward.3} parent=0 // loop_header_branch
    %14 = sbr.rel (%p12) target = $region8
  $region5: #{c3_forward.3} parent=0 // loop_body
    %s16 = ssub.s32 %s11, 1
    %s17 = ssub.s32 %s11, 2
    %s24 = sadd.s32 1, %s19
    %p25 = scmp.ge.s32.totalorder %s24, 1
    %s26 = scalar_select %p25, 0, %s24
    %s27 = sadd.s32 1, %s18
    %s28 = scalar_select %p25, %s27, %s18
    %p29 = scmp.ge.s32.totalorder %s28, 2
    %s30 = scalar_select %p29, 0, %s28
    %s31 = ssub.s32 %s18, %s30
    %s32 = ssub.s32 %s19, %s26
    %s33 = sor.u32 %s31, %s32
    %p34 = scmp.eq.s32.totalorder %s33, 0
    %s36 = sadd.s32 %s35, 1
    %s37 = scalar_select %p34, %s35, %s36
    %p40 = pneg %p34
    %p41 = scmp.eq.s32.totalorder %s11, 1
    %p42 = por %p40, %p41
    %p43 = scmp.ne.s32.totalorder %s35, %s38
    %p44 = scmp.eq.s32.totalorder %s11, 0
    %p45 = por %p43, %p44
    %p46 = scmp.ne.s32.totalorder %s35, %s38
    %p47 = scmp.eq.s32.totalorder %s16, 1
    %p48 = por %p46, %p47
    %p49 = scmp.ne.s32.totalorder %s38, %s39
    %p50 = scmp.eq.s32.totalorder %s16, 0
    %p51 = por %p49, %p50
    %p52 = scmp.ne.s32.totalorder %s38, %s39
    %p53 = scmp.eq.s32.totalorder %s17, 1
    %p54 = por %p52, %p53
    %p56 = scmp.ne.s32.totalorder %s39, %s55
    %p57 = scmp.eq.s32.totalorder %s17, 0
    %p58 = por %p56, %p57
    %s59 = ssub.s32 %s19, %s26
    %p60 = scmp.eq.s32.totalorder %s59, 0
    %s62 = sadd.s32 %s61, 1
    %s63 = scalar_select %p60, %s61, %s62
    %p66 = pneg %p60
    %p67 = scmp.eq.s32.totalorder %s11, 1
    %p68 = por %p66, %p67
    %p69 = scmp.ne.s32.totalorder %s61, %s64
    %p70 = scmp.eq.s32.totalorder %s11, 0
    %p71 = por %p69, %p70
    %p72 = scmp.ne.s32.totalorder %s61, %s64
    %p73 = scmp.eq.s32.totalorder %s16, 1
    %p74 = por %p72, %p73
    %p75 = scmp.ne.s32.totalorder %s64, %s65
    %p76 = scmp.eq.s32.totalorder %s16, 0
    %p77 = por %p75, %p76
    %p78 = scmp.ne.s32.totalorder %s64, %s65
    %p79 = scmp.eq.s32.totalorder %s17, 1
    %p80 = por %p78, %p79
    %p82 = scmp.ne.s32.totalorder %s65, %s81
    %p83 = scmp.eq.s32.totalorder %s17, 0
    %p84 = por %p82, %p83
    %s86 = sadd.s32 %s85, 1
    %p89 = scmp.eq.s32.totalorder %s11, 1
    %p90 = scmp.ne.s32.totalorder %s85, %s87
    %p91 = scmp.eq.s32.totalorder %s11, 0
    %p92 = por %p90, %p91
    %p93 = scmp.ne.s32.totalorder %s85, %s87
    %p94 = scmp.eq.s32.totalorder %s16, 1
    %p95 = por %p93, %p94
    %p96 = scmp.ne.s32.totalorder %s87, %s88
    %p97 = scmp.eq.s32.totalorder %s16, 0
    %p98 = por %p96, %p97
    %p99 = scmp.ne.s32.totalorder %s87, %s88
    %p100 = scmp.eq.s32.totalorder %s17, 1
    %p101 = por %p99, %p100
    %p103 = scmp.ne.s32.totalorder %s88, %s102
    %p104 = scmp.eq.s32.totalorder %s17, 0
    %p105 = por %p103, %p104
    %s107 = sadd.s32 %s106, 1
    %p110 = scmp.eq.s32.totalorder %s11, 1
    %p111 = scmp.ne.s32.totalorder %s106, %s108
    %p112 = scmp.eq.s32.totalorder %s11, 0
    %p113 = por %p111, %p112
    %p114 = scmp.ne.s32.totalorder %s106, %s108
    %p115 = scmp.eq.s32.totalorder %s16, 1
    %p116 = por %p114, %p115
    %p117 = scmp.ne.s32.totalorder %s108, %s109
    %p118 = scmp.eq.s32.totalorder %s16, 0
    %p119 = por %p117, %p118
    %p120 = scmp.ne.s32.totalorder %s108, %s109
    %p121 = scmp.eq.s32.totalorder %s17, 1
    %p122 = por %p120, %p121
    %p124 = scmp.ne.s32.totalorder %s109, %s123
    %p125 = scmp.eq.s32.totalorder %s17, 0
    %p126 = por %p124, %p125
    %s128 = sadd.s32 %s127, 1
    %p131 = scmp.eq.s32.totalorder %s11, 1
    %p132 = scmp.ne.s32.totalorder %s127, %s129
    %p133 = scmp.eq.s32.totalorder %s11, 0
    %p134 = por %p132, %p133
    %p135 = scmp.ne.s32.totalorder %s127, %s129
    %p136 = scmp.eq.s32.totalorder %s16, 1
    %p137 = por %p135, %p136
    %p138 = scmp.ne.s32.totalorder %s129, %s130
    %p139 = scmp.eq.s32.totalorder %s16, 0
    %p140 = por %p138, %p139
    %p141 = scmp.ne.s32.totalorder %s129, %s130
    %p142 = scmp.eq.s32.totalorder %s17, 1
    %p143 = por %p141, %p142
    %p145 = scmp.ne.s32.totalorder %s130, %s144
    %p146 = scmp.eq.s32.totalorder %s17, 0
    %p147 = por %p145, %p146
    %s148 = ssub.s32 %s18, %s30
    %s149 = ssub.s32 %s19, %s26
    %s150 = sor.u32 %s148, %s149
    %p151 = scmp.eq.s32.totalorder %s150, 0
    %s153 = sadd.s32 %s152, 1
    %s154 = scalar_select %p151, %s152, %s153
    %p157 = pneg %p151
    %p158 = scmp.eq.s32.totalorder %s11, 1
    %p159 = por %p157, %p158
    %p160 = scmp.ne.s32.totalorder %s152, %s155
    %p161 = scmp.eq.s32.totalorder %s11, 0
    %p162 = por %p160, %p161
    %p163 = scmp.ne.s32.totalorder %s152, %s155
    %p164 = scmp.eq.s32.totalorder %s16, 1
    %p165 = por %p163, %p164
    %p166 = scmp.ne.s32.totalorder %s155, %s156
    %p167 = scmp.eq.s32.totalorder %s16, 0
    %p168 = por %p166, %p167
    %p169 = scmp.ne.s32.totalorder %s155, %s156
    %p170 = scmp.eq.s32.totalorder %s17, 1
    %p171 = por %p169, %p170
    %p173 = scmp.ne.s32.totalorder %s156, %s172
    %p174 = scmp.eq.s32.totalorder %s17, 0
    %p175 = por %p173, %p174
    %p176 = scmp.le.s32.totalorder 1, %s11
    %p177 = scmp.lt.s32.totalorder %s11, 3
    %p178 = pnand %p176, %p177
    %p179 = pneg %p178
    // Predicated region
    $region9: #{c3_forward.3} parent=5 // pred_check
      _
    $region10: #{c3_forward.3} parent=5 // pred_check_branch
      %181 = sbr.rel (%p178) target = $region12
    $region11: #{c3_forward.3} parent=5 // pred_region
      %s182 = ssub.s32 %s11, 1
      // Predicated region
      $region13: #{c3_forward.3} parent=11 // pred_check
        %p183 = pneg %p77
      $region14: #{c3_forward.3} parent=11 // pred_check_branch
        %185 = sbr.rel (%p183) target = $region16
      $region15: #{c3_forward.3} parent=11 // pred_region
        %s186 = smul.u32 54, %s21
        %p187 = scmp.lt.s32.totalorder %s186, 53
        %s188 = scalar_select %p187, %s186, 53
        %s189 = smul.addr %s188, 8
        %s190 = scalar_lea.vmem %s1, %s189
        %s191 = smul.u32 54, %s21
      $region16: #{c3_forward.3} parent=11 // pred_fallthru
        _
      // Predicated region
      $region17: #{c3_forward.3} parent=11 // pred_check
        %p192 = pneg %p98
      $region18: #{c3_forward.3} parent=11 // pred_check_branch
        %194 = sbr.rel (%p192) target = $region20
      $region19: #{c3_forward.3} parent=11 // pred_region
        _
      $region20: #{c3_forward.3} parent=11 // pred_fallthru
        _
      // Predicated region
      $region21: #{c3_forward.3} parent=11 // pred_check
        %p195 = pneg %p119
      $region22: #{c3_forward.3} parent=11 // pred_check_branch
        %197 = sbr.rel (%p195) target = $region24
      $region23: #{c3_forward.3} parent=11 // pred_region
        _
      $region24: #{c3_forward.3} parent=11 // pred_fallthru
        _
      // Predicated region
      $region25: #{c3_forward.3} parent=11 // pred_check
        %p198 = pneg %p140
      $region26: #{c3_forward.3} parent=11 // pred_check_branch
        %200 = sbr.rel (%p198) target = $region28
      $region27: #{c3_forward.3} parent=11 // pred_region
        _
      $region28: #{c3_forward.3} parent=11 // pred_fallthru
        _
    $region12: #{c3_forward.3} parent=5 // pred_fallthru
      _
    %p201 = scmp.lt.s32.totalorder %s11, 2
    // Predicated region
    $region29: #{c3_forward.3} parent=5 // pred_check
      %p202 = pneg %p201
    $region30: #{c3_forward.3} parent=5 // pred_check_branch
      %204 = sbr.rel (%p202) target = $region32
    $region31: #{c3_forward.3} parent=5 // pred_region
      // Predicated region
      $region33: #{c3_forward.3} parent=31 // pred_check
        %p205 = pneg %p45
      $region34: #{c3_forward.3} parent=31 // pred_check_branch
        %207 = sbr.rel (%p205) target = $region36
      $region35: #{c3_forward.3} parent=31 // pred_region
        %s208 = smul.u32 54, %s19
        %p209 = scmp.lt.s32.totalorder %s18, 1
        %s210 = scalar_select %p209, %s18, 1
        %p211 = scmp.lt.s32.totalorder %s208, 53
        %s212 = scalar_select %p211, %s208, 53
        %s213 = smul.addr %s210, 54
        %s214 = sadd.s32 %s212, %s213
        %s215 = smul.addr %s214, 4
        %s216 = scalar_lea.vmem %s0, %s215
        %s217 = smul.u32 54, %s19
      $region36: #{c3_forward.3} parent=31 // pred_fallthru
        _
    $region32: #{c3_forward.3} parent=5 // pred_fallthru
      _
    %p218 = scmp.le.s32.totalorder 1, %s11
    %p219 = scmp.lt.s32.totalorder %s11, 3
    %p220 = pnand %p218, %p219
    %p221 = pneg %p220
    // Predicated region
    $region37: #{c3_forward.3} parent=5 // pred_check
      _
    $region38: #{c3_forward.3} parent=5 // pred_check_branch
      %223 = sbr.rel (%p220) target = $region40
    $region39: #{c3_forward.3} parent=5 // pred_region
      %s224 = ssub.s32 %s11, 1
      %s225 = smul.u32 54, %s21
      %p226 = scmp.lt.s32.totalorder %s20, 1
      %s227 = scalar_select %p226, %s20, 1
      %p228 = scmp.lt.s32.totalorder %s225, 53
      %s229 = scalar_select %p228, %s225, 53
      %s230 = smul.addr %s227, 54
      %s231 = sadd.s32 %s229, %s230
      %s232 = smul.addr %s231, 4
      %s233 = scalar_lea.vmem %s0, %s232
      %p234 = pneg %p51
      %p235 = pneg %p48
      %s236 = smul.u32 54, %s21
      %p237 = scmp.lt.s32.totalorder %s236, 53
      %s238 = scalar_select %p237, %s236, 53
      %s239 = smul.addr %s238, 8
      %s240 = scalar_lea.vmem %s1, %s239
      %p241 = pneg %p77
      %p242 = pneg %p74
      %p243 = pneg %p98
      %p244 = pneg %p95
      %p245 = pneg %p119
      %p246 = pneg %p116
      %p247 = pneg %p140
      %p248 = pneg %p137
      %p249 = pneg %p168
      %p250 = pneg %p165
      %s251 = smul.u32 54, %s21
      %p252 = scmp.lt.s32.totalorder %s20, 1
      %s253 = scalar_select %p252, %s20, 1
      %p254 = scmp.lt.s32.totalorder %s251, 53
      %s255 = scalar_select %p254, %s251, 53
      %s256 = smul.addr %s253, 54
      %s257 = sadd.s32 %s255, %s256
      %s258 = smul.addr %s257, 4
      %s259 = scalar_lea.vmem %s5, %s258
      %s260 = smul.u32 54, %s21
      %p261 = scmp.lt.s32.totalorder %s20, 1
      %s262 = scalar_select %p261, %s20, 1
      %p263 = scmp.lt.s32.totalorder %s260, 53
      %s264 = scalar_select %p263, %s260, 53
      %s265 = smul.addr %s262, 54
      %s266 = sadd.s32 %s264, %s265
      %s267 = smul.addr %s266, 4
      %s268 = scalar_lea.vmem %s0, %s267
      %s269 = smul.u32 54, %s21
      %s270 = smul.u32 54, %s21
      %p271 = scmp.lt.s32.totalorder %s270, 53
      %s272 = scalar_select %p271, %s270, 53
      %s273 = smul.addr %s272, 8
      %s274 = scalar_lea.vmem %s1, %s273
      %s275 = smul.u32 54, %s21
      %s276 = smul.u32 54, %s21
      %p277 = scmp.lt.s32.totalorder %s20, 1
      %s278 = scalar_select %p277, %s20, 1
      %p279 = scmp.lt.s32.totalorder %s276, 53
      %s280 = scalar_select %p279, %s276, 53
      %s281 = smul.addr %s278, 54
      %s282 = sadd.s32 %s280, %s281
      %s283 = smul.addr %s282, 4
      %s284 = scalar_lea.vmem %s5, %s283
      %s285 = smul.u32 54, %s21
      %v287 = vld [vmem:[%s268] sm:$0xf]
      %v288 = vld [vmem:[%s268 + $0x4] sm:$0xf]
      %v289 = vld [vmem:[%s268 + $0x8] sm:$0xf]
      %v290 = vld [vmem:[%s268 + $0xc] sm:$0xf]
      %v291 = vld [vmem:[%s268 + $0x10] sm:$0xf]
      %v292 = vld [vmem:[%s268 + $0x14] sm:$0xf]
      %v293 = vld [vmem:[%s268 + $0x18] sm:$0xf]
      %v294 = vld [vmem:[%s268 + $0x1c] sm:$0xf]
      %v295 = vld [vmem:[%s268 + $0x20] sm:$0xf]
      %v296 = vld [vmem:[%s268 + $0x24] sm:$0xf]
      %v297 = vld [vmem:[%s268 + $0x28] sm:$0xf]
      %v298 = vld [vmem:[%s268 + $0x2c] sm:$0xf]
      %v299 = vld [vmem:[%s268 + $0x30] sm:$0xf]
      %v300 = vld [vmem:[%s268 + $0x34] sm:$0xf]
      %v301 = vld [vmem:[%s268 + $0x38] sm:$0xf]
      %v302 = vld [vmem:[%s268 + $0x3c] sm:$0xf]
      %v303 = vld [vmem:[%s268 + $0x40] sm:$0xf]
      %v304 = vld [vmem:[%s268 + $0x44] sm:$0xf]
      %v305 = vld [vmem:[%s268 + $0x48] sm:$0xf]
      %v306 = vld [vmem:[%s268 + $0x4c] sm:$0xf]
      %v307 = vld [vmem:[%s268 + $0x50] sm:$0xf]
      %v308 = vld [vmem:[%s268 + $0x54] sm:$0xf]
      %v309 = vld [vmem:[%s268 + $0x58] sm:$0xf]
      %v310 = vld [vmem:[%s268 + $0x5c] sm:$0xf]
      %v311 = vld [vmem:[%s268 + $0x60] sm:$0xf]
      %v312 = vld [vmem:[%s268 + $0x64] sm:$0xf]
      %v313 = vld [vmem:[%s268 + $0x68] sm:$0xf]
      %v314 = vld [vmem:[%s268 + $0x6c] sm:$0xf]
      %v315 = vld [vmem:[%s268 + $0x70] sm:$0xf]
      %v316 = vld [vmem:[%s268 + $0x74] sm:$0xf]
      %v317 = vld [vmem:[%s268 + $0x78] sm:$0xf]
      %v318 = vld [vmem:[%s268 + $0x7c] sm:$0xf]
      %v319 = vld [vmem:[%s268 + $0x80] sm:$0xf]
      %v320 = vld [vmem:[%s268 + $0x84] sm:$0xf]
      %v321 = vld [vmem:[%s268 + $0x88] sm:$0xf]
      %v322 = vld [vmem:[%s268 + $0x8c] sm:$0xf]
      %v323 = vld [vmem:[%s268 + $0x90] sm:$0xf]
      %v324 = vld [vmem:[%s268 + $0x94] sm:$0xf]
      %v325 = vld [vmem:[%s268 + $0x98] sm:$0xf]
      %v326 = vld [vmem:[%s268 + $0x9c] sm:$0xf]
      %v327 = vld [vmem:[%s268 + $0xa0] sm:$0xf]
      %v328 = vld [vmem:[%s268 + $0xa4] sm:$0xf]
      %v329 = vld [vmem:[%s268 + $0xa8] sm:$0xf]
      %v330 = vld [vmem:[%s268 + $0xac] sm:$0xf]
      %v331 = vld [vmem:[%s268 + $0xb0] sm:$0xf]
      %v332 = vld [vmem:[%s268 + $0xb4] sm:$0xf]
      %v333 = vld [vmem:[%s268 + $0xb8] sm:$0xf]
      %v334 = vld [vmem:[%s268 + $0xbc] sm:$0xf]
      %v335 = vld [vmem:[%s268 + $0xc0] sm:$0xf]
      %v336 = vld [vmem:[%s268 + $0xc4] sm:$0xf]
      %v337 = vld [vmem:[%s268 + $0xc8] sm:$0xf]
      %v338 = vld [vmem:[%s268 + $0xcc] sm:$0xf]
      %v339 = vld [vmem:[%s268 + $0xd0] sm:$0xf]
      %v340 = vld [vmem:[%s268 + $0xd4] sm:$0xf]
      %v341 = vld [vmem:[%s2] sm:$0x3]
      %v396 = vunpack.c.l.b16 %v287
      %v397 = vunpack.c.l.b16 %v288
      %v398 = vunpack.c.l.b16 %v289
      %v399 = vunpack.c.l.b16 %v290
      %v400 = vunpack.c.l.b16 %v291
      %v401 = vunpack.c.l.b16 %v292
      %v402 = vunpack.c.l.b16 %v293
      %v403 = vunpack.c.l.b16 %v294
      %v404 = vunpack.c.l.b16 %v295
      %v405 = vunpack.c.l.b16 %v296
      %v406 = vunpack.c.l.b16 %v297
      %v407 = vunpack.c.l.b16 %v298
      %v408 = vunpack.c.l.b16 %v299
      %v409 = vunpack.c.l.b16 %v300
      %v410 = vunpack.c.l.b16 %v301
      %v411 = vunpack.c.l.b16 %v302
      %v412 = vunpack.c.l.b16 %v303
      %v413 = vunpack.c.l.b16 %v304
      %v414 = vunpack.c.l.b16 %v305
      %v415 = vunpack.c.l.b16 %v306
      %v416 = vunpack.c.l.b16 %v307
      %v417 = vunpack.c.l.b16 %v308
      %v418 = vunpack.c.l.b16 %v309
      %v419 = vunpack.c.l.b16 %v310
      %v420 = vunpack.c.l.b16 %v311
      %v421 = vunpack.c.l.b16 %v312
      %v422 = vunpack.c.l.b16 %v313
      %v423 = vunpack.c.l.b16 %v314
      %v424 = vunpack.c.l.b16 %v315
      %v425 = vunpack.c.l.b16 %v316
      %v426 = vunpack.c.l.b16 %v317
      %v427 = vunpack.c.l.b16 %v318
      %v428 = vunpack.c.l.b16 %v319
      %v429 = vunpack.c.l.b16 %v320
      %v430 = vunpack.c.l.b16 %v321
      %v431 = vunpack.c.l.b16 %v322
      %v432 = vunpack.c.l.b16 %v323
      %v433 = vunpack.c.l.b16 %v324
      %v434 = vunpack.c.l.b16 %v325
      %v435 = vunpack.c.l.b16 %v326
      %v436 = vunpack.c.l.b16 %v327
      %v437 = vunpack.c.l.b16 %v328
      %v438 = vunpack.c.l.b16 %v329
      %v439 = vunpack.c.l.b16 %v330
      %v440 = vunpack.c.l.b16 %v331
      %v441 = vunpack.c.l.b16 %v332
      %v442 = vunpack.c.l.b16 %v333
      %v443 = vunpack.c.l.b16 %v334
      %v444 = vunpack.c.l.b16 %v335
      %v445 = vunpack.c.l.b16 %v336
      %v446 = vunpack.c.l.b16 %v337
      %v447 = vunpack.c.l.b16 %v338
      %v448 = vunpack.c.l.b16 %v339
      %v449 = vunpack.c.l.b16 %v340
      %v450 = vpack.c.b16 %v397, %v396
      %v451 = vpack.c.b16 %v399, %v398
      %v452 = vpack.c.b16 %v401, %v400
      %v453 = vpack.c.b16 %v403, %v402
      %v454 = vpack.c.b16 %v405, %v404
      %v455 = vpack.c.b16 %v407, %v406
      %v456 = vpack.c.b16 %v409, %v408
      %v457 = vpack.c.b16 %v411, %v410
      %v458 = vpack.c.b16 %v413, %v412
      %v459 = vpack.c.b16 %v415, %v414
      %v460 = vpack.c.b16 %v417, %v416
      %v461 = vpack.c.b16 %v419, %v418
      %v462 = vpack.c.b16 %v421, %v420
      %v463 = vpack.c.b16 %v423, %v422
      %v464 = vpack.c.b16 %v425, %v424
      %v465 = vpack.c.b16 %v427, %v426
      %v466 = vpack.c.b16 %v429, %v428
      %v467 = vpack.c.b16 %v431, %v430
      %v468 = vpack.c.b16 %v433, %v432
      %v469 = vpack.c.b16 %v435, %v434
      %v470 = vpack.c.b16 %v437, %v436
      %v471 = vpack.c.b16 %v439, %v438
      %v472 = vpack.c.b16 %v441, %v440
      %v473 = vpack.c.b16 %v443, %v442
      %v474 = vpack.c.b16 %v445, %v444
      %v475 = vpack.c.b16 %v447, %v446
      %v476 = vpack.c.b16 %v449, %v448
      %vm477 = vcmask 31744
      %v479 = vsel %vm477, %v450, 0
      %v482 = vsel %vm477, %v451, 0
      %v485 = vsel %vm477, %v452, 0
      %v488 = vsel %vm477, %v453, 0
      %v491 = vsel %vm477, %v454, 0
      %v494 = vsel %vm477, %v455, 0
      %v497 = vsel %vm477, %v456, 0
      %v500 = vsel %vm477, %v457, 0
      %v503 = vsel %vm477, %v458, 0
      %v506 = vsel %vm477, %v459, 0
      %v509 = vsel %vm477, %v460, 0
      %v512 = vsel %vm477, %v461, 0
      %v515 = vsel %vm477, %v462, 0
      %v518 = vsel %vm477, %v463, 0
      %v521 = vsel %vm477, %v464, 0
      %v524 = vsel %vm477, %v465, 0
      %v527 = vsel %vm477, %v466, 0
      %v530 = vsel %vm477, %v467, 0
      %v533 = vsel %vm477, %v468, 0
      %v536 = vsel %vm477, %v469, 0
      %v539 = vsel %vm477, %v470, 0
      %v542 = vsel %vm477, %v471, 0
      %v545 = vsel %vm477, %v472, 0
      %v548 = vsel %vm477, %v473, 0
      %v551 = vsel %vm477, %v474, 0
      %v554 = vsel %vm477, %v475, 0
      %v557 = vsel %vm477, %v476, 0
      %vm559 = vcmask 1041408
      %v561 = vsel %vm559, %v341, 0
      %563 = vmatprep.subr.bf16.mxu0 0
      %564 = vmatpush1.bf16.msra.mxu0 %v561
      %565 = vmatprep.subr.bf16.mxu0 0
      %566 = vmatpush1.bf16.msra.mxu0 0
      %567 = vmatprep.subr.bf16.mxu0 0
      %568 = vmatpush1.bf16.msra.mxu0 0
      %569 = vmatprep.subr.bf16.mxu0 0
      %570 = vmatpush1.bf16.msra.mxu0 0
      %571 = vmatprep.subr.bf16.mxu0 0
      %572 = vmatpush1.bf16.msra.mxu0 0
      %573 = vmatprep.subr.bf16.mxu0 0
      %574 = vmatpush1.bf16.msra.mxu0 0
      %575 = vmatprep.subr.bf16.mxu0 0
      %576 = vmatpush1.bf16.msra.mxu0 0
      %577 = vmatprep.subr.bf16.mxu0 0
      %578 = vmatpush1.bf16.msra.mxu0 0
      %579 = vmatprep.subr.bf16.mxu0 0
      %580 = vmatpush1.bf16.msra.mxu0 0
      %581 = vmatprep.subr.bf16.mxu0 0
      %582 = vmatpush1.bf16.msra.mxu0 0
      %583 = vmatprep.subr.bf16.mxu0 0
      %584 = vmatpush1.bf16.msra.mxu0 0
      %585 = vmatprep.subr.bf16.mxu0 0
      %586 = vmatpush1.bf16.msra.mxu0 0
      %587 = vmatprep.subr.bf16.mxu0 0
      %588 = vmatpush1.bf16.msra.mxu0 0
      %589 = vmatprep.subr.bf16.mxu0 0
      %590 = vmatpush1.bf16.msra.mxu0 0
      %591 = vmatprep.subr.bf16.mxu0 0
      %592 = vmatpush1.bf16.msra.mxu0 0
      %593 = vmatprep.subr.bf16.mxu0 0
      %594 = vmatpush1.bf16.msra.mxu0 0
      %595 = vmatprep.mubr.bf16.mxu0 0
      %596 = vmatmul.mubr.bf16.gmra.mrb[0].mxu0 %v479
      %v597 = vpop.f32.mrb[0].mxu0
      %v598 = vadd.f32 0.0, %v597
      %v599 = vpop.f32.mrb[0].mxu0
      %v600 = vpop.f32.mrb[0].mxu0
      %v601 = vadd.f32 0.0, %v600
      %v602 = vpop.f32.mrb[0].mxu0
      %603 = vmatprep.mubr.bf16.mxu0 0
      %604 = vmatmul.mubr.bf16.gmra.mrb[0].mxu0 %v482
      %v605 = vpop.f32.mrb[0].mxu0
      %v606 = vadd.f32 0.0, %v605
      %v607 = vpop.f32.mrb[0].mxu0
      %v608 = vpop.f32.mrb[0].mxu0
      %v609 = vadd.f32 0.0, %v608
      %v610 = vpop.f32.mrb[0].mxu0
      %611 = vmatprep.mubr.bf16.mxu0 0
      %612 = vmatmul.mubr.bf16.gmra.mrb[0].mxu0 %v485
      %v613 = vpop.f32.mrb[0].mxu0
      %v614 = vadd.f32 0.0, %v613
      %v615 = vpop.f32.mrb[0].mxu0
      %v616 = vpop.f32.mrb[0].mxu0
      %v617 = vadd.f32 0.0, %v616
      %v618 = vpop.f32.mrb[0].mxu0
      %619 = vmatprep.mubr.bf16.mxu0 0
      %620 = vmatmul.mubr.bf16.gmra.mrb[0].mxu0 %v488
      %v621 = vpop.f32.mrb[0].mxu0
      %v622 = vadd.f32 0.0, %v621
      %v623 = vpop.f32.mrb[0].mxu0
      %v624 = vpop.f32.mrb[0].mxu0
      %v625 = vadd.f32 0.0, %v624
      %v626 = vpop.f32.mrb[0].mxu0
      %627 = vmatprep.mubr.bf16.mxu0 0
      %628 = vmatmul.mubr.bf16.gmra.mrb[0].mxu0 %v491
      %v629 = vpop.f32.mrb[0].mxu0
      %v630 = vadd.f32 0.0, %v629
      %v631 = vpop.f32.mrb[0].mxu0
      %v632 = vpop.f32.mrb[0].mxu0
      %v633 = vadd.f32 0.0, %v632
      %v634 = vpop.f32.mrb[0].mxu0
      %635 = vmatprep.mubr.bf16.mxu0 0
      %636 = vmatmul.mubr.bf16.gmra.mrb[0].mxu0 %v494
      %v637 = vpop.f32.mrb[0].mxu0
      %v638 = vadd.f32 0.0, %v637
      %v639 = vpop.f32.mrb[0].mxu0
      %v640 = vpop.f32.mrb[0].mxu0
      %v641 = vadd.f32 0.0, %v640
      %v642 = vpop.f32.mrb[0].mxu0
      %643 = vmatprep.mubr.bf16.mxu0 0
      %644 = vmatmul.mubr.bf16.gmra.mrb[0].mxu0 %v497
      %v645 = vpop.f32.mrb[0].mxu0
      %v646 = vadd.f32 0.0, %v645
      %v647 = vpop.f32.mrb[0].mxu0
      %v648 = vpop.f32.mrb[0].mxu0
      %v649 = vadd.f32 0.0, %v648
      %v650 = vpop.f32.mrb[0].mxu0
      %651 = vmatprep.mubr.bf16.mxu0 0
      %652 = vmatmul.mubr.bf16.gmra.mrb[0].mxu0 %v500
      %v653 = vpop.f32.mrb[0].mxu0
      %v654 = vadd.f32 0.0, %v653
      %v655 = vpop.f32.mrb[0].mxu0
      %v656 = vpop.f32.mrb[0].mxu0
      %v657 = vadd.f32 0.0, %v656
      %v658 = vpop.f32.mrb[0].mxu0
      %659 = vmatprep.mubr.bf16.mxu0 0
      %660 = vmatmul.mubr.bf16.gmra.mrb[0].mxu0 %v503
      %v661 = vpop.f32.mrb[0].mxu0
      %v662 = vadd.f32 0.0, %v661
      %v663 = vpop.f32.mrb[0].mxu0
      %v664 = vpop.f32.mrb[0].mxu0
      %v665 = vadd.f32 0.0, %v664
      %v666 = vpop.f32.mrb[0].mxu0
      %667 = vmatprep.mubr.bf16.mxu0 0
      %668 = vmatmul.mubr.bf16.gmra.mrb[0].mxu0 %v506
      %v669 = vpop.f32.mrb[0].mxu0
      %v670 = vadd.f32 0.0, %v669
      %v671 = vpop.f32.mrb[0].mxu0
      %v672 = vpop.f32.mrb[0].mxu0
      %v673 = vadd.f32 0.0, %v672
      %v674 = vpop.f32.mrb[0].mxu0
      %675 = vmatprep.mubr.bf16.mxu0 0
      %676 = vmatmul.mubr.bf16.gmra.mrb[0].mxu0 %v509
      %v677 = vpop.f32.mrb[0].mxu0
      %v678 = vadd.f32 0.0, %v677
      %v679 = vpop.f32.mrb[0].mxu0
      %v680 = vpop.f32.mrb[0].mxu0
      %v681 = vadd.f32 0.0, %v680
      %v682 = vpop.f32.mrb[0].mxu0
      %683 = vmatprep.mubr.bf16.mxu0 0
      %684 = vmatmul.mubr.bf16.gmra.mrb[0].mxu0 %v512
      %v685 = vpop.f32.mrb[0].mxu0
      %v686 = vadd.f32 0.0, %v685
      %v687 = vpop.f32.mrb[0].mxu0
      %v688 = vpop.f32.mrb[0].mxu0
      %v689 = vadd.f32 0.0, %v688
      %v690 = vpop.f32.mrb[0].mxu0
      %691 = vmatprep.mubr.bf16.mxu0 0
      %692 = vmatmul.mubr.bf16.gmra.mrb[0].mxu0 %v515
      %v693 = vpop.f32.mrb[0].mxu0
      %v694 = vadd.f32 0.0, %v693
      %v695 = vpop.f32.mrb[0].mxu0
      %v696 = vpop.f32.mrb[0].mxu0
      %v697 = vadd.f32 0.0, %v696
      %v698 = vpop.f32.mrb[0].mxu0
      %699 = vmatprep.mubr.bf16.mxu0 0
      %700 = vmatmul.mubr.bf16.gmra.mrb[0].mxu0 %v518
      %v701 = vpop.f32.mrb[0].mxu0
      %v702 = vadd.f32 0.0, %v701
      %v703 = vpop.f32.mrb[0].mxu0
      %v704 = vpop.f32.mrb[0].mxu0
      %v705 = vadd.f32 0.0, %v704
      %v706 = vpop.f32.mrb[0].mxu0
      %707 = vmatprep.mubr.bf16.mxu0 0
      %708 = vmatmul.mubr.bf16.gmra.mrb[0].mxu0 %v521
      %v709 = vpop.f32.mrb[0].mxu0
      %v710 = vadd.f32 0.0, %v709
      %v711 = vpop.f32.mrb[0].mxu0
      %v712 = vpop.f32.mrb[0].mxu0
      %v713 = vadd.f32 0.0, %v712
      %v714 = vpop.f32.mrb[0].mxu0
      %715 = vmatprep.mubr.bf16.mxu0 0
      %716 = vmatmul.mubr.bf16.gmra.mrb[0].mxu0 %v524
      %v717 = vpop.f32.mrb[0].mxu0
      %v718 = vadd.f32 0.0, %v717
      %v719 = vpop.f32.mrb[0].mxu0
      %v720 = vpop.f32.mrb[0].mxu0
      %v721 = vadd.f32 0.0, %v720
      %v722 = vpop.f32.mrb[0].mxu0
      %723 = vmatprep.mubr.bf16.mxu0 0
      %724 = vmatmul.mubr.bf16.gmra.mrb[0].mxu0 %v527
      %v725 = vpop.f32.mrb[0].mxu0
      %v726 = vadd.f32 0.0, %v725
      %v727 = vpop.f32.mrb[0].mxu0
      %v728 = vpop.f32.mrb[0].mxu0
      %v729 = vadd.f32 0.0, %v728
      %v730 = vpop.f32.mrb[0].mxu0
      %731 = vmatprep.mubr.bf16.mxu0 0
      %732 = vmatmul.mubr.bf16.gmra.mrb[0].mxu0 %v530
      %v733 = vpop.f32.mrb[0].mxu0
      %v734 = vadd.f32 0.0, %v733
      %v735 = vpop.f32.mrb[0].mxu0
      %v736 = vpop.f32.mrb[0].mxu0
      %v737 = vadd.f32 0.0, %v736
      %v738 = vpop.f32.mrb[0].mxu0
      %739 = vmatprep.mubr.bf16.mxu0 0
      %740 = vmatmul.mubr.bf16.gmra.mrb[0].mxu0 %v533
      %v741 = vpop.f32.mrb[0].mxu0
      %v742 = vadd.f32 0.0, %v741
      %v743 = vpop.f32.mrb[0].mxu0
      %v744 = vpop.f32.mrb[0].mxu0
      %v745 = vadd.f32 0.0, %v744
      %v746 = vpop.f32.mrb[0].mxu0
      %747 = vmatprep.mubr.bf16.mxu0 0
      %748 = vmatmul.mubr.bf16.gmra.mrb[0].mxu0 %v536
      %v749 = vpop.f32.mrb[0].mxu0
      %v750 = vadd.f32 0.0, %v749
      %v751 = vpop.f32.mrb[0].mxu0
      %v752 = vpop.f32.mrb[0].mxu0
      %v753 = vadd.f32 0.0, %v752
      %v754 = vpop.f32.mrb[0].mxu0
      %755 = vmatprep.mubr.bf16.mxu0 0
      %756 = vmatmul.mubr.bf16.gmra.mrb[0].mxu0 %v539
      %v757 = vpop.f32.mrb[0].mxu0
      %v758 = vadd.f32 0.0, %v757
      %v759 = vpop.f32.mrb[0].mxu0
      %v760 = vpop.f32.mrb[0].mxu0
      %v761 = vadd.f32 0.0, %v760
      %v762 = vpop.f32.mrb[0].mxu0
      %763 = vmatprep.mubr.bf16.mxu0 0
      %764 = vmatmul.mubr.bf16.gmra.mrb[0].mxu0 %v542
      %v765 = vpop.f32.mrb[0].mxu0
      %v766 = vadd.f32 0.0, %v765
      %v767 = vpop.f32.mrb[0].mxu0
      %v768 = vpop.f32.mrb[0].mxu0
      %v769 = vadd.f32 0.0, %v768
      %v770 = vpop.f32.mrb[0].mxu0
      %771 = vmatprep.mubr.bf16.mxu0 0
      %772 = vmatmul.mubr.bf16.gmra.mrb[0].mxu0 %v545
      %v773 = vpop.f32.mrb[0].mxu0
      %v774 = vadd.f32 0.0, %v773
      %v775 = vpop.f32.mrb[0].mxu0
      %v776 = vpop.f32.mrb[0].mxu0
      %v777 = vadd.f32 0.0, %v776
      %v778 = vpop.f32.mrb[0].mxu0
      %779 = vmatprep.mubr.bf16.mxu0 0
      %780 = vmatmul.mubr.bf16.gmra.mrb[0].mxu0 %v548
      %v781 = vpop.f32.mrb[0].mxu0
      %v782 = vadd.f32 0.0, %v781
      %v783 = vpop.f32.mrb[0].mxu0
      %v784 = vpop.f32.mrb[0].mxu0
      %v785 = vadd.f32 0.0, %v784
      %v786 = vpop.f32.mrb[0].mxu0
      %787 = vmatprep.mubr.bf16.mxu0 0
      %788 = vmatmul.mubr.bf16.gmra.mrb[0].mxu0 %v551
      %v789 = vpop.f32.mrb[0].mxu0
      %v790 = vadd.f32 0.0, %v789
      %v791 = vpop.f32.mrb[0].mxu0
      %v792 = vpop.f32.mrb[0].mxu0
      %v793 = vadd.f32 0.0, %v792
      %v794 = vpop.f32.mrb[0].mxu0
      %795 = vmatprep.mubr.bf16.mxu0 0
      %796 = vmatmul.mubr.bf16.gmra.mrb[0].mxu0 %v554
      %v797 = vpop.f32.mrb[0].mxu0
      %v798 = vadd.f32 0.0, %v797
      %v799 = vpop.f32.mrb[0].mxu0
      %v800 = vpop.f32.mrb[0].mxu0
      %v801 = vadd.f32 0.0, %v800
      %v802 = vpop.f32.mrb[0].mxu0
      %803 = vmatprep.mubr.bf16.mxu0 0
      %804 = vmatmul.mubr.bf16.gmra.mrb[0].mxu0 %v557
      %v805 = vpop.f32.mrb[0].mxu0
      %v806 = vadd.f32 0.0, %v805
      %v807 = vpop.f32.mrb[0].mxu0
      %v808 = vpop.f32.mrb[0].mxu0
      %v809 = vadd.f32 0.0, %v808
      %v810 = vpop.f32.mrb[0].mxu0
      %811 = vdwg.mxu0
      %v812 = vld [vmem:[%s3] sm:$0x1]
      %v814 = vlaneseq
      %v815 = vshrl.u32 %v814, 7
      %v816 = vsub.s32 0, %v815
      %v817 = vrot.slane %v812, %v816
      %v819 = vmul.f32 %v598, %v817
      %v820 = vmul.f32 %v601, %v817
      %v821 = vmul.f32 %v606, %v817
      %v822 = vmul.f32 %v609, %v817
      %v823 = vmul.f32 %v614, %v817
      %v824 = vmul.f32 %v617, %v817
      %v825 = vmul.f32 %v622, %v817
      %v826 = vmul.f32 %v625, %v817
      %v827 = vmul.f32 %v630, %v817
      %v828 = vmul.f32 %v633, %v817
      %v829 = vmul.f32 %v638, %v817
      %v830 = vmul.f32 %v641, %v817
      %v831 = vmul.f32 %v646, %v817
      %v832 = vmul.f32 %v649, %v817
      %v833 = vmul.f32 %v654, %v817
      %v834 = vmul.f32 %v657, %v817
      %v835 = vmul.f32 %v662, %v817
      %v836 = vmul.f32 %v665, %v817
      %v837 = vmul.f32 %v670, %v817
      %v838 = vmul.f32 %v673, %v817
      %v839 = vmul.f32 %v678, %v817
      %v840 = vmul.f32 %v681, %v817
      %v841 = vmul.f32 %v686, %v817
      %v842 = vmul.f32 %v689, %v817
      %v843 = vmul.f32 %v694, %v817
      %v844 = vmul.f32 %v697, %v817
      %v845 = vmul.f32 %v702, %v817
      %v846 = vmul.f32 %v705, %v817
      %v847 = vmul.f32 %v710, %v817
      %v848 = vmul.f32 %v713, %v817
      %v849 = vmul.f32 %v718, %v817
      %v850 = vmul.f32 %v721, %v817
      %v851 = vmul.f32 %v726, %v817
      %v852 = vmul.f32 %v729, %v817
      %v853 = vmul.f32 %v734, %v817
      %v854 = vmul.f32 %v737, %v817
      %v855 = vmul.f32 %v742, %v817
      %v856 = vmul.f32 %v745, %v817
      %v857 = vmul.f32 %v750, %v817
      %v858 = vmul.f32 %v753, %v817
      %v859 = vmul.f32 %v758, %v817
      %v860 = vmul.f32 %v761, %v817
      %v861 = vmul.f32 %v766, %v817
      %v862 = vmul.f32 %v769, %v817
      %v863 = vmul.f32 %v774, %v817
      %v864 = vmul.f32 %v777, %v817
      %v865 = vmul.f32 %v782, %v817
      %v866 = vmul.f32 %v785, %v817
      %v867 = vmul.f32 %v790, %v817
      %v868 = vmul.f32 %v793, %v817
      %v869 = vmul.f32 %v798, %v817
      %v870 = vmul.f32 %v801, %v817
      %v871 = vmul.f32 %v806, %v817
      %v872 = vmul.f32 %v809, %v817
      %v873 = vld [vmem:[%s4] sm:$0x1]
      %v875 = vlaneseq
      %v876 = vshrl.u32 %v875, 7
      %v877 = vsub.s32 0, %v876
      %v878 = vrot.slane %v873, %v877
      %v880 = vadd.f32 %v819, %v878
      %v881 = vadd.f32 %v820, %v878
      %v882 = vadd.f32 %v821, %v878
      %v883 = vadd.f32 %v822, %v878
      %v884 = vadd.f32 %v823, %v878
      %v885 = vadd.f32 %v824, %v878
      %v886 = vadd.f32 %v825, %v878
      %v887 = vadd.f32 %v826, %v878
      %v888 = vadd.f32 %v827, %v878
      %v889 = vadd.f32 %v828, %v878
      %v890 = vadd.f32 %v829, %v878
      %v891 = vadd.f32 %v830, %v878
      %v892 = vadd.f32 %v831, %v878
      %v893 = vadd.f32 %v832, %v878
      %v894 = vadd.f32 %v833, %v878
      %v895 = vadd.f32 %v834, %v878
      %v896 = vadd.f32 %v835, %v878
      %v897 = vadd.f32 %v836, %v878
      %v898 = vadd.f32 %v837, %v878
      %v899 = vadd.f32 %v838, %v878
      %v900 = vadd.f32 %v839, %v878
      %v901 = vadd.f32 %v840, %v878
      %v902 = vadd.f32 %v841, %v878
      %v903 = vadd.f32 %v842, %v878
      %v904 = vadd.f32 %v843, %v878
      %v905 = vadd.f32 %v844, %v878
      %v906 = vadd.f32 %v845, %v878
      %v907 = vadd.f32 %v846, %v878
      %v908 = vadd.f32 %v847, %v878
      %v909 = vadd.f32 %v848, %v878
      %v910 = vadd.f32 %v849, %v878
      %v911 = vadd.f32 %v850, %v878
      %v912 = vadd.f32 %v851, %v878
      %v913 = vadd.f32 %v852, %v878
      %v914 = vadd.f32 %v853, %v878
      %v915 = vadd.f32 %v854, %v878
      %v916 = vadd.f32 %v855, %v878
      %v917 = vadd.f32 %v856, %v878
      %v918 = vadd.f32 %v857, %v878
      %v919 = vadd.f32 %v858, %v878
      %v920 = vadd.f32 %v859, %v878
      %v921 = vadd.f32 %v860, %v878
      %v922 = vadd.f32 %v861, %v878
      %v923 = vadd.f32 %v862, %v878
      %v924 = vadd.f32 %v863, %v878
      %v925 = vadd.f32 %v864, %v878
      %v926 = vadd.f32 %v865, %v878
      %v927 = vadd.f32 %v866, %v878
      %v928 = vadd.f32 %v867, %v878
      %v929 = vadd.f32 %v868, %v878
      %v930 = vadd.f32 %v869, %v878
      %v931 = vadd.f32 %v870, %v878
      %v932 = vadd.f32 %v871, %v878
      %v933 = vadd.f32 %v872, %v878
      %v934 = vand.u32 2147483647, %v880
      %v935 = vand.u32 2147483647, %v881
      %v936 = vand.u32 2147483647, %v882
      %v937 = vand.u32 2147483647, %v883
      %v938 = vand.u32 2147483647, %v884
      %v939 = vand.u32 2147483647, %v885
      %v940 = vand.u32 2147483647, %v886
      %v941 = vand.u32 2147483647, %v887
      %v942 = vand.u32 2147483647, %v888
      %v943 = vand.u32 2147483647, %v889
      %v944 = vand.u32 2147483647, %v890
      %v945 = vand.u32 2147483647, %v891
      %v946 = vand.u32 2147483647, %v892
      %v947 = vand.u32 2147483647, %v893
      %v948 = vand.u32 2147483647, %v894
      %v949 = vand.u32 2147483647, %v895
      %v950 = vand.u32 2147483647, %v896
      %v951 = vand.u32 2147483647, %v897
      %v952 = vand.u32 2147483647, %v898
      %v953 = vand.u32 2147483647, %v899
      %v954 = vand.u32 2147483647, %v900
      %v955 = vand.u32 2147483647, %v901
      %v956 = vand.u32 2147483647, %v902
      %v957 = vand.u32 2147483647, %v903
      %v958 = vand.u32 2147483647, %v904
      %v959 = vand.u32 2147483647, %v905
      %v960 = vand.u32 2147483647, %v906
      %v961 = vand.u32 2147483647, %v907
      %v962 = vand.u32 2147483647, %v908
      %v963 = vand.u32 2147483647, %v909
      %v964 = vand.u32 2147483647, %v910
      %v965 = vand.u32 2147483647, %v911
      %v966 = vand.u32 2147483647, %v912
      %v967 = vand.u32 2147483647, %v913
      %v968 = vand.u32 2147483647, %v914
      %v969 = vand.u32 2147483647, %v915
      %v970 = vand.u32 2147483647, %v916
      %v971 = vand.u32 2147483647, %v917
      %v972 = vand.u32 2147483647, %v918
      %v973 = vand.u32 2147483647, %v919
      %v974 = vand.u32 2147483647, %v920
      %v975 = vand.u32 2147483647, %v921
      %v976 = vand.u32 2147483647, %v922
      %v977 = vand.u32 2147483647, %v923
      %v978 = vand.u32 2147483647, %v924
      %v979 = vand.u32 2147483647, %v925
      %v980 = vand.u32 2147483647, %v926
      %v981 = vand.u32 2147483647, %v927
      %v982 = vand.u32 2147483647, %v928
      %v983 = vand.u32 2147483647, %v929
      %v984 = vand.u32 2147483647, %v930
      %v985 = vand.u32 2147483647, %v931
      %v986 = vand.u32 2147483647, %v932
      %v987 = vand.u32 2147483647, %v933
      %v988 = vsub.f32 0.0, %v934
      %v989 = vsub.f32 0.0, %v935
      %v990 = vsub.f32 0.0, %v936
      %v991 = vsub.f32 0.0, %v937
      %v992 = vsub.f32 0.0, %v938
      %v993 = vsub.f32 0.0, %v939
      %v994 = vsub.f32 0.0, %v940
      %v995 = vsub.f32 0.0, %v941
      %v996 = vsub.f32 0.0, %v942
      %v997 = vsub.f32 0.0, %v943
      %v998 = vsub.f32 0.0, %v944
      %v999 = vsub.f32 0.0, %v945
      %v1000 = vsub.f32 0.0, %v946
      %v1001 = vsub.f32 0.0, %v947
      %v1002 = vsub.f32 0.0, %v948
      %v1003 = vsub.f32 0.0, %v949
      %v1004 = vsub.f32 0.0, %v950
      %v1005 = vsub.f32 0.0, %v951
      %v1006 = vsub.f32 0.0, %v952
      %v1007 = vsub.f32 0.0, %v953
      %v1008 = vsub.f32 0.0, %v954
      %v1009 = vsub.f32 0.0, %v955
      %v1010 = vsub.f32 0.0, %v956
      %v1011 = vsub.f32 0.0, %v957
      %v1012 = vsub.f32 0.0, %v958
      %v1013 = vsub.f32 0.0, %v959
      %v1014 = vsub.f32 0.0, %v960
      %v1015 = vsub.f32 0.0, %v961
      %v1016 = vsub.f32 0.0, %v962
      %v1017 = vsub.f32 0.0, %v963
      %v1018 = vsub.f32 0.0, %v964
      %v1019 = vsub.f32 0.0, %v965
      %v1020 = vsub.f32 0.0, %v966
      %v1021 = vsub.f32 0.0, %v967
      %v1022 = vsub.f32 0.0, %v968
      %v1023 = vsub.f32 0.0, %v969
      %v1024 = vsub.f32 0.0, %v970
      %v1025 = vsub.f32 0.0, %v971
      %v1026 = vsub.f32 0.0, %v972
      %v1027 = vsub.f32 0.0, %v973
      %v1028 = vsub.f32 0.0, %v974
      %v1029 = vsub.f32 0.0, %v975
      %v1030 = vsub.f32 0.0, %v976
      %v1031 = vsub.f32 0.0, %v977
      %v1032 = vsub.f32 0.0, %v978
      %v1033 = vsub.f32 0.0, %v979
      %v1034 = vsub.f32 0.0, %v980
      %v1035 = vsub.f32 0.0, %v981
      %v1036 = vsub.f32 0.0, %v982
      %v1037 = vsub.f32 0.0, %v983
      %v1038 = vsub.f32 0.0, %v984
      %v1039 = vsub.f32 0.0, %v985
      %v1040 = vsub.f32 0.0, %v986
      %v1041 = vsub.f32 0.0, %v987
      %v1042 = vmul.f32 %v988, 1.442695
      %v1043 = vpow.pop %v1042
      %v1044 = vmul.f32 %v989, 1.442695
      %v1045 = vpow.pop %v1044
      %v1046 = vmul.f32 %v990, 1.442695
      %v1047 = vpow.pop %v1046
      %v1048 = vmul.f32 %v991, 1.442695
      %v1049 = vpow.pop %v1048
      %v1050 = vmul.f32 %v992, 1.442695
      %v1051 = vpow.pop %v1050
      %v1052 = vmul.f32 %v993, 1.442695
      %v1053 = vpow.pop %v1052
      %v1054 = vmul.f32 %v994, 1.442695
      %v1055 = vpow.pop %v1054
      %v1056 = vmul.f32 %v995, 1.442695
      %v1057 = vpow.pop %v1056
      %v1058 = vmul.f32 %v996, 1.442695
      %v1059 = vpow.pop %v1058
      %v1060 = vmul.f32 %v997, 1.442695
      %v1061 = vpow.pop %v1060
      %v1062 = vmul.f32 %v998, 1.442695
      %v1063 = vpow.pop %v1062
      %v1064 = vmul.f32 %v999, 1.442695
      %v1065 = vpow.pop %v1064
      %v1066 = vmul.f32 %v1000, 1.442695
      %v1067 = vpow.pop %v1066
      %v1068 = vmul.f32 %v1001, 1.442695
      %v1069 = vpow.pop %v1068
      %v1070 = vmul.f32 %v1002, 1.442695
      %v1071 = vpow.pop %v1070
      %v1072 = vmul.f32 %v1003, 1.442695
      %v1073 = vpow.pop %v1072
      %v1074 = vmul.f32 %v1004, 1.442695
      %v1075 = vpow.pop %v1074
      %v1076 = vmul.f32 %v1005, 1.442695
      %v1077 = vpow.pop %v1076
      %v1078 = vmul.f32 %v1006, 1.442695
      %v1079 = vpow.pop %v1078
      %v1080 = vmul.f32 %v1007, 1.442695
      %v1081 = vpow.pop %v1080
      %v1082 = vmul.f32 %v1008, 1.442695
      %v1083 = vpow.pop %v1082
      %v1084 = vmul.f32 %v1009, 1.442695
      %v1085 = vpow.pop %v1084
      %v1086 = vmul.f32 %v1010, 1.442695
      %v1087 = vpow.pop %v1086
      %v1088 = vmul.f32 %v1011, 1.442695
      %v1089 = vpow.pop %v1088
      %v1090 = vmul.f32 %v1012, 1.442695
      %v1091 = vpow.pop %v1090
      %v1092 = vmul.f32 %v1013, 1.442695
      %v1093 = vpow.pop %v1092
      %v1094 = vmul.f32 %v1014, 1.442695
      %v1095 = vpow.pop %v1094
      %v1096 = vmul.f32 %v1015, 1.442695
      %v1097 = vpow.pop %v1096
      %v1098 = vmul.f32 %v1016, 1.442695
      %v1099 = vpow.pop %v1098
      %v1100 = vmul.f32 %v1017, 1.442695
      %v1101 = vpow.pop %v1100
      %v1102 = vmul.f32 %v1018, 1.442695
      %v1103 = vpow.pop %v1102
      %v1104 = vmul.f32 %v1019, 1.442695
      %v1105 = vpow.pop %v1104
      %v1106 = vmul.f32 %v1020, 1.442695
      %v1107 = vpow.pop %v1106
      %v1108 = vmul.f32 %v1021, 1.442695
      %v1109 = vpow.pop %v1108
      %v1110 = vmul.f32 %v1022, 1.442695
      %v1111 = vpow.pop %v1110
      %v1112 = vmul.f32 %v1023, 1.442695
      %v1113 = vpow.pop %v1112
      %v1114 = vmul.f32 %v1024, 1.442695
      %v1115 = vpow.pop %v1114
      %v1116 = vmul.f32 %v1025, 1.442695
      %v1117 = vpow.pop %v1116
      %v1118 = vmul.f32 %v1026, 1.442695
      %v1119 = vpow.pop %v1118
      %v1120 = vmul.f32 %v1027, 1.442695
      %v1121 = vpow.pop %v1120
      %v1122 = vmul.f32 %v1028, 1.442695
      %v1123 = vpow.pop %v1122
      %v1124 = vmul.f32 %v1029, 1.442695
      %v1125 = vpow.pop %v1124
      %v1126 = vmul.f32 %v1030, 1.442695
      %v1127 = vpow.pop %v1126
      %v1128 = vmul.f32 %v1031, 1.442695
      %v1129 = vpow.pop %v1128
      %v1130 = vmul.f32 %v1032, 1.442695
      %v1131 = vpow.pop %v1130
      %v1132 = vmul.f32 %v1033, 1.442695
      %v1133 = vpow.pop %v1132
      %v1134 = vmul.f32 %v1034, 1.442695
      %v1135 = vpow.pop %v1134
      %v1136 = vmul.f32 %v1035, 1.442695
      %v1137 = vpow.pop %v1136
      %v1138 = vmul.f32 %v1036, 1.442695
      %v1139 = vpow.pop %v1138
      %v1140 = vmul.f32 %v1037, 1.442695
      %v1141 = vpow.pop %v1140
      %v1142 = vmul.f32 %v1038, 1.442695
      %v1143 = vpow.pop %v1142
      %v1144 = vmul.f32 %v1039, 1.442695
      %v1145 = vpow.pop %v1144
      %v1146 = vmul.f32 %v1040, 1.442695
      %v1147 = vpow.pop %v1146
      %v1148 = vmul.f32 %v1041, 1.442695
      %v1149 = vpow.pop %v1148
      %v1150 = vadd.f32 %v1043, 1.0
      %v1151 = vadd.f32 %v1045, 1.0
      %v1152 = vadd.f32 %v1047, 1.0
      %v1153 = vadd.f32 %v1049, 1.0
      %v1154 = vadd.f32 %v1051, 1.0
      %v1155 = vadd.f32 %v1053, 1.0
      %v1156 = vadd.f32 %v1055, 1.0
      %v1157 = vadd.f32 %v1057, 1.0
      %v1158 = vadd.f32 %v1059, 1.0
      %v1159 = vadd.f32 %v1061, 1.0
      %v1160 = vadd.f32 %v1063, 1.0
      %v1161 = vadd.f32 %v1065, 1.0
      %v1162 = vadd.f32 %v1067, 1.0
      %v1163 = vadd.f32 %v1069, 1.0
      %v1164 = vadd.f32 %v1071, 1.0
      %v1165 = vadd.f32 %v1073, 1.0
      %v1166 = vadd.f32 %v1075, 1.0
      %v1167 = vadd.f32 %v1077, 1.0
      %v1168 = vadd.f32 %v1079, 1.0
      %v1169 = vadd.f32 %v1081, 1.0
      %v1170 = vadd.f32 %v1083, 1.0
      %v1171 = vadd.f32 %v1085, 1.0
      %v1172 = vadd.f32 %v1087, 1.0
      %v1173 = vadd.f32 %v1089, 1.0
      %v1174 = vadd.f32 %v1091, 1.0
      %v1175 = vadd.f32 %v1093, 1.0
      %v1176 = vadd.f32 %v1095, 1.0
      %v1177 = vadd.f32 %v1097, 1.0
      %v1178 = vadd.f32 %v1099, 1.0
      %v1179 = vadd.f32 %v1101, 1.0
      %v1180 = vadd.f32 %v1103, 1.0
      %v1181 = vadd.f32 %v1105, 1.0
      %v1182 = vadd.f32 %v1107, 1.0
      %v1183 = vadd.f32 %v1109, 1.0
      %v1184 = vadd.f32 %v1111, 1.0
      %v1185 = vadd.f32 %v1113, 1.0
      %v1186 = vadd.f32 %v1115, 1.0
      %v1187 = vadd.f32 %v1117, 1.0
      %v1188 = vadd.f32 %v1119, 1.0
      %v1189 = vadd.f32 %v1121, 1.0
      %v1190 = vadd.f32 %v1123, 1.0
      %v1191 = vadd.f32 %v1125, 1.0
      %v1192 = vadd.f32 %v1127, 1.0
      %v1193 = vadd.f32 %v1129, 1.0
      %v1194 = vadd.f32 %v1131, 1.0
      %v1195 = vadd.f32 %v1133, 1.0
      %v1196 = vadd.f32 %v1135, 1.0
      %v1197 = vadd.f32 %v1137, 1.0
      %v1198 = vadd.f32 %v1139, 1.0
      %v1199 = vadd.f32 %v1141, 1.0
      %v1200 = vadd.f32 %v1143, 1.0
      %v1201 = vadd.f32 %v1145, 1.0
      %v1202 = vadd.f32 %v1147, 1.0
      %v1203 = vadd.f32 %v1149, 1.0
      %v1204 = vrcp.pop %v1150
      %v1205 = vrcp.pop %v1151
      %v1206 = vrcp.pop %v1152
      %v1207 = vrcp.pop %v1153
      %v1208 = vrcp.pop %v1154
      %v1209 = vrcp.pop %v1155
      %v1210 = vrcp.pop %v1156
      %v1211 = vrcp.pop %v1157
      %v1212 = vrcp.pop %v1158
      %v1213 = vrcp.pop %v1159
      %v1214 = vrcp.pop %v1160
      %v1215 = vrcp.pop %v1161
      %v1216 = vrcp.pop %v1162
      %v1217 = vrcp.pop %v1163
      %v1218 = vrcp.pop %v1164
      %v1219 = vrcp.pop %v1165
      %v1220 = vrcp.pop %v1166
      %v1221 = vrcp.pop %v1167
      %v1222 = vrcp.pop %v1168
      %v1223 = vrcp.pop %v1169
      %v1224 = vrcp.pop %v1170
      %v1225 = vrcp.pop %v1171
      %v1226 = vrcp.pop %v1172
      %v1227 = vrcp.pop %v1173
      %v1228 = vrcp.pop %v1174
      %v1229 = vrcp.pop %v1175
      %v1230 = vrcp.pop %v1176
      %v1231 = vrcp.pop %v1177
      %v1232 = vrcp.pop %v1178
      %v1233 = vrcp.pop %v1179
      %v1234 = vrcp.pop %v1180
      %v1235 = vrcp.pop %v1181
      %v1236 = vrcp.pop %v1182
      %v1237 = vrcp.pop %v1183
      %v1238 = vrcp.pop %v1184
      %v1239 = vrcp.pop %v1185
      %v1240 = vrcp.pop %v1186
      %v1241 = vrcp.pop %v1187
      %v1242 = vrcp.pop %v1188
      %v1243 = vrcp.pop %v1189
      %v1244 = vrcp.pop %v1190
      %v1245 = vrcp.pop %v1191
      %v1246 = vrcp.pop %v1192
      %v1247 = vrcp.pop %v1193
      %v1248 = vrcp.pop %v1194
      %v1249 = vrcp.pop %v1195
      %v1250 = vrcp.pop %v1196
      %v1251 = vrcp.pop %v1197
      %v1252 = vrcp.pop %v1198
      %v1253 = vrcp.pop %v1199
      %v1254 = vrcp.pop %v1200
      %v1255 = vrcp.pop %v1201
      %v1256 = vrcp.pop %v1202
      %v1257 = vrcp.pop %v1203
      %vm1258 = vcmp.ge.f32.partialorder %v880, 0.0
      %vm1259 = vcmp.ge.f32.partialorder %v881, 0.0
      %vm1260 = vcmp.ge.f32.partialorder %v882, 0.0
      %vm1261 = vcmp.ge.f32.partialorder %v883, 0.0
      %vm1262 = vcmp.ge.f32.partialorder %v884, 0.0
      %vm1263 = vcmp.ge.f32.partialorder %v885, 0.0
      %vm1264 = vcmp.ge.f32.partialorder %v886, 0.0
      %vm1265 = vcmp.ge.f32.partialorder %v887, 0.0
      %vm1266 = vcmp.ge.f32.partialorder %v888, 0.0
      %vm1267 = vcmp.ge.f32.partialorder %v889, 0.0
      %vm1268 = vcmp.ge.f32.partialorder %v890, 0.0
      %vm1269 = vcmp.ge.f32.partialorder %v891, 0.0
      %vm1270 = vcmp.ge.f32.partialorder %v892, 0.0
      %vm1271 = vcmp.ge.f32.partialorder %v893, 0.0
      %vm1272 = vcmp.ge.f32.partialorder %v894, 0.0
      %vm1273 = vcmp.ge.f32.partialorder %v895, 0.0
      %vm1274 = vcmp.ge.f32.partialorder %v896, 0.0
      %vm1275 = vcmp.ge.f32.partialorder %v897, 0.0
      %vm1276 = vcmp.ge.f32.partialorder %v898, 0.0
      %vm1277 = vcmp.ge.f32.partialorder %v899, 0.0
      %vm1278 = vcmp.ge.f32.partialorder %v900, 0.0
      %vm1279 = vcmp.ge.f32.partialorder %v901, 0.0
      %vm1280 = vcmp.ge.f32.partialorder %v902, 0.0
      %vm1281 = vcmp.ge.f32.partialorder %v903, 0.0
      %vm1282 = vcmp.ge.f32.partialorder %v904, 0.0
      %vm1283 = vcmp.ge.f32.partialorder %v905, 0.0
      %vm1284 = vcmp.ge.f32.partialorder %v906, 0.0
      %vm1285 = vcmp.ge.f32.partialorder %v907, 0.0
      %vm1286 = vcmp.ge.f32.partialorder %v908, 0.0
      %vm1287 = vcmp.ge.f32.partialorder %v909, 0.0
      %vm1288 = vcmp.ge.f32.partialorder %v910, 0.0
      %vm1289 = vcmp.ge.f32.partialorder %v911, 0.0
      %vm1290 = vcmp.ge.f32.partialorder %v912, 0.0
      %vm1291 = vcmp.ge.f32.partialorder %v913, 0.0
      %vm1292 = vcmp.ge.f32.partialorder %v914, 0.0
      %vm1293 = vcmp.ge.f32.partialorder %v915, 0.0
      %vm1294 = vcmp.ge.f32.partialorder %v916, 0.0
      %vm1295 = vcmp.ge.f32.partialorder %v917, 0.0
      %vm1296 = vcmp.ge.f32.partialorder %v918, 0.0
      %vm1297 = vcmp.ge.f32.partialorder %v919, 0.0
      %vm1298 = vcmp.ge.f32.partialorder %v920, 0.0
      %vm1299 = vcmp.ge.f32.partialorder %v921, 0.0
      %vm1300 = vcmp.ge.f32.partialorder %v922, 0.0
      %vm1301 = vcmp.ge.f32.partialorder %v923, 0.0
      %vm1302 = vcmp.ge.f32.partialorder %v924, 0.0
      %vm1303 = vcmp.ge.f32.partialorder %v925, 0.0
      %vm1304 = vcmp.ge.f32.partialorder %v926, 0.0
      %vm1305 = vcmp.ge.f32.partialorder %v927, 0.0
      %vm1306 = vcmp.ge.f32.partialorder %v928, 0.0
      %vm1307 = vcmp.ge.f32.partialorder %v929, 0.0
      %vm1308 = vcmp.ge.f32.partialorder %v930, 0.0
      %vm1309 = vcmp.ge.f32.partialorder %v931, 0.0
      %vm1310 = vcmp.ge.f32.partialorder %v932, 0.0
      %vm1311 = vcmp.ge.f32.partialorder %v933, 0.0
      %v1312 = vmul.f32 %v1043, %v1204
      %v1313 = vmul.f32 %v1045, %v1205
      %v1314 = vmul.f32 %v1047, %v1206
      %v1315 = vmul.f32 %v1049, %v1207
      %v1316 = vmul.f32 %v1051, %v1208
      %v1317 = vmul.f32 %v1053, %v1209
      %v1318 = vmul.f32 %v1055, %v1210
      %v1319 = vmul.f32 %v1057, %v1211
      %v1320 = vmul.f32 %v1059, %v1212
      %v1321 = vmul.f32 %v1061, %v1213
      %v1322 = vmul.f32 %v1063, %v1214
      %v1323 = vmul.f32 %v1065, %v1215
      %v1324 = vmul.f32 %v1067, %v1216
      %v1325 = vmul.f32 %v1069, %v1217
      %v1326 = vmul.f32 %v1071, %v1218
      %v1327 = vmul.f32 %v1073, %v1219
      %v1328 = vmul.f32 %v1075, %v1220
      %v1329 = vmul.f32 %v1077, %v1221
      %v1330 = vmul.f32 %v1079, %v1222
      %v1331 = vmul.f32 %v1081, %v1223
      %v1332 = vmul.f32 %v1083, %v1224
      %v1333 = vmul.f32 %v1085, %v1225
      %v1334 = vmul.f32 %v1087, %v1226
      %v1335 = vmul.f32 %v1089, %v1227
      %v1336 = vmul.f32 %v1091, %v1228
      %v1337 = vmul.f32 %v1093, %v1229
      %v1338 = vmul.f32 %v1095, %v1230
      %v1339 = vmul.f32 %v1097, %v1231
      %v1340 = vmul.f32 %v1099, %v1232
      %v1341 = vmul.f32 %v1101, %v1233
      %v1342 = vmul.f32 %v1103, %v1234
      %v1343 = vmul.f32 %v1105, %v1235
      %v1344 = vmul.f32 %v1107, %v1236
      %v1345 = vmul.f32 %v1109, %v1237
      %v1346 = vmul.f32 %v1111, %v1238
      %v1347 = vmul.f32 %v1113, %v1239
      %v1348 = vmul.f32 %v1115, %v1240
      %v1349 = vmul.f32 %v1117, %v1241
      %v1350 = vmul.f32 %v1119, %v1242
      %v1351 = vmul.f32 %v1121, %v1243
      %v1352 = vmul.f32 %v1123, %v1244
      %v1353 = vmul.f32 %v1125, %v1245
      %v1354 = vmul.f32 %v1127, %v1246
      %v1355 = vmul.f32 %v1129, %v1247
      %v1356 = vmul.f32 %v1131, %v1248
      %v1357 = vmul.f32 %v1133, %v1249
      %v1358 = vmul.f32 %v1135, %v1250
      %v1359 = vmul.f32 %v1137, %v1251
      %v1360 = vmul.f32 %v1139, %v1252
      %v1361 = vmul.f32 %v1141, %v1253
      %v1362 = vmul.f32 %v1143, %v1254
      %v1363 = vmul.f32 %v1145, %v1255
      %v1364 = vmul.f32 %v1147, %v1256
      %v1365 = vmul.f32 %v1149, %v1257
      %v1366 = vsel %vm1258, %v1204, %v1312
      %v1367 = vsel %vm1259, %v1205, %v1313
      %v1368 = vsel %vm1260, %v1206, %v1314
      %v1369 = vsel %vm1261, %v1207, %v1315
      %v1370 = vsel %vm1262, %v1208, %v1316
      %v1371 = vsel %vm1263, %v1209, %v1317
      %v1372 = vsel %vm1264, %v1210, %v1318
      %v1373 = vsel %vm1265, %v1211, %v1319
      %v1374 = vsel %vm1266, %v1212, %v1320
      %v1375 = vsel %vm1267, %v1213, %v1321
      %v1376 = vsel %vm1268, %v1214, %v1322
      %v1377 = vsel %vm1269, %v1215, %v1323
      %v1378 = vsel %vm1270, %v1216, %v1324
      %v1379 = vsel %vm1271, %v1217, %v1325
      %v1380 = vsel %vm1272, %v1218, %v1326
      %v1381 = vsel %vm1273, %v1219, %v1327
      %v1382 = vsel %vm1274, %v1220, %v1328
      %v1383 = vsel %vm1275, %v1221, %v1329
      %v1384 = vsel %vm1276, %v1222, %v1330
      %v1385 = vsel %vm1277, %v1223, %v1331
      %v1386 = vsel %vm1278, %v1224, %v1332
      %v1387 = vsel %vm1279, %v1225, %v1333
      %v1388 = vsel %vm1280, %v1226, %v1334
      %v1389 = vsel %vm1281, %v1227, %v1335
      %v1390 = vsel %vm1282, %v1228, %v1336
      %v1391 = vsel %vm1283, %v1229, %v1337
      %v1392 = vsel %vm1284, %v1230, %v1338
      %v1393 = vsel %vm1285, %v1231, %v1339
      %v1394 = vsel %vm1286, %v1232, %v1340
      %v1395 = vsel %vm1287, %v1233, %v1341
      %v1396 = vsel %vm1288, %v1234, %v1342
      %v1397 = vsel %vm1289, %v1235, %v1343
      %v1398 = vsel %vm1290, %v1236, %v1344
      %v1399 = vsel %vm1291, %v1237, %v1345
      %v1400 = vsel %vm1292, %v1238, %v1346
      %v1401 = vsel %vm1293, %v1239, %v1347
      %v1402 = vsel %vm1294, %v1240, %v1348
      %v1403 = vsel %vm1295, %v1241, %v1349
      %v1404 = vsel %vm1296, %v1242, %v1350
      %v1405 = vsel %vm1297, %v1243, %v1351
      %v1406 = vsel %vm1298, %v1244, %v1352
      %v1407 = vsel %vm1299, %v1245, %v1353
      %v1408 = vsel %vm1300, %v1246, %v1354
      %v1409 = vsel %vm1301, %v1247, %v1355
      %v1410 = vsel %vm1302, %v1248, %v1356
      %v1411 = vsel %vm1303, %v1249, %v1357
      %v1412 = vsel %vm1304, %v1250, %v1358
      %v1413 = vsel %vm1305, %v1251, %v1359
      %v1414 = vsel %vm1306, %v1252, %v1360
      %v1415 = vsel %vm1307, %v1253, %v1361
      %v1416 = vsel %vm1308, %v1254, %v1362
      %v1417 = vsel %vm1309, %v1255, %v1363
      %v1418 = vsel %vm1310, %v1256, %v1364
      %v1419 = vsel %vm1311, %v1257, %v1365
      %v1420 = vmul.f32 %v880, %v1366
      %v1421 = vmul.f32 %v881, %v1367
      %v1422 = vmul.f32 %v882, %v1368
      %v1423 = vmul.f32 %v883, %v1369
      %v1424 = vmul.f32 %v884, %v1370
      %v1425 = vmul.f32 %v885, %v1371
      %v1426 = vmul.f32 %v886, %v1372
      %v1427 = vmul.f32 %v887, %v1373
      %v1428 = vmul.f32 %v888, %v1374
      %v1429 = vmul.f32 %v889, %v1375
      %v1430 = vmul.f32 %v890, %v1376
      %v1431 = vmul.f32 %v891, %v1377
      %v1432 = vmul.f32 %v892, %v1378
      %v1433 = vmul.f32 %v893, %v1379
      %v1434 = vmul.f32 %v894, %v1380
      %v1435 = vmul.f32 %v895, %v1381
      %v1436 = vmul.f32 %v896, %v1382
      %v1437 = vmul.f32 %v897, %v1383
      %v1438 = vmul.f32 %v898, %v1384
      %v1439 = vmul.f32 %v899, %v1385
      %v1440 = vmul.f32 %v900, %v1386
      %v1441 = vmul.f32 %v901, %v1387
      %v1442 = vmul.f32 %v902, %v1388
      %v1443 = vmul.f32 %v903, %v1389
      %v1444 = vmul.f32 %v904, %v1390
      %v1445 = vmul.f32 %v905, %v1391
      %v1446 = vmul.f32 %v906, %v1392
      %v1447 = vmul.f32 %v907, %v1393
      %v1448 = vmul.f32 %v908, %v1394
      %v1449 = vmul.f32 %v909, %v1395
      %v1450 = vmul.f32 %v910, %v1396
      %v1451 = vmul.f32 %v911, %v1397
      %v1452 = vmul.f32 %v912, %v1398
      %v1453 = vmul.f32 %v913, %v1399
      %v1454 = vmul.f32 %v914, %v1400
      %v1455 = vmul.f32 %v915, %v1401
      %v1456 = vmul.f32 %v916, %v1402
      %v1457 = vmul.f32 %v917, %v1403
      %v1458 = vmul.f32 %v918, %v1404
      %v1459 = vmul.f32 %v919, %v1405
      %v1460 = vmul.f32 %v920, %v1406
      %v1461 = vmul.f32 %v921, %v1407
      %v1462 = vmul.f32 %v922, %v1408
      %v1463 = vmul.f32 %v923, %v1409
      %v1464 = vmul.f32 %v924, %v1410
      %v1465 = vmul.f32 %v925, %v1411
      %v1466 = vmul.f32 %v926, %v1412
      %v1467 = vmul.f32 %v927, %v1413
      %v1468 = vmul.f32 %v928, %v1414
      %v1469 = vmul.f32 %v929, %v1415
      %v1470 = vmul.f32 %v930, %v1416
      %v1471 = vmul.f32 %v931, %v1417
      %v1472 = vmul.f32 %v932, %v1418
      %v1473 = vmul.f32 %v933, %v1419
      %v1474 = vld [vmem:[%s274] sm:$0xff]
      %v1475 = vld [vmem:[%s274 + $0x8] sm:$0xff]
      %v1476 = vld [vmem:[%s274 + $0x10] sm:$0xff]
      %v1477 = vld [vmem:[%s274 + $0x18] sm:$0xff]
      %v1478 = vld [vmem:[%s274 + $0x20] sm:$0xff]
      %v1479 = vld [vmem:[%s274 + $0x28] sm:$0xff]
      %v1480 = vld [vmem:[%s274 + $0x30] sm:$0xff]
      %v1481 = vld [vmem:[%s274 + $0x38] sm:$0xff]
      %v1482 = vld [vmem:[%s274 + $0x40] sm:$0xff]
      %v1483 = vld [vmem:[%s274 + $0x48] sm:$0xff]
      %v1484 = vld [vmem:[%s274 + $0x50] sm:$0xff]
      %v1485 = vld [vmem:[%s274 + $0x58] sm:$0xff]
      %v1486 = vld [vmem:[%s274 + $0x60] sm:$0xff]
      %v1487 = vld [vmem:[%s274 + $0x68] sm:$0xff]
      %v1488 = vld [vmem:[%s274 + $0x70] sm:$0xff]
      %v1489 = vld [vmem:[%s274 + $0x78] sm:$0xff]
      %v1490 = vld [vmem:[%s274 + $0x80] sm:$0xff]
      %v1491 = vld [vmem:[%s274 + $0x88] sm:$0xff]
      %v1492 = vld [vmem:[%s274 + $0x90] sm:$0xff]
      %v1493 = vld [vmem:[%s274 + $0x98] sm:$0xff]
      %v1494 = vld [vmem:[%s274 + $0xa0] sm:$0xff]
      %v1495 = vld [vmem:[%s274 + $0xa8] sm:$0xff]
      %v1496 = vld [vmem:[%s274 + $0xb0] sm:$0xff]
      %v1497 = vld [vmem:[%s274 + $0xb8] sm:$0xff]
      %v1498 = vld [vmem:[%s274 + $0xc0] sm:$0xff]
      %v1499 = vld [vmem:[%s274 + $0xc8] sm:$0xff]
      %v1500 = vld [vmem:[%s274 + $0xd0] sm:$0xff]
      %v1501 = vld [vmem:[%s274 + $0xd8] sm:$0xff]
      %v1502 = vld [vmem:[%s274 + $0xe0] sm:$0xff]
      %v1503 = vld [vmem:[%s274 + $0xe8] sm:$0xff]
      %v1504 = vld [vmem:[%s274 + $0xf0] sm:$0xff]
      %v1505 = vld [vmem:[%s274 + $0xf8] sm:$0xff]
      %v1506 = vld [vmem:[%s274 + $0x100] sm:$0xff]
      %v1507 = vld [vmem:[%s274 + $0x108] sm:$0xff]
      %v1508 = vld [vmem:[%s274 + $0x110] sm:$0xff]
      %v1509 = vld [vmem:[%s274 + $0x118] sm:$0xff]
      %v1510 = vld [vmem:[%s274 + $0x120] sm:$0xff]
      %v1511 = vld [vmem:[%s274 + $0x128] sm:$0xff]
      %v1512 = vld [vmem:[%s274 + $0x130] sm:$0xff]
      %v1513 = vld [vmem:[%s274 + $0x138] sm:$0xff]
      %v1514 = vld [vmem:[%s274 + $0x140] sm:$0xff]
      %v1515 = vld [vmem:[%s274 + $0x148] sm:$0xff]
      %v1516 = vld [vmem:[%s274 + $0x150] sm:$0xff]
      %v1517 = vld [vmem:[%s274 + $0x158] sm:$0xff]
      %v1518 = vld [vmem:[%s274 + $0x160] sm:$0xff]
      %v1519 = vld [vmem:[%s274 + $0x168] sm:$0xff]
      %v1520 = vld [vmem:[%s274 + $0x170] sm:$0xff]
      %v1521 = vld [vmem:[%s274 + $0x178] sm:$0xff]
      %v1522 = vld [vmem:[%s274 + $0x180] sm:$0xff]
      %v1523 = vld [vmem:[%s274 + $0x188] sm:$0xff]
      %v1524 = vld [vmem:[%s274 + $0x190] sm:$0xff]
      %v1525 = vld [vmem:[%s274 + $0x198] sm:$0xff]
      %v1526 = vld [vmem:[%s274 + $0x1a0] sm:$0xff]
      %v1527 = vld [vmem:[%s274 + $0x1a8] sm:$0xff]
      %1529 = vset.pattern.permute.xlu0 0
      %1530 = vperm.xlu0 %1529, %v1474
      %v1531 = vpop.permute.xlu0 %1530
      %1534 = vset.pattern.permute.xlu0 0
      %1535 = vperm.xlu0 %1534, %v1475
      %v1536 = vpop.permute.xlu0 %1535
      %1539 = vset.pattern.permute.xlu0 0
      %1540 = vperm.xlu0 %1539, %v1476
      %v1541 = vpop.permute.xlu0 %1540
      %1544 = vset.pattern.permute.xlu0 0
      %1545 = vperm.xlu0 %1544, %v1477
      %v1546 = vpop.permute.xlu0 %1545
      %1549 = vset.pattern.permute.xlu0 0
      %1550 = vperm.xlu0 %1549, %v1478
      %v1551 = vpop.permute.xlu0 %1550
      %1554 = vset.pattern.permute.xlu0 0
      %1555 = vperm.xlu0 %1554, %v1479
      %v1556 = vpop.permute.xlu0 %1555
      %1559 = vset.pattern.permute.xlu0 0
      %1560 = vperm.xlu0 %1559, %v1480
      %v1561 = vpop.permute.xlu0 %1560
      %1564 = vset.pattern.permute.xlu0 0
      %1565 = vperm.xlu0 %1564, %v1481
      %v1566 = vpop.permute.xlu0 %1565
      %1569 = vset.pattern.permute.xlu0 0
      %1570 = vperm.xlu0 %1569, %v1482
      %v1571 = vpop.permute.xlu0 %1570
      %1574 = vset.pattern.permute.xlu0 0
      %1575 = vperm.xlu0 %1574, %v1483
      %v1576 = vpop.permute.xlu0 %1575
      %1579 = vset.pattern.permute.xlu0 0
      %1580 = vperm.xlu0 %1579, %v1484
      %v1581 = vpop.permute.xlu0 %1580
      %1584 = vset.pattern.permute.xlu0 0
      %1585 = vperm.xlu0 %1584, %v1485
      %v1586 = vpop.permute.xlu0 %1585
      %1589 = vset.pattern.permute.xlu0 0
      %1590 = vperm.xlu0 %1589, %v1486
      %v1591 = vpop.permute.xlu0 %1590
      %1594 = vset.pattern.permute.xlu0 0
      %1595 = vperm.xlu0 %1594, %v1487
      %v1596 = vpop.permute.xlu0 %1595
      %1599 = vset.pattern.permute.xlu0 0
      %1600 = vperm.xlu0 %1599, %v1488
      %v1601 = vpop.permute.xlu0 %1600
      %1604 = vset.pattern.permute.xlu0 0
      %1605 = vperm.xlu0 %1604, %v1489
      %v1606 = vpop.permute.xlu0 %1605
      %1609 = vset.pattern.permute.xlu0 0
      %1610 = vperm.xlu0 %1609, %v1490
      %v1611 = vpop.permute.xlu0 %1610
      %1614 = vset.pattern.permute.xlu0 0
      %1615 = vperm.xlu0 %1614, %v1491
      %v1616 = vpop.permute.xlu0 %1615
      %1619 = vset.pattern.permute.xlu0 0
      %1620 = vperm.xlu0 %1619, %v1492
      %v1621 = vpop.permute.xlu0 %1620
      %1624 = vset.pattern.permute.xlu0 0
      %1625 = vperm.xlu0 %1624, %v1493
      %v1626 = vpop.permute.xlu0 %1625
      %1629 = vset.pattern.permute.xlu0 0
      %1630 = vperm.xlu0 %1629, %v1494
      %v1631 = vpop.permute.xlu0 %1630
      %1634 = vset.pattern.permute.xlu0 0
      %1635 = vperm.xlu0 %1634, %v1495
      %v1636 = vpop.permute.xlu0 %1635
      %1639 = vset.pattern.permute.xlu0 0
      %1640 = vperm.xlu0 %1639, %v1496
      %v1641 = vpop.permute.xlu0 %1640
      %1644 = vset.pattern.permute.xlu0 0
      %1645 = vperm.xlu0 %1644, %v1497
      %v1646 = vpop.permute.xlu0 %1645
      %1649 = vset.pattern.permute.xlu0 0
      %1650 = vperm.xlu0 %1649, %v1498
      %v1651 = vpop.permute.xlu0 %1650
      %1654 = vset.pattern.permute.xlu0 0
      %1655 = vperm.xlu0 %1654, %v1499
      %v1656 = vpop.permute.xlu0 %1655
      %1659 = vset.pattern.permute.xlu0 0
      %1660 = vperm.xlu0 %1659, %v1500
      %v1661 = vpop.permute.xlu0 %1660
      %1664 = vset.pattern.permute.xlu0 0
      %1665 = vperm.xlu0 %1664, %v1501
      %v1666 = vpop.permute.xlu0 %1665
      %1669 = vset.pattern.permute.xlu0 0
      %1670 = vperm.xlu0 %1669, %v1502
      %v1671 = vpop.permute.xlu0 %1670
      %1674 = vset.pattern.permute.xlu0 0
      %1675 = vperm.xlu0 %1674, %v1503
      %v1676 = vpop.permute.xlu0 %1675
      %1679 = vset.pattern.permute.xlu0 0
      %1680 = vperm.xlu0 %1679, %v1504
      %v1681 = vpop.permute.xlu0 %1680
      %1684 = vset.pattern.permute.xlu0 0
      %1685 = vperm.xlu0 %1684, %v1505
      %v1686 = vpop.permute.xlu0 %1685
      %1689 = vset.pattern.permute.xlu0 0
      %1690 = vperm.xlu0 %1689, %v1506
      %v1691 = vpop.permute.xlu0 %1690
      %1694 = vset.pattern.permute.xlu0 0
      %1695 = vperm.xlu0 %1694, %v1507
      %v1696 = vpop.permute.xlu0 %1695
      %1699 = vset.pattern.permute.xlu0 0
      %1700 = vperm.xlu0 %1699, %v1508
      %v1701 = vpop.permute.xlu0 %1700
      %1704 = vset.pattern.permute.xlu0 0
      %1705 = vperm.xlu0 %1704, %v1509
      %v1706 = vpop.permute.xlu0 %1705
      %1709 = vset.pattern.permute.xlu0 0
      %1710 = vperm.xlu0 %1709, %v1510
      %v1711 = vpop.permute.xlu0 %1710
      %1714 = vset.pattern.permute.xlu0 0
      %1715 = vperm.xlu0 %1714, %v1511
      %v1716 = vpop.permute.xlu0 %1715
      %1719 = vset.pattern.permute.xlu0 0
      %1720 = vperm.xlu0 %1719, %v1512
      %v1721 = vpop.permute.xlu0 %1720
      %1724 = vset.pattern.permute.xlu0 0
      %1725 = vperm.xlu0 %1724, %v1513
      %v1726 = vpop.permute.xlu0 %1725
      %1729 = vset.pattern.permute.xlu0 0
      %1730 = vperm.xlu0 %1729, %v1514
      %v1731 = vpop.permute.xlu0 %1730
      %1734 = vset.pattern.permute.xlu0 0
      %1735 = vperm.xlu0 %1734, %v1515
      %v1736 = vpop.permute.xlu0 %1735
      %1739 = vset.pattern.permute.xlu0 0
      %1740 = vperm.xlu0 %1739, %v1516
      %v1741 = vpop.permute.xlu0 %1740
      %1744 = vset.pattern.permute.xlu0 0
      %1745 = vperm.xlu0 %1744, %v1517
      %v1746 = vpop.permute.xlu0 %1745
      %1749 = vset.pattern.permute.xlu0 0
      %1750 = vperm.xlu0 %1749, %v1518
      %v1751 = vpop.permute.xlu0 %1750
      %1754 = vset.pattern.permute.xlu0 0
      %1755 = vperm.xlu0 %1754, %v1519
      %v1756 = vpop.permute.xlu0 %1755
      %1759 = vset.pattern.permute.xlu0 0
      %1760 = vperm.xlu0 %1759, %v1520
      %v1761 = vpop.permute.xlu0 %1760
      %1764 = vset.pattern.permute.xlu0 0
      %1765 = vperm.xlu0 %1764, %v1521
      %v1766 = vpop.permute.xlu0 %1765
      %1769 = vset.pattern.permute.xlu0 0
      %1770 = vperm.xlu0 %1769, %v1522
      %v1771 = vpop.permute.xlu0 %1770
      %1774 = vset.pattern.permute.xlu0 0
      %1775 = vperm.xlu0 %1774, %v1523
      %v1776 = vpop.permute.xlu0 %1775
      %1779 = vset.pattern.permute.xlu0 0
      %1780 = vperm.xlu0 %1779, %v1524
      %v1781 = vpop.permute.xlu0 %1780
      %1784 = vset.pattern.permute.xlu0 0
      %1785 = vperm.xlu0 %1784, %v1525
      %v1786 = vpop.permute.xlu0 %1785
      %1789 = vset.pattern.permute.xlu0 0
      %1790 = vperm.xlu0 %1789, %v1526
      %v1791 = vpop.permute.xlu0 %1790
      %1794 = vset.pattern.permute.xlu0 0
      %1795 = vperm.xlu0 %1794, %v1527
      %v1796 = vpop.permute.xlu0 %1795
      %v1798 = vmul.f32 %v1420, %v1531
      %v1799 = vmul.f32 %v1421, %v1536
      %v1800 = vmul.f32 %v1422, %v1541
      %v1801 = vmul.f32 %v1423, %v1546
      %v1802 = vmul.f32 %v1424, %v1551
      %v1803 = vmul.f32 %v1425, %v1556
      %v1804 = vmul.f32 %v1426, %v1561
      %v1805 = vmul.f32 %v1427, %v1566
      %v1806 = vmul.f32 %v1428, %v1571
      %v1807 = vmul.f32 %v1429, %v1576
      %v1808 = vmul.f32 %v1430, %v1581
      %v1809 = vmul.f32 %v1431, %v1586
      %v1810 = vmul.f32 %v1432, %v1591
      %v1811 = vmul.f32 %v1433, %v1596
      %v1812 = vmul.f32 %v1434, %v1601
      %v1813 = vmul.f32 %v1435, %v1606
      %v1814 = vmul.f32 %v1436, %v1611
      %v1815 = vmul.f32 %v1437, %v1616
      %v1816 = vmul.f32 %v1438, %v1621
      %v1817 = vmul.f32 %v1439, %v1626
      %v1818 = vmul.f32 %v1440, %v1631
      %v1819 = vmul.f32 %v1441, %v1636
      %v1820 = vmul.f32 %v1442, %v1641
      %v1821 = vmul.f32 %v1443, %v1646
      %v1822 = vmul.f32 %v1444, %v1651
      %v1823 = vmul.f32 %v1445, %v1656
      %v1824 = vmul.f32 %v1446, %v1661
      %v1825 = vmul.f32 %v1447, %v1666
      %v1826 = vmul.f32 %v1448, %v1671
      %v1827 = vmul.f32 %v1449, %v1676
      %v1828 = vmul.f32 %v1450, %v1681
      %v1829 = vmul.f32 %v1451, %v1686
      %v1830 = vmul.f32 %v1452, %v1691
      %v1831 = vmul.f32 %v1453, %v1696
      %v1832 = vmul.f32 %v1454, %v1701
      %v1833 = vmul.f32 %v1455, %v1706
      %v1834 = vmul.f32 %v1456, %v1711
      %v1835 = vmul.f32 %v1457, %v1716
      %v1836 = vmul.f32 %v1458, %v1721
      %v1837 = vmul.f32 %v1459, %v1726
      %v1838 = vmul.f32 %v1460, %v1731
      %v1839 = vmul.f32 %v1461, %v1736
      %v1840 = vmul.f32 %v1462, %v1741
      %v1841 = vmul.f32 %v1463, %v1746
      %v1842 = vmul.f32 %v1464, %v1751
      %v1843 = vmul.f32 %v1465, %v1756
      %v1844 = vmul.f32 %v1466, %v1761
      %v1845 = vmul.f32 %v1467, %v1766
      %v1846 = vmul.f32 %v1468, %v1771
      %v1847 = vmul.f32 %v1469, %v1776
      %v1848 = vmul.f32 %v1470, %v1781
      %v1849 = vmul.f32 %v1471, %v1786
      %v1850 = vmul.f32 %v1472, %v1791
      %v1851 = vmul.f32 %v1473, %v1796
      %v1852 = vpack.c.bf16 %v1799, %v1798
      %v1853 = vpack.c.bf16 %v1801, %v1800
      %v1854 = vpack.c.bf16 %v1803, %v1802
      %v1855 = vpack.c.bf16 %v1805, %v1804
      %v1856 = vpack.c.bf16 %v1807, %v1806
      %v1857 = vpack.c.bf16 %v1809, %v1808
      %v1858 = vpack.c.bf16 %v1811, %v1810
      %v1859 = vpack.c.bf16 %v1813, %v1812
      %v1860 = vpack.c.bf16 %v1815, %v1814
      %v1861 = vpack.c.bf16 %v1817, %v1816
      %v1862 = vpack.c.bf16 %v1819, %v1818
      %v1863 = vpack.c.bf16 %v1821, %v1820
      %v1864 = vpack.c.bf16 %v1823, %v1822
      %v1865 = vpack.c.bf16 %v1825, %v1824
      %v1866 = vpack.c.bf16 %v1827, %v1826
      %v1867 = vpack.c.bf16 %v1829, %v1828
      %v1868 = vpack.c.bf16 %v1831, %v1830
      %v1869 = vpack.c.bf16 %v1833, %v1832
      %v1870 = vpack.c.bf16 %v1835, %v1834
      %v1871 = vpack.c.bf16 %v1837, %v1836
      %v1872 = vpack.c.bf16 %v1839, %v1838
      %v1873 = vpack.c.bf16 %v1841, %v1840
      %v1874 = vpack.c.bf16 %v1843, %v1842
      %v1875 = vpack.c.bf16 %v1845, %v1844
      %v1876 = vpack.c.bf16 %v1847, %v1846
      %v1877 = vpack.c.bf16 %v1849, %v1848
      %v1878 = vpack.c.bf16 %v1851, %v1850
      %v1906 = vunpack.c.l.b16 %v1852
      %v1907 = vunpack.c.h.b16 %v1852
      %v1908 = vunpack.c.l.b16 %v1853
      %v1909 = vunpack.c.h.b16 %v1853
      %v1910 = vunpack.c.l.b16 %v1854
      %v1911 = vunpack.c.h.b16 %v1854
      %v1912 = vunpack.c.l.b16 %v1855
      %v1913 = vunpack.c.h.b16 %v1855
      %v1914 = vunpack.c.l.b16 %v1856
      %v1915 = vunpack.c.h.b16 %v1856
      %v1916 = vunpack.c.l.b16 %v1857
      %v1917 = vunpack.c.h.b16 %v1857
      %v1918 = vunpack.c.l.b16 %v1858
      %v1919 = vunpack.c.h.b16 %v1858
      %v1920 = vunpack.c.l.b16 %v1859
      %v1921 = vunpack.c.h.b16 %v1859
      %v1922 = vunpack.c.l.b16 %v1860
      %v1923 = vunpack.c.h.b16 %v1860
      %v1924 = vunpack.c.l.b16 %v1861
      %v1925 = vunpack.c.h.b16 %v1861
      %v1926 = vunpack.c.l.b16 %v1862
      %v1927 = vunpack.c.h.b16 %v1862
      %v1928 = vunpack.c.l.b16 %v1863
      %v1929 = vunpack.c.h.b16 %v1863
      %v1930 = vunpack.c.l.b16 %v1864
      %v1931 = vunpack.c.h.b16 %v1864
      %v1932 = vunpack.c.l.b16 %v1865
      %v1933 = vunpack.c.h.b16 %v1865
      %v1934 = vunpack.c.l.b16 %v1866
      %v1935 = vunpack.c.h.b16 %v1866
      %v1936 = vunpack.c.l.b16 %v1867
      %v1937 = vunpack.c.h.b16 %v1867
      %v1938 = vunpack.c.l.b16 %v1868
      %v1939 = vunpack.c.h.b16 %v1868
      %v1940 = vunpack.c.l.b16 %v1869
      %v1941 = vunpack.c.h.b16 %v1869
      %v1942 = vunpack.c.l.b16 %v1870
      %v1943 = vunpack.c.h.b16 %v1870
      %v1944 = vunpack.c.l.b16 %v1871
      %v1945 = vunpack.c.h.b16 %v1871
      %v1946 = vunpack.c.l.b16 %v1872
      %v1947 = vunpack.c.h.b16 %v1872
      %v1948 = vunpack.c.l.b16 %v1873
      %v1949 = vunpack.c.h.b16 %v1873
      %v1950 = vunpack.c.l.b16 %v1874
      %v1951 = vunpack.c.h.b16 %v1874
      %v1952 = vunpack.c.l.b16 %v1875
      %v1953 = vunpack.c.h.b16 %v1875
      %v1954 = vunpack.c.l.b16 %v1876
      %v1955 = vunpack.c.h.b16 %v1876
      %v1956 = vunpack.c.l.b16 %v1877
      %v1957 = vunpack.c.h.b16 %v1877
      %v1958 = vunpack.c.l.b16 %v1878
      %v1959 = vunpack.c.h.b16 %v1878
      %v1960 = vpack.c.b16 %v1906, %v1906
      %v1961 = vpack.c.b16 %v1907, %v1907
      %v1962 = vpack.c.b16 %v1908, %v1908
      %v1963 = vpack.c.b16 %v1909, %v1909
      %v1964 = vpack.c.b16 %v1910, %v1910
      %v1965 = vpack.c.b16 %v1911, %v1911
      %v1966 = vpack.c.b16 %v1912, %v1912
      %v1967 = vpack.c.b16 %v1913, %v1913
      %v1968 = vpack.c.b16 %v1914, %v1914
      %v1969 = vpack.c.b16 %v1915, %v1915
      %v1970 = vpack.c.b16 %v1916, %v1916
      %v1971 = vpack.c.b16 %v1917, %v1917
      %v1972 = vpack.c.b16 %v1918, %v1918
      %v1973 = vpack.c.b16 %v1919, %v1919
      %v1974 = vpack.c.b16 %v1920, %v1920
      %v1975 = vpack.c.b16 %v1921, %v1921
      %v1976 = vpack.c.b16 %v1922, %v1922
      %v1977 = vpack.c.b16 %v1923, %v1923
      %v1978 = vpack.c.b16 %v1924, %v1924
      %v1979 = vpack.c.b16 %v1925, %v1925
      %v1980 = vpack.c.b16 %v1926, %v1926
      %v1981 = vpack.c.b16 %v1927, %v1927
      %v1982 = vpack.c.b16 %v1928, %v1928
      %v1983 = vpack.c.b16 %v1929, %v1929
      %v1984 = vpack.c.b16 %v1930, %v1930
      %v1985 = vpack.c.b16 %v1931, %v1931
      %v1986 = vpack.c.b16 %v1932, %v1932
      %v1987 = vpack.c.b16 %v1933, %v1933
      %v1988 = vpack.c.b16 %v1934, %v1934
      %v1989 = vpack.c.b16 %v1935, %v1935
      %v1990 = vpack.c.b16 %v1936, %v1936
      %v1991 = vpack.c.b16 %v1937, %v1937
      %v1992 = vpack.c.b16 %v1938, %v1938
      %v1993 = vpack.c.b16 %v1939, %v1939
      %v1994 = vpack.c.b16 %v1940, %v1940
      %v1995 = vpack.c.b16 %v1941, %v1941
      %v1996 = vpack.c.b16 %v1942, %v1942
      %v1997 = vpack.c.b16 %v1943, %v1943
      %v1998 = vpack.c.b16 %v1944, %v1944
      %v1999 = vpack.c.b16 %v1945, %v1945
      %v2000 = vpack.c.b16 %v1946, %v1946
      %v2001 = vpack.c.b16 %v1947, %v1947
      %v2002 = vpack.c.b16 %v1948, %v1948
      %v2003 = vpack.c.b16 %v1949, %v1949
      %v2004 = vpack.c.b16 %v1950, %v1950
      %v2005 = vpack.c.b16 %v1951, %v1951
      %v2006 = vpack.c.b16 %v1952, %v1952
      %v2007 = vpack.c.b16 %v1953, %v1953
      %v2008 = vpack.c.b16 %v1954, %v1954
      %v2009 = vpack.c.b16 %v1955, %v1955
      %v2010 = vpack.c.b16 %v1956, %v1956
      %v2011 = vpack.c.b16 %v1957, %v1957
      %v2012 = vpack.c.b16 %v1958, %v1958
      %v2013 = vpack.c.b16 %v1959, %v1959
      %vm2068 = vcmask 60416
      %2069 = vst.msk [vmem:[%s284] sm:$0xf] %vm2068, %v1960
      %2070 = vst.msk [vmem:[%s284 + $0x4] sm:$0xf] %vm2068, %v1961
      %2071 = vst.msk [vmem:[%s284 + $0x8] sm:$0xf] %vm2068, %v1962
      %2072 = vst.msk [vmem:[%s284 + $0xc] sm:$0xf] %vm2068, %v1963
      %2073 = vst.msk [vmem:[%s284 + $0x10] sm:$0xf] %vm2068, %v1964
      %2074 = vst.msk [vmem:[%s284 + $0x14] sm:$0xf] %vm2068, %v1965
      %2075 = vst.msk [vmem:[%s284 + $0x18] sm:$0xf] %vm2068, %v1966
      %2076 = vst.msk [vmem:[%s284 + $0x1c] sm:$0xf] %vm2068, %v1967
      %2077 = vst.msk [vmem:[%s284 + $0x20] sm:$0xf] %vm2068, %v1968
      %2078 = vst.msk [vmem:[%s284 + $0x24] sm:$0xf] %vm2068, %v1969
      %2079 = vst.msk [vmem:[%s284 + $0x28] sm:$0xf] %vm2068, %v1970
      %2080 = vst.msk [vmem:[%s284 + $0x2c] sm:$0xf] %vm2068, %v1971
      %2081 = vst.msk [vmem:[%s284 + $0x30] sm:$0xf] %vm2068, %v1972
      %2082 = vst.msk [vmem:[%s284 + $0x34] sm:$0xf] %vm2068, %v1973
      %2083 = vst.msk [vmem:[%s284 + $0x38] sm:$0xf] %vm2068, %v1974
      %2084 = vst.msk [vmem:[%s284 + $0x3c] sm:$0xf] %vm2068, %v1975
      %2085 = vst.msk [vmem:[%s284 + $0x40] sm:$0xf] %vm2068, %v1976
      %2086 = vst.msk [vmem:[%s284 + $0x44] sm:$0xf] %vm2068, %v1977
      %2087 = vst.msk [vmem:[%s284 + $0x48] sm:$0xf] %vm2068, %v1978
      %2088 = vst.msk [vmem:[%s284 + $0x4c] sm:$0xf] %vm2068, %v1979
      %2089 = vst.msk [vmem:[%s284 + $0x50] sm:$0xf] %vm2068, %v1980
      %2090 = vst.msk [vmem:[%s284 + $0x54] sm:$0xf] %vm2068, %v1981
      %2091 = vst.msk [vmem:[%s284 + $0x58] sm:$0xf] %vm2068, %v1982
      %2092 = vst.msk [vmem:[%s284 + $0x5c] sm:$0xf] %vm2068, %v1983
      %2093 = vst.msk [vmem:[%s284 + $0x60] sm:$0xf] %vm2068, %v1984
      %2094 = vst.msk [vmem:[%s284 + $0x64] sm:$0xf] %vm2068, %v1985
      %2095 = vst.msk [vmem:[%s284 + $0x68] sm:$0xf] %vm2068, %v1986
      %2096 = vst.msk [vmem:[%s284 + $0x6c] sm:$0xf] %vm2068, %v1987
      %2097 = vst.msk [vmem:[%s284 + $0x70] sm:$0xf] %vm2068, %v1988
      %2098 = vst.msk [vmem:[%s284 + $0x74] sm:$0xf] %vm2068, %v1989
      %2099 = vst.msk [vmem:[%s284 + $0x78] sm:$0xf] %vm2068, %v1990
      %2100 = vst.msk [vmem:[%s284 + $0x7c] sm:$0xf] %vm2068, %v1991
      %2101 = vst.msk [vmem:[%s284 + $0x80] sm:$0xf] %vm2068, %v1992
      %2102 = vst.msk [vmem:[%s284 + $0x84] sm:$0xf] %vm2068, %v1993
      %2103 = vst.msk [vmem:[%s284 + $0x88] sm:$0xf] %vm2068, %v1994
      %2104 = vst.msk [vmem:[%s284 + $0x8c] sm:$0xf] %vm2068, %v1995
      %2105 = vst.msk [vmem:[%s284 + $0x90] sm:$0xf] %vm2068, %v1996
      %2106 = vst.msk [vmem:[%s284 + $0x94] sm:$0xf] %vm2068, %v1997
      %2107 = vst.msk [vmem:[%s284 + $0x98] sm:$0xf] %vm2068, %v1998
      %2108 = vst.msk [vmem:[%s284 + $0x9c] sm:$0xf] %vm2068, %v1999
      %2109 = vst.msk [vmem:[%s284 + $0xa0] sm:$0xf] %vm2068, %v2000
      %2110 = vst.msk [vmem:[%s284 + $0xa4] sm:$0xf] %vm2068, %v2001
      %2111 = vst.msk [vmem:[%s284 + $0xa8] sm:$0xf] %vm2068, %v2002
      %2112 = vst.msk [vmem:[%s284 + $0xac] sm:$0xf] %vm2068, %v2003
      %2113 = vst.msk [vmem:[%s284 + $0xb0] sm:$0xf] %vm2068, %v2004
      %2114 = vst.msk [vmem:[%s284 + $0xb4] sm:$0xf] %vm2068, %v2005
      %2115 = vst.msk [vmem:[%s284 + $0xb8] sm:$0xf] %vm2068, %v2006
      %2116 = vst.msk [vmem:[%s284 + $0xbc] sm:$0xf] %vm2068, %v2007
      %2117 = vst.msk [vmem:[%s284 + $0xc0] sm:$0xf] %vm2068, %v2008
      %2118 = vst.msk [vmem:[%s284 + $0xc4] sm:$0xf] %vm2068, %v2009
      %2119 = vst.msk [vmem:[%s284 + $0xc8] sm:$0xf] %vm2068, %v2010
      %2120 = vst.msk [vmem:[%s284 + $0xcc] sm:$0xf] %vm2068, %v2011
      %2121 = vst.msk [vmem:[%s284 + $0xd0] sm:$0xf] %vm2068, %v2012
      %2122 = vst.msk [vmem:[%s284 + $0xd4] sm:$0xf] %vm2068, %v2013
      %s2123 = smul.u32 54, %s21
      %p2124 = scmp.lt.s32.totalorder %s20, 1
      %s2125 = scalar_select %p2124, %s20, 1
      %p2126 = scmp.lt.s32.totalorder %s2123, 53
      %s2127 = scalar_select %p2126, %s2123, 53
      %s2128 = smul.addr %s2125, 54
      %s2129 = sadd.s32 %s2127, %s2128
      %s2130 = smul.addr %s2129, 4
      %s2131 = scalar_lea.vmem %s5, %s2130
      // Predicated region
      $region41: #{c3_forward.3} parent=39 // pred_check
        %p2132 = pneg %p165
      $region42: #{c3_forward.3} parent=39 // pred_check_branch
        %2134 = sbr.rel (%p2132) target = $region44
      $region43: #{c3_forward.3} parent=39 // pred_region
        %s2135 = smul.u32 54, %s21
      $region44: #{c3_forward.3} parent=39 // pred_fallthru
        _
    $region40: #{c3_forward.3} parent=5 // pred_fallthru
      _
    %p2136 = scmp.le.s32.totalorder 2, %s11
    // Predicated region
    $region45: #{c3_forward.3} parent=5 // pred_check
      %p2137 = pneg %p2136
    $region46: #{c3_forward.3} parent=5 // pred_check_branch
      %2139 = sbr.rel (%p2137) target = $region48
    $region47: #{c3_forward.3} parent=5 // pred_region
      %s2140 = ssub.s32 %s11, 2
      // Predicated region
      $region49: #{c3_forward.3} parent=47 // pred_check
        %p2141 = pneg %p171
      $region50: #{c3_forward.3} parent=47 // pred_check_branch
        %2143 = sbr.rel (%p2141) target = $region52
      $region51: #{c3_forward.3} parent=47 // pred_region
        %s2144 = smul.u32 54, %s23
        %p2145 = scmp.lt.s32.totalorder %s22, 1
        %s2146 = scalar_select %p2145, %s22, 1
        %p2147 = scmp.lt.s32.totalorder %s2144, 53
        %s2148 = scalar_select %p2147, %s2144, 53
        %s2149 = smul.addr %s2146, 54
        %s2150 = sadd.s32 %s2148, %s2149
        %s2151 = smul.addr %s2150, 4
        %s2152 = scalar_lea.vmem %s5, %s2151
      $region52: #{c3_forward.3} parent=47 // pred_fallthru
        _
    $region48: #{c3_forward.3} parent=5 // pred_fallthru
      _
  $region6: #{c3_forward.3} parent=0 // loop_footer
    %s15 = sadd.s32 1, %s11
  $region7: #{c3_forward.3} parent=0 // loop_footer_branch
    %10 = sbr.rel target = $region3
  $region8: #{c3_forward.3} parent=0 // loop_exit
    _

// kernel: c3_forward.4
$region0: #{c3_forward.4}
  #allocation0 [shape = 'u32[]', space=smem, size = 0x4, offset = 0x4, fixed_abs, tag = 'smem constant byte address 0x4 - core index']
  #allocation1 [shape = 'u32[144,128]{1,0:T(1,128)}', space=vmem, size = 0x12000, scoped, tag = 'internal scratch']
  %s0 = inlined_call_operand.vmem [shape: bf16[2,432,8], index: 0, kind: input, shape index: {}, may-alias: {0,1,2}]
  %s1 = inlined_call_operand.vmem [shape: bf16[2,432,8], index: 1, kind: input, shape index: {}, may-alias: {0,1,2}]
  %s2 = inlined_call_operand.vmem [shape: bf16[2,432,8], index: 2, kind: input, shape index: {}, may-alias: {0,1,2}]
  %s3 = inlined_call_operand.vmem [shape: f32[432,1], index: 3, kind: input, shape index: {}, may-alias: {3,4,5}]
  %s4 = inlined_call_operand.vmem [shape: f32[432,1], index: 4, kind: input, shape index: {}, may-alias: {3,4,5}]
  %s5 = inlined_call_operand.vmem [shape: f32[432,1], index: 5, kind: input, shape index: {}, may-alias: {3,4,5}]
  %s6 = inlined_call_operand.vmem [shape: bf16[4,4], index: 6, kind: input, shape index: {}]
  %s7 = inlined_call_operand.vmem [shape: f32[1,4], index: 7, kind: input, shape index: {}]
  %s8 = inlined_call_operand.vmem [shape: f32[1,4], index: 8, kind: input, shape index: {}]
  %s9 = inlined_call_operand.vmem [shape: bf16[36,4], index: 9, kind: input, shape index: {}]
  %s10 = inlined_call_operand.vmem [shape: f32[1,4], index: 10, kind: input, shape index: {}]
  %s11 = inlined_call_operand.vmem [shape: f32[1,4], index: 11, kind: input, shape index: {}]
  %s12 = inlined_call_operand.vmem [shape: bf16[2,432,8], index: 12, kind: output, shape index: {}]
  %s13 = sld [smem:[#allocation0]]
  $region81: #{c3_forward.4} parent=0
    _
  %s15 = ssub.s32 1, %s13
  %s16 = scalar_select 0, %s15, %s13
  loop: start=0, step=1, limit=4
  $region2: #{c3_forward.4} parent=0 // loop_pre_header
    _
  $region3: #{c3_forward.4} parent=0 // loop_header
    %s18 = sphi 0, %s22
    %p19 = scmp.ge.s32.totalorder %s18, 4
    %s25 = sphi 0, %s37
    %s26 = sphi 0, %s33
    %s27 = sphi 0, %s25
    %s28 = sphi 0, %s26
    %s29 = sphi 0, %s27
    %s30 = sphi 0, %s28
    %s48 = sphi 0, %s50
    %s51 = sphi 0, %s48
    %s52 = sphi 0, %s51
    %s68 = sphi 0, %s52
    %s76 = sphi 0, %s78
    %s79 = sphi 0, %s76
    %s80 = sphi 0, %s79
    %s96 = sphi 0, %s80
    %s110 = sphi 0, %s112
    %s113 = sphi 0, %s110
    %s114 = sphi 0, %s113
    %s130 = sphi 0, %s114
    %s142 = sphi 0, %s144
    %s145 = sphi 0, %s142
    %s146 = sphi 0, %s145
    %s162 = sphi 0, %s146
    %s168 = sphi 0, %s170
    %s171 = sphi 0, %s168
    %s172 = sphi 0, %s171
    %s188 = sphi 0, %s172
    %s200 = sphi 0, %s202
    %s203 = sphi 0, %s200
    %s204 = sphi 0, %s203
    %s220 = sphi 0, %s204
    %s224 = sphi 0, %s224
    %s226 = sphi 0, %s224
    %s227 = sphi 0, %s226
    %s241 = sphi 0, %s227
    %s245 = sphi 0, %s245
    %s247 = sphi 0, %s245
    %s248 = sphi 0, %s247
    %s262 = sphi 0, %s248
    %s266 = sphi 0, %s266
    %s268 = sphi 0, %s266
    %s269 = sphi 0, %s268
    %s283 = sphi 0, %s269
    %s287 = sphi 0, %s287
    %s289 = sphi 0, %s287
    %s290 = sphi 0, %s289
    %s304 = sphi 0, %s290
    %s308 = sphi 0, %s308
    %s310 = sphi 0, %s308
    %s311 = sphi 0, %s310
    %s325 = sphi 0, %s311
    %s329 = sphi 0, %s329
    %s331 = sphi 0, %s329
    %s332 = sphi 0, %s331
    %s346 = sphi 0, %s332
    %s354 = sphi 0, %s356
    %s357 = sphi 0, %s354
    %s358 = sphi 0, %s357
    %s374 = sphi 0, %s358
  $region4: #{c3_forward.4} parent=0 // loop_header_branch
    %21 = sbr.rel (%p19) target = $region8
  $region5: #{c3_forward.4} parent=0 // loop_body
    %s23 = ssub.s32 %s18, 1
    %s24 = ssub.s32 %s18, 2
    %s31 = sadd.s32 1, %s26
    %p32 = scmp.ge.s32.totalorder %s31, 1
    %s33 = scalar_select %p32, 0, %s31
    %s34 = sadd.s32 1, %s25
    %s35 = scalar_select %p32, %s34, %s25
    %p36 = scmp.ge.s32.totalorder %s35, 2
    %s37 = scalar_select %p36, 0, %s35
    %s38 = ssub.s32 %s26, 1
    %p39 = scmp.gt.s32.totalorder %s38, 0
    %s40 = scalar_select %p39, %s38, 0
    %s41 = ssub.s32 %s33, 1
    %p42 = scmp.gt.s32.totalorder %s41, 0
    %s43 = scalar_select %p42, %s41, 0
    %s44 = ssub.s32 %s25, %s37
    %s45 = ssub.s32 %s40, %s43
    %s46 = sor.u32 %s44, %s45
    %p47 = scmp.eq.s32.totalorder %s46, 0
    %s49 = sadd.s32 %s48, 1
    %s50 = scalar_select %p47, %s48, %s49
    %p53 = pneg %p47
    %p54 = scmp.eq.s32.totalorder %s18, 1
    %p55 = por %p53, %p54
    %p56 = scmp.ne.s32.totalorder %s48, %s51
    %p57 = scmp.eq.s32.totalorder %s18, 0
    %p58 = por %p56, %p57
    %p59 = scmp.ne.s32.totalorder %s48, %s51
    %p60 = scmp.eq.s32.totalorder %s23, 1
    %p61 = por %p59, %p60
    %p62 = scmp.ne.s32.totalorder %s51, %s52
    %p63 = scmp.eq.s32.totalorder %s23, 0
    %p64 = por %p62, %p63
    %p65 = scmp.ne.s32.totalorder %s51, %s52
    %p66 = scmp.eq.s32.totalorder %s24, 1
    %p67 = por %p65, %p66
    %p69 = scmp.ne.s32.totalorder %s52, %s68
    %p70 = scmp.eq.s32.totalorder %s24, 0
    %p71 = por %p69, %p70
    %s72 = ssub.s32 %s25, %s37
    %s73 = ssub.s32 %s26, %s33
    %s74 = sor.u32 %s72, %s73
    %p75 = scmp.eq.s32.totalorder %s74, 0
    %s77 = sadd.s32 %s76, 1
    %s78 = scalar_select %p75, %s76, %s77
    %p81 = pneg %p75
    %p82 = scmp.eq.s32.totalorder %s18, 1
    %p83 = por %p81, %p82
    %p84 = scmp.ne.s32.totalorder %s76, %s79
    %p85 = scmp.eq.s32.totalorder %s18, 0
    %p86 = por %p84, %p85
    %p87 = scmp.ne.s32.totalorder %s76, %s79
    %p88 = scmp.eq.s32.totalorder %s23, 1
    %p89 = por %p87, %p88
    %p90 = scmp.ne.s32.totalorder %s79, %s80
    %p91 = scmp.eq.s32.totalorder %s23, 0
    %p92 = por %p90, %p91
    %p93 = scmp.ne.s32.totalorder %s79, %s80
    %p94 = scmp.eq.s32.totalorder %s24, 1
    %p95 = por %p93, %p94
    %p97 = scmp.ne.s32.totalorder %s80, %s96
    %p98 = scmp.eq.s32.totalorder %s24, 0
    %p99 = por %p97, %p98
    %s100 = sadd.s32 %s26, 1
    %p101 = scmp.lt.s32.totalorder %s100, 0
    %s102 = scalar_select %p101, %s100, 0
    %s103 = sadd.s32 %s33, 1
    %p104 = scmp.lt.s32.totalorder %s103, 0
    %s105 = scalar_select %p104, %s103, 0
    %s106 = ssub.s32 %s25, %s37
    %s107 = ssub.s32 %s102, %s105
    %s108 = sor.u32 %s106, %s107
    %p109 = scmp.eq.s32.totalorder %s108, 0
    %s111 = sadd.s32 %s110, 1
    %s112 = scalar_select %p109, %s110, %s111
    %p115 = pneg %p109
    %p116 = scmp.eq.s32.totalorder %s18, 1
    %p117 = por %p115, %p116
    %p118 = scmp.ne.s32.totalorder %s110, %s113
    %p119 = scmp.eq.s32.totalorder %s18, 0
    %p120 = por %p118, %p119
    %p121 = scmp.ne.s32.totalorder %s110, %s113
    %p122 = scmp.eq.s32.totalorder %s23, 1
    %p123 = por %p121, %p122
    %p124 = scmp.ne.s32.totalorder %s113, %s114
    %p125 = scmp.eq.s32.totalorder %s23, 0
    %p126 = por %p124, %p125
    %p127 = scmp.ne.s32.totalorder %s113, %s114
    %p128 = scmp.eq.s32.totalorder %s24, 1
    %p129 = por %p127, %p128
    %p131 = scmp.ne.s32.totalorder %s114, %s130
    %p132 = scmp.eq.s32.totalorder %s24, 0
    %p133 = por %p131, %p132
    %s134 = ssub.s32 %s26, 1
    %p135 = scmp.gt.s32.totalorder %s134, 0
    %s136 = scalar_select %p135, %s134, 0
    %s137 = ssub.s32 %s33, 1
    %p138 = scmp.gt.s32.totalorder %s137, 0
    %s139 = scalar_select %p138, %s137, 0
    %s140 = ssub.s32 %s136, %s139
    %p141 = scmp.eq.s32.totalorder %s140, 0
    %s143 = sadd.s32 %s142, 1
    %s144 = scalar_select %p141, %s142, %s143
    %p147 = pneg %p141
    %p148 = scmp.eq.s32.totalorder %s18, 1
    %p149 = por %p147, %p148
    %p150 = scmp.ne.s32.totalorder %s142, %s145
    %p151 = scmp.eq.s32.totalorder %s18, 0
    %p152 = por %p150, %p151
    %p153 = scmp.ne.s32.totalorder %s142, %s145
    %p154 = scmp.eq.s32.totalorder %s23, 1
    %p155 = por %p153, %p154
    %p156 = scmp.ne.s32.totalorder %s145, %s146
    %p157 = scmp.eq.s32.totalorder %s23, 0
    %p158 = por %p156, %p157
    %p159 = scmp.ne.s32.totalorder %s145, %s146
    %p160 = scmp.eq.s32.totalorder %s24, 1
    %p161 = por %p159, %p160
    %p163 = scmp.ne.s32.totalorder %s146, %s162
    %p164 = scmp.eq.s32.totalorder %s24, 0
    %p165 = por %p163, %p164
    %s166 = ssub.s32 %s26, %s33
    %p167 = scmp.eq.s32.totalorder %s166, 0
    %s169 = sadd.s32 %s168, 1
    %s170 = scalar_select %p167, %s168, %s169
    %p173 = pneg %p167
    %p174 = scmp.eq.s32.totalorder %s18, 1
    %p175 = por %p173, %p174
    %p176 = scmp.ne.s32.totalorder %s168, %s171
    %p177 = scmp.eq.s32.totalorder %s18, 0
    %p178 = por %p176, %p177
    %p179 = scmp.ne.s32.totalorder %s168, %s171
    %p180 = scmp.eq.s32.totalorder %s23, 1
    %p181 = por %p179, %p180
    %p182 = scmp.ne.s32.totalorder %s171, %s172
    %p183 = scmp.eq.s32.totalorder %s23, 0
    %p184 = por %p182, %p183
    %p185 = scmp.ne.s32.totalorder %s171, %s172
    %p186 = scmp.eq.s32.totalorder %s24, 1
    %p187 = por %p185, %p186
    %p189 = scmp.ne.s32.totalorder %s172, %s188
    %p190 = scmp.eq.s32.totalorder %s24, 0
    %p191 = por %p189, %p190
    %s192 = sadd.s32 %s26, 1
    %p193 = scmp.lt.s32.totalorder %s192, 0
    %s194 = scalar_select %p193, %s192, 0
    %s195 = sadd.s32 %s33, 1
    %p196 = scmp.lt.s32.totalorder %s195, 0
    %s197 = scalar_select %p196, %s195, 0
    %s198 = ssub.s32 %s194, %s197
    %p199 = scmp.eq.s32.totalorder %s198, 0
    %s201 = sadd.s32 %s200, 1
    %s202 = scalar_select %p199, %s200, %s201
    %p205 = pneg %p199
    %p206 = scmp.eq.s32.totalorder %s18, 1
    %p207 = por %p205, %p206
    %p208 = scmp.ne.s32.totalorder %s200, %s203
    %p209 = scmp.eq.s32.totalorder %s18, 0
    %p210 = por %p208, %p209
    %p211 = scmp.ne.s32.totalorder %s200, %s203
    %p212 = scmp.eq.s32.totalorder %s23, 1
    %p213 = por %p211, %p212
    %p214 = scmp.ne.s32.totalorder %s203, %s204
    %p215 = scmp.eq.s32.totalorder %s23, 0
    %p216 = por %p214, %p215
    %p217 = scmp.ne.s32.totalorder %s203, %s204
    %p218 = scmp.eq.s32.totalorder %s24, 1
    %p219 = por %p217, %p218
    %p221 = scmp.ne.s32.totalorder %s204, %s220
    %p222 = scmp.eq.s32.totalorder %s24, 0
    %p223 = por %p221, %p222
    %s225 = sadd.s32 %s224, 1
    %p228 = scmp.eq.s32.totalorder %s18, 1
    %p229 = scmp.ne.s32.totalorder %s224, %s226
    %p230 = scmp.eq.s32.totalorder %s18, 0
    %p231 = por %p229, %p230
    %p232 = scmp.ne.s32.totalorder %s224, %s226
    %p233 = scmp.eq.s32.totalorder %s23, 1
    %p234 = por %p232, %p233
    %p235 = scmp.ne.s32.totalorder %s226, %s227
    %p236 = scmp.eq.s32.totalorder %s23, 0
    %p237 = por %p235, %p236
    %p238 = scmp.ne.s32.totalorder %s226, %s227
    %p239 = scmp.eq.s32.totalorder %s24, 1
    %p240 = por %p238, %p239
    %p242 = scmp.ne.s32.totalorder %s227, %s241
    %p243 = scmp.eq.s32.totalorder %s24, 0
    %p244 = por %p242, %p243
    %s246 = sadd.s32 %s245, 1
    %p249 = scmp.eq.s32.totalorder %s18, 1
    %p250 = scmp.ne.s32.totalorder %s245, %s247
    %p251 = scmp.eq.s32.totalorder %s18, 0
    %p252 = por %p250, %p251
    %p253 = scmp.ne.s32.totalorder %s245, %s247
    %p254 = scmp.eq.s32.totalorder %s23, 1
    %p255 = por %p253, %p254
    %p256 = scmp.ne.s32.totalorder %s247, %s248
    %p257 = scmp.eq.s32.totalorder %s23, 0
    %p258 = por %p256, %p257
    %p259 = scmp.ne.s32.totalorder %s247, %s248
    %p260 = scmp.eq.s32.totalorder %s24, 1
    %p261 = por %p259, %p260
    %p263 = scmp.ne.s32.totalorder %s248, %s262
    %p264 = scmp.eq.s32.totalorder %s24, 0
    %p265 = por %p263, %p264
    %s267 = sadd.s32 %s266, 1
    %p270 = scmp.eq.s32.totalorder %s18, 1
    %p271 = scmp.ne.s32.totalorder %s266, %s268
    %p272 = scmp.eq.s32.totalorder %s18, 0
    %p273 = por %p271, %p272
    %p274 = scmp.ne.s32.totalorder %s266, %s268
    %p275 = scmp.eq.s32.totalorder %s23, 1
    %p276 = por %p274, %p275
    %p277 = scmp.ne.s32.totalorder %s268, %s269
    %p278 = scmp.eq.s32.totalorder %s23, 0
    %p279 = por %p277, %p278
    %p280 = scmp.ne.s32.totalorder %s268, %s269
    %p281 = scmp.eq.s32.totalorder %s24, 1
    %p282 = por %p280, %p281
    %p284 = scmp.ne.s32.totalorder %s269, %s283
    %p285 = scmp.eq.s32.totalorder %s24, 0
    %p286 = por %p284, %p285
    %s288 = sadd.s32 %s287, 1
    %p291 = scmp.eq.s32.totalorder %s18, 1
    %p292 = scmp.ne.s32.totalorder %s287, %s289
    %p293 = scmp.eq.s32.totalorder %s18, 0
    %p294 = por %p292, %p293
    %p295 = scmp.ne.s32.totalorder %s287, %s289
    %p296 = scmp.eq.s32.totalorder %s23, 1
    %p297 = por %p295, %p296
    %p298 = scmp.ne.s32.totalorder %s289, %s290
    %p299 = scmp.eq.s32.totalorder %s23, 0
    %p300 = por %p298, %p299
    %p301 = scmp.ne.s32.totalorder %s289, %s290
    %p302 = scmp.eq.s32.totalorder %s24, 1
    %p303 = por %p301, %p302
    %p305 = scmp.ne.s32.totalorder %s290, %s304
    %p306 = scmp.eq.s32.totalorder %s24, 0
    %p307 = por %p305, %p306
    %s309 = sadd.s32 %s308, 1
    %p312 = scmp.eq.s32.totalorder %s18, 1
    %p313 = scmp.ne.s32.totalorder %s308, %s310
    %p314 = scmp.eq.s32.totalorder %s18, 0
    %p315 = por %p313, %p314
    %p316 = scmp.ne.s32.totalorder %s308, %s310
    %p317 = scmp.eq.s32.totalorder %s23, 1
    %p318 = por %p316, %p317
    %p319 = scmp.ne.s32.totalorder %s310, %s311
    %p320 = scmp.eq.s32.totalorder %s23, 0
    %p321 = por %p319, %p320
    %p322 = scmp.ne.s32.totalorder %s310, %s311
    %p323 = scmp.eq.s32.totalorder %s24, 1
    %p324 = por %p322, %p323
    %p326 = scmp.ne.s32.totalorder %s311, %s325
    %p327 = scmp.eq.s32.totalorder %s24, 0
    %p328 = por %p326, %p327
    %s330 = sadd.s32 %s329, 1
    %p333 = scmp.eq.s32.totalorder %s18, 1
    %p334 = scmp.ne.s32.totalorder %s329, %s331
    %p335 = scmp.eq.s32.totalorder %s18, 0
    %p336 = por %p334, %p335
    %p337 = scmp.ne.s32.totalorder %s329, %s331
    %p338 = scmp.eq.s32.totalorder %s23, 1
    %p339 = por %p337, %p338
    %p340 = scmp.ne.s32.totalorder %s331, %s332
    %p341 = scmp.eq.s32.totalorder %s23, 0
    %p342 = por %p340, %p341
    %p343 = scmp.ne.s32.totalorder %s331, %s332
    %p344 = scmp.eq.s32.totalorder %s24, 1
    %p345 = por %p343, %p344
    %p347 = scmp.ne.s32.totalorder %s332, %s346
    %p348 = scmp.eq.s32.totalorder %s24, 0
    %p349 = por %p347, %p348
    %s350 = ssub.s32 %s25, %s37
    %s351 = ssub.s32 %s26, %s33
    %s352 = sor.u32 %s350, %s351
    %p353 = scmp.eq.s32.totalorder %s352, 0
    %s355 = sadd.s32 %s354, 1
    %s356 = scalar_select %p353, %s354, %s355
    %p359 = pneg %p353
    %p360 = scmp.eq.s32.totalorder %s18, 1
    %p361 = por %p359, %p360
    %p362 = scmp.ne.s32.totalorder %s354, %s357
    %p363 = scmp.eq.s32.totalorder %s18, 0
    %p364 = por %p362, %p363
    %p365 = scmp.ne.s32.totalorder %s354, %s357
    %p366 = scmp.eq.s32.totalorder %s23, 1
    %p367 = por %p365, %p366
    %p368 = scmp.ne.s32.totalorder %s357, %s358
    %p369 = scmp.eq.s32.totalorder %s23, 0
    %p370 = por %p368, %p369
    %p371 = scmp.ne.s32.totalorder %s357, %s358
    %p372 = scmp.eq.s32.totalorder %s24, 1
    %p373 = por %p371, %p372
    %p375 = scmp.ne.s32.totalorder %s358, %s374
    %p376 = scmp.eq.s32.totalorder %s24, 0
    %p377 = por %p375, %p376
    %p378 = scmp.le.s32.totalorder 1, %s18
    %p379 = scmp.lt.s32.totalorder %s18, 3
    %p380 = pnand %p378, %p379
    %p381 = pneg %p380
    // Predicated region
    $region9: #{c3_forward.4} parent=5 // pred_check
      _
    $region10: #{c3_forward.4} parent=5 // pred_check_branch
      %383 = sbr.rel (%p380) target = $region12
    $region11: #{c3_forward.4} parent=5 // pred_region
      %s384 = ssub.s32 %s18, 1
      // Predicated region
      $region13: #{c3_forward.4} parent=11 // pred_check
        %p385 = pneg %p158
      $region14: #{c3_forward.4} parent=11 // pred_check_branch
        %387 = sbr.rel (%p385) target = $region16
      $region15: #{c3_forward.4} parent=11 // pred_region
        %s388 = ssub.s32 %s28, 1
        %p389 = scmp.gt.s32.totalorder %s388, 0
        %s390 = scalar_select %p389, %s388, 0
        %s391 = smul.u32 54, %s390
        %p392 = scmp.lt.s32.totalorder %s391, 53
        %s393 = scalar_select %p392, %s391, 53
        %s394 = smul.addr %s393, 8
        %s395 = scalar_lea.vmem %s3, %s394
        %s396 = ssub.s32 %s28, 1
        %p397 = scmp.gt.s32.totalorder %s396, 0
        %s398 = scalar_select %p397, %s396, 0
        %s399 = smul.u32 54, %s398
      $region16: #{c3_forward.4} parent=11 // pred_fallthru
        _
      // Predicated region
      $region17: #{c3_forward.4} parent=11 // pred_check
        %p400 = pneg %p184
      $region18: #{c3_forward.4} parent=11 // pred_check_branch
        %402 = sbr.rel (%p400) target = $region20
      $region19: #{c3_forward.4} parent=11 // pred_region
        %s403 = smul.u32 54, %s28
        %p404 = scmp.lt.s32.totalorder %s403, 53
        %s405 = scalar_select %p404, %s403, 53
        %s406 = smul.addr %s405, 8
        %s407 = scalar_lea.vmem %s4, %s406
        %s408 = smul.u32 54, %s28
      $region20: #{c3_forward.4} parent=11 // pred_fallthru
        _
      // Predicated region
      $region21: #{c3_forward.4} parent=11 // pred_check
        %p409 = pneg %p216
      $region22: #{c3_forward.4} parent=11 // pred_check_branch
        %411 = sbr.rel (%p409) target = $region24
      $region23: #{c3_forward.4} parent=11 // pred_region
        %s412 = sadd.s32 %s28, 1
        %p413 = scmp.lt.s32.totalorder %s412, 0
        %s414 = scalar_select %p413, %s412, 0
        %s415 = smul.u32 54, %s414
        %p416 = scmp.lt.s32.totalorder %s415, 53
        %s417 = scalar_select %p416, %s415, 53
        %s418 = smul.addr %s417, 8
        %s419 = scalar_lea.vmem %s5, %s418
        %s420 = sadd.s32 %s28, 1
        %p421 = scmp.lt.s32.totalorder %s420, 0
        %s422 = scalar_select %p421, %s420, 0
        %s423 = smul.u32 54, %s422
      $region24: #{c3_forward.4} parent=11 // pred_fallthru
        _
      // Predicated region
      $region25: #{c3_forward.4} parent=11 // pred_check
        %p424 = pneg %p237
      $region26: #{c3_forward.4} parent=11 // pred_check_branch
        %426 = sbr.rel (%p424) target = $region28
      $region27: #{c3_forward.4} parent=11 // pred_region
        _
      $region28: #{c3_forward.4} parent=11 // pred_fallthru
        _
      // Predicated region
      $region29: #{c3_forward.4} parent=11 // pred_check
        %p427 = pneg %p258
      $region30: #{c3_forward.4} parent=11 // pred_check_branch
        %429 = sbr.rel (%p427) target = $region32
      $region31: #{c3_forward.4} parent=11 // pred_region
        _
      $region32: #{c3_forward.4} parent=11 // pred_fallthru
        _
      // Predicated region
      $region33: #{c3_forward.4} parent=11 // pred_check
        %p430 = pneg %p279
      $region34: #{c3_forward.4} parent=11 // pred_check_branch
        %432 = sbr.rel (%p430) target = $region36
      $region35: #{c3_forward.4} parent=11 // pred_region
        _
      $region36: #{c3_forward.4} parent=11 // pred_fallthru
        _
      // Predicated region
      $region37: #{c3_forward.4} parent=11 // pred_check
        %p433 = pneg %p300
      $region38: #{c3_forward.4} parent=11 // pred_check_branch
        %435 = sbr.rel (%p433) target = $region40
      $region39: #{c3_forward.4} parent=11 // pred_region
        _
      $region40: #{c3_forward.4} parent=11 // pred_fallthru
        _
      // Predicated region
      $region41: #{c3_forward.4} parent=11 // pred_check
        %p436 = pneg %p321
      $region42: #{c3_forward.4} parent=11 // pred_check_branch
        %438 = sbr.rel (%p436) target = $region44
      $region43: #{c3_forward.4} parent=11 // pred_region
        _
      $region44: #{c3_forward.4} parent=11 // pred_fallthru
        _
      // Predicated region
      $region45: #{c3_forward.4} parent=11 // pred_check
        %p439 = pneg %p342
      $region46: #{c3_forward.4} parent=11 // pred_check_branch
        %441 = sbr.rel (%p439) target = $region48
      $region47: #{c3_forward.4} parent=11 // pred_region
        _
      $region48: #{c3_forward.4} parent=11 // pred_fallthru
        _
    $region12: #{c3_forward.4} parent=5 // pred_fallthru
      _
    %p442 = scmp.lt.s32.totalorder %s18, 2
    // Predicated region
    $region49: #{c3_forward.4} parent=5 // pred_check
      %p443 = pneg %p442
    $region50: #{c3_forward.4} parent=5 // pred_check_branch
      %445 = sbr.rel (%p443) target = $region52
    $region51: #{c3_forward.4} parent=5 // pred_region
      // Predicated region
      $region53: #{c3_forward.4} parent=51 // pred_check
        %p446 = pneg %p58
      $region54: #{c3_forward.4} parent=51 // pred_check_branch
        %448 = sbr.rel (%p446) target = $region56
      $region55: #{c3_forward.4} parent=51 // pred_region
        %s449 = ssub.s32 %s26, 1
        %p450 = scmp.gt.s32.totalorder %s449, 0
        %s451 = scalar_select %p450, %s449, 0
        %s452 = smul.u32 54, %s451
        %p453 = scmp.lt.s32.totalorder %s25, 1
        %s454 = scalar_select %p453, %s25, 1
        %p455 = scmp.lt.s32.totalorder %s452, 53
        %s456 = scalar_select %p455, %s452, 53
        %s457 = smul.addr %s454, 54
        %s458 = sadd.s32 %s456, %s457
        %s459 = smul.addr %s458, 4
        %s460 = scalar_lea.vmem %s0, %s459
        %s461 = ssub.s32 %s26, 1
        %p462 = scmp.gt.s32.totalorder %s461, 0
        %s463 = scalar_select %p462, %s461, 0
        %s464 = smul.u32 54, %s463
      $region56: #{c3_forward.4} parent=51 // pred_fallthru
        _
      // Predicated region
      $region57: #{c3_forward.4} parent=51 // pred_check
        %p465 = pneg %p86
      $region58: #{c3_forward.4} parent=51 // pred_check_branch
        %467 = sbr.rel (%p465) target = $region60
      $region59: #{c3_forward.4} parent=51 // pred_region
        %s468 = smul.u32 54, %s26
        %p469 = scmp.lt.s32.totalorder %s25, 1
        %s470 = scalar_select %p469, %s25, 1
        %p471 = scmp.lt.s32.totalorder %s468, 53
        %s472 = scalar_select %p471, %s468, 53
        %s473 = smul.addr %s470, 54
        %s474 = sadd.s32 %s472, %s473
        %s475 = smul.addr %s474, 4
        %s476 = scalar_lea.vmem %s1, %s475
        %s477 = smul.u32 54, %s26
      $region60: #{c3_forward.4} parent=51 // pred_fallthru
        _
      // Predicated region
      $region61: #{c3_forward.4} parent=51 // pred_check
        %p478 = pneg %p120
      $region62: #{c3_forward.4} parent=51 // pred_check_branch
        %480 = sbr.rel (%p478) target = $region64
      $region63: #{c3_forward.4} parent=51 // pred_region
        %s481 = sadd.s32 %s26, 1
        %p482 = scmp.lt.s32.totalorder %s481, 0
        %s483 = scalar_select %p482, %s481, 0
        %s484 = smul.u32 54, %s483
        %p485 = scmp.lt.s32.totalorder %s25, 1
        %s486 = scalar_select %p485, %s25, 1
        %p487 = scmp.lt.s32.totalorder %s484, 53
        %s488 = scalar_select %p487, %s484, 53
        %s489 = smul.addr %s486, 54
        %s490 = sadd.s32 %s488, %s489
        %s491 = smul.addr %s490, 4
        %s492 = scalar_lea.vmem %s2, %s491
        %s493 = sadd.s32 %s26, 1
        %p494 = scmp.lt.s32.totalorder %s493, 0
        %s495 = scalar_select %p494, %s493, 0
        %s496 = smul.u32 54, %s495
      $region64: #{c3_forward.4} parent=51 // pred_fallthru
        _
    $region52: #{c3_forward.4} parent=5 // pred_fallthru
      _
    %p497 = scmp.le.s32.totalorder 1, %s18
    %p498 = scmp.lt.s32.totalorder %s18, 3
    %p499 = pnand %p497, %p498
    %p500 = pneg %p499
    // Predicated region
    $region65: #{c3_forward.4} parent=5 // pred_check
      _
    $region66: #{c3_forward.4} parent=5 // pred_check_branch
      %502 = sbr.rel (%p499) target = $region68
    $region67: #{c3_forward.4} parent=5 // pred_region
      %s503 = ssub.s32 %s18, 1
      %s504 = ssub.s32 %s28, 1
      %p505 = scmp.gt.s32.totalorder %s504, 0
      %s506 = scalar_select %p505, %s504, 0
      %s507 = smul.u32 54, %s506
      %p508 = scmp.lt.s32.totalorder %s27, 1
      %s509 = scalar_select %p508, %s27, 1
      %p510 = scmp.lt.s32.totalorder %s507, 53
      %s511 = scalar_select %p510, %s507, 53
      %s512 = smul.addr %s509, 54
      %s513 = sadd.s32 %s511, %s512
      %s514 = smul.addr %s513, 4
      %s515 = scalar_lea.vmem %s0, %s514
      %p516 = pneg %p64
      %p517 = pneg %p61
      %s518 = smul.u32 54, %s28
      %p519 = scmp.lt.s32.totalorder %s27, 1
      %s520 = scalar_select %p519, %s27, 1
      %p521 = scmp.lt.s32.totalorder %s518, 53
      %s522 = scalar_select %p521, %s518, 53
      %s523 = smul.addr %s520, 54
      %s524 = sadd.s32 %s522, %s523
      %s525 = smul.addr %s524, 4
      %s526 = scalar_lea.vmem %s1, %s525
      %p527 = pneg %p92
      %p528 = pneg %p89
      %s529 = sadd.s32 %s28, 1
      %p530 = scmp.lt.s32.totalorder %s529, 0
      %s531 = scalar_select %p530, %s529, 0
      %s532 = smul.u32 54, %s531
      %p533 = scmp.lt.s32.totalorder %s27, 1
      %s534 = scalar_select %p533, %s27, 1
      %p535 = scmp.lt.s32.totalorder %s532, 53
      %s536 = scalar_select %p535, %s532, 53
      %s537 = smul.addr %s534, 54
      %s538 = sadd.s32 %s536, %s537
      %s539 = smul.addr %s538, 4
      %s540 = scalar_lea.vmem %s2, %s539
      %p541 = pneg %p126
      %p542 = pneg %p123
      %s543 = ssub.s32 %s28, 1
      %p544 = scmp.gt.s32.totalorder %s543, 0
      %s545 = scalar_select %p544, %s543, 0
      %s546 = smul.u32 54, %s545
      %p547 = scmp.lt.s32.totalorder %s546, 53
      %s548 = scalar_select %p547, %s546, 53
      %s549 = smul.addr %s548, 8
      %s550 = scalar_lea.vmem %s3, %s549
      %p551 = pneg %p158
      %p552 = pneg %p155
      %s553 = smul.u32 54, %s28
      %p554 = scmp.lt.s32.totalorder %s553, 53
      %s555 = scalar_select %p554, %s553, 53
      %s556 = smul.addr %s555, 8
      %s557 = scalar_lea.vmem %s4, %s556
      %p558 = pneg %p184
      %p559 = pneg %p181
      %s560 = sadd.s32 %s28, 1
      %p561 = scmp.lt.s32.totalorder %s560, 0
      %s562 = scalar_select %p561, %s560, 0
      %s563 = smul.u32 54, %s562
      %p564 = scmp.lt.s32.totalorder %s563, 53
      %s565 = scalar_select %p564, %s563, 53
      %s566 = smul.addr %s565, 8
      %s567 = scalar_lea.vmem %s5, %s566
      %p568 = pneg %p216
      %p569 = pneg %p213
      %p570 = pneg %p237
      %p571 = pneg %p234
      %p572 = pneg %p258
      %p573 = pneg %p255
      %p574 = pneg %p279
      %p575 = pneg %p276
      %p576 = pneg %p300
      %p577 = pneg %p297
      %p578 = pneg %p321
      %p579 = pneg %p318
      %p580 = pneg %p342
      %p581 = pneg %p339
      %p582 = pneg %p370
      %p583 = pneg %p367
      %s584 = smul.u32 54, %s28
      %p585 = scmp.lt.s32.totalorder %s27, 1
      %s586 = scalar_select %p585, %s27, 1
      %p587 = scmp.lt.s32.totalorder %s584, 53
      %s588 = scalar_select %p587, %s584, 53
      %s589 = smul.addr %s586, 54
      %s590 = sadd.s32 %s588, %s589
      %s591 = smul.addr %s590, 4
      %s592 = scalar_lea.vmem %s12, %s591
      %s593 = ssub.s32 %s28, 1
      %p594 = scmp.gt.s32.totalorder %s593, 0
      %s595 = scalar_select %p594, %s593, 0
      %s596 = smul.u32 54, %s595
      %p597 = scmp.lt.s32.totalorder %s27, 1
      %s598 = scalar_select %p597, %s27, 1
      %p599 = scmp.lt.s32.totalorder %s596, 53
      %s600 = scalar_select %p599, %s596, 53
      %s601 = smul.addr %s598, 54
      %s602 = sadd.s32 %s600, %s601
      %s603 = smul.addr %s602, 4
      %s604 = scalar_lea.vmem %s0, %s603
      %s605 = ssub.s32 %s28, 1
      %p606 = scmp.gt.s32.totalorder %s605, 0
      %s607 = scalar_select %p606, %s605, 0
      %s608 = smul.u32 54, %s607
      %s609 = smul.u32 54, %s28
      %p610 = scmp.lt.s32.totalorder %s27, 1
      %s611 = scalar_select %p610, %s27, 1
      %p612 = scmp.lt.s32.totalorder %s609, 53
      %s613 = scalar_select %p612, %s609, 53
      %s614 = smul.addr %s611, 54
      %s615 = sadd.s32 %s613, %s614
      %s616 = smul.addr %s615, 4
      %s617 = scalar_lea.vmem %s1, %s616
      %s618 = smul.u32 54, %s28
      %s619 = sadd.s32 %s28, 1
      %p620 = scmp.lt.s32.totalorder %s619, 0
      %s621 = scalar_select %p620, %s619, 0
      %s622 = smul.u32 54, %s621
      %p623 = scmp.lt.s32.totalorder %s27, 1
      %s624 = scalar_select %p623, %s27, 1
      %p625 = scmp.lt.s32.totalorder %s622, 53
      %s626 = scalar_select %p625, %s622, 53
      %s627 = smul.addr %s624, 54
      %s628 = sadd.s32 %s626, %s627
      %s629 = smul.addr %s628, 4
      %s630 = scalar_lea.vmem %s2, %s629
      %s631 = sadd.s32 %s28, 1
      %p632 = scmp.lt.s32.totalorder %s631, 0
      %s633 = scalar_select %p632, %s631, 0
      %s634 = smul.u32 54, %s633
      %s635 = ssub.s32 %s28, 1
      %p636 = scmp.gt.s32.totalorder %s635, 0
      %s637 = scalar_select %p636, %s635, 0
      %s638 = smul.u32 54, %s637
      %p639 = scmp.lt.s32.totalorder %s638, 53
      %s640 = scalar_select %p639, %s638, 53
      %s641 = smul.addr %s640, 8
      %s642 = scalar_lea.vmem %s3, %s641
      %s643 = ssub.s32 %s28, 1
      %p644 = scmp.gt.s32.totalorder %s643, 0
      %s645 = scalar_select %p644, %s643, 0
      %s646 = smul.u32 54, %s645
      %s647 = smul.u32 54, %s28
      %p648 = scmp.lt.s32.totalorder %s647, 53
      %s649 = scalar_select %p648, %s647, 53
      %s650 = smul.addr %s649, 8
      %s651 = scalar_lea.vmem %s4, %s650
      %s652 = smul.u32 54, %s28
      %s653 = sadd.s32 %s28, 1
      %p654 = scmp.lt.s32.totalorder %s653, 0
      %s655 = scalar_select %p654, %s653, 0
      %s656 = smul.u32 54, %s655
      %p657 = scmp.lt.s32.totalorder %s656, 53
      %s658 = scalar_select %p657, %s656, 53
      %s659 = smul.addr %s658, 8
      %s660 = scalar_lea.vmem %s5, %s659
      %s661 = sadd.s32 %s28, 1
      %p662 = scmp.lt.s32.totalorder %s661, 0
      %s663 = scalar_select %p662, %s661, 0
      %s664 = smul.u32 54, %s663
      %s665 = smul.u32 54, %s28
      %p666 = scmp.lt.s32.totalorder %s27, 1
      %s667 = scalar_select %p666, %s27, 1
      %p668 = scmp.lt.s32.totalorder %s665, 53
      %s669 = scalar_select %p668, %s665, 53
      %s670 = smul.addr %s667, 54
      %s671 = sadd.s32 %s669, %s670
      %s672 = smul.addr %s671, 4
      %s673 = scalar_lea.vmem %s12, %s672
      %s674 = smul.u32 54, %s28
      %v676 = vld [vmem:[%s617] sm:$0xf]
      %v677 = vld [vmem:[%s617 + $0x4] sm:$0xf]
      %v678 = vld [vmem:[%s617 + $0x8] sm:$0xf]
      %v679 = vld [vmem:[%s617 + $0xc] sm:$0xf]
      %v680 = vld [vmem:[%s617 + $0x10] sm:$0xf]
      %v681 = vld [vmem:[%s617 + $0x14] sm:$0xf]
      %v682 = vld [vmem:[%s617 + $0x18] sm:$0xf]
      %v683 = vld [vmem:[%s617 + $0x1c] sm:$0xf]
      %v684 = vld [vmem:[%s617 + $0x20] sm:$0xf]
      %v685 = vld [vmem:[%s617 + $0x24] sm:$0xf]
      %v686 = vld [vmem:[%s617 + $0x28] sm:$0xf]
      %v687 = vld [vmem:[%s617 + $0x2c] sm:$0xf]
      %v688 = vld [vmem:[%s617 + $0x30] sm:$0xf]
      %v689 = vld [vmem:[%s617 + $0x34] sm:$0xf]
      %v690 = vld [vmem:[%s617 + $0x38] sm:$0xf]
      %v691 = vld [vmem:[%s617 + $0x3c] sm:$0xf]
      %v692 = vld [vmem:[%s617 + $0x40] sm:$0xf]
      %v693 = vld [vmem:[%s617 + $0x44] sm:$0xf]
      %v694 = vld [vmem:[%s617 + $0x48] sm:$0xf]
      %v695 = vld [vmem:[%s617 + $0x4c] sm:$0xf]
      %v696 = vld [vmem:[%s617 + $0x50] sm:$0xf]
      %v697 = vld [vmem:[%s617 + $0x54] sm:$0xf]
      %v698 = vld [vmem:[%s617 + $0x58] sm:$0xf]
      %v699 = vld [vmem:[%s617 + $0x5c] sm:$0xf]
      %v700 = vld [vmem:[%s617 + $0x60] sm:$0xf]
      %v701 = vld [vmem:[%s617 + $0x64] sm:$0xf]
      %v702 = vld [vmem:[%s617 + $0x68] sm:$0xf]
      %v703 = vld [vmem:[%s617 + $0x6c] sm:$0xf]
      %v704 = vld [vmem:[%s617 + $0x70] sm:$0xf]
      %v705 = vld [vmem:[%s617 + $0x74] sm:$0xf]
      %v706 = vld [vmem:[%s617 + $0x78] sm:$0xf]
      %v707 = vld [vmem:[%s617 + $0x7c] sm:$0xf]
      %v708 = vld [vmem:[%s617 + $0x80] sm:$0xf]
      %v709 = vld [vmem:[%s617 + $0x84] sm:$0xf]
      %v710 = vld [vmem:[%s617 + $0x88] sm:$0xf]
      %v711 = vld [vmem:[%s617 + $0x8c] sm:$0xf]
      %v712 = vld [vmem:[%s617 + $0x90] sm:$0xf]
      %v713 = vld [vmem:[%s617 + $0x94] sm:$0xf]
      %v714 = vld [vmem:[%s617 + $0x98] sm:$0xf]
      %v715 = vld [vmem:[%s617 + $0x9c] sm:$0xf]
      %v716 = vld [vmem:[%s617 + $0xa0] sm:$0xf]
      %v717 = vld [vmem:[%s617 + $0xa4] sm:$0xf]
      %v718 = vld [vmem:[%s617 + $0xa8] sm:$0xf]
      %v719 = vld [vmem:[%s617 + $0xac] sm:$0xf]
      %v720 = vld [vmem:[%s617 + $0xb0] sm:$0xf]
      %v721 = vld [vmem:[%s617 + $0xb4] sm:$0xf]
      %v722 = vld [vmem:[%s617 + $0xb8] sm:$0xf]
      %v723 = vld [vmem:[%s617 + $0xbc] sm:$0xf]
      %v724 = vld [vmem:[%s617 + $0xc0] sm:$0xf]
      %v725 = vld [vmem:[%s617 + $0xc4] sm:$0xf]
      %v726 = vld [vmem:[%s617 + $0xc8] sm:$0xf]
      %v727 = vld [vmem:[%s617 + $0xcc] sm:$0xf]
      %v728 = vld [vmem:[%s617 + $0xd0] sm:$0xf]
      %v729 = vld [vmem:[%s617 + $0xd4] sm:$0xf]
      %v730 = vld [vmem:[%s651] sm:$0xff]
      %v731 = vld [vmem:[%s651 + $0x8] sm:$0xff]
      %v732 = vld [vmem:[%s651 + $0x10] sm:$0xff]
      %v733 = vld [vmem:[%s651 + $0x18] sm:$0xff]
      %v734 = vld [vmem:[%s651 + $0x20] sm:$0xff]
      %v735 = vld [vmem:[%s651 + $0x28] sm:$0xff]
      %v736 = vld [vmem:[%s651 + $0x30] sm:$0xff]
      %v737 = vld [vmem:[%s651 + $0x38] sm:$0xff]
      %v738 = vld [vmem:[%s651 + $0x40] sm:$0xff]
      %v739 = vld [vmem:[%s651 + $0x48] sm:$0xff]
      %v740 = vld [vmem:[%s651 + $0x50] sm:$0xff]
      %v741 = vld [vmem:[%s651 + $0x58] sm:$0xff]
      %v742 = vld [vmem:[%s651 + $0x60] sm:$0xff]
      %v743 = vld [vmem:[%s651 + $0x68] sm:$0xff]
      %v744 = vld [vmem:[%s651 + $0x70] sm:$0xff]
      %v745 = vld [vmem:[%s651 + $0x78] sm:$0xff]
      %v746 = vld [vmem:[%s651 + $0x80] sm:$0xff]
      %v747 = vld [vmem:[%s651 + $0x88] sm:$0xff]
      %v748 = vld [vmem:[%s651 + $0x90] sm:$0xff]
      %v749 = vld [vmem:[%s651 + $0x98] sm:$0xff]
      %v750 = vld [vmem:[%s651 + $0xa0] sm:$0xff]
      %v751 = vld [vmem:[%s651 + $0xa8] sm:$0xff]
      %v752 = vld [vmem:[%s651 + $0xb0] sm:$0xff]
      %v753 = vld [vmem:[%s651 + $0xb8] sm:$0xff]
      %v754 = vld [vmem:[%s651 + $0xc0] sm:$0xff]
      %v755 = vld [vmem:[%s651 + $0xc8] sm:$0xff]
      %v756 = vld [vmem:[%s651 + $0xd0] sm:$0xff]
      %v757 = vld [vmem:[%s651 + $0xd8] sm:$0xff]
      %v758 = vld [vmem:[%s651 + $0xe0] sm:$0xff]
      %v759 = vld [vmem:[%s651 + $0xe8] sm:$0xff]
      %v760 = vld [vmem:[%s651 + $0xf0] sm:$0xff]
      %v761 = vld [vmem:[%s651 + $0xf8] sm:$0xff]
      %v762 = vld [vmem:[%s651 + $0x100] sm:$0xff]
      %v763 = vld [vmem:[%s651 + $0x108] sm:$0xff]
      %v764 = vld [vmem:[%s651 + $0x110] sm:$0xff]
      %v765 = vld [vmem:[%s651 + $0x118] sm:$0xff]
      %v766 = vld [vmem:[%s651 + $0x120] sm:$0xff]
      %v767 = vld [vmem:[%s651 + $0x128] sm:$0xff]
      %v768 = vld [vmem:[%s651 + $0x130] sm:$0xff]
      %v769 = vld [vmem:[%s651 + $0x138] sm:$0xff]
      %v770 = vld [vmem:[%s651 + $0x140] sm:$0xff]
      %v771 = vld [vmem:[%s651 + $0x148] sm:$0xff]
      %v772 = vld [vmem:[%s651 + $0x150] sm:$0xff]
      %v773 = vld [vmem:[%s651 + $0x158] sm:$0xff]
      %v774 = vld [vmem:[%s651 + $0x160] sm:$0xff]
      %v775 = vld [vmem:[%s651 + $0x168] sm:$0xff]
      %v776 = vld [vmem:[%s651 + $0x170] sm:$0xff]
      %v777 = vld [vmem:[%s651 + $0x178] sm:$0xff]
      %v778 = vld [vmem:[%s651 + $0x180] sm:$0xff]
      %v779 = vld [vmem:[%s651 + $0x188] sm:$0xff]
      %v780 = vld [vmem:[%s651 + $0x190] sm:$0xff]
      %v781 = vld [vmem:[%s651 + $0x198] sm:$0xff]
      %v782 = vld [vmem:[%s651 + $0x1a0] sm:$0xff]
      %v783 = vld [vmem:[%s651 + $0x1a8] sm:$0xff]
      %v784 = vld [vmem:[%s6] sm:$0x3]
      %v785 = vld [vmem:[%s7] sm:$0x1]
      %v786 = vld [vmem:[%s8] sm:$0x1]
      %v841 = vunpack.c.l.b16 %v676
      %v842 = vunpack.c.l.b16 %v677
      %v843 = vunpack.c.l.b16 %v678
      %v844 = vunpack.c.l.b16 %v679
      %v845 = vunpack.c.l.b16 %v680
      %v846 = vunpack.c.l.b16 %v681
      %v847 = vunpack.c.l.b16 %v682
      %v848 = vunpack.c.l.b16 %v683
      %v849 = vunpack.c.l.b16 %v684
      %v850 = vunpack.c.l.b16 %v685
      %v851 = vunpack.c.l.b16 %v686
      %v852 = vunpack.c.l.b16 %v687
      %v853 = vunpack.c.l.b16 %v688
      %v854 = vunpack.c.l.b16 %v689
      %v855 = vunpack.c.l.b16 %v690
      %v856 = vunpack.c.l.b16 %v691
      %v857 = vunpack.c.l.b16 %v692
      %v858 = vunpack.c.l.b16 %v693
      %v859 = vunpack.c.l.b16 %v694
      %v860 = vunpack.c.l.b16 %v695
      %v861 = vunpack.c.l.b16 %v696
      %v862 = vunpack.c.l.b16 %v697
      %v863 = vunpack.c.l.b16 %v698
      %v864 = vunpack.c.l.b16 %v699
      %v865 = vunpack.c.l.b16 %v700
      %v866 = vunpack.c.l.b16 %v701
      %v867 = vunpack.c.l.b16 %v702
      %v868 = vunpack.c.l.b16 %v703
      %v869 = vunpack.c.l.b16 %v704
      %v870 = vunpack.c.l.b16 %v705
      %v871 = vunpack.c.l.b16 %v706
      %v872 = vunpack.c.l.b16 %v707
      %v873 = vunpack.c.l.b16 %v708
      %v874 = vunpack.c.l.b16 %v709
      %v875 = vunpack.c.l.b16 %v710
      %v876 = vunpack.c.l.b16 %v711
      %v877 = vunpack.c.l.b16 %v712
      %v878 = vunpack.c.l.b16 %v713
      %v879 = vunpack.c.l.b16 %v714
      %v880 = vunpack.c.l.b16 %v715
      %v881 = vunpack.c.l.b16 %v716
      %v882 = vunpack.c.l.b16 %v717
      %v883 = vunpack.c.l.b16 %v718
      %v884 = vunpack.c.l.b16 %v719
      %v885 = vunpack.c.l.b16 %v720
      %v886 = vunpack.c.l.b16 %v721
      %v887 = vunpack.c.l.b16 %v722
      %v888 = vunpack.c.l.b16 %v723
      %v889 = vunpack.c.l.b16 %v724
      %v890 = vunpack.c.l.b16 %v725
      %v891 = vunpack.c.l.b16 %v726
      %v892 = vunpack.c.l.b16 %v727
      %v893 = vunpack.c.l.b16 %v728
      %v894 = vunpack.c.l.b16 %v729
      %v895 = vpack.c.b16 %v842, %v841
      %v896 = vpack.c.b16 %v844, %v843
      %v897 = vpack.c.b16 %v846, %v845
      %v898 = vpack.c.b16 %v848, %v847
      %v899 = vpack.c.b16 %v850, %v849
      %v900 = vpack.c.b16 %v852, %v851
      %v901 = vpack.c.b16 %v854, %v853
      %v902 = vpack.c.b16 %v856, %v855
      %v903 = vpack.c.b16 %v858, %v857
      %v904 = vpack.c.b16 %v860, %v859
      %v905 = vpack.c.b16 %v862, %v861
      %v906 = vpack.c.b16 %v864, %v863
      %v907 = vpack.c.b16 %v866, %v865
      %v908 = vpack.c.b16 %v868, %v867
      %v909 = vpack.c.b16 %v870, %v869
      %v910 = vpack.c.b16 %v872, %v871
      %v911 = vpack.c.b16 %v874, %v873
      %v912 = vpack.c.b16 %v876, %v875
      %v913 = vpack.c.b16 %v878, %v877
      %v914 = vpack.c.b16 %v880, %v879
      %v915 = vpack.c.b16 %v882, %v881
      %v916 = vpack.c.b16 %v884, %v883
      %v917 = vpack.c.b16 %v886, %v885
      %v918 = vpack.c.b16 %v888, %v887
      %v919 = vpack.c.b16 %v890, %v889
      %v920 = vpack.c.b16 %v892, %v891
      %v921 = vpack.c.b16 %v894, %v893
      %vm922 = vcmask 31744
      %v924 = vsel %vm922, %v895, 0
      %v927 = vsel %vm922, %v896, 0
      %v930 = vsel %vm922, %v897, 0
      %v933 = vsel %vm922, %v898, 0
      %v936 = vsel %vm922, %v899, 0
      %v939 = vsel %vm922, %v900, 0
      %v942 = vsel %vm922, %v901, 0
      %v945 = vsel %vm922, %v902, 0
      %v948 = vsel %vm922, %v903, 0
      %v951 = vsel %vm922, %v904, 0
      %v954 = vsel %vm922, %v905, 0
      %v957 = vsel %vm922, %v906, 0
      %v960 = vsel %vm922, %v907, 0
      %v963 = vsel %vm922, %v908, 0
      %v966 = vsel %vm922, %v909, 0
      %v969 = vsel %vm922, %v910, 0
      %v972 = vsel %vm922, %v911, 0
      %v975 = vsel %vm922, %v912, 0
      %v978 = vsel %vm922, %v913, 0
      %v981 = vsel %vm922, %v914, 0
      %v984 = vsel %vm922, %v915, 0
      %v987 = vsel %vm922, %v916, 0
      %v990 = vsel %vm922, %v917, 0
      %v993 = vsel %vm922, %v918, 0
      %v996 = vsel %vm922, %v919, 0
      %v999 = vsel %vm922, %v920, 0
      %v1002 = vsel %vm922, %v921, 0
      %vm1004 = vcmask 1041408
      %v1006 = vsel %vm1004, %v784, 0
      %1008 = vmatprep.subr.bf16.mxu0 0
      %1009 = vmatpush1.bf16.msra.mxu0 %v1006
      %1010 = vmatprep.subr.bf16.mxu0 0
      %1011 = vmatpush1.bf16.msra.mxu0 0
      %1012 = vmatprep.subr.bf16.mxu0 0
      %1013 = vmatpush1.bf16.msra.mxu0 0
      %1014 = vmatprep.subr.bf16.mxu0 0
      %1015 = vmatpush1.bf16.msra.mxu0 0
      %1016 = vmatprep.subr.bf16.mxu0 0
      %1017 = vmatpush1.bf16.msra.mxu0 0
      %1018 = vmatprep.subr.bf16.mxu0 0
      %1019 = vmatpush1.bf16.msra.mxu0 0
      %1020 = vmatprep.subr.bf16.mxu0 0
      %1021 = vmatpush1.bf16.msra.mxu0 0
      %1022 = vmatprep.subr.bf16.mxu0 0
      %1023 = vmatpush1.bf16.msra.mxu0 0
      %1024 = vmatprep.subr.bf16.mxu0 0
      %1025 = vmatpush1.bf16.msra.mxu0 0
      %1026 = vmatprep.subr.bf16.mxu0 0
      %1027 = vmatpush1.bf16.msra.mxu0 0
      %1028 = vmatprep.subr.bf16.mxu0 0
      %1029 = vmatpush1.bf16.msra.mxu0 0
      %1030 = vmatprep.subr.bf16.mxu0 0
      %1031 = vmatpush1.bf16.msra.mxu0 0
      %1032 = vmatprep.subr.bf16.mxu0 0
      %1033 = vmatpush1.bf16.msra.mxu0 0
      %1034 = vmatprep.subr.bf16.mxu0 0
      %1035 = vmatpush1.bf16.msra.mxu0 0
      %1036 = vmatprep.subr.bf16.mxu0 0
      %1037 = vmatpush1.bf16.msra.mxu0 0
      %1038 = vmatprep.subr.bf16.mxu0 0
      %1039 = vmatpush1.bf16.msra.mxu0 0
      %1040 = vmatprep.mubr.bf16.mxu0 0
      %1041 = vmatmul.mubr.bf16.gmra.mrb[0].mxu0 %v924
      %v1042 = vpop.f32.mrb[0].mxu0
      %v1043 = vadd.f32 0.0, %v1042
      %v1044 = vpop.f32.mrb[0].mxu0
      %v1045 = vpop.f32.mrb[0].mxu0
      %v1046 = vadd.f32 0.0, %v1045
      %v1047 = vpop.f32.mrb[0].mxu0
      %1048 = vmatprep.mubr.bf16.mxu0 0
      %1049 = vmatmul.mubr.bf16.gmra.mrb[0].mxu0 %v927
      %v1050 = vpop.f32.mrb[0].mxu0
      %v1051 = vadd.f32 0.0, %v1050
      %v1052 = vpop.f32.mrb[0].mxu0
      %v1053 = vpop.f32.mrb[0].mxu0
      %v1054 = vadd.f32 0.0, %v1053
      %v1055 = vpop.f32.mrb[0].mxu0
      %1056 = vmatprep.mubr.bf16.mxu0 0
      %1057 = vmatmul.mubr.bf16.gmra.mrb[0].mxu0 %v930
      %v1058 = vpop.f32.mrb[0].mxu0
      %v1059 = vadd.f32 0.0, %v1058
      %v1060 = vpop.f32.mrb[0].mxu0
      %v1061 = vpop.f32.mrb[0].mxu0
      %v1062 = vadd.f32 0.0, %v1061
      %v1063 = vpop.f32.mrb[0].mxu0
      %1064 = vmatprep.mubr.bf16.mxu0 0
      %1065 = vmatmul.mubr.bf16.gmra.mrb[0].mxu0 %v933
      %v1066 = vpop.f32.mrb[0].mxu0
      %v1067 = vadd.f32 0.0, %v1066
      %v1068 = vpop.f32.mrb[0].mxu0
      %v1069 = vpop.f32.mrb[0].mxu0
      %v1070 = vadd.f32 0.0, %v1069
      %v1071 = vpop.f32.mrb[0].mxu0
      %1072 = vmatprep.mubr.bf16.mxu0 0
      %1073 = vmatmul.mubr.bf16.gmra.mrb[0].mxu0 %v936
      %v1074 = vpop.f32.mrb[0].mxu0
      %v1075 = vadd.f32 0.0, %v1074
      %v1076 = vpop.f32.mrb[0].mxu0
      %v1077 = vpop.f32.mrb[0].mxu0
      %v1078 = vadd.f32 0.0, %v1077
      %v1079 = vpop.f32.mrb[0].mxu0
      %1080 = vmatprep.mubr.bf16.mxu0 0
      %1081 = vmatmul.mubr.bf16.gmra.mrb[0].mxu0 %v939
      %v1082 = vpop.f32.mrb[0].mxu0
      %v1083 = vadd.f32 0.0, %v1082
      %v1084 = vpop.f32.mrb[0].mxu0
      %v1085 = vpop.f32.mrb[0].mxu0
      %v1086 = vadd.f32 0.0, %v1085
      %v1087 = vpop.f32.mrb[0].mxu0
      %1088 = vmatprep.mubr.bf16.mxu0 0
      %1089 = vmatmul.mubr.bf16.gmra.mrb[0].mxu0 %v942
      %v1090 = vpop.f32.mrb[0].mxu0
      %v1091 = vadd.f32 0.0, %v1090
      %v1092 = vpop.f32.mrb[0].mxu0
      %v1093 = vpop.f32.mrb[0].mxu0
      %v1094 = vadd.f32 0.0, %v1093
      %v1095 = vpop.f32.mrb[0].mxu0
      %1096 = vmatprep.mubr.bf16.mxu0 0
      %1097 = vmatmul.mubr.bf16.gmra.mrb[0].mxu0 %v945
      %v1098 = vpop.f32.mrb[0].mxu0
      %v1099 = vadd.f32 0.0, %v1098
      %v1100 = vpop.f32.mrb[0].mxu0
      %v1101 = vpop.f32.mrb[0].mxu0
      %v1102 = vadd.f32 0.0, %v1101
      %v1103 = vpop.f32.mrb[0].mxu0
      %1104 = vmatprep.mubr.bf16.mxu0 0
      %1105 = vmatmul.mubr.bf16.gmra.mrb[0].mxu0 %v948
      %v1106 = vpop.f32.mrb[0].mxu0
      %v1107 = vadd.f32 0.0, %v1106
      %v1108 = vpop.f32.mrb[0].mxu0
      %v1109 = vpop.f32.mrb[0].mxu0
      %v1110 = vadd.f32 0.0, %v1109
      %v1111 = vpop.f32.mrb[0].mxu0
      %1112 = vmatprep.mubr.bf16.mxu0 0
      %1113 = vmatmul.mubr.bf16.gmra.mrb[0].mxu0 %v951
      %v1114 = vpop.f32.mrb[0].mxu0
      %v1115 = vadd.f32 0.0, %v1114
      %v1116 = vpop.f32.mrb[0].mxu0
      %v1117 = vpop.f32.mrb[0].mxu0
      %v1118 = vadd.f32 0.0, %v1117
      %v1119 = vpop.f32.mrb[0].mxu0
      %1120 = vmatprep.mubr.bf16.mxu0 0
      %1121 = vmatmul.mubr.bf16.gmra.mrb[0].mxu0 %v954
      %v1122 = vpop.f32.mrb[0].mxu0
      %v1123 = vadd.f32 0.0, %v1122
      %v1124 = vpop.f32.mrb[0].mxu0
      %v1125 = vpop.f32.mrb[0].mxu0
      %v1126 = vadd.f32 0.0, %v1125
      %v1127 = vpop.f32.mrb[0].mxu0
      %1128 = vmatprep.mubr.bf16.mxu0 0
      %1129 = vmatmul.mubr.bf16.gmra.mrb[0].mxu0 %v957
      %v1130 = vpop.f32.mrb[0].mxu0
      %v1131 = vadd.f32 0.0, %v1130
      %v1132 = vpop.f32.mrb[0].mxu0
      %v1133 = vpop.f32.mrb[0].mxu0
      %v1134 = vadd.f32 0.0, %v1133
      %v1135 = vpop.f32.mrb[0].mxu0
      %1136 = vmatprep.mubr.bf16.mxu0 0
      %1137 = vmatmul.mubr.bf16.gmra.mrb[0].mxu0 %v960
      %v1138 = vpop.f32.mrb[0].mxu0
      %v1139 = vadd.f32 0.0, %v1138
      %v1140 = vpop.f32.mrb[0].mxu0
      %v1141 = vpop.f32.mrb[0].mxu0
      %v1142 = vadd.f32 0.0, %v1141
      %v1143 = vpop.f32.mrb[0].mxu0
      %1144 = vmatprep.mubr.bf16.mxu0 0
      %1145 = vmatmul.mubr.bf16.gmra.mrb[0].mxu0 %v963
      %v1146 = vpop.f32.mrb[0].mxu0
      %v1147 = vadd.f32 0.0, %v1146
      %v1148 = vpop.f32.mrb[0].mxu0
      %v1149 = vpop.f32.mrb[0].mxu0
      %v1150 = vadd.f32 0.0, %v1149
      %v1151 = vpop.f32.mrb[0].mxu0
      %1152 = vmatprep.mubr.bf16.mxu0 0
      %1153 = vmatmul.mubr.bf16.gmra.mrb[0].mxu0 %v966
      %v1154 = vpop.f32.mrb[0].mxu0
      %v1155 = vadd.f32 0.0, %v1154
      %v1156 = vpop.f32.mrb[0].mxu0
      %v1157 = vpop.f32.mrb[0].mxu0
      %v1158 = vadd.f32 0.0, %v1157
      %v1159 = vpop.f32.mrb[0].mxu0
      %1160 = vmatprep.mubr.bf16.mxu0 0
      %1161 = vmatmul.mubr.bf16.gmra.mrb[0].mxu0 %v969
      %v1162 = vpop.f32.mrb[0].mxu0
      %v1163 = vadd.f32 0.0, %v1162
      %v1164 = vpop.f32.mrb[0].mxu0
      %v1165 = vpop.f32.mrb[0].mxu0
      %v1166 = vadd.f32 0.0, %v1165
      %v1167 = vpop.f32.mrb[0].mxu0
      %1168 = vmatprep.mubr.bf16.mxu0 0
      %1169 = vmatmul.mubr.bf16.gmra.mrb[0].mxu0 %v972
      %v1170 = vpop.f32.mrb[0].mxu0
      %v1171 = vadd.f32 0.0, %v1170
      %v1172 = vpop.f32.mrb[0].mxu0
      %v1173 = vpop.f32.mrb[0].mxu0
      %v1174 = vadd.f32 0.0, %v1173
      %v1175 = vpop.f32.mrb[0].mxu0
      %1176 = vmatprep.mubr.bf16.mxu0 0
      %1177 = vmatmul.mubr.bf16.gmra.mrb[0].mxu0 %v975
      %v1178 = vpop.f32.mrb[0].mxu0
      %v1179 = vadd.f32 0.0, %v1178
      %v1180 = vpop.f32.mrb[0].mxu0
      %v1181 = vpop.f32.mrb[0].mxu0
      %v1182 = vadd.f32 0.0, %v1181
      %v1183 = vpop.f32.mrb[0].mxu0
      %1184 = vmatprep.mubr.bf16.mxu0 0
      %1185 = vmatmul.mubr.bf16.gmra.mrb[0].mxu0 %v978
      %v1186 = vpop.f32.mrb[0].mxu0
      %v1187 = vadd.f32 0.0, %v1186
      %v1188 = vpop.f32.mrb[0].mxu0
      %v1189 = vpop.f32.mrb[0].mxu0
      %v1190 = vadd.f32 0.0, %v1189
      %v1191 = vpop.f32.mrb[0].mxu0
      %1192 = vmatprep.mubr.bf16.mxu0 0
      %1193 = vmatmul.mubr.bf16.gmra.mrb[0].mxu0 %v981
      %v1194 = vpop.f32.mrb[0].mxu0
      %v1195 = vadd.f32 0.0, %v1194
      %v1196 = vpop.f32.mrb[0].mxu0
      %v1197 = vpop.f32.mrb[0].mxu0
      %v1198 = vadd.f32 0.0, %v1197
      %v1199 = vpop.f32.mrb[0].mxu0
      %1200 = vmatprep.mubr.bf16.mxu0 0
      %1201 = vmatmul.mubr.bf16.gmra.mrb[0].mxu0 %v984
      %v1202 = vpop.f32.mrb[0].mxu0
      %v1203 = vadd.f32 0.0, %v1202
      %v1204 = vpop.f32.mrb[0].mxu0
      %v1205 = vpop.f32.mrb[0].mxu0
      %v1206 = vadd.f32 0.0, %v1205
      %v1207 = vpop.f32.mrb[0].mxu0
      %1208 = vmatprep.mubr.bf16.mxu0 0
      %1209 = vmatmul.mubr.bf16.gmra.mrb[0].mxu0 %v987
      %v1210 = vpop.f32.mrb[0].mxu0
      %v1211 = vadd.f32 0.0, %v1210
      %v1212 = vpop.f32.mrb[0].mxu0
      %v1213 = vpop.f32.mrb[0].mxu0
      %v1214 = vadd.f32 0.0, %v1213
      %v1215 = vpop.f32.mrb[0].mxu0
      %1216 = vmatprep.mubr.bf16.mxu0 0
      %1217 = vmatmul.mubr.bf16.gmra.mrb[0].mxu0 %v990
      %v1218 = vpop.f32.mrb[0].mxu0
      %v1219 = vadd.f32 0.0, %v1218
      %v1220 = vpop.f32.mrb[0].mxu0
      %v1221 = vpop.f32.mrb[0].mxu0
      %v1222 = vadd.f32 0.0, %v1221
      %v1223 = vpop.f32.mrb[0].mxu0
      %1224 = vmatprep.mubr.bf16.mxu0 0
      %1225 = vmatmul.mubr.bf16.gmra.mrb[0].mxu0 %v993
      %v1226 = vpop.f32.mrb[0].mxu0
      %v1227 = vadd.f32 0.0, %v1226
      %v1228 = vpop.f32.mrb[0].mxu0
      %v1229 = vpop.f32.mrb[0].mxu0
      %v1230 = vadd.f32 0.0, %v1229
      %v1231 = vpop.f32.mrb[0].mxu0
      %1232 = vmatprep.mubr.bf16.mxu0 0
      %1233 = vmatmul.mubr.bf16.gmra.mrb[0].mxu0 %v996
      %v1234 = vpop.f32.mrb[0].mxu0
      %v1235 = vadd.f32 0.0, %v1234
      %v1236 = vpop.f32.mrb[0].mxu0
      %v1237 = vpop.f32.mrb[0].mxu0
      %v1238 = vadd.f32 0.0, %v1237
      %v1239 = vpop.f32.mrb[0].mxu0
      %1240 = vmatprep.mubr.bf16.mxu0 0
      %1241 = vmatmul.mubr.bf16.gmra.mrb[0].mxu0 %v999
      %v1242 = vpop.f32.mrb[0].mxu0
      %v1243 = vadd.f32 0.0, %v1242
      %v1244 = vpop.f32.mrb[0].mxu0
      %v1245 = vpop.f32.mrb[0].mxu0
      %v1246 = vadd.f32 0.0, %v1245
      %v1247 = vpop.f32.mrb[0].mxu0
      %1248 = vmatprep.mubr.bf16.mxu0 0
      %1249 = vmatmul.mubr.bf16.gmra.mrb[0].mxu0 %v1002
      %v1250 = vpop.f32.mrb[0].mxu0
      %v1251 = vadd.f32 0.0, %v1250
      %v1252 = vpop.f32.mrb[0].mxu0
      %v1253 = vpop.f32.mrb[0].mxu0
      %v1254 = vadd.f32 0.0, %v1253
      %v1255 = vpop.f32.mrb[0].mxu0
      %1256 = vdwg.mxu0
      %v1258 = vlaneseq
      %v1259 = vshrl.u32 %v1258, 7
      %v1260 = vsub.s32 0, %v1259
      %v1261 = vrot.slane %v785, %v1260
      %v1263 = vmul.f32 %v1043, %v1261
      %v1264 = vmul.f32 %v1046, %v1261
      %v1265 = vmul.f32 %v1051, %v1261
      %v1266 = vmul.f32 %v1054, %v1261
      %v1267 = vmul.f32 %v1059, %v1261
      %v1268 = vmul.f32 %v1062, %v1261
      %v1269 = vmul.f32 %v1067, %v1261
      %v1270 = vmul.f32 %v1070, %v1261
      %v1271 = vmul.f32 %v1075, %v1261
      %v1272 = vmul.f32 %v1078, %v1261
      %v1273 = vmul.f32 %v1083, %v1261
      %v1274 = vmul.f32 %v1086, %v1261
      %v1275 = vmul.f32 %v1091, %v1261
      %v1276 = vmul.f32 %v1094, %v1261
      %v1277 = vmul.f32 %v1099, %v1261
      %v1278 = vmul.f32 %v1102, %v1261
      %v1279 = vmul.f32 %v1107, %v1261
      %v1280 = vmul.f32 %v1110, %v1261
      %v1281 = vmul.f32 %v1115, %v1261
      %v1282 = vmul.f32 %v1118, %v1261
      %v1283 = vmul.f32 %v1123, %v1261
      %v1284 = vmul.f32 %v1126, %v1261
      %v1285 = vmul.f32 %v1131, %v1261
      %v1286 = vmul.f32 %v1134, %v1261
      %v1287 = vmul.f32 %v1139, %v1261
      %v1288 = vmul.f32 %v1142, %v1261
      %v1289 = vmul.f32 %v1147, %v1261
      %v1290 = vmul.f32 %v1150, %v1261
      %v1291 = vmul.f32 %v1155, %v1261
      %v1292 = vmul.f32 %v1158, %v1261
      %v1293 = vmul.f32 %v1163, %v1261
      %v1294 = vmul.f32 %v1166, %v1261
      %v1295 = vmul.f32 %v1171, %v1261
      %v1296 = vmul.f32 %v1174, %v1261
      %v1297 = vmul.f32 %v1179, %v1261
      %v1298 = vmul.f32 %v1182, %v1261
      %v1299 = vmul.f32 %v1187, %v1261
      %v1300 = vmul.f32 %v1190, %v1261
      %v1301 = vmul.f32 %v1195, %v1261
      %v1302 = vmul.f32 %v1198, %v1261
      %v1303 = vmul.f32 %v1203, %v1261
      %v1304 = vmul.f32 %v1206, %v1261
      %v1305 = vmul.f32 %v1211, %v1261
      %v1306 = vmul.f32 %v1214, %v1261
      %v1307 = vmul.f32 %v1219, %v1261
      %v1308 = vmul.f32 %v1222, %v1261
      %v1309 = vmul.f32 %v1227, %v1261
      %v1310 = vmul.f32 %v1230, %v1261
      %v1311 = vmul.f32 %v1235, %v1261
      %v1312 = vmul.f32 %v1238, %v1261
      %v1313 = vmul.f32 %v1243, %v1261
      %v1314 = vmul.f32 %v1246, %v1261
      %v1315 = vmul.f32 %v1251, %v1261
      %v1316 = vmul.f32 %v1254, %v1261
      %v1318 = vlaneseq
      %v1319 = vshrl.u32 %v1318, 7
      %v1320 = vsub.s32 0, %v1319
      %v1321 = vrot.slane %v786, %v1320
      %v1323 = vadd.f32 %v1263, %v1321
      %v1324 = vadd.f32 %v1264, %v1321
      %v1325 = vadd.f32 %v1265, %v1321
      %v1326 = vadd.f32 %v1266, %v1321
      %v1327 = vadd.f32 %v1267, %v1321
      %v1328 = vadd.f32 %v1268, %v1321
      %v1329 = vadd.f32 %v1269, %v1321
      %v1330 = vadd.f32 %v1270, %v1321
      %v1331 = vadd.f32 %v1271, %v1321
      %v1332 = vadd.f32 %v1272, %v1321
      %v1333 = vadd.f32 %v1273, %v1321
      %v1334 = vadd.f32 %v1274, %v1321
      %v1335 = vadd.f32 %v1275, %v1321
      %v1336 = vadd.f32 %v1276, %v1321
      %v1337 = vadd.f32 %v1277, %v1321
      %v1338 = vadd.f32 %v1278, %v1321
      %v1339 = vadd.f32 %v1279, %v1321
      %v1340 = vadd.f32 %v1280, %v1321
      %v1341 = vadd.f32 %v1281, %v1321
      %v1342 = vadd.f32 %v1282, %v1321
      %v1343 = vadd.f32 %v1283, %v1321
      %v1344 = vadd.f32 %v1284, %v1321
      %v1345 = vadd.f32 %v1285, %v1321
      %v1346 = vadd.f32 %v1286, %v1321
      %v1347 = vadd.f32 %v1287, %v1321
      %v1348 = vadd.f32 %v1288, %v1321
      %v1349 = vadd.f32 %v1289, %v1321
      %v1350 = vadd.f32 %v1290, %v1321
      %v1351 = vadd.f32 %v1291, %v1321
      %v1352 = vadd.f32 %v1292, %v1321
      %v1353 = vadd.f32 %v1293, %v1321
      %v1354 = vadd.f32 %v1294, %v1321
      %v1355 = vadd.f32 %v1295, %v1321
      %v1356 = vadd.f32 %v1296, %v1321
      %v1357 = vadd.f32 %v1297, %v1321
      %v1358 = vadd.f32 %v1298, %v1321
      %v1359 = vadd.f32 %v1299, %v1321
      %v1360 = vadd.f32 %v1300, %v1321
      %v1361 = vadd.f32 %v1301, %v1321
      %v1362 = vadd.f32 %v1302, %v1321
      %v1363 = vadd.f32 %v1303, %v1321
      %v1364 = vadd.f32 %v1304, %v1321
      %v1365 = vadd.f32 %v1305, %v1321
      %v1366 = vadd.f32 %v1306, %v1321
      %v1367 = vadd.f32 %v1307, %v1321
      %v1368 = vadd.f32 %v1308, %v1321
      %v1369 = vadd.f32 %v1309, %v1321
      %v1370 = vadd.f32 %v1310, %v1321
      %v1371 = vadd.f32 %v1311, %v1321
      %v1372 = vadd.f32 %v1312, %v1321
      %v1373 = vadd.f32 %v1313, %v1321
      %v1374 = vadd.f32 %v1314, %v1321
      %v1375 = vadd.f32 %v1315, %v1321
      %v1376 = vadd.f32 %v1316, %v1321
      %v1377 = vand.u32 2147483647, %v1323
      %v1378 = vand.u32 2147483647, %v1324
      %v1379 = vand.u32 2147483647, %v1325
      %v1380 = vand.u32 2147483647, %v1326
      %v1381 = vand.u32 2147483647, %v1327
      %v1382 = vand.u32 2147483647, %v1328
      %v1383 = vand.u32 2147483647, %v1329
      %v1384 = vand.u32 2147483647, %v1330
      %v1385 = vand.u32 2147483647, %v1331
      %v1386 = vand.u32 2147483647, %v1332
      %v1387 = vand.u32 2147483647, %v1333
      %v1388 = vand.u32 2147483647, %v1334
      %v1389 = vand.u32 2147483647, %v1335
      %v1390 = vand.u32 2147483647, %v1336
      %v1391 = vand.u32 2147483647, %v1337
      %v1392 = vand.u32 2147483647, %v1338
      %v1393 = vand.u32 2147483647, %v1339
      %v1394 = vand.u32 2147483647, %v1340
      %v1395 = vand.u32 2147483647, %v1341
      %v1396 = vand.u32 2147483647, %v1342
      %v1397 = vand.u32 2147483647, %v1343
      %v1398 = vand.u32 2147483647, %v1344
      %v1399 = vand.u32 2147483647, %v1345
      %v1400 = vand.u32 2147483647, %v1346
      %v1401 = vand.u32 2147483647, %v1347
      %v1402 = vand.u32 2147483647, %v1348
      %v1403 = vand.u32 2147483647, %v1349
      %v1404 = vand.u32 2147483647, %v1350
      %v1405 = vand.u32 2147483647, %v1351
      %v1406 = vand.u32 2147483647, %v1352
      %v1407 = vand.u32 2147483647, %v1353
      %v1408 = vand.u32 2147483647, %v1354
      %v1409 = vand.u32 2147483647, %v1355
      %v1410 = vand.u32 2147483647, %v1356
      %v1411 = vand.u32 2147483647, %v1357
      %v1412 = vand.u32 2147483647, %v1358
      %v1413 = vand.u32 2147483647, %v1359
      %v1414 = vand.u32 2147483647, %v1360
      %v1415 = vand.u32 2147483647, %v1361
      %v1416 = vand.u32 2147483647, %v1362
      %v1417 = vand.u32 2147483647, %v1363
      %v1418 = vand.u32 2147483647, %v1364
      %v1419 = vand.u32 2147483647, %v1365
      %v1420 = vand.u32 2147483647, %v1366
      %v1421 = vand.u32 2147483647, %v1367
      %v1422 = vand.u32 2147483647, %v1368
      %v1423 = vand.u32 2147483647, %v1369
      %v1424 = vand.u32 2147483647, %v1370
      %v1425 = vand.u32 2147483647, %v1371
      %v1426 = vand.u32 2147483647, %v1372
      %v1427 = vand.u32 2147483647, %v1373
      %v1428 = vand.u32 2147483647, %v1374
      %v1429 = vand.u32 2147483647, %v1375
      %v1430 = vand.u32 2147483647, %v1376
      %v1431 = vsub.f32 0.0, %v1377
      %v1432 = vsub.f32 0.0, %v1378
      %v1433 = vsub.f32 0.0, %v1379
      %v1434 = vsub.f32 0.0, %v1380
      %v1435 = vsub.f32 0.0, %v1381
      %v1436 = vsub.f32 0.0, %v1382
      %v1437 = vsub.f32 0.0, %v1383
      %v1438 = vsub.f32 0.0, %v1384
      %v1439 = vsub.f32 0.0, %v1385
      %v1440 = vsub.f32 0.0, %v1386
      %v1441 = vsub.f32 0.0, %v1387
      %v1442 = vsub.f32 0.0, %v1388
      %v1443 = vsub.f32 0.0, %v1389
      %v1444 = vsub.f32 0.0, %v1390
      %v1445 = vsub.f32 0.0, %v1391
      %v1446 = vsub.f32 0.0, %v1392
      %v1447 = vsub.f32 0.0, %v1393
      %v1448 = vsub.f32 0.0, %v1394
      %v1449 = vsub.f32 0.0, %v1395
      %v1450 = vsub.f32 0.0, %v1396
      %v1451 = vsub.f32 0.0, %v1397
      %v1452 = vsub.f32 0.0, %v1398
      %v1453 = vsub.f32 0.0, %v1399
      %v1454 = vsub.f32 0.0, %v1400
      %v1455 = vsub.f32 0.0, %v1401
      %v1456 = vsub.f32 0.0, %v1402
      %v1457 = vsub.f32 0.0, %v1403
      %v1458 = vsub.f32 0.0, %v1404
      %v1459 = vsub.f32 0.0, %v1405
      %v1460 = vsub.f32 0.0, %v1406
      %v1461 = vsub.f32 0.0, %v1407
      %v1462 = vsub.f32 0.0, %v1408
      %v1463 = vsub.f32 0.0, %v1409
      %v1464 = vsub.f32 0.0, %v1410
      %v1465 = vsub.f32 0.0, %v1411
      %v1466 = vsub.f32 0.0, %v1412
      %v1467 = vsub.f32 0.0, %v1413
      %v1468 = vsub.f32 0.0, %v1414
      %v1469 = vsub.f32 0.0, %v1415
      %v1470 = vsub.f32 0.0, %v1416
      %v1471 = vsub.f32 0.0, %v1417
      %v1472 = vsub.f32 0.0, %v1418
      %v1473 = vsub.f32 0.0, %v1419
      %v1474 = vsub.f32 0.0, %v1420
      %v1475 = vsub.f32 0.0, %v1421
      %v1476 = vsub.f32 0.0, %v1422
      %v1477 = vsub.f32 0.0, %v1423
      %v1478 = vsub.f32 0.0, %v1424
      %v1479 = vsub.f32 0.0, %v1425
      %v1480 = vsub.f32 0.0, %v1426
      %v1481 = vsub.f32 0.0, %v1427
      %v1482 = vsub.f32 0.0, %v1428
      %v1483 = vsub.f32 0.0, %v1429
      %v1484 = vsub.f32 0.0, %v1430
      %v1485 = vmul.f32 %v1431, 1.442695
      %v1486 = vpow.pop %v1485
      %v1487 = vmul.f32 %v1432, 1.442695
      %v1488 = vpow.pop %v1487
      %v1489 = vmul.f32 %v1433, 1.442695
      %v1490 = vpow.pop %v1489
      %v1491 = vmul.f32 %v1434, 1.442695
      %v1492 = vpow.pop %v1491
      %v1493 = vmul.f32 %v1435, 1.442695
      %v1494 = vpow.pop %v1493
      %v1495 = vmul.f32 %v1436, 1.442695
      %v1496 = vpow.pop %v1495
      %v1497 = vmul.f32 %v1437, 1.442695
      %v1498 = vpow.pop %v1497
      %v1499 = vmul.f32 %v1438, 1.442695
      %v1500 = vpow.pop %v1499
      %v1501 = vmul.f32 %v1439, 1.442695
      %v1502 = vpow.pop %v1501
      %v1503 = vmul.f32 %v1440, 1.442695
      %v1504 = vpow.pop %v1503
      %v1505 = vmul.f32 %v1441, 1.442695
      %v1506 = vpow.pop %v1505
      %v1507 = vmul.f32 %v1442, 1.442695
      %v1508 = vpow.pop %v1507
      %v1509 = vmul.f32 %v1443, 1.442695
      %v1510 = vpow.pop %v1509
      %v1511 = vmul.f32 %v1444, 1.442695
      %v1512 = vpow.pop %v1511
      %v1513 = vmul.f32 %v1445, 1.442695
      %v1514 = vpow.pop %v1513
      %v1515 = vmul.f32 %v1446, 1.442695
      %v1516 = vpow.pop %v1515
      %v1517 = vmul.f32 %v1447, 1.442695
      %v1518 = vpow.pop %v1517
      %v1519 = vmul.f32 %v1448, 1.442695
      %v1520 = vpow.pop %v1519
      %v1521 = vmul.f32 %v1449, 1.442695
      %v1522 = vpow.pop %v1521
      %v1523 = vmul.f32 %v1450, 1.442695
      %v1524 = vpow.pop %v1523
      %v1525 = vmul.f32 %v1451, 1.442695
      %v1526 = vpow.pop %v1525
      %v1527 = vmul.f32 %v1452, 1.442695
      %v1528 = vpow.pop %v1527
      %v1529 = vmul.f32 %v1453, 1.442695
      %v1530 = vpow.pop %v1529
      %v1531 = vmul.f32 %v1454, 1.442695
      %v1532 = vpow.pop %v1531
      %v1533 = vmul.f32 %v1455, 1.442695
      %v1534 = vpow.pop %v1533
      %v1535 = vmul.f32 %v1456, 1.442695
      %v1536 = vpow.pop %v1535
      %v1537 = vmul.f32 %v1457, 1.442695
      %v1538 = vpow.pop %v1537
      %v1539 = vmul.f32 %v1458, 1.442695
      %v1540 = vpow.pop %v1539
      %v1541 = vmul.f32 %v1459, 1.442695
      %v1542 = vpow.pop %v1541
      %v1543 = vmul.f32 %v1460, 1.442695
      %v1544 = vpow.pop %v1543
      %v1545 = vmul.f32 %v1461, 1.442695
      %v1546 = vpow.pop %v1545
      %v1547 = vmul.f32 %v1462, 1.442695
      %v1548 = vpow.pop %v1547
      %v1549 = vmul.f32 %v1463, 1.442695
      %v1550 = vpow.pop %v1549
      %v1551 = vmul.f32 %v1464, 1.442695
      %v1552 = vpow.pop %v1551
      %v1553 = vmul.f32 %v1465, 1.442695
      %v1554 = vpow.pop %v1553
      %v1555 = vmul.f32 %v1466, 1.442695
      %v1556 = vpow.pop %v1555
      %v1557 = vmul.f32 %v1467, 1.442695
      %v1558 = vpow.pop %v1557
      %v1559 = vmul.f32 %v1468, 1.442695
      %v1560 = vpow.pop %v1559
      %v1561 = vmul.f32 %v1469, 1.442695
      %v1562 = vpow.pop %v1561
      %v1563 = vmul.f32 %v1470, 1.442695
      %v1564 = vpow.pop %v1563
      %v1565 = vmul.f32 %v1471, 1.442695
      %v1566 = vpow.pop %v1565
      %v1567 = vmul.f32 %v1472, 1.442695
      %v1568 = vpow.pop %v1567
      %v1569 = vmul.f32 %v1473, 1.442695
      %v1570 = vpow.pop %v1569
      %v1571 = vmul.f32 %v1474, 1.442695
      %v1572 = vpow.pop %v1571
      %v1573 = vmul.f32 %v1475, 1.442695
      %v1574 = vpow.pop %v1573
      %v1575 = vmul.f32 %v1476, 1.442695
      %v1576 = vpow.pop %v1575
      %v1577 = vmul.f32 %v1477, 1.442695
      %v1578 = vpow.pop %v1577
      %v1579 = vmul.f32 %v1478, 1.442695
      %v1580 = vpow.pop %v1579
      %v1581 = vmul.f32 %v1479, 1.442695
      %v1582 = vpow.pop %v1581
      %v1583 = vmul.f32 %v1480, 1.442695
      %v1584 = vpow.pop %v1583
      %v1585 = vmul.f32 %v1481, 1.442695
      %v1586 = vpow.pop %v1585
      %v1587 = vmul.f32 %v1482, 1.442695
      %v1588 = vpow.pop %v1587
      %v1589 = vmul.f32 %v1483, 1.442695
      %v1590 = vpow.pop %v1589
      %v1591 = vmul.f32 %v1484, 1.442695
      %v1592 = vpow.pop %v1591
      %v1593 = vadd.f32 %v1486, 1.0
      %v1594 = vadd.f32 %v1488, 1.0
      %v1595 = vadd.f32 %v1490, 1.0
      %v1596 = vadd.f32 %v1492, 1.0
      %v1597 = vadd.f32 %v1494, 1.0
      %v1598 = vadd.f32 %v1496, 1.0
      %v1599 = vadd.f32 %v1498, 1.0
      %v1600 = vadd.f32 %v1500, 1.0
      %v1601 = vadd.f32 %v1502, 1.0
      %v1602 = vadd.f32 %v1504, 1.0
      %v1603 = vadd.f32 %v1506, 1.0
      %v1604 = vadd.f32 %v1508, 1.0
      %v1605 = vadd.f32 %v1510, 1.0
      %v1606 = vadd.f32 %v1512, 1.0
      %v1607 = vadd.f32 %v1514, 1.0
      %v1608 = vadd.f32 %v1516, 1.0
      %v1609 = vadd.f32 %v1518, 1.0
      %v1610 = vadd.f32 %v1520, 1.0
      %v1611 = vadd.f32 %v1522, 1.0
      %v1612 = vadd.f32 %v1524, 1.0
      %v1613 = vadd.f32 %v1526, 1.0
      %v1614 = vadd.f32 %v1528, 1.0
      %v1615 = vadd.f32 %v1530, 1.0
      %v1616 = vadd.f32 %v1532, 1.0
      %v1617 = vadd.f32 %v1534, 1.0
      %v1618 = vadd.f32 %v1536, 1.0
      %v1619 = vadd.f32 %v1538, 1.0
      %v1620 = vadd.f32 %v1540, 1.0
      %v1621 = vadd.f32 %v1542, 1.0
      %v1622 = vadd.f32 %v1544, 1.0
      %v1623 = vadd.f32 %v1546, 1.0
      %v1624 = vadd.f32 %v1548, 1.0
      %v1625 = vadd.f32 %v1550, 1.0
      %v1626 = vadd.f32 %v1552, 1.0
      %v1627 = vadd.f32 %v1554, 1.0
      %v1628 = vadd.f32 %v1556, 1.0
      %v1629 = vadd.f32 %v1558, 1.0
      %v1630 = vadd.f32 %v1560, 1.0
      %v1631 = vadd.f32 %v1562, 1.0
      %v1632 = vadd.f32 %v1564, 1.0
      %v1633 = vadd.f32 %v1566, 1.0
      %v1634 = vadd.f32 %v1568, 1.0
      %v1635 = vadd.f32 %v1570, 1.0
      %v1636 = vadd.f32 %v1572, 1.0
      %v1637 = vadd.f32 %v1574, 1.0
      %v1638 = vadd.f32 %v1576, 1.0
      %v1639 = vadd.f32 %v1578, 1.0
      %v1640 = vadd.f32 %v1580, 1.0
      %v1641 = vadd.f32 %v1582, 1.0
      %v1642 = vadd.f32 %v1584, 1.0
      %v1643 = vadd.f32 %v1586, 1.0
      %v1644 = vadd.f32 %v1588, 1.0
      %v1645 = vadd.f32 %v1590, 1.0
      %v1646 = vadd.f32 %v1592, 1.0
      %v1647 = vrcp.pop %v1593
      %v1648 = vrcp.pop %v1594
      %v1649 = vrcp.pop %v1595
      %v1650 = vrcp.pop %v1596
      %v1651 = vrcp.pop %v1597
      %v1652 = vrcp.pop %v1598
      %v1653 = vrcp.pop %v1599
      %v1654 = vrcp.pop %v1600
      %v1655 = vrcp.pop %v1601
      %v1656 = vrcp.pop %v1602
      %v1657 = vrcp.pop %v1603
      %v1658 = vrcp.pop %v1604
      %v1659 = vrcp.pop %v1605
      %v1660 = vrcp.pop %v1606
      %v1661 = vrcp.pop %v1607
      %v1662 = vrcp.pop %v1608
      %v1663 = vrcp.pop %v1609
      %v1664 = vrcp.pop %v1610
      %v1665 = vrcp.pop %v1611
      %v1666 = vrcp.pop %v1612
      %v1667 = vrcp.pop %v1613
      %v1668 = vrcp.pop %v1614
      %v1669 = vrcp.pop %v1615
      %v1670 = vrcp.pop %v1616
      %v1671 = vrcp.pop %v1617
      %v1672 = vrcp.pop %v1618
      %v1673 = vrcp.pop %v1619
      %v1674 = vrcp.pop %v1620
      %v1675 = vrcp.pop %v1621
      %v1676 = vrcp.pop %v1622
      %v1677 = vrcp.pop %v1623
      %v1678 = vrcp.pop %v1624
      %v1679 = vrcp.pop %v1625
      %v1680 = vrcp.pop %v1626
      %v1681 = vrcp.pop %v1627
      %v1682 = vrcp.pop %v1628
      %v1683 = vrcp.pop %v1629
      %v1684 = vrcp.pop %v1630
      %v1685 = vrcp.pop %v1631
      %v1686 = vrcp.pop %v1632
      %v1687 = vrcp.pop %v1633
      %v1688 = vrcp.pop %v1634
      %v1689 = vrcp.pop %v1635
      %v1690 = vrcp.pop %v1636
      %v1691 = vrcp.pop %v1637
      %v1692 = vrcp.pop %v1638
      %v1693 = vrcp.pop %v1639
      %v1694 = vrcp.pop %v1640
      %v1695 = vrcp.pop %v1641
      %v1696 = vrcp.pop %v1642
      %v1697 = vrcp.pop %v1643
      %v1698 = vrcp.pop %v1644
      %v1699 = vrcp.pop %v1645
      %v1700 = vrcp.pop %v1646
      %vm1701 = vcmp.ge.f32.partialorder %v1323, 0.0
      %vm1702 = vcmp.ge.f32.partialorder %v1324, 0.0
      %vm1703 = vcmp.ge.f32.partialorder %v1325, 0.0
      %vm1704 = vcmp.ge.f32.partialorder %v1326, 0.0
      %vm1705 = vcmp.ge.f32.partialorder %v1327, 0.0
      %vm1706 = vcmp.ge.f32.partialorder %v1328, 0.0
      %vm1707 = vcmp.ge.f32.partialorder %v1329, 0.0
      %vm1708 = vcmp.ge.f32.partialorder %v1330, 0.0
      %vm1709 = vcmp.ge.f32.partialorder %v1331, 0.0
      %vm1710 = vcmp.ge.f32.partialorder %v1332, 0.0
      %vm1711 = vcmp.ge.f32.partialorder %v1333, 0.0
      %vm1712 = vcmp.ge.f32.partialorder %v1334, 0.0
      %vm1713 = vcmp.ge.f32.partialorder %v1335, 0.0
      %vm1714 = vcmp.ge.f32.partialorder %v1336, 0.0
      %vm1715 = vcmp.ge.f32.partialorder %v1337, 0.0
      %vm1716 = vcmp.ge.f32.partialorder %v1338, 0.0
      %vm1717 = vcmp.ge.f32.partialorder %v1339, 0.0
      %vm1718 = vcmp.ge.f32.partialorder %v1340, 0.0
      %vm1719 = vcmp.ge.f32.partialorder %v1341, 0.0
      %vm1720 = vcmp.ge.f32.partialorder %v1342, 0.0
      %vm1721 = vcmp.ge.f32.partialorder %v1343, 0.0
      %vm1722 = vcmp.ge.f32.partialorder %v1344, 0.0
      %vm1723 = vcmp.ge.f32.partialorder %v1345, 0.0
      %vm1724 = vcmp.ge.f32.partialorder %v1346, 0.0
      %vm1725 = vcmp.ge.f32.partialorder %v1347, 0.0
      %vm1726 = vcmp.ge.f32.partialorder %v1348, 0.0
      %vm1727 = vcmp.ge.f32.partialorder %v1349, 0.0
      %vm1728 = vcmp.ge.f32.partialorder %v1350, 0.0
      %vm1729 = vcmp.ge.f32.partialorder %v1351, 0.0
      %vm1730 = vcmp.ge.f32.partialorder %v1352, 0.0
      %vm1731 = vcmp.ge.f32.partialorder %v1353, 0.0
      %vm1732 = vcmp.ge.f32.partialorder %v1354, 0.0
      %vm1733 = vcmp.ge.f32.partialorder %v1355, 0.0
      %vm1734 = vcmp.ge.f32.partialorder %v1356, 0.0
      %vm1735 = vcmp.ge.f32.partialorder %v1357, 0.0
      %vm1736 = vcmp.ge.f32.partialorder %v1358, 0.0
      %vm1737 = vcmp.ge.f32.partialorder %v1359, 0.0
      %vm1738 = vcmp.ge.f32.partialorder %v1360, 0.0
      %vm1739 = vcmp.ge.f32.partialorder %v1361, 0.0
      %vm1740 = vcmp.ge.f32.partialorder %v1362, 0.0
      %vm1741 = vcmp.ge.f32.partialorder %v1363, 0.0
      %vm1742 = vcmp.ge.f32.partialorder %v1364, 0.0
      %vm1743 = vcmp.ge.f32.partialorder %v1365, 0.0
      %vm1744 = vcmp.ge.f32.partialorder %v1366, 0.0
      %vm1745 = vcmp.ge.f32.partialorder %v1367, 0.0
      %vm1746 = vcmp.ge.f32.partialorder %v1368, 0.0
      %vm1747 = vcmp.ge.f32.partialorder %v1369, 0.0
      %vm1748 = vcmp.ge.f32.partialorder %v1370, 0.0
      %vm1749 = vcmp.ge.f32.partialorder %v1371, 0.0
      %vm1750 = vcmp.ge.f32.partialorder %v1372, 0.0
      %vm1751 = vcmp.ge.f32.partialorder %v1373, 0.0
      %vm1752 = vcmp.ge.f32.partialorder %v1374, 0.0
      %vm1753 = vcmp.ge.f32.partialorder %v1375, 0.0
      %vm1754 = vcmp.ge.f32.partialorder %v1376, 0.0
      %v1755 = vmul.f32 %v1486, %v1647
      %v1756 = vmul.f32 %v1488, %v1648
      %v1757 = vmul.f32 %v1490, %v1649
      %v1758 = vmul.f32 %v1492, %v1650
      %v1759 = vmul.f32 %v1494, %v1651
      %v1760 = vmul.f32 %v1496, %v1652
      %v1761 = vmul.f32 %v1498, %v1653
      %v1762 = vmul.f32 %v1500, %v1654
      %v1763 = vmul.f32 %v1502, %v1655
      %v1764 = vmul.f32 %v1504, %v1656
      %v1765 = vmul.f32 %v1506, %v1657
      %v1766 = vmul.f32 %v1508, %v1658
      %v1767 = vmul.f32 %v1510, %v1659
      %v1768 = vmul.f32 %v1512, %v1660
      %v1769 = vmul.f32 %v1514, %v1661
      %v1770 = vmul.f32 %v1516, %v1662
      %v1771 = vmul.f32 %v1518, %v1663
      %v1772 = vmul.f32 %v1520, %v1664
      %v1773 = vmul.f32 %v1522, %v1665
      %v1774 = vmul.f32 %v1524, %v1666
      %v1775 = vmul.f32 %v1526, %v1667
      %v1776 = vmul.f32 %v1528, %v1668
      %v1777 = vmul.f32 %v1530, %v1669
      %v1778 = vmul.f32 %v1532, %v1670
      %v1779 = vmul.f32 %v1534, %v1671
      %v1780 = vmul.f32 %v1536, %v1672
      %v1781 = vmul.f32 %v1538, %v1673
      %v1782 = vmul.f32 %v1540, %v1674
      %v1783 = vmul.f32 %v1542, %v1675
      %v1784 = vmul.f32 %v1544, %v1676
      %v1785 = vmul.f32 %v1546, %v1677
      %v1786 = vmul.f32 %v1548, %v1678
      %v1787 = vmul.f32 %v1550, %v1679
      %v1788 = vmul.f32 %v1552, %v1680
      %v1789 = vmul.f32 %v1554, %v1681
      %v1790 = vmul.f32 %v1556, %v1682
      %v1791 = vmul.f32 %v1558, %v1683
      %v1792 = vmul.f32 %v1560, %v1684
      %v1793 = vmul.f32 %v1562, %v1685
      %v1794 = vmul.f32 %v1564, %v1686
      %v1795 = vmul.f32 %v1566, %v1687
      %v1796 = vmul.f32 %v1568, %v1688
      %v1797 = vmul.f32 %v1570, %v1689
      %v1798 = vmul.f32 %v1572, %v1690
      %v1799 = vmul.f32 %v1574, %v1691
      %v1800 = vmul.f32 %v1576, %v1692
      %v1801 = vmul.f32 %v1578, %v1693
      %v1802 = vmul.f32 %v1580, %v1694
      %v1803 = vmul.f32 %v1582, %v1695
      %v1804 = vmul.f32 %v1584, %v1696
      %v1805 = vmul.f32 %v1586, %v1697
      %v1806 = vmul.f32 %v1588, %v1698
      %v1807 = vmul.f32 %v1590, %v1699
      %v1808 = vmul.f32 %v1592, %v1700
      %v1809 = vsel %vm1701, %v1647, %v1755
      %v1810 = vsel %vm1702, %v1648, %v1756
      %v1811 = vsel %vm1703, %v1649, %v1757
      %v1812 = vsel %vm1704, %v1650, %v1758
      %v1813 = vsel %vm1705, %v1651, %v1759
      %v1814 = vsel %vm1706, %v1652, %v1760
      %v1815 = vsel %vm1707, %v1653, %v1761
      %v1816 = vsel %vm1708, %v1654, %v1762
      %v1817 = vsel %vm1709, %v1655, %v1763
      %v1818 = vsel %vm1710, %v1656, %v1764
      %v1819 = vsel %vm1711, %v1657, %v1765
      %v1820 = vsel %vm1712, %v1658, %v1766
      %v1821 = vsel %vm1713, %v1659, %v1767
      %v1822 = vsel %vm1714, %v1660, %v1768
      %v1823 = vsel %vm1715, %v1661, %v1769
      %v1824 = vsel %vm1716, %v1662, %v1770
      %v1825 = vsel %vm1717, %v1663, %v1771
      %v1826 = vsel %vm1718, %v1664, %v1772
      %v1827 = vsel %vm1719, %v1665, %v1773
      %v1828 = vsel %vm1720, %v1666, %v1774
      %v1829 = vsel %vm1721, %v1667, %v1775
      %v1830 = vsel %vm1722, %v1668, %v1776
      %v1831 = vsel %vm1723, %v1669, %v1777
      %v1832 = vsel %vm1724, %v1670, %v1778
      %v1833 = vsel %vm1725, %v1671, %v1779
      %v1834 = vsel %vm1726, %v1672, %v1780
      %v1835 = vsel %vm1727, %v1673, %v1781
      %v1836 = vsel %vm1728, %v1674, %v1782
      %v1837 = vsel %vm1729, %v1675, %v1783
      %v1838 = vsel %vm1730, %v1676, %v1784
      %v1839 = vsel %vm1731, %v1677, %v1785
      %v1840 = vsel %vm1732, %v1678, %v1786
      %v1841 = vsel %vm1733, %v1679, %v1787
      %v1842 = vsel %vm1734, %v1680, %v1788
      %v1843 = vsel %vm1735, %v1681, %v1789
      %v1844 = vsel %vm1736, %v1682, %v1790
      %v1845 = vsel %vm1737, %v1683, %v1791
      %v1846 = vsel %vm1738, %v1684, %v1792
      %v1847 = vsel %vm1739, %v1685, %v1793
      %v1848 = vsel %vm1740, %v1686, %v1794
      %v1849 = vsel %vm1741, %v1687, %v1795
      %v1850 = vsel %vm1742, %v1688, %v1796
      %v1851 = vsel %vm1743, %v1689, %v1797
      %v1852 = vsel %vm1744, %v1690, %v1798
      %v1853 = vsel %vm1745, %v1691, %v1799
      %v1854 = vsel %vm1746, %v1692, %v1800
      %v1855 = vsel %vm1747, %v1693, %v1801
      %v1856 = vsel %vm1748, %v1694, %v1802
      %v1857 = vsel %vm1749, %v1695, %v1803
      %v1858 = vsel %vm1750, %v1696, %v1804
      %v1859 = vsel %vm1751, %v1697, %v1805
      %v1860 = vsel %vm1752, %v1698, %v1806
      %v1861 = vsel %vm1753, %v1699, %v1807
      %v1862 = vsel %vm1754, %v1700, %v1808
      %v1863 = vmul.f32 %v1323, %v1809
      %v1864 = vmul.f32 %v1324, %v1810
      %v1865 = vmul.f32 %v1325, %v1811
      %v1866 = vmul.f32 %v1326, %v1812
      %v1867 = vmul.f32 %v1327, %v1813
      %v1868 = vmul.f32 %v1328, %v1814
      %v1869 = vmul.f32 %v1329, %v1815
      %v1870 = vmul.f32 %v1330, %v1816
      %v1871 = vmul.f32 %v1331, %v1817
      %v1872 = vmul.f32 %v1332, %v1818
      %v1873 = vmul.f32 %v1333, %v1819
      %v1874 = vmul.f32 %v1334, %v1820
      %v1875 = vmul.f32 %v1335, %v1821
      %v1876 = vmul.f32 %v1336, %v1822
      %v1877 = vmul.f32 %v1337, %v1823
      %v1878 = vmul.f32 %v1338, %v1824
      %v1879 = vmul.f32 %v1339, %v1825
      %v1880 = vmul.f32 %v1340, %v1826
      %v1881 = vmul.f32 %v1341, %v1827
      %v1882 = vmul.f32 %v1342, %v1828
      %v1883 = vmul.f32 %v1343, %v1829
      %v1884 = vmul.f32 %v1344, %v1830
      %v1885 = vmul.f32 %v1345, %v1831
      %v1886 = vmul.f32 %v1346, %v1832
      %v1887 = vmul.f32 %v1347, %v1833
      %v1888 = vmul.f32 %v1348, %v1834
      %v1889 = vmul.f32 %v1349, %v1835
      %v1890 = vmul.f32 %v1350, %v1836
      %v1891 = vmul.f32 %v1351, %v1837
      %v1892 = vmul.f32 %v1352, %v1838
      %v1893 = vmul.f32 %v1353, %v1839
      %v1894 = vmul.f32 %v1354, %v1840
      %v1895 = vmul.f32 %v1355, %v1841
      %v1896 = vmul.f32 %v1356, %v1842
      %v1897 = vmul.f32 %v1357, %v1843
      %v1898 = vmul.f32 %v1358, %v1844
      %v1899 = vmul.f32 %v1359, %v1845
      %v1900 = vmul.f32 %v1360, %v1846
      %v1901 = vmul.f32 %v1361, %v1847
      %v1902 = vmul.f32 %v1362, %v1848
      %v1903 = vmul.f32 %v1363, %v1849
      %v1904 = vmul.f32 %v1364, %v1850
      %v1905 = vmul.f32 %v1365, %v1851
      %v1906 = vmul.f32 %v1366, %v1852
      %v1907 = vmul.f32 %v1367, %v1853
      %v1908 = vmul.f32 %v1368, %v1854
      %v1909 = vmul.f32 %v1369, %v1855
      %v1910 = vmul.f32 %v1370, %v1856
      %v1911 = vmul.f32 %v1371, %v1857
      %v1912 = vmul.f32 %v1372, %v1858
      %v1913 = vmul.f32 %v1373, %v1859
      %v1914 = vmul.f32 %v1374, %v1860
      %v1915 = vmul.f32 %v1375, %v1861
      %v1916 = vmul.f32 %v1376, %v1862
      %1918 = vset.pattern.permute.xlu0 0
      %1919 = vperm.xlu0 %1918, %v730
      %v1920 = vpop.permute.xlu0 %1919
      %1923 = vset.pattern.permute.xlu0 0
      %1924 = vperm.xlu0 %1923, %v731
      %v1925 = vpop.permute.xlu0 %1924
      %1928 = vset.pattern.permute.xlu0 0
      %1929 = vperm.xlu0 %1928, %v732
      %v1930 = vpop.permute.xlu0 %1929
      %1933 = vset.pattern.permute.xlu0 0
      %1934 = vperm.xlu0 %1933, %v733
      %v1935 = vpop.permute.xlu0 %1934
      %1938 = vset.pattern.permute.xlu0 0
      %1939 = vperm.xlu0 %1938, %v734
      %v1940 = vpop.permute.xlu0 %1939
      %1943 = vset.pattern.permute.xlu0 0
      %1944 = vperm.xlu0 %1943, %v735
      %v1945 = vpop.permute.xlu0 %1944
      %1948 = vset.pattern.permute.xlu0 0
      %1949 = vperm.xlu0 %1948, %v736
      %v1950 = vpop.permute.xlu0 %1949
      %1953 = vset.pattern.permute.xlu0 0
      %1954 = vperm.xlu0 %1953, %v737
      %v1955 = vpop.permute.xlu0 %1954
      %1958 = vset.pattern.permute.xlu0 0
      %1959 = vperm.xlu0 %1958, %v738
      %v1960 = vpop.permute.xlu0 %1959
      %1963 = vset.pattern.permute.xlu0 0
      %1964 = vperm.xlu0 %1963, %v739
      %v1965 = vpop.permute.xlu0 %1964
      %1968 = vset.pattern.permute.xlu0 0
      %1969 = vperm.xlu0 %1968, %v740
      %v1970 = vpop.permute.xlu0 %1969
      %1973 = vset.pattern.permute.xlu0 0
      %1974 = vperm.xlu0 %1973, %v741
      %v1975 = vpop.permute.xlu0 %1974
      %1978 = vset.pattern.permute.xlu0 0
      %1979 = vperm.xlu0 %1978, %v742
      %v1980 = vpop.permute.xlu0 %1979
      %1983 = vset.pattern.permute.xlu0 0
      %1984 = vperm.xlu0 %1983, %v743
      %v1985 = vpop.permute.xlu0 %1984
      %1988 = vset.pattern.permute.xlu0 0
      %1989 = vperm.xlu0 %1988, %v744
      %v1990 = vpop.permute.xlu0 %1989
      %1993 = vset.pattern.permute.xlu0 0
      %1994 = vperm.xlu0 %1993, %v745
      %v1995 = vpop.permute.xlu0 %1994
      %1998 = vset.pattern.permute.xlu0 0
      %1999 = vperm.xlu0 %1998, %v746
      %v2000 = vpop.permute.xlu0 %1999
      %2003 = vset.pattern.permute.xlu0 0
      %2004 = vperm.xlu0 %2003, %v747
      %v2005 = vpop.permute.xlu0 %2004
      %2008 = vset.pattern.permute.xlu0 0
      %2009 = vperm.xlu0 %2008, %v748
      %v2010 = vpop.permute.xlu0 %2009
      %2013 = vset.pattern.permute.xlu0 0
      %2014 = vperm.xlu0 %2013, %v749
      %v2015 = vpop.permute.xlu0 %2014
      %2018 = vset.pattern.permute.xlu0 0
      %2019 = vperm.xlu0 %2018, %v750
      %v2020 = vpop.permute.xlu0 %2019
      %2023 = vset.pattern.permute.xlu0 0
      %2024 = vperm.xlu0 %2023, %v751
      %v2025 = vpop.permute.xlu0 %2024
      %2028 = vset.pattern.permute.xlu0 0
      %2029 = vperm.xlu0 %2028, %v752
      %v2030 = vpop.permute.xlu0 %2029
      %2033 = vset.pattern.permute.xlu0 0
      %2034 = vperm.xlu0 %2033, %v753
      %v2035 = vpop.permute.xlu0 %2034
      %2038 = vset.pattern.permute.xlu0 0
      %2039 = vperm.xlu0 %2038, %v754
      %v2040 = vpop.permute.xlu0 %2039
      %2043 = vset.pattern.permute.xlu0 0
      %2044 = vperm.xlu0 %2043, %v755
      %v2045 = vpop.permute.xlu0 %2044
      %2048 = vset.pattern.permute.xlu0 0
      %2049 = vperm.xlu0 %2048, %v756
      %v2050 = vpop.permute.xlu0 %2049
      %2053 = vset.pattern.permute.xlu0 0
      %2054 = vperm.xlu0 %2053, %v757
      %v2055 = vpop.permute.xlu0 %2054
      %2058 = vset.pattern.permute.xlu0 0
      %2059 = vperm.xlu0 %2058, %v758
      %v2060 = vpop.permute.xlu0 %2059
      %2063 = vset.pattern.permute.xlu0 0
      %2064 = vperm.xlu0 %2063, %v759
      %v2065 = vpop.permute.xlu0 %2064
      %2068 = vset.pattern.permute.xlu0 0
      %2069 = vperm.xlu0 %2068, %v760
      %v2070 = vpop.permute.xlu0 %2069
      %2073 = vset.pattern.permute.xlu0 0
      %2074 = vperm.xlu0 %2073, %v761
      %v2075 = vpop.permute.xlu0 %2074
      %2078 = vset.pattern.permute.xlu0 0
      %2079 = vperm.xlu0 %2078, %v762
      %v2080 = vpop.permute.xlu0 %2079
      %2083 = vset.pattern.permute.xlu0 0
      %2084 = vperm.xlu0 %2083, %v763
      %v2085 = vpop.permute.xlu0 %2084
      %2088 = vset.pattern.permute.xlu0 0
      %2089 = vperm.xlu0 %2088, %v764
      %v2090 = vpop.permute.xlu0 %2089
      %2093 = vset.pattern.permute.xlu0 0
      %2094 = vperm.xlu0 %2093, %v765
      %v2095 = vpop.permute.xlu0 %2094
      %2098 = vset.pattern.permute.xlu0 0
      %2099 = vperm.xlu0 %2098, %v766
      %v2100 = vpop.permute.xlu0 %2099
      %2103 = vset.pattern.permute.xlu0 0
      %2104 = vperm.xlu0 %2103, %v767
      %v2105 = vpop.permute.xlu0 %2104
      %2108 = vset.pattern.permute.xlu0 0
      %2109 = vperm.xlu0 %2108, %v768
      %v2110 = vpop.permute.xlu0 %2109
      %2113 = vset.pattern.permute.xlu0 0
      %2114 = vperm.xlu0 %2113, %v769
      %v2115 = vpop.permute.xlu0 %2114
      %2118 = vset.pattern.permute.xlu0 0
      %2119 = vperm.xlu0 %2118, %v770
      %v2120 = vpop.permute.xlu0 %2119
      %2123 = vset.pattern.permute.xlu0 0
      %2124 = vperm.xlu0 %2123, %v771
      %v2125 = vpop.permute.xlu0 %2124
      %2128 = vset.pattern.permute.xlu0 0
      %2129 = vperm.xlu0 %2128, %v772
      %v2130 = vpop.permute.xlu0 %2129
      %2133 = vset.pattern.permute.xlu0 0
      %2134 = vperm.xlu0 %2133, %v773
      %v2135 = vpop.permute.xlu0 %2134
      %2138 = vset.pattern.permute.xlu0 0
      %2139 = vperm.xlu0 %2138, %v774
      %v2140 = vpop.permute.xlu0 %2139
      %2143 = vset.pattern.permute.xlu0 0
      %2144 = vperm.xlu0 %2143, %v775
      %v2145 = vpop.permute.xlu0 %2144
      %2148 = vset.pattern.permute.xlu0 0
      %2149 = vperm.xlu0 %2148, %v776
      %v2150 = vpop.permute.xlu0 %2149
      %2153 = vset.pattern.permute.xlu0 0
      %2154 = vperm.xlu0 %2153, %v777
      %v2155 = vpop.permute.xlu0 %2154
      %2158 = vset.pattern.permute.xlu0 0
      %2159 = vperm.xlu0 %2158, %v778
      %v2160 = vpop.permute.xlu0 %2159
      %2163 = vset.pattern.permute.xlu0 0
      %2164 = vperm.xlu0 %2163, %v779
      %v2165 = vpop.permute.xlu0 %2164
      %2168 = vset.pattern.permute.xlu0 0
      %2169 = vperm.xlu0 %2168, %v780
      %v2170 = vpop.permute.xlu0 %2169
      %2173 = vset.pattern.permute.xlu0 0
      %2174 = vperm.xlu0 %2173, %v781
      %v2175 = vpop.permute.xlu0 %2174
      %2178 = vset.pattern.permute.xlu0 0
      %2179 = vperm.xlu0 %2178, %v782
      %v2180 = vpop.permute.xlu0 %2179
      %2183 = vset.pattern.permute.xlu0 0
      %2184 = vperm.xlu0 %2183, %v783
      %v2185 = vpop.permute.xlu0 %2184
      %v2187 = vmul.f32 %v1863, %v1920
      %v2188 = vmul.f32 %v1864, %v1925
      %v2189 = vmul.f32 %v1865, %v1930
      %v2190 = vmul.f32 %v1866, %v1935
      %v2191 = vmul.f32 %v1867, %v1940
      %v2192 = vmul.f32 %v1868, %v1945
      %v2193 = vmul.f32 %v1869, %v1950
      %v2194 = vmul.f32 %v1870, %v1955
      %v2195 = vmul.f32 %v1871, %v1960
      %v2196 = vmul.f32 %v1872, %v1965
      %v2197 = vmul.f32 %v1873, %v1970
      %v2198 = vmul.f32 %v1874, %v1975
      %v2199 = vmul.f32 %v1875, %v1980
      %v2200 = vmul.f32 %v1876, %v1985
      %v2201 = vmul.f32 %v1877, %v1990
      %v2202 = vmul.f32 %v1878, %v1995
      %v2203 = vmul.f32 %v1879, %v2000
      %v2204 = vmul.f32 %v1880, %v2005
      %v2205 = vmul.f32 %v1881, %v2010
      %v2206 = vmul.f32 %v1882, %v2015
      %v2207 = vmul.f32 %v1883, %v2020
      %v2208 = vmul.f32 %v1884, %v2025
      %v2209 = vmul.f32 %v1885, %v2030
      %v2210 = vmul.f32 %v1886, %v2035
      %v2211 = vmul.f32 %v1887, %v2040
      %v2212 = vmul.f32 %v1888, %v2045
      %v2213 = vmul.f32 %v1889, %v2050
      %v2214 = vmul.f32 %v1890, %v2055
      %v2215 = vmul.f32 %v1891, %v2060
      %v2216 = vmul.f32 %v1892, %v2065
      %v2217 = vmul.f32 %v1893, %v2070
      %v2218 = vmul.f32 %v1894, %v2075
      %v2219 = vmul.f32 %v1895, %v2080
      %v2220 = vmul.f32 %v1896, %v2085
      %v2221 = vmul.f32 %v1897, %v2090
      %v2222 = vmul.f32 %v1898, %v2095
      %v2223 = vmul.f32 %v1899, %v2100
      %v2224 = vmul.f32 %v1900, %v2105
      %v2225 = vmul.f32 %v1901, %v2110
      %v2226 = vmul.f32 %v1902, %v2115
      %v2227 = vmul.f32 %v1903, %v2120
      %v2228 = vmul.f32 %v1904, %v2125
      %v2229 = vmul.f32 %v1905, %v2130
      %v2230 = vmul.f32 %v1906, %v2135
      %v2231 = vmul.f32 %v1907, %v2140
      %v2232 = vmul.f32 %v1908, %v2145
      %v2233 = vmul.f32 %v1909, %v2150
      %v2234 = vmul.f32 %v1910, %v2155
      %v2235 = vmul.f32 %v1911, %v2160
      %v2236 = vmul.f32 %v1912, %v2165
      %v2237 = vmul.f32 %v1913, %v2170
      %v2238 = vmul.f32 %v1914, %v2175
      %v2239 = vmul.f32 %v1915, %v2180
      %v2240 = vmul.f32 %v1916, %v2185
      %v2241 = vpack.c.bf16 %v2188, %v2187
      %v2242 = vpack.c.bf16 %v2190, %v2189
      %v2243 = vpack.c.bf16 %v2192, %v2191
      %v2244 = vpack.c.bf16 %v2194, %v2193
      %v2245 = vpack.c.bf16 %v2196, %v2195
      %v2246 = vpack.c.bf16 %v2198, %v2197
      %v2247 = vpack.c.bf16 %v2200, %v2199
      %v2248 = vpack.c.bf16 %v2202, %v2201
      %v2249 = vpack.c.bf16 %v2204, %v2203
      %v2250 = vpack.c.bf16 %v2206, %v2205
      %v2251 = vpack.c.bf16 %v2208, %v2207
      %v2252 = vpack.c.bf16 %v2210, %v2209
      %v2253 = vpack.c.bf16 %v2212, %v2211
      %v2254 = vpack.c.bf16 %v2214, %v2213
      %v2255 = vpack.c.bf16 %v2216, %v2215
      %v2256 = vpack.c.bf16 %v2218, %v2217
      %v2257 = vpack.c.bf16 %v2220, %v2219
      %v2258 = vpack.c.bf16 %v2222, %v2221
      %v2259 = vpack.c.bf16 %v2224, %v2223
      %v2260 = vpack.c.bf16 %v2226, %v2225
      %v2261 = vpack.c.bf16 %v2228, %v2227
      %v2262 = vpack.c.bf16 %v2230, %v2229
      %v2263 = vpack.c.bf16 %v2232, %v2231
      %v2264 = vpack.c.bf16 %v2234, %v2233
      %v2265 = vpack.c.bf16 %v2236, %v2235
      %v2266 = vpack.c.bf16 %v2238, %v2237
      %v2267 = vpack.c.bf16 %v2240, %v2239
      %v2268 = vld [vmem:[%s604 + $0xc8] sm:$0xf]
      %v2269 = vld [vmem:[%s604 + $0xcc] sm:$0xf]
      %v2270 = vld [vmem:[%s604 + $0xd0] sm:$0xf]
      %v2271 = vld [vmem:[%s604 + $0xd4] sm:$0xf]
      %v2272 = vld [vmem:[%s642 + $0x190] sm:$0xff]
      %v2273 = vld [vmem:[%s642 + $0x198] sm:$0xff]
      %v2274 = vld [vmem:[%s642 + $0x1a0] sm:$0xff]
      %v2275 = vld [vmem:[%s642 + $0x1a8] sm:$0xff]
      %v2280 = vunpack.c.l.b16 %v2268
      %v2281 = vunpack.c.l.b16 %v2269
      %v2282 = vunpack.c.l.b16 %v2270
      %v2283 = vunpack.c.l.b16 %v2271
      %v2284 = vpack.c.b16 %v2281, %v2280
      %v2285 = vpack.c.b16 %v2283, %v2282
      %v2287 = vsel %vm922, %v2284, 0
      %v2290 = vsel %vm922, %v2285, 0
      %2292 = vmatprep.subr.bf16.mxu0 0
      %2293 = vmatpush1.bf16.msra.mxu0 %v1006
      %2294 = vmatprep.subr.bf16.mxu0 0
      %2295 = vmatpush1.bf16.msra.mxu0 0
      %2296 = vmatprep.subr.bf16.mxu0 0
      %2297 = vmatpush1.bf16.msra.mxu0 0
      %2298 = vmatprep.subr.bf16.mxu0 0
      %2299 = vmatpush1.bf16.msra.mxu0 0
      %2300 = vmatprep.subr.bf16.mxu0 0
      %2301 = vmatpush1.bf16.msra.mxu0 0
      %2302 = vmatprep.subr.bf16.mxu0 0
      %2303 = vmatpush1.bf16.msra.mxu0 0
      %2304 = vmatprep.subr.bf16.mxu0 0
      %2305 = vmatpush1.bf16.msra.mxu0 0
      %2306 = vmatprep.subr.bf16.mxu0 0
      %2307 = vmatpush1.bf16.msra.mxu0 0
      %2308 = vmatprep.subr.bf16.mxu0 0
      %2309 = vmatpush1.bf16.msra.mxu0 0
      %2310 = vmatprep.subr.bf16.mxu0 0
      %2311 = vmatpush1.bf16.msra.mxu0 0
      %2312 = vmatprep.subr.bf16.mxu0 0
      %2313 = vmatpush1.bf16.msra.mxu0 0
      %2314 = vmatprep.subr.bf16.mxu0 0
      %2315 = vmatpush1.bf16.msra.mxu0 0
      %2316 = vmatprep.subr.bf16.mxu0 0
      %2317 = vmatpush1.bf16.msra.mxu0 0
      %2318 = vmatprep.subr.bf16.mxu0 0
      %2319 = vmatpush1.bf16.msra.mxu0 0
      %2320 = vmatprep.subr.bf16.mxu0 0
      %2321 = vmatpush1.bf16.msra.mxu0 0
      %2322 = vmatprep.subr.bf16.mxu0 0
      %2323 = vmatpush1.bf16.msra.mxu0 0
      %2324 = vmatprep.mubr.bf16.mxu0 0
      %2325 = vmatmul.mubr.bf16.gmra.mrb[0].mxu0 %v2287
      %v2326 = vpop.f32.mrb[0].mxu0
      %v2327 = vadd.f32 0.0, %v2326
      %v2328 = vpop.f32.mrb[0].mxu0
      %v2329 = vpop.f32.mrb[0].mxu0
      %v2330 = vadd.f32 0.0, %v2329
      %v2331 = vpop.f32.mrb[0].mxu0
      %2332 = vmatprep.mubr.bf16.mxu0 0
      %2333 = vmatmul.mubr.bf16.gmra.mrb[0].mxu0 %v2290
      %v2334 = vpop.f32.mrb[0].mxu0
      %v2335 = vadd.f32 0.0, %v2334
      %v2336 = vpop.f32.mrb[0].mxu0
      %v2337 = vpop.f32.mrb[0].mxu0
      %v2338 = vadd.f32 0.0, %v2337
      %v2339 = vpop.f32.mrb[0].mxu0
      %2340 = vdwg.mxu0
      %v2341 = vmul.f32 %v2327, %v1261
      %v2342 = vmul.f32 %v2330, %v1261
      %v2343 = vmul.f32 %v2335, %v1261
      %v2344 = vmul.f32 %v2338, %v1261
      %v2345 = vadd.f32 %v2341, %v1321
      %v2346 = vadd.f32 %v2342, %v1321
      %v2347 = vadd.f32 %v2343, %v1321
      %v2348 = vadd.f32 %v2344, %v1321
      %v2349 = vand.u32 2147483647, %v2345
      %v2350 = vand.u32 2147483647, %v2346
      %v2351 = vand.u32 2147483647, %v2347
      %v2352 = vand.u32 2147483647, %v2348
      %v2353 = vsub.f32 0.0, %v2349
      %v2354 = vsub.f32 0.0, %v2350
      %v2355 = vsub.f32 0.0, %v2351
      %v2356 = vsub.f32 0.0, %v2352
      %v2357 = vmul.f32 %v2353, 1.442695
      %v2358 = vpow.pop %v2357
      %v2359 = vmul.f32 %v2354, 1.442695
      %v2360 = vpow.pop %v2359
      %v2361 = vmul.f32 %v2355, 1.442695
      %v2362 = vpow.pop %v2361
      %v2363 = vmul.f32 %v2356, 1.442695
      %v2364 = vpow.pop %v2363
      %v2365 = vadd.f32 %v2358, 1.0
      %v2366 = vadd.f32 %v2360, 1.0
      %v2367 = vadd.f32 %v2362, 1.0
      %v2368 = vadd.f32 %v2364, 1.0
      %v2369 = vrcp.pop %v2365
      %v2370 = vrcp.pop %v2366
      %v2371 = vrcp.pop %v2367
      %v2372 = vrcp.pop %v2368
      %vm2373 = vcmp.ge.f32.partialorder %v2345, 0.0
      %vm2374 = vcmp.ge.f32.partialorder %v2346, 0.0
      %vm2375 = vcmp.ge.f32.partialorder %v2347, 0.0
      %vm2376 = vcmp.ge.f32.partialorder %v2348, 0.0
      %v2377 = vmul.f32 %v2358, %v2369
      %v2378 = vmul.f32 %v2360, %v2370
      %v2379 = vmul.f32 %v2362, %v2371
      %v2380 = vmul.f32 %v2364, %v2372
      %v2381 = vsel %vm2373, %v2369, %v2377
      %v2382 = vsel %vm2374, %v2370, %v2378
      %v2383 = vsel %vm2375, %v2371, %v2379
      %v2384 = vsel %vm2376, %v2372, %v2380
      %v2385 = vmul.f32 %v2345, %v2381
      %v2386 = vmul.f32 %v2346, %v2382
      %v2387 = vmul.f32 %v2347, %v2383
      %v2388 = vmul.f32 %v2348, %v2384
      %2390 = vset.pattern.permute.xlu0 0
      %2391 = vperm.xlu0 %2390, %v2272
      %v2392 = vpop.permute.xlu0 %2391
      %2395 = vset.pattern.permute.xlu0 0
      %2396 = vperm.xlu0 %2395, %v2273
      %v2397 = vpop.permute.xlu0 %2396
      %2400 = vset.pattern.permute.xlu0 0
      %2401 = vperm.xlu0 %2400, %v2274
      %v2402 = vpop.permute.xlu0 %2401
      %2405 = vset.pattern.permute.xlu0 0
      %2406 = vperm.xlu0 %2405, %v2275
      %v2407 = vpop.permute.xlu0 %2406
      %v2409 = vmul.f32 %v2385, %v2392
      %v2410 = vmul.f32 %v2386, %v2397
      %v2411 = vmul.f32 %v2387, %v2402
      %v2412 = vmul.f32 %v2388, %v2407
      %v2413 = vpack.c.bf16 %v2410, %v2409
      %v2414 = vpack.c.bf16 %v2412, %v2411
      %v2415 = vld [vmem:[%s630] sm:$0xf]
      %v2416 = vld [vmem:[%s630 + $0x4] sm:$0xf]
      %v2417 = vld [vmem:[%s630 + $0x8] sm:$0xf]
      %v2418 = vld [vmem:[%s630 + $0xc] sm:$0xf]
      %v2419 = vld [vmem:[%s660] sm:$0xff]
      %v2420 = vld [vmem:[%s660 + $0x8] sm:$0xff]
      %v2421 = vld [vmem:[%s660 + $0x10] sm:$0xff]
      %v2422 = vld [vmem:[%s660 + $0x18] sm:$0xff]
      %v2427 = vunpack.c.l.b16 %v2415
      %v2428 = vunpack.c.l.b16 %v2416
      %v2429 = vunpack.c.l.b16 %v2417
      %v2430 = vunpack.c.l.b16 %v2418
      %v2431 = vpack.c.b16 %v2428, %v2427
      %v2432 = vpack.c.b16 %v2430, %v2429
      %v2434 = vsel %vm922, %v2431, 0
      %v2437 = vsel %vm922, %v2432, 0
      %2439 = vmatprep.subr.bf16.mxu0 0
      %2440 = vmatpush1.bf16.msra.mxu0 %v1006
      %2441 = vmatprep.subr.bf16.mxu0 0
      %2442 = vmatpush1.bf16.msra.mxu0 0
      %2443 = vmatprep.subr.bf16.mxu0 0
      %2444 = vmatpush1.bf16.msra.mxu0 0
      %2445 = vmatprep.subr.bf16.mxu0 0
      %2446 = vmatpush1.bf16.msra.mxu0 0
      %2447 = vmatprep.subr.bf16.mxu0 0
      %2448 = vmatpush1.bf16.msra.mxu0 0
      %2449 = vmatprep.subr.bf16.mxu0 0
      %2450 = vmatpush1.bf16.msra.mxu0 0
      %2451 = vmatprep.subr.bf16.mxu0 0
      %2452 = vmatpush1.bf16.msra.mxu0 0
      %2453 = vmatprep.subr.bf16.mxu0 0
      %2454 = vmatpush1.bf16.msra.mxu0 0
      %2455 = vmatprep.subr.bf16.mxu0 0
      %2456 = vmatpush1.bf16.msra.mxu0 0
      %2457 = vmatprep.subr.bf16.mxu0 0
      %2458 = vmatpush1.bf16.msra.mxu0 0
      %2459 = vmatprep.subr.bf16.mxu0 0
      %2460 = vmatpush1.bf16.msra.mxu0 0
      %2461 = vmatprep.subr.bf16.mxu0 0
      %2462 = vmatpush1.bf16.msra.mxu0 0
      %2463 = vmatprep.subr.bf16.mxu0 0
      %2464 = vmatpush1.bf16.msra.mxu0 0
      %2465 = vmatprep.subr.bf16.mxu0 0
      %2466 = vmatpush1.bf16.msra.mxu0 0
      %2467 = vmatprep.subr.bf16.mxu0 0
      %2468 = vmatpush1.bf16.msra.mxu0 0
      %2469 = vmatprep.subr.bf16.mxu0 0
      %2470 = vmatpush1.bf16.msra.mxu0 0
      %2471 = vmatprep.mubr.bf16.mxu0 0
      %2472 = vmatmul.mubr.bf16.gmra.mrb[0].mxu0 %v2434
      %v2473 = vpop.f32.mrb[0].mxu0
      %v2474 = vadd.f32 0.0, %v2473
      %v2475 = vpop.f32.mrb[0].mxu0
      %v2476 = vpop.f32.mrb[0].mxu0
      %v2477 = vadd.f32 0.0, %v2476
      %v2478 = vpop.f32.mrb[0].mxu0
      %2479 = vmatprep.mubr.bf16.mxu0 0
      %2480 = vmatmul.mubr.bf16.gmra.mrb[0].mxu0 %v2437
      %v2481 = vpop.f32.mrb[0].mxu0
      %v2482 = vadd.f32 0.0, %v2481
      %v2483 = vpop.f32.mrb[0].mxu0
      %v2484 = vpop.f32.mrb[0].mxu0
      %v2485 = vadd.f32 0.0, %v2484
      %v2486 = vpop.f32.mrb[0].mxu0
      %2487 = vdwg.mxu0
      %v2488 = vmul.f32 %v2474, %v1261
      %v2489 = vmul.f32 %v2477, %v1261
      %v2490 = vmul.f32 %v2482, %v1261
      %v2491 = vmul.f32 %v2485, %v1261
      %v2492 = vadd.f32 %v2488, %v1321
      %v2493 = vadd.f32 %v2489, %v1321
      %v2494 = vadd.f32 %v2490, %v1321
      %v2495 = vadd.f32 %v2491, %v1321
      %v2496 = vand.u32 2147483647, %v2492
      %v2497 = vand.u32 2147483647, %v2493
      %v2498 = vand.u32 2147483647, %v2494
      %v2499 = vand.u32 2147483647, %v2495
      %v2500 = vsub.f32 0.0, %v2496
      %v2501 = vsub.f32 0.0, %v2497
      %v2502 = vsub.f32 0.0, %v2498
      %v2503 = vsub.f32 0.0, %v2499
      %v2504 = vmul.f32 %v2500, 1.442695
      %v2505 = vpow.pop %v2504
      %v2506 = vmul.f32 %v2501, 1.442695
      %v2507 = vpow.pop %v2506
      %v2508 = vmul.f32 %v2502, 1.442695
      %v2509 = vpow.pop %v2508
      %v2510 = vmul.f32 %v2503, 1.442695
      %v2511 = vpow.pop %v2510
      %v2512 = vadd.f32 %v2505, 1.0
      %v2513 = vadd.f32 %v2507, 1.0
      %v2514 = vadd.f32 %v2509, 1.0
      %v2515 = vadd.f32 %v2511, 1.0
      %v2516 = vrcp.pop %v2512
      %v2517 = vrcp.pop %v2513
      %v2518 = vrcp.pop %v2514
      %v2519 = vrcp.pop %v2515
      %vm2520 = vcmp.ge.f32.partialorder %v2492, 0.0
      %vm2521 = vcmp.ge.f32.partialorder %v2493, 0.0
      %vm2522 = vcmp.ge.f32.partialorder %v2494, 0.0
      %vm2523 = vcmp.ge.f32.partialorder %v2495, 0.0
      %v2524 = vmul.f32 %v2505, %v2516
      %v2525 = vmul.f32 %v2507, %v2517
      %v2526 = vmul.f32 %v2509, %v2518
      %v2527 = vmul.f32 %v2511, %v2519
      %v2528 = vsel %vm2520, %v2516, %v2524
      %v2529 = vsel %vm2521, %v2517, %v2525
      %v2530 = vsel %vm2522, %v2518, %v2526
      %v2531 = vsel %vm2523, %v2519, %v2527
      %v2532 = vmul.f32 %v2492, %v2528
      %v2533 = vmul.f32 %v2493, %v2529
      %v2534 = vmul.f32 %v2494, %v2530
      %v2535 = vmul.f32 %v2495, %v2531
      %2537 = vset.pattern.permute.xlu0 0
      %2538 = vperm.xlu0 %2537, %v2419
      %v2539 = vpop.permute.xlu0 %2538
      %2542 = vset.pattern.permute.xlu0 0
      %2543 = vperm.xlu0 %2542, %v2420
      %v2544 = vpop.permute.xlu0 %2543
      %2547 = vset.pattern.permute.xlu0 0
      %2548 = vperm.xlu0 %2547, %v2421
      %v2549 = vpop.permute.xlu0 %2548
      %2552 = vset.pattern.permute.xlu0 0
      %2553 = vperm.xlu0 %2552, %v2422
      %v2554 = vpop.permute.xlu0 %2553
      %v2556 = vmul.f32 %v2532, %v2539
      %v2557 = vmul.f32 %v2533, %v2544
      %v2558 = vmul.f32 %v2534, %v2549
      %v2559 = vmul.f32 %v2535, %v2554
      %v2560 = vpack.c.bf16 %v2557, %v2556
      %v2561 = vpack.c.bf16 %v2559, %v2558
      %vm2562 = vsmask.f32 7424
      %v2564 = vshrl.u32 %v2413, 16
      %v2566 = vshll.u32 %v2413, 16
      %v2568 = vrot.slane %v2566, 1
      %v2569 = vor.u32 %v2564, %v2568
      %v2571 = vshll.u32 %v2414, 16
      %v2573 = vrot.slane %v2571, 1
      %v2574 = vsel %vm2562, %v2569, %v2573
      %v2575 = vshrl.u32 %v2414, 16
      %v2577 = vor.u32 %v2575, %v2573
      %v2579 = vshll.u32 %v2241, 16
      %v2581 = vrot.slane %v2579, 1
      %v2582 = vsel %vm2562, %v2577, %v2581
      %v2583 = vshrl.u32 %v2241, 16
      %v2585 = vor.u32 %v2583, %v2581
      %v2587 = vshll.u32 %v2242, 16
      %v2589 = vrot.slane %v2587, 1
      %v2590 = vsel %vm2562, %v2585, %v2589
      %v2591 = vshrl.u32 %v2242, 16
      %v2593 = vor.u32 %v2591, %v2589
      %v2595 = vshll.u32 %v2243, 16
      %v2597 = vrot.slane %v2595, 1
      %v2598 = vsel %vm2562, %v2593, %v2597
      %v2599 = vshrl.u32 %v2243, 16
      %v2601 = vor.u32 %v2599, %v2597
      %v2603 = vshll.u32 %v2244, 16
      %v2605 = vrot.slane %v2603, 1
      %v2606 = vsel %vm2562, %v2601, %v2605
      %v2607 = vshrl.u32 %v2244, 16
      %v2609 = vor.u32 %v2607, %v2605
      %v2611 = vshll.u32 %v2245, 16
      %v2613 = vrot.slane %v2611, 1
      %v2614 = vsel %vm2562, %v2609, %v2613
      %v2615 = vshrl.u32 %v2245, 16
      %v2617 = vor.u32 %v2615, %v2613
      %v2619 = vshll.u32 %v2246, 16
      %v2621 = vrot.slane %v2619, 1
      %v2622 = vsel %vm2562, %v2617, %v2621
      %v2623 = vshrl.u32 %v2246, 16
      %v2625 = vor.u32 %v2623, %v2621
      %v2627 = vshll.u32 %v2247, 16
      %v2629 = vrot.slane %v2627, 1
      %v2630 = vsel %vm2562, %v2625, %v2629
      %v2631 = vshrl.u32 %v2247, 16
      %v2633 = vor.u32 %v2631, %v2629
      %v2635 = vshll.u32 %v2248, 16
      %v2637 = vrot.slane %v2635, 1
      %v2638 = vsel %vm2562, %v2633, %v2637
      %v2639 = vshrl.u32 %v2248, 16
      %v2641 = vor.u32 %v2639, %v2637
      %v2643 = vshll.u32 %v2249, 16
      %v2645 = vrot.slane %v2643, 1
      %v2646 = vsel %vm2562, %v2641, %v2645
      %v2647 = vshrl.u32 %v2249, 16
      %v2649 = vor.u32 %v2647, %v2645
      %v2651 = vshll.u32 %v2250, 16
      %v2653 = vrot.slane %v2651, 1
      %v2654 = vsel %vm2562, %v2649, %v2653
      %v2655 = vshrl.u32 %v2250, 16
      %v2657 = vor.u32 %v2655, %v2653
      %v2659 = vshll.u32 %v2251, 16
      %v2661 = vrot.slane %v2659, 1
      %v2662 = vsel %vm2562, %v2657, %v2661
      %v2663 = vshrl.u32 %v2251, 16
      %v2665 = vor.u32 %v2663, %v2661
      %v2667 = vshll.u32 %v2252, 16
      %v2669 = vrot.slane %v2667, 1
      %v2670 = vsel %vm2562, %v2665, %v2669
      %v2671 = vshrl.u32 %v2252, 16
      %v2673 = vor.u32 %v2671, %v2669
      %v2675 = vshll.u32 %v2253, 16
      %v2677 = vrot.slane %v2675, 1
      %v2678 = vsel %vm2562, %v2673, %v2677
      %v2679 = vshrl.u32 %v2253, 16
      %v2681 = vor.u32 %v2679, %v2677
      %v2683 = vshll.u32 %v2254, 16
      %v2685 = vrot.slane %v2683, 1
      %v2686 = vsel %vm2562, %v2681, %v2685
      %v2687 = vshrl.u32 %v2254, 16
      %v2689 = vor.u32 %v2687, %v2685
      %v2691 = vshll.u32 %v2255, 16
      %v2693 = vrot.slane %v2691, 1
      %v2694 = vsel %vm2562, %v2689, %v2693
      %v2695 = vshrl.u32 %v2255, 16
      %v2697 = vor.u32 %v2695, %v2693
      %v2699 = vshll.u32 %v2256, 16
      %v2701 = vrot.slane %v2699, 1
      %v2702 = vsel %vm2562, %v2697, %v2701
      %v2703 = vshrl.u32 %v2256, 16
      %v2705 = vor.u32 %v2703, %v2701
      %v2707 = vshll.u32 %v2257, 16
      %v2709 = vrot.slane %v2707, 1
      %v2710 = vsel %vm2562, %v2705, %v2709
      %v2711 = vshrl.u32 %v2257, 16
      %v2713 = vor.u32 %v2711, %v2709
      %v2715 = vshll.u32 %v2258, 16
      %v2717 = vrot.slane %v2715, 1
      %v2718 = vsel %vm2562, %v2713, %v2717
      %v2719 = vshrl.u32 %v2258, 16
      %v2721 = vor.u32 %v2719, %v2717
      %v2723 = vshll.u32 %v2259, 16
      %v2725 = vrot.slane %v2723, 1
      %v2726 = vsel %vm2562, %v2721, %v2725
      %v2727 = vshrl.u32 %v2259, 16
      %v2729 = vor.u32 %v2727, %v2725
      %v2731 = vshll.u32 %v2260, 16
      %v2733 = vrot.slane %v2731, 1
      %v2734 = vsel %vm2562, %v2729, %v2733
      %v2735 = vshrl.u32 %v2260, 16
      %v2737 = vor.u32 %v2735, %v2733
      %v2739 = vshll.u32 %v2261, 16
      %v2741 = vrot.slane %v2739, 1
      %v2742 = vsel %vm2562, %v2737, %v2741
      %v2743 = vshrl.u32 %v2261, 16
      %v2745 = vor.u32 %v2743, %v2741
      %v2747 = vshll.u32 %v2262, 16
      %v2749 = vrot.slane %v2747, 1
      %v2750 = vsel %vm2562, %v2745, %v2749
      %v2751 = vshrl.u32 %v2262, 16
      %v2753 = vor.u32 %v2751, %v2749
      %v2755 = vshll.u32 %v2263, 16
      %v2757 = vrot.slane %v2755, 1
      %v2758 = vsel %vm2562, %v2753, %v2757
      %v2759 = vshrl.u32 %v2263, 16
      %v2761 = vor.u32 %v2759, %v2757
      %v2763 = vshll.u32 %v2264, 16
      %v2765 = vrot.slane %v2763, 1
      %v2766 = vsel %vm2562, %v2761, %v2765
      %v2767 = vshrl.u32 %v2264, 16
      %v2769 = vor.u32 %v2767, %v2765
      %v2771 = vshll.u32 %v2265, 16
      %v2773 = vrot.slane %v2771, 1
      %v2774 = vsel %vm2562, %v2769, %v2773
      %v2775 = vshrl.u32 %v2265, 16
      %v2777 = vor.u32 %v2775, %v2773
      %v2779 = vshll.u32 %v2266, 16
      %v2781 = vrot.slane %v2779, 1
      %v2782 = vsel %vm2562, %v2777, %v2781
      %v2783 = vshrl.u32 %v2266, 16
      %v2785 = vor.u32 %v2783, %v2781
      %2786 = vrot.lane.b32.xlu0 %v2574, 4
      %v2787 = vpop.permute.xlu0 %2786
      %2788 = vrot.lane.b32.xlu0 %v2582, 4
      %v2789 = vpop.permute.xlu0 %2788
      %2790 = vrot.lane.b32.xlu0 %v2590, 4
      %v2791 = vpop.permute.xlu0 %2790
      %2792 = vrot.lane.b32.xlu0 %v2598, 4
      %v2793 = vpop.permute.xlu0 %2792
      %2794 = vrot.lane.b32.xlu0 %v2606, 4
      %v2795 = vpop.permute.xlu0 %2794
      %2796 = vrot.lane.b32.xlu0 %v2614, 4
      %v2797 = vpop.permute.xlu0 %2796
      %2798 = vrot.lane.b32.xlu0 %v2622, 4
      %v2799 = vpop.permute.xlu0 %2798
      %2800 = vrot.lane.b32.xlu0 %v2630, 4
      %v2801 = vpop.permute.xlu0 %2800
      %2802 = vrot.lane.b32.xlu0 %v2638, 4
      %v2803 = vpop.permute.xlu0 %2802
      %2804 = vrot.lane.b32.xlu0 %v2646, 4
      %v2805 = vpop.permute.xlu0 %2804
      %2806 = vrot.lane.b32.xlu0 %v2654, 4
      %v2807 = vpop.permute.xlu0 %2806
      %2808 = vrot.lane.b32.xlu0 %v2662, 4
      %v2809 = vpop.permute.xlu0 %2808
      %2810 = vrot.lane.b32.xlu0 %v2670, 4
      %v2811 = vpop.permute.xlu0 %2810
      %2812 = vrot.lane.b32.xlu0 %v2678, 4
      %v2813 = vpop.permute.xlu0 %2812
      %2814 = vrot.lane.b32.xlu0 %v2686, 4
      %v2815 = vpop.permute.xlu0 %2814
      %2816 = vrot.lane.b32.xlu0 %v2694, 4
      %v2817 = vpop.permute.xlu0 %2816
      %2818 = vrot.lane.b32.xlu0 %v2702, 4
      %v2819 = vpop.permute.xlu0 %2818
      %2820 = vrot.lane.b32.xlu0 %v2710, 4
      %v2821 = vpop.permute.xlu0 %2820
      %2822 = vrot.lane.b32.xlu0 %v2718, 4
      %v2823 = vpop.permute.xlu0 %2822
      %2824 = vrot.lane.b32.xlu0 %v2726, 4
      %v2825 = vpop.permute.xlu0 %2824
      %2826 = vrot.lane.b32.xlu0 %v2734, 4
      %v2827 = vpop.permute.xlu0 %2826
      %2828 = vrot.lane.b32.xlu0 %v2742, 4
      %v2829 = vpop.permute.xlu0 %2828
      %2830 = vrot.lane.b32.xlu0 %v2750, 4
      %v2831 = vpop.permute.xlu0 %2830
      %2832 = vrot.lane.b32.xlu0 %v2758, 4
      %v2833 = vpop.permute.xlu0 %2832
      %2834 = vrot.lane.b32.xlu0 %v2766, 4
      %v2835 = vpop.permute.xlu0 %2834
      %2836 = vrot.lane.b32.xlu0 %v2774, 4
      %v2837 = vpop.permute.xlu0 %2836
      %2838 = vrot.lane.b32.xlu0 %v2782, 4
      %v2839 = vpop.permute.xlu0 %2838
      %2840 = vrot.lane.b32.xlu0 %v2785, 4
      %v2841 = vpop.permute.xlu0 %2840
      %vm2870 = vcmask 1046528
      %v2871 = vrot.slane %v2413, 1
      %v2872 = vrot.slane %v2414, 1
      %v2873 = vsel %vm2870, %v2871, %v2872
      %v2874 = vrot.slane %v2241, 1
      %v2875 = vsel %vm2870, %v2872, %v2874
      %v2876 = vrot.slane %v2242, 1
      %v2877 = vsel %vm2870, %v2874, %v2876
      %v2878 = vrot.slane %v2243, 1
      %v2879 = vsel %vm2870, %v2876, %v2878
      %v2880 = vrot.slane %v2244, 1
      %v2881 = vsel %vm2870, %v2878, %v2880
      %v2882 = vrot.slane %v2245, 1
      %v2883 = vsel %vm2870, %v2880, %v2882
      %v2884 = vrot.slane %v2246, 1
      %v2885 = vsel %vm2870, %v2882, %v2884
      %v2886 = vrot.slane %v2247, 1
      %v2887 = vsel %vm2870, %v2884, %v2886
      %v2888 = vrot.slane %v2248, 1
      %v2889 = vsel %vm2870, %v2886, %v2888
      %v2890 = vrot.slane %v2249, 1
      %v2891 = vsel %vm2870, %v2888, %v2890
      %v2892 = vrot.slane %v2250, 1
      %v2893 = vsel %vm2870, %v2890, %v2892
      %v2894 = vrot.slane %v2251, 1
      %v2895 = vsel %vm2870, %v2892, %v2894
      %v2896 = vrot.slane %v2252, 1
      %v2897 = vsel %vm2870, %v2894, %v2896
      %v2898 = vrot.slane %v2253, 1
      %v2899 = vsel %vm2870, %v2896, %v2898
      %v2900 = vrot.slane %v2254, 1
      %v2901 = vsel %vm2870, %v2898, %v2900
      %v2902 = vrot.slane %v2255, 1
      %v2903 = vsel %vm2870, %v2900, %v2902
      %v2904 = vrot.slane %v2256, 1
      %v2905 = vsel %vm2870, %v2902, %v2904
      %v2906 = vrot.slane %v2257, 1
      %v2907 = vsel %vm2870, %v2904, %v2906
      %v2908 = vrot.slane %v2258, 1
      %v2909 = vsel %vm2870, %v2906, %v2908
      %v2910 = vrot.slane %v2259, 1
      %v2911 = vsel %vm2870, %v2908, %v2910
      %v2912 = vrot.slane %v2260, 1
      %v2913 = vsel %vm2870, %v2910, %v2912
      %v2914 = vrot.slane %v2261, 1
      %v2915 = vsel %vm2870, %v2912, %v2914
      %v2916 = vrot.slane %v2262, 1
      %v2917 = vsel %vm2870, %v2914, %v2916
      %v2918 = vrot.slane %v2263, 1
      %v2919 = vsel %vm2870, %v2916, %v2918
      %v2920 = vrot.slane %v2264, 1
      %v2921 = vsel %vm2870, %v2918, %v2920
      %v2922 = vrot.slane %v2265, 1
      %v2923 = vsel %vm2870, %v2920, %v2922
      %v2924 = vrot.slane %v2266, 1
      %v2925 = vsel %vm2870, %v2922, %v2924
      %2926 = vrot.lane.b32.xlu0 %v2873, 8
      %v2927 = vpop.permute.xlu0 %2926
      %2928 = vrot.lane.b32.xlu0 %v2875, 8
      %v2929 = vpop.permute.xlu0 %2928
      %2930 = vrot.lane.b32.xlu0 %v2877, 8
      %v2931 = vpop.permute.xlu0 %2930
      %2932 = vrot.lane.b32.xlu0 %v2879, 8
      %v2933 = vpop.permute.xlu0 %2932
      %2934 = vrot.lane.b32.xlu0 %v2881, 8
      %v2935 = vpop.permute.xlu0 %2934
      %2936 = vrot.lane.b32.xlu0 %v2883, 8
      %v2937 = vpop.permute.xlu0 %2936
      %2938 = vrot.lane.b32.xlu0 %v2885, 8
      %v2939 = vpop.permute.xlu0 %2938
      %2940 = vrot.lane.b32.xlu0 %v2887, 8
      %v2941 = vpop.permute.xlu0 %2940
      %2942 = vrot.lane.b32.xlu0 %v2889, 8
      %v2943 = vpop.permute.xlu0 %2942
      %2944 = vrot.lane.b32.xlu0 %v2891, 8
      %v2945 = vpop.permute.xlu0 %2944
      %2946 = vrot.lane.b32.xlu0 %v2893, 8
      %v2947 = vpop.permute.xlu0 %2946
      %2948 = vrot.lane.b32.xlu0 %v2895, 8
      %v2949 = vpop.permute.xlu0 %2948
      %2950 = vrot.lane.b32.xlu0 %v2897, 8
      %v2951 = vpop.permute.xlu0 %2950
      %2952 = vrot.lane.b32.xlu0 %v2899, 8
      %v2953 = vpop.permute.xlu0 %2952
      %2954 = vrot.lane.b32.xlu0 %v2901, 8
      %v2955 = vpop.permute.xlu0 %2954
      %2956 = vrot.lane.b32.xlu0 %v2903, 8
      %v2957 = vpop.permute.xlu0 %2956
      %2958 = vrot.lane.b32.xlu0 %v2905, 8
      %v2959 = vpop.permute.xlu0 %2958
      %2960 = vrot.lane.b32.xlu0 %v2907, 8
      %v2961 = vpop.permute.xlu0 %2960
      %2962 = vrot.lane.b32.xlu0 %v2909, 8
      %v2963 = vpop.permute.xlu0 %2962
      %2964 = vrot.lane.b32.xlu0 %v2911, 8
      %v2965 = vpop.permute.xlu0 %2964
      %2966 = vrot.lane.b32.xlu0 %v2913, 8
      %v2967 = vpop.permute.xlu0 %2966
      %2968 = vrot.lane.b32.xlu0 %v2915, 8
      %v2969 = vpop.permute.xlu0 %2968
      %2970 = vrot.lane.b32.xlu0 %v2917, 8
      %v2971 = vpop.permute.xlu0 %2970
      %2972 = vrot.lane.b32.xlu0 %v2919, 8
      %v2973 = vpop.permute.xlu0 %2972
      %2974 = vrot.lane.b32.xlu0 %v2921, 8
      %v2975 = vpop.permute.xlu0 %2974
      %2976 = vrot.lane.b32.xlu0 %v2923, 8
      %v2977 = vpop.permute.xlu0 %2976
      %2978 = vrot.lane.b32.xlu0 %v2925, 8
      %v2979 = vpop.permute.xlu0 %2978
      %2980 = vrot.lane.b32.xlu0 %v2924, 8
      %v2981 = vpop.permute.xlu0 %2980
      %vm2983 = vcmask 1043456
      %v2984 = vrot.slane %v2414, 4
      %v2985 = vrot.slane %v2241, 4
      %v2986 = vsel %vm2983, %v2984, %v2985
      %v2987 = vrot.slane %v2242, 4
      %v2988 = vsel %vm2983, %v2985, %v2987
      %v2989 = vrot.slane %v2243, 4
      %v2990 = vsel %vm2983, %v2987, %v2989
      %v2991 = vrot.slane %v2244, 4
      %v2992 = vsel %vm2983, %v2989, %v2991
      %v2993 = vrot.slane %v2245, 4
      %v2994 = vsel %vm2983, %v2991, %v2993
      %v2995 = vrot.slane %v2246, 4
      %v2996 = vsel %vm2983, %v2993, %v2995
      %v2997 = vrot.slane %v2247, 4
      %v2998 = vsel %vm2983, %v2995, %v2997
      %v2999 = vrot.slane %v2248, 4
      %v3000 = vsel %vm2983, %v2997, %v2999
      %v3001 = vrot.slane %v2249, 4
      %v3002 = vsel %vm2983, %v2999, %v3001
      %v3003 = vrot.slane %v2250, 4
      %v3004 = vsel %vm2983, %v3001, %v3003
      %v3005 = vrot.slane %v2251, 4
      %v3006 = vsel %vm2983, %v3003, %v3005
      %v3007 = vrot.slane %v2252, 4
      %v3008 = vsel %vm2983, %v3005, %v3007
      %v3009 = vrot.slane %v2253, 4
      %v3010 = vsel %vm2983, %v3007, %v3009
      %v3011 = vrot.slane %v2254, 4
      %v3012 = vsel %vm2983, %v3009, %v3011
      %v3013 = vrot.slane %v2255, 4
      %v3014 = vsel %vm2983, %v3011, %v3013
      %v3015 = vrot.slane %v2256, 4
      %v3016 = vsel %vm2983, %v3013, %v3015
      %v3017 = vrot.slane %v2257, 4
      %v3018 = vsel %vm2983, %v3015, %v3017
      %v3019 = vrot.slane %v2258, 4
      %v3020 = vsel %vm2983, %v3017, %v3019
      %v3021 = vrot.slane %v2259, 4
      %v3022 = vsel %vm2983, %v3019, %v3021
      %v3023 = vrot.slane %v2260, 4
      %v3024 = vsel %vm2983, %v3021, %v3023
      %v3025 = vrot.slane %v2261, 4
      %v3026 = vsel %vm2983, %v3023, %v3025
      %v3027 = vrot.slane %v2262, 4
      %v3028 = vsel %vm2983, %v3025, %v3027
      %v3029 = vrot.slane %v2263, 4
      %v3030 = vsel %vm2983, %v3027, %v3029
      %v3031 = vrot.slane %v2264, 4
      %v3032 = vsel %vm2983, %v3029, %v3031
      %v3033 = vrot.slane %v2265, 4
      %v3034 = vsel %vm2983, %v3031, %v3033
      %v3035 = vrot.slane %v2266, 4
      %v3036 = vsel %vm2983, %v3033, %v3035
      %v3037 = vrot.slane %v2267, 4
      %v3038 = vsel %vm2983, %v3035, %v3037
      %3039 = vrot.lane.b32.xlu0 %v2986, 12
      %v3040 = vpop.permute.xlu0 %3039
      %3041 = vrot.lane.b32.xlu0 %v2988, 12
      %v3042 = vpop.permute.xlu0 %3041
      %3043 = vrot.lane.b32.xlu0 %v2990, 12
      %v3044 = vpop.permute.xlu0 %3043
      %3045 = vrot.lane.b32.xlu0 %v2992, 12
      %v3046 = vpop.permute.xlu0 %3045
      %3047 = vrot.lane.b32.xlu0 %v2994, 12
      %v3048 = vpop.permute.xlu0 %3047
      %3049 = vrot.lane.b32.xlu0 %v2996, 12
      %v3050 = vpop.permute.xlu0 %3049
      %3051 = vrot.lane.b32.xlu0 %v2998, 12
      %v3052 = vpop.permute.xlu0 %3051
      %3053 = vrot.lane.b32.xlu0 %v3000, 12
      %v3054 = vpop.permute.xlu0 %3053
      %3055 = vrot.lane.b32.xlu0 %v3002, 12
      %v3056 = vpop.permute.xlu0 %3055
      %3057 = vrot.lane.b32.xlu0 %v3004, 12
      %v3058 = vpop.permute.xlu0 %3057
      %3059 = vrot.lane.b32.xlu0 %v3006, 12
      %v3060 = vpop.permute.xlu0 %3059
      %3061 = vrot.lane.b32.xlu0 %v3008, 12
      %v3062 = vpop.permute.xlu0 %3061
      %3063 = vrot.lane.b32.xlu0 %v3010, 12
      %v3064 = vpop.permute.xlu0 %3063
      %3065 = vrot.lane.b32.xlu0 %v3012, 12
      %v3066 = vpop.permute.xlu0 %3065
      %3067 = vrot.lane.b32.xlu0 %v3014, 12
      %v3068 = vpop.permute.xlu0 %3067
      %3069 = vrot.lane.b32.xlu0 %v3016, 12
      %v3070 = vpop.permute.xlu0 %3069
      %3071 = vrot.lane.b32.xlu0 %v3018, 12
      %v3072 = vpop.permute.xlu0 %3071
      %3073 = vrot.lane.b32.xlu0 %v3020, 12
      %v3074 = vpop.permute.xlu0 %3073
      %3075 = vrot.lane.b32.xlu0 %v3022, 12
      %v3076 = vpop.permute.xlu0 %3075
      %3077 = vrot.lane.b32.xlu0 %v3024, 12
      %v3078 = vpop.permute.xlu0 %3077
      %3079 = vrot.lane.b32.xlu0 %v3026, 12
      %v3080 = vpop.permute.xlu0 %3079
      %3081 = vrot.lane.b32.xlu0 %v3028, 12
      %v3082 = vpop.permute.xlu0 %3081
      %3083 = vrot.lane.b32.xlu0 %v3030, 12
      %v3084 = vpop.permute.xlu0 %3083
      %3085 = vrot.lane.b32.xlu0 %v3032, 12
      %v3086 = vpop.permute.xlu0 %3085
      %3087 = vrot.lane.b32.xlu0 %v3034, 12
      %v3088 = vpop.permute.xlu0 %3087
      %3089 = vrot.lane.b32.xlu0 %v3036, 12
      %v3090 = vpop.permute.xlu0 %3089
      %3091 = vrot.lane.b32.xlu0 %v3038, 12
      %v3092 = vpop.permute.xlu0 %3091
      %3093 = vrot.lane.b32.xlu0 %v3037, 12
      %v3094 = vpop.permute.xlu0 %3093
      %vm3095 = vsmask.f32 3328
      %v3096 = vrot.slane %v2583, 4
      %v3097 = vrot.slane %v2579, 5
      %v3098 = vor.u32 %v3096, %v3097
      %v3099 = vrot.slane %v2591, 4
      %v3100 = vrot.slane %v2587, 5
      %v3101 = vor.u32 %v3099, %v3100
      %v3102 = vsel %vm3095, %v3098, %v3101
      %v3103 = vrot.slane %v2599, 4
      %v3104 = vrot.slane %v2595, 5
      %v3105 = vor.u32 %v3103, %v3104
      %v3106 = vsel %vm3095, %v3101, %v3105
      %v3107 = vrot.slane %v2607, 4
      %v3108 = vrot.slane %v2603, 5
      %v3109 = vor.u32 %v3107, %v3108
      %v3110 = vsel %vm3095, %v3105, %v3109
      %v3111 = vrot.slane %v2615, 4
      %v3112 = vrot.slane %v2611, 5
      %v3113 = vor.u32 %v3111, %v3112
      %v3114 = vsel %vm3095, %v3109, %v3113
      %v3115 = vrot.slane %v2623, 4
      %v3116 = vrot.slane %v2619, 5
      %v3117 = vor.u32 %v3115, %v3116
      %v3118 = vsel %vm3095, %v3113, %v3117
      %v3119 = vrot.slane %v2631, 4
      %v3120 = vrot.slane %v2627, 5
      %v3121 = vor.u32 %v3119, %v3120
      %v3122 = vsel %vm3095, %v3117, %v3121
      %v3123 = vrot.slane %v2639, 4
      %v3124 = vrot.slane %v2635, 5
      %v3125 = vor.u32 %v3123, %v3124
      %v3126 = vsel %vm3095, %v3121, %v3125
      %v3127 = vrot.slane %v2647, 4
      %v3128 = vrot.slane %v2643, 5
      %v3129 = vor.u32 %v3127, %v3128
      %v3130 = vsel %vm3095, %v3125, %v3129
      %v3131 = vrot.slane %v2655, 4
      %v3132 = vrot.slane %v2651, 5
      %v3133 = vor.u32 %v3131, %v3132
      %v3134 = vsel %vm3095, %v3129, %v3133
      %v3135 = vrot.slane %v2663, 4
      %v3136 = vrot.slane %v2659, 5
      %v3137 = vor.u32 %v3135, %v3136
      %v3138 = vsel %vm3095, %v3133, %v3137
      %v3139 = vrot.slane %v2671, 4
      %v3140 = vrot.slane %v2667, 5
      %v3141 = vor.u32 %v3139, %v3140
      %v3142 = vsel %vm3095, %v3137, %v3141
      %v3143 = vrot.slane %v2679, 4
      %v3144 = vrot.slane %v2675, 5
      %v3145 = vor.u32 %v3143, %v3144
      %v3146 = vsel %vm3095, %v3141, %v3145
      %v3147 = vrot.slane %v2687, 4
      %v3148 = vrot.slane %v2683, 5
      %v3149 = vor.u32 %v3147, %v3148
      %v3150 = vsel %vm3095, %v3145, %v3149
      %v3151 = vrot.slane %v2695, 4
      %v3152 = vrot.slane %v2691, 5
      %v3153 = vor.u32 %v3151, %v3152
      %v3154 = vsel %vm3095, %v3149, %v3153
      %v3155 = vrot.slane %v2703, 4
      %v3156 = vrot.slane %v2699, 5
      %v3157 = vor.u32 %v3155, %v3156
      %v3158 = vsel %vm3095, %v3153, %v3157
      %v3159 = vrot.slane %v2711, 4
      %v3160 = vrot.slane %v2707, 5
      %v3161 = vor.u32 %v3159, %v3160
      %v3162 = vsel %vm3095, %v3157, %v3161
      %v3163 = vrot.slane %v2719, 4
      %v3164 = vrot.slane %v2715, 5
      %v3165 = vor.u32 %v3163, %v3164
      %v3166 = vsel %vm3095, %v3161, %v3165
      %v3167 = vrot.slane %v2727, 4
      %v3168 = vrot.slane %v2723, 5
      %v3169 = vor.u32 %v3167, %v3168
      %v3170 = vsel %vm3095, %v3165, %v3169
      %v3171 = vrot.slane %v2735, 4
      %v3172 = vrot.slane %v2731, 5
      %v3173 = vor.u32 %v3171, %v3172
      %v3174 = vsel %vm3095, %v3169, %v3173
      %v3175 = vrot.slane %v2743, 4
      %v3176 = vrot.slane %v2739, 5
      %v3177 = vor.u32 %v3175, %v3176
      %v3178 = vsel %vm3095, %v3173, %v3177
      %v3179 = vrot.slane %v2751, 4
      %v3180 = vrot.slane %v2747, 5
      %v3181 = vor.u32 %v3179, %v3180
      %v3182 = vsel %vm3095, %v3177, %v3181
      %v3183 = vrot.slane %v2759, 4
      %v3184 = vrot.slane %v2755, 5
      %v3185 = vor.u32 %v3183, %v3184
      %v3186 = vsel %vm3095, %v3181, %v3185
      %v3187 = vrot.slane %v2767, 4
      %v3188 = vrot.slane %v2763, 5
      %v3189 = vor.u32 %v3187, %v3188
      %v3190 = vsel %vm3095, %v3185, %v3189
      %v3191 = vrot.slane %v2775, 4
      %v3192 = vrot.slane %v2771, 5
      %v3193 = vor.u32 %v3191, %v3192
      %v3194 = vsel %vm3095, %v3189, %v3193
      %v3195 = vrot.slane %v2783, 4
      %v3196 = vrot.slane %v2779, 5
      %v3197 = vor.u32 %v3195, %v3196
      %v3198 = vsel %vm3095, %v3193, %v3197
      %v3200 = vshrl.u32 %v2267, 16
      %v3202 = vrot.slane %v3200, 4
      %v3203 = vshll.u32 %v2267, 16
      %v3205 = vrot.slane %v3203, 5
      %v3206 = vor.u32 %v3202, %v3205
      %v3207 = vsel %vm3095, %v3197, %v3206
      %3208 = vrot.lane.b32.xlu0 %v3098, 16
      %v3209 = vpop.permute.xlu0 %3208
      %3210 = vrot.lane.b32.xlu0 %v3102, 16
      %v3211 = vpop.permute.xlu0 %3210
      %3212 = vrot.lane.b32.xlu0 %v3106, 16
      %v3213 = vpop.permute.xlu0 %3212
      %3214 = vrot.lane.b32.xlu0 %v3110, 16
      %v3215 = vpop.permute.xlu0 %3214
      %3216 = vrot.lane.b32.xlu0 %v3114, 16
      %v3217 = vpop.permute.xlu0 %3216
      %3218 = vrot.lane.b32.xlu0 %v3118, 16
      %v3219 = vpop.permute.xlu0 %3218
      %3220 = vrot.lane.b32.xlu0 %v3122, 16
      %v3221 = vpop.permute.xlu0 %3220
      %3222 = vrot.lane.b32.xlu0 %v3126, 16
      %v3223 = vpop.permute.xlu0 %3222
      %3224 = vrot.lane.b32.xlu0 %v3130, 16
      %v3225 = vpop.permute.xlu0 %3224
      %3226 = vrot.lane.b32.xlu0 %v3134, 16
      %v3227 = vpop.permute.xlu0 %3226
      %3228 = vrot.lane.b32.xlu0 %v3138, 16
      %v3229 = vpop.permute.xlu0 %3228
      %3230 = vrot.lane.b32.xlu0 %v3142, 16
      %v3231 = vpop.permute.xlu0 %3230
      %3232 = vrot.lane.b32.xlu0 %v3146, 16
      %v3233 = vpop.permute.xlu0 %3232
      %3234 = vrot.lane.b32.xlu0 %v3150, 16
      %v3235 = vpop.permute.xlu0 %3234
      %3236 = vrot.lane.b32.xlu0 %v3154, 16
      %v3237 = vpop.permute.xlu0 %3236
      %3238 = vrot.lane.b32.xlu0 %v3158, 16
      %v3239 = vpop.permute.xlu0 %3238
      %3240 = vrot.lane.b32.xlu0 %v3162, 16
      %v3241 = vpop.permute.xlu0 %3240
      %3242 = vrot.lane.b32.xlu0 %v3166, 16
      %v3243 = vpop.permute.xlu0 %3242
      %3244 = vrot.lane.b32.xlu0 %v3170, 16
      %v3245 = vpop.permute.xlu0 %3244
      %3246 = vrot.lane.b32.xlu0 %v3174, 16
      %v3247 = vpop.permute.xlu0 %3246
      %3248 = vrot.lane.b32.xlu0 %v3178, 16
      %v3249 = vpop.permute.xlu0 %3248
      %3250 = vrot.lane.b32.xlu0 %v3182, 16
      %v3251 = vpop.permute.xlu0 %3250
      %3252 = vrot.lane.b32.xlu0 %v3186, 16
      %v3253 = vpop.permute.xlu0 %3252
      %3254 = vrot.lane.b32.xlu0 %v3190, 16
      %v3255 = vpop.permute.xlu0 %3254
      %3256 = vrot.lane.b32.xlu0 %v3194, 16
      %v3257 = vpop.permute.xlu0 %3256
      %3258 = vrot.lane.b32.xlu0 %v3198, 16
      %v3259 = vpop.permute.xlu0 %3258
      %3260 = vrot.lane.b32.xlu0 %v3207, 16
      %v3261 = vpop.permute.xlu0 %3260
      %3262 = vrot.lane.b32.xlu0 %v3206, 16
      %v3263 = vpop.permute.xlu0 %3262
      %vm3265 = vcmask 1042432
      %v3266 = vrot.slane %v2241, 5
      %v3267 = vrot.slane %v2242, 5
      %v3268 = vsel %vm3265, %v3266, %v3267
      %v3269 = vrot.slane %v2243, 5
      %v3270 = vsel %vm3265, %v3267, %v3269
      %v3271 = vrot.slane %v2244, 5
      %v3272 = vsel %vm3265, %v3269, %v3271
      %v3273 = vrot.slane %v2245, 5
      %v3274 = vsel %vm3265, %v3271, %v3273
      %v3275 = vrot.slane %v2246, 5
      %v3276 = vsel %vm3265, %v3273, %v3275
      %v3277 = vrot.slane %v2247, 5
      %v3278 = vsel %vm3265, %v3275, %v3277
      %v3279 = vrot.slane %v2248, 5
      %v3280 = vsel %vm3265, %v3277, %v3279
      %v3281 = vrot.slane %v2249, 5
      %v3282 = vsel %vm3265, %v3279, %v3281
      %v3283 = vrot.slane %v2250, 5
      %v3284 = vsel %vm3265, %v3281, %v3283
      %v3285 = vrot.slane %v2251, 5
      %v3286 = vsel %vm3265, %v3283, %v3285
      %v3287 = vrot.slane %v2252, 5
      %v3288 = vsel %vm3265, %v3285, %v3287
      %v3289 = vrot.slane %v2253, 5
      %v3290 = vsel %vm3265, %v3287, %v3289
      %v3291 = vrot.slane %v2254, 5
      %v3292 = vsel %vm3265, %v3289, %v3291
      %v3293 = vrot.slane %v2255, 5
      %v3294 = vsel %vm3265, %v3291, %v3293
      %v3295 = vrot.slane %v2256, 5
      %v3296 = vsel %vm3265, %v3293, %v3295
      %v3297 = vrot.slane %v2257, 5
      %v3298 = vsel %vm3265, %v3295, %v3297
      %v3299 = vrot.slane %v2258, 5
      %v3300 = vsel %vm3265, %v3297, %v3299
      %v3301 = vrot.slane %v2259, 5
      %v3302 = vsel %vm3265, %v3299, %v3301
      %v3303 = vrot.slane %v2260, 5
      %v3304 = vsel %vm3265, %v3301, %v3303
      %v3305 = vrot.slane %v2261, 5
      %v3306 = vsel %vm3265, %v3303, %v3305
      %v3307 = vrot.slane %v2262, 5
      %v3308 = vsel %vm3265, %v3305, %v3307
      %v3309 = vrot.slane %v2263, 5
      %v3310 = vsel %vm3265, %v3307, %v3309
      %v3311 = vrot.slane %v2264, 5
      %v3312 = vsel %vm3265, %v3309, %v3311
      %v3313 = vrot.slane %v2265, 5
      %v3314 = vsel %vm3265, %v3311, %v3313
      %v3315 = vrot.slane %v2266, 5
      %v3316 = vsel %vm3265, %v3313, %v3315
      %v3317 = vrot.slane %v2267, 5
      %v3318 = vsel %vm3265, %v3315, %v3317
      %v3319 = vrot.slane %v2560, 5
      %v3320 = vsel %vm3265, %v3317, %v3319
      %3321 = vrot.lane.b32.xlu0 %v3266, 20
      %v3322 = vpop.permute.xlu0 %3321
      %3323 = vrot.lane.b32.xlu0 %v3268, 20
      %v3324 = vpop.permute.xlu0 %3323
      %3325 = vrot.lane.b32.xlu0 %v3270, 20
      %v3326 = vpop.permute.xlu0 %3325
      %3327 = vrot.lane.b32.xlu0 %v3272, 20
      %v3328 = vpop.permute.xlu0 %3327
      %3329 = vrot.lane.b32.xlu0 %v3274, 20
      %v3330 = vpop.permute.xlu0 %3329
      %3331 = vrot.lane.b32.xlu0 %v3276, 20
      %v3332 = vpop.permute.xlu0 %3331
      %3333 = vrot.lane.b32.xlu0 %v3278, 20
      %v3334 = vpop.permute.xlu0 %3333
      %3335 = vrot.lane.b32.xlu0 %v3280, 20
      %v3336 = vpop.permute.xlu0 %3335
      %3337 = vrot.lane.b32.xlu0 %v3282, 20
      %v3338 = vpop.permute.xlu0 %3337
      %3339 = vrot.lane.b32.xlu0 %v3284, 20
      %v3340 = vpop.permute.xlu0 %3339
      %3341 = vrot.lane.b32.xlu0 %v3286, 20
      %v3342 = vpop.permute.xlu0 %3341
      %3343 = vrot.lane.b32.xlu0 %v3288, 20
      %v3344 = vpop.permute.xlu0 %3343
      %3345 = vrot.lane.b32.xlu0 %v3290, 20
      %v3346 = vpop.permute.xlu0 %3345
      %3347 = vrot.lane.b32.xlu0 %v3292, 20
      %v3348 = vpop.permute.xlu0 %3347
      %3349 = vrot.lane.b32.xlu0 %v3294, 20
      %v3350 = vpop.permute.xlu0 %3349
      %3351 = vrot.lane.b32.xlu0 %v3296, 20
      %v3352 = vpop.permute.xlu0 %3351
      %3353 = vrot.lane.b32.xlu0 %v3298, 20
      %v3354 = vpop.permute.xlu0 %3353
      %3355 = vrot.lane.b32.xlu0 %v3300, 20
      %v3356 = vpop.permute.xlu0 %3355
      %3357 = vrot.lane.b32.xlu0 %v3302, 20
      %v3358 = vpop.permute.xlu0 %3357
      %3359 = vrot.lane.b32.xlu0 %v3304, 20
      %v3360 = vpop.permute.xlu0 %3359
      %3361 = vrot.lane.b32.xlu0 %v3306, 20
      %v3362 = vpop.permute.xlu0 %3361
      %3363 = vrot.lane.b32.xlu0 %v3308, 20
      %v3364 = vpop.permute.xlu0 %3363
      %3365 = vrot.lane.b32.xlu0 %v3310, 20
      %v3366 = vpop.permute.xlu0 %3365
      %3367 = vrot.lane.b32.xlu0 %v3312, 20
      %v3368 = vpop.permute.xlu0 %3367
      %3369 = vrot.lane.b32.xlu0 %v3314, 20
      %v3370 = vpop.permute.xlu0 %3369
      %3371 = vrot.lane.b32.xlu0 %v3316, 20
      %v3372 = vpop.permute.xlu0 %3371
      %3373 = vrot.lane.b32.xlu0 %v3318, 20
      %v3374 = vpop.permute.xlu0 %3373
      %3375 = vrot.lane.b32.xlu0 %v3320, 20
      %v3376 = vpop.permute.xlu0 %3375
      %3378 = vrot.lane.b32.xlu0 %v2242, 24
      %v3379 = vpop.permute.xlu0 %3378
      %3380 = vrot.lane.b32.xlu0 %v2243, 24
      %v3381 = vpop.permute.xlu0 %3380
      %3382 = vrot.lane.b32.xlu0 %v2244, 24
      %v3383 = vpop.permute.xlu0 %3382
      %3384 = vrot.lane.b32.xlu0 %v2245, 24
      %v3385 = vpop.permute.xlu0 %3384
      %3386 = vrot.lane.b32.xlu0 %v2246, 24
      %v3387 = vpop.permute.xlu0 %3386
      %3388 = vrot.lane.b32.xlu0 %v2247, 24
      %v3389 = vpop.permute.xlu0 %3388
      %3390 = vrot.lane.b32.xlu0 %v2248, 24
      %v3391 = vpop.permute.xlu0 %3390
      %3392 = vrot.lane.b32.xlu0 %v2249, 24
      %v3393 = vpop.permute.xlu0 %3392
      %3394 = vrot.lane.b32.xlu0 %v2250, 24
      %v3395 = vpop.permute.xlu0 %3394
      %3396 = vrot.lane.b32.xlu0 %v2251, 24
      %v3397 = vpop.permute.xlu0 %3396
      %3398 = vrot.lane.b32.xlu0 %v2252, 24
      %v3399 = vpop.permute.xlu0 %3398
      %3400 = vrot.lane.b32.xlu0 %v2253, 24
      %v3401 = vpop.permute.xlu0 %3400
      %3402 = vrot.lane.b32.xlu0 %v2254, 24
      %v3403 = vpop.permute.xlu0 %3402
      %3404 = vrot.lane.b32.xlu0 %v2255, 24
      %v3405 = vpop.permute.xlu0 %3404
      %3406 = vrot.lane.b32.xlu0 %v2256, 24
      %v3407 = vpop.permute.xlu0 %3406
      %3408 = vrot.lane.b32.xlu0 %v2257, 24
      %v3409 = vpop.permute.xlu0 %3408
      %3410 = vrot.lane.b32.xlu0 %v2258, 24
      %v3411 = vpop.permute.xlu0 %3410
      %3412 = vrot.lane.b32.xlu0 %v2259, 24
      %v3413 = vpop.permute.xlu0 %3412
      %3414 = vrot.lane.b32.xlu0 %v2260, 24
      %v3415 = vpop.permute.xlu0 %3414
      %3416 = vrot.lane.b32.xlu0 %v2261, 24
      %v3417 = vpop.permute.xlu0 %3416
      %3418 = vrot.lane.b32.xlu0 %v2262, 24
      %v3419 = vpop.permute.xlu0 %3418
      %3420 = vrot.lane.b32.xlu0 %v2263, 24
      %v3421 = vpop.permute.xlu0 %3420
      %3422 = vrot.lane.b32.xlu0 %v2264, 24
      %v3423 = vpop.permute.xlu0 %3422
      %3424 = vrot.lane.b32.xlu0 %v2265, 24
      %v3425 = vpop.permute.xlu0 %3424
      %3426 = vrot.lane.b32.xlu0 %v2266, 24
      %v3427 = vpop.permute.xlu0 %3426
      %3428 = vrot.lane.b32.xlu0 %v2267, 24
      %v3429 = vpop.permute.xlu0 %3428
      %3430 = vrot.lane.b32.xlu0 %v2560, 24
      %v3431 = vpop.permute.xlu0 %3430
      %3432 = vrot.lane.b32.xlu0 %v2561, 24
      %v3433 = vpop.permute.xlu0 %3432
      %v3434 = vrot.slane %v3203, 1
      %v3435 = vsel %vm2562, %v2785, %v3434
      %v3436 = vor.u32 %v3200, %v3434
      %v3438 = vshll.u32 %v2560, 16
      %v3440 = vrot.slane %v3438, 1
      %v3441 = vsel %vm2562, %v3436, %v3440
      %v3442 = vshrl.u32 %v2560, 16
      %v3444 = vor.u32 %v3442, %v3440
      %v3446 = vshll.u32 %v2561, 16
      %v3448 = vrot.slane %v3446, 1
      %v3449 = vsel %vm2562, %v3444, %v3448
      %v3450 = vshrl.u32 %v2561, 16
      %v3452 = vor.u32 %v3450, %v3448
      %3453 = vrot.lane.b32.xlu0 %v2598, 28
      %v3454 = vpop.permute.xlu0 %3453
      %3455 = vrot.lane.b32.xlu0 %v2606, 28
      %v3456 = vpop.permute.xlu0 %3455
      %3457 = vrot.lane.b32.xlu0 %v2614, 28
      %v3458 = vpop.permute.xlu0 %3457
      %3459 = vrot.lane.b32.xlu0 %v2622, 28
      %v3460 = vpop.permute.xlu0 %3459
      %3461 = vrot.lane.b32.xlu0 %v2630, 28
      %v3462 = vpop.permute.xlu0 %3461
      %3463 = vrot.lane.b32.xlu0 %v2638, 28
      %v3464 = vpop.permute.xlu0 %3463
      %3465 = vrot.lane.b32.xlu0 %v2646, 28
      %v3466 = vpop.permute.xlu0 %3465
      %3467 = vrot.lane.b32.xlu0 %v2654, 28
      %v3468 = vpop.permute.xlu0 %3467
      %3469 = vrot.lane.b32.xlu0 %v2662, 28
      %v3470 = vpop.permute.xlu0 %3469
      %3471 = vrot.lane.b32.xlu0 %v2670, 28
      %v3472 = vpop.permute.xlu0 %3471
      %3473 = vrot.lane.b32.xlu0 %v2678, 28
      %v3474 = vpop.permute.xlu0 %3473
      %3475 = vrot.lane.b32.xlu0 %v2686, 28
      %v3476 = vpop.permute.xlu0 %3475
      %3477 = vrot.lane.b32.xlu0 %v2694, 28
      %v3478 = vpop.permute.xlu0 %3477
      %3479 = vrot.lane.b32.xlu0 %v2702, 28
      %v3480 = vpop.permute.xlu0 %3479
      %3481 = vrot.lane.b32.xlu0 %v2710, 28
      %v3482 = vpop.permute.xlu0 %3481
      %3483 = vrot.lane.b32.xlu0 %v2718, 28
      %v3484 = vpop.permute.xlu0 %3483
      %3485 = vrot.lane.b32.xlu0 %v2726, 28
      %v3486 = vpop.permute.xlu0 %3485
      %3487 = vrot.lane.b32.xlu0 %v2734, 28
      %v3488 = vpop.permute.xlu0 %3487
      %3489 = vrot.lane.b32.xlu0 %v2742, 28
      %v3490 = vpop.permute.xlu0 %3489
      %3491 = vrot.lane.b32.xlu0 %v2750, 28
      %v3492 = vpop.permute.xlu0 %3491
      %3493 = vrot.lane.b32.xlu0 %v2758, 28
      %v3494 = vpop.permute.xlu0 %3493
      %3495 = vrot.lane.b32.xlu0 %v2766, 28
      %v3496 = vpop.permute.xlu0 %3495
      %3497 = vrot.lane.b32.xlu0 %v2774, 28
      %v3498 = vpop.permute.xlu0 %3497
      %3499 = vrot.lane.b32.xlu0 %v2782, 28
      %v3500 = vpop.permute.xlu0 %3499
      %3501 = vrot.lane.b32.xlu0 %v3435, 28
      %v3502 = vpop.permute.xlu0 %3501
      %3503 = vrot.lane.b32.xlu0 %v3441, 28
      %v3504 = vpop.permute.xlu0 %3503
      %3505 = vrot.lane.b32.xlu0 %v3449, 28
      %v3506 = vpop.permute.xlu0 %3505
      %3507 = vrot.lane.b32.xlu0 %v3452, 28
      %v3508 = vpop.permute.xlu0 %3507
      %v3509 = vrot.slane %v2267, 1
      %v3510 = vsel %vm2870, %v2924, %v3509
      %v3511 = vrot.slane %v2560, 1
      %v3512 = vsel %vm2870, %v3509, %v3511
      %v3513 = vrot.slane %v2561, 1
      %v3514 = vsel %vm2870, %v3511, %v3513
      %3515 = vrot.lane.b32.xlu0 %v2879, 32
      %v3516 = vpop.permute.xlu0 %3515
      %3517 = vrot.lane.b32.xlu0 %v2881, 32
      %v3518 = vpop.permute.xlu0 %3517
      %3519 = vrot.lane.b32.xlu0 %v2883, 32
      %v3520 = vpop.permute.xlu0 %3519
      %3521 = vrot.lane.b32.xlu0 %v2885, 32
      %v3522 = vpop.permute.xlu0 %3521
      %3523 = vrot.lane.b32.xlu0 %v2887, 32
      %v3524 = vpop.permute.xlu0 %3523
      %3525 = vrot.lane.b32.xlu0 %v2889, 32
      %v3526 = vpop.permute.xlu0 %3525
      %3527 = vrot.lane.b32.xlu0 %v2891, 32
      %v3528 = vpop.permute.xlu0 %3527
      %3529 = vrot.lane.b32.xlu0 %v2893, 32
      %v3530 = vpop.permute.xlu0 %3529
      %3531 = vrot.lane.b32.xlu0 %v2895, 32
      %v3532 = vpop.permute.xlu0 %3531
      %3533 = vrot.lane.b32.xlu0 %v2897, 32
      %v3534 = vpop.permute.xlu0 %3533
      %3535 = vrot.lane.b32.xlu0 %v2899, 32
      %v3536 = vpop.permute.xlu0 %3535
      %3537 = vrot.lane.b32.xlu0 %v2901, 32
      %v3538 = vpop.permute.xlu0 %3537
      %3539 = vrot.lane.b32.xlu0 %v2903, 32
      %v3540 = vpop.permute.xlu0 %3539
      %3541 = vrot.lane.b32.xlu0 %v2905, 32
      %v3542 = vpop.permute.xlu0 %3541
      %3543 = vrot.lane.b32.xlu0 %v2907, 32
      %v3544 = vpop.permute.xlu0 %3543
      %3545 = vrot.lane.b32.xlu0 %v2909, 32
      %v3546 = vpop.permute.xlu0 %3545
      %3547 = vrot.lane.b32.xlu0 %v2911, 32
      %v3548 = vpop.permute.xlu0 %3547
      %3549 = vrot.lane.b32.xlu0 %v2913, 32
      %v3550 = vpop.permute.xlu0 %3549
      %3551 = vrot.lane.b32.xlu0 %v2915, 32
      %v3552 = vpop.permute.xlu0 %3551
      %3553 = vrot.lane.b32.xlu0 %v2917, 32
      %v3554 = vpop.permute.xlu0 %3553
      %3555 = vrot.lane.b32.xlu0 %v2919, 32
      %v3556 = vpop.permute.xlu0 %3555
      %3557 = vrot.lane.b32.xlu0 %v2921, 32
      %v3558 = vpop.permute.xlu0 %3557
      %3559 = vrot.lane.b32.xlu0 %v2923, 32
      %v3560 = vpop.permute.xlu0 %3559
      %3561 = vrot.lane.b32.xlu0 %v2925, 32
      %v3562 = vpop.permute.xlu0 %3561
      %3563 = vrot.lane.b32.xlu0 %v3510, 32
      %v3564 = vpop.permute.xlu0 %3563
      %3565 = vrot.lane.b32.xlu0 %v3512, 32
      %v3566 = vpop.permute.xlu0 %3565
      %3567 = vrot.lane.b32.xlu0 %v3514, 32
      %v3568 = vpop.permute.xlu0 %3567
      %3569 = vrot.lane.b32.xlu0 %v3513, 32
      %v3570 = vpop.permute.xlu0 %3569
      %v3572 = vsel %vm922, %v2413, %v2787
      %v3574 = vsel %vm922, %v2414, %v2789
      %v3576 = vsel %vm922, %v2241, %v2791
      %v3578 = vsel %vm922, %v2242, %v2793
      %v3580 = vsel %vm922, %v2243, %v2795
      %v3582 = vsel %vm922, %v2244, %v2797
      %v3584 = vsel %vm922, %v2245, %v2799
      %v3586 = vsel %vm922, %v2246, %v2801
      %v3588 = vsel %vm922, %v2247, %v2803
      %v3590 = vsel %vm922, %v2248, %v2805
      %v3592 = vsel %vm922, %v2249, %v2807
      %v3594 = vsel %vm922, %v2250, %v2809
      %v3596 = vsel %vm922, %v2251, %v2811
      %v3598 = vsel %vm922, %v2252, %v2813
      %v3600 = vsel %vm922, %v2253, %v2815
      %v3602 = vsel %vm922, %v2254, %v2817
      %v3604 = vsel %vm922, %v2255, %v2819
      %v3606 = vsel %vm922, %v2256, %v2821
      %v3608 = vsel %vm922, %v2257, %v2823
      %v3610 = vsel %vm922, %v2258, %v2825
      %v3612 = vsel %vm922, %v2259, %v2827
      %v3614 = vsel %vm922, %v2260, %v2829
      %v3616 = vsel %vm922, %v2261, %v2831
      %v3618 = vsel %vm922, %v2262, %v2833
      %v3620 = vsel %vm922, %v2263, %v2835
      %v3622 = vsel %vm922, %v2264, %v2837
      %v3624 = vsel %vm922, %v2265, %v2839
      %v3626 = vsel %vm922, %v2266, %v2841
      %vm3627 = vcmask 64512
      %v3629 = vsel %vm3627, %v3572, %v2927
      %v3631 = vsel %vm3627, %v3574, %v2929
      %v3633 = vsel %vm3627, %v3576, %v2931
      %v3635 = vsel %vm3627, %v3578, %v2933
      %v3637 = vsel %vm3627, %v3580, %v2935
      %v3639 = vsel %vm3627, %v3582, %v2937
      %v3641 = vsel %vm3627, %v3584, %v2939
      %v3643 = vsel %vm3627, %v3586, %v2941
      %v3645 = vsel %vm3627, %v3588, %v2943
      %v3647 = vsel %vm3627, %v3590, %v2945
      %v3649 = vsel %vm3627, %v3592, %v2947
      %v3651 = vsel %vm3627, %v3594, %v2949
      %v3653 = vsel %vm3627, %v3596, %v2951
      %v3655 = vsel %vm3627, %v3598, %v2953
      %v3657 = vsel %vm3627, %v3600, %v2955
      %v3659 = vsel %vm3627, %v3602, %v2957
      %v3661 = vsel %vm3627, %v3604, %v2959
      %v3663 = vsel %vm3627, %v3606, %v2961
      %v3665 = vsel %vm3627, %v3608, %v2963
      %v3667 = vsel %vm3627, %v3610, %v2965
      %v3669 = vsel %vm3627, %v3612, %v2967
      %v3671 = vsel %vm3627, %v3614, %v2969
      %v3673 = vsel %vm3627, %v3616, %v2971
      %v3675 = vsel %vm3627, %v3618, %v2973
      %v3677 = vsel %vm3627, %v3620, %v2975
      %v3679 = vsel %vm3627, %v3622, %v2977
      %v3681 = vsel %vm3627, %v3624, %v2979
      %v3683 = vsel %vm3627, %v3626, %v2981
      %vm3684 = vcmask 97280
      %v3686 = vsel %vm3684, %v3629, %v3040
      %v3688 = vsel %vm3684, %v3631, %v3042
      %v3690 = vsel %vm3684, %v3633, %v3044
      %v3692 = vsel %vm3684, %v3635, %v3046
      %v3694 = vsel %vm3684, %v3637, %v3048
      %v3696 = vsel %vm3684, %v3639, %v3050
      %v3698 = vsel %vm3684, %v3641, %v3052
      %v3700 = vsel %vm3684, %v3643, %v3054
      %v3702 = vsel %vm3684, %v3645, %v3056
      %v3704 = vsel %vm3684, %v3647, %v3058
      %v3706 = vsel %vm3684, %v3649, %v3060
      %v3708 = vsel %vm3684, %v3651, %v3062
      %v3710 = vsel %vm3684, %v3653, %v3064
      %v3712 = vsel %vm3684, %v3655, %v3066
      %v3714 = vsel %vm3684, %v3657, %v3068
      %v3716 = vsel %vm3684, %v3659, %v3070
      %v3718 = vsel %vm3684, %v3661, %v3072
      %v3720 = vsel %vm3684, %v3663, %v3074
      %v3722 = vsel %vm3684, %v3665, %v3076
      %v3724 = vsel %vm3684, %v3667, %v3078
      %v3726 = vsel %vm3684, %v3669, %v3080
      %v3728 = vsel %vm3684, %v3671, %v3082
      %v3730 = vsel %vm3684, %v3673, %v3084
      %v3732 = vsel %vm3684, %v3675, %v3086
      %v3734 = vsel %vm3684, %v3677, %v3088
      %v3736 = vsel %vm3684, %v3679, %v3090
      %v3738 = vsel %vm3684, %v3681, %v3092
      %v3740 = vsel %vm3684, %v3683, %v3094
      %vm3741 = vcmask 130048
      %v3743 = vsel %vm3741, %v3686, %v3209
      %v3745 = vsel %vm3741, %v3688, %v3211
      %v3747 = vsel %vm3741, %v3690, %v3213
      %v3749 = vsel %vm3741, %v3692, %v3215
      %v3751 = vsel %vm3741, %v3694, %v3217
      %v3753 = vsel %vm3741, %v3696, %v3219
      %v3755 = vsel %vm3741, %v3698, %v3221
      %v3757 = vsel %vm3741, %v3700, %v3223
      %v3759 = vsel %vm3741, %v3702, %v3225
      %v3761 = vsel %vm3741, %v3704, %v3227
      %v3763 = vsel %vm3741, %v3706, %v3229
      %v3765 = vsel %vm3741, %v3708, %v3231
      %v3767 = vsel %vm3741, %v3710, %v3233
      %v3769 = vsel %vm3741, %v3712, %v3235
      %v3771 = vsel %vm3741, %v3714, %v3237
      %v3773 = vsel %vm3741, %v3716, %v3239
      %v3775 = vsel %vm3741, %v3718, %v3241
      %v3777 = vsel %vm3741, %v3720, %v3243
      %v3779 = vsel %vm3741, %v3722, %v3245
      %v3781 = vsel %vm3741, %v3724, %v3247
      %v3783 = vsel %vm3741, %v3726, %v3249
      %v3785 = vsel %vm3741, %v3728, %v3251
      %v3787 = vsel %vm3741, %v3730, %v3253
      %v3789 = vsel %vm3741, %v3732, %v3255
      %v3791 = vsel %vm3741, %v3734, %v3257
      %v3793 = vsel %vm3741, %v3736, %v3259
      %v3795 = vsel %vm3741, %v3738, %v3261
      %v3797 = vsel %vm3741, %v3740, %v3263
      %vm3798 = vcmask 162816
      %v3800 = vsel %vm3798, %v3743, %v3322
      %v3802 = vsel %vm3798, %v3745, %v3324
      %v3804 = vsel %vm3798, %v3747, %v3326
      %v3806 = vsel %vm3798, %v3749, %v3328
      %v3808 = vsel %vm3798, %v3751, %v3330
      %v3810 = vsel %vm3798, %v3753, %v3332
      %v3812 = vsel %vm3798, %v3755, %v3334
      %v3814 = vsel %vm3798, %v3757, %v3336
      %v3816 = vsel %vm3798, %v3759, %v3338
      %v3818 = vsel %vm3798, %v3761, %v3340
      %v3820 = vsel %vm3798, %v3763, %v3342
      %v3822 = vsel %vm3798, %v3765, %v3344
      %v3824 = vsel %vm3798, %v3767, %v3346
      %v3826 = vsel %vm3798, %v3769, %v3348
      %v3828 = vsel %vm3798, %v3771, %v3350
      %v3830 = vsel %vm3798, %v3773, %v3352
      %v3832 = vsel %vm3798, %v3775, %v3354
      %v3834 = vsel %vm3798, %v3777, %v3356
      %v3836 = vsel %vm3798, %v3779, %v3358
      %v3838 = vsel %vm3798, %v3781, %v3360
      %v3840 = vsel %vm3798, %v3783, %v3362
      %v3842 = vsel %vm3798, %v3785, %v3364
      %v3844 = vsel %vm3798, %v3787, %v3366
      %v3846 = vsel %vm3798, %v3789, %v3368
      %v3848 = vsel %vm3798, %v3791, %v3370
      %v3850 = vsel %vm3798, %v3793, %v3372
      %v3852 = vsel %vm3798, %v3795, %v3374
      %v3854 = vsel %vm3798, %v3797, %v3376
      %vm3855 = vcmask 195584
      %v3857 = vsel %vm3855, %v3800, %v3379
      %v3859 = vsel %vm3855, %v3802, %v3381
      %v3861 = vsel %vm3855, %v3804, %v3383
      %v3863 = vsel %vm3855, %v3806, %v3385
      %v3865 = vsel %vm3855, %v3808, %v3387
      %v3867 = vsel %vm3855, %v3810, %v3389
      %v3869 = vsel %vm3855, %v3812, %v3391
      %v3871 = vsel %vm3855, %v3814, %v3393
      %v3873 = vsel %vm3855, %v3816, %v3395
      %v3875 = vsel %vm3855, %v3818, %v3397
      %v3877 = vsel %vm3855, %v3820, %v3399
      %v3879 = vsel %vm3855, %v3822, %v3401
      %v3881 = vsel %vm3855, %v3824, %v3403
      %v3883 = vsel %vm3855, %v3826, %v3405
      %v3885 = vsel %vm3855, %v3828, %v3407
      %v3887 = vsel %vm3855, %v3830, %v3409
      %v3889 = vsel %vm3855, %v3832, %v3411
      %v3891 = vsel %vm3855, %v3834, %v3413
      %v3893 = vsel %vm3855, %v3836, %v3415
      %v3895 = vsel %vm3855, %v3838, %v3417
      %v3897 = vsel %vm3855, %v3840, %v3419
      %v3899 = vsel %vm3855, %v3842, %v3421
      %v3901 = vsel %vm3855, %v3844, %v3423
      %v3903 = vsel %vm3855, %v3846, %v3425
      %v3905 = vsel %vm3855, %v3848, %v3427
      %v3907 = vsel %vm3855, %v3850, %v3429
      %v3909 = vsel %vm3855, %v3852, %v3431
      %v3911 = vsel %vm3855, %v3854, %v3433
      %vm3912 = vcmask 228352
      %v3914 = vsel %vm3912, %v3857, %v3454
      %v3916 = vsel %vm3912, %v3859, %v3456
      %v3918 = vsel %vm3912, %v3861, %v3458
      %v3920 = vsel %vm3912, %v3863, %v3460
      %v3922 = vsel %vm3912, %v3865, %v3462
      %v3924 = vsel %vm3912, %v3867, %v3464
      %v3926 = vsel %vm3912, %v3869, %v3466
      %v3928 = vsel %vm3912, %v3871, %v3468
      %v3930 = vsel %vm3912, %v3873, %v3470
      %v3932 = vsel %vm3912, %v3875, %v3472
      %v3934 = vsel %vm3912, %v3877, %v3474
      %v3936 = vsel %vm3912, %v3879, %v3476
      %v3938 = vsel %vm3912, %v3881, %v3478
      %v3940 = vsel %vm3912, %v3883, %v3480
      %v3942 = vsel %vm3912, %v3885, %v3482
      %v3944 = vsel %vm3912, %v3887, %v3484
      %v3946 = vsel %vm3912, %v3889, %v3486
      %v3948 = vsel %vm3912, %v3891, %v3488
      %v3950 = vsel %vm3912, %v3893, %v3490
      %v3952 = vsel %vm3912, %v3895, %v3492
      %v3954 = vsel %vm3912, %v3897, %v3494
      %v3956 = vsel %vm3912, %v3899, %v3496
      %v3958 = vsel %vm3912, %v3901, %v3498
      %v3960 = vsel %vm3912, %v3903, %v3500
      %v3962 = vsel %vm3912, %v3905, %v3502
      %v3964 = vsel %vm3912, %v3907, %v3504
      %v3966 = vsel %vm3912, %v3909, %v3506
      %v3968 = vsel %vm3912, %v3911, %v3508
      %vm3969 = vcmask 261120
      %v3971 = vsel %vm3969, %v3914, %v3516
      %v3973 = vsel %vm3969, %v3916, %v3518
      %v3975 = vsel %vm3969, %v3918, %v3520
      %v3977 = vsel %vm3969, %v3920, %v3522
      %v3979 = vsel %vm3969, %v3922, %v3524
      %v3981 = vsel %vm3969, %v3924, %v3526
      %v3983 = vsel %vm3969, %v3926, %v3528
      %v3985 = vsel %vm3969, %v3928, %v3530
      %v3987 = vsel %vm3969, %v3930, %v3532
      %v3989 = vsel %vm3969, %v3932, %v3534
      %v3991 = vsel %vm3969, %v3934, %v3536
      %v3993 = vsel %vm3969, %v3936, %v3538
      %v3995 = vsel %vm3969, %v3938, %v3540
      %v3997 = vsel %vm3969, %v3940, %v3542
      %v3999 = vsel %vm3969, %v3942, %v3544
      %v4001 = vsel %vm3969, %v3944, %v3546
      %v4003 = vsel %vm3969, %v3946, %v3548
      %v4005 = vsel %vm3969, %v3948, %v3550
      %v4007 = vsel %vm3969, %v3950, %v3552
      %v4009 = vsel %vm3969, %v3952, %v3554
      %v4011 = vsel %vm3969, %v3954, %v3556
      %v4013 = vsel %vm3969, %v3956, %v3558
      %v4015 = vsel %vm3969, %v3958, %v3560
      %v4017 = vsel %vm3969, %v3960, %v3562
      %v4019 = vsel %vm3969, %v3962, %v3564
      %v4021 = vsel %vm3969, %v3964, %v3566
      %v4023 = vsel %vm3969, %v3966, %v3568
      %v4025 = vsel %vm3969, %v3968, %v3570
      %v4026 = vld [vmem:[%s9] sm:$0xf]
      %v4027 = vld [vmem:[%s9 + $0x4] sm:$0xf]
      %v4028 = vld [vmem:[%s9 + $0x8] sm:$0xf]
      %v4029 = vld [vmem:[%s9 + $0xc] sm:$0xf]
      %v4030 = vld [vmem:[%s9 + $0x10] sm:$0x3]
      %vm4031 = vsmask.f32 4352
      %v4032 = vshrl.u32 %v3971, 16
      %v4034 = vrot.slane %v4032, 3
      %v4035 = vshll.u32 %v3971, 16
      %v4037 = vrot.slane %v4035, 4
      %v4038 = vor.u32 %v4034, %v4037
      %v4039 = vshrl.u32 %v3973, 16
      %v4041 = vrot.slane %v4039, 3
      %v4042 = vshll.u32 %v3973, 16
      %v4044 = vrot.slane %v4042, 4
      %v4045 = vor.u32 %v4041, %v4044
      %v4046 = vsel %vm4031, %v4038, %v4045
      %v4047 = vshrl.u32 %v3975, 16
      %v4049 = vrot.slane %v4047, 3
      %v4050 = vshll.u32 %v3975, 16
      %v4052 = vrot.slane %v4050, 4
      %v4053 = vor.u32 %v4049, %v4052
      %v4054 = vsel %vm4031, %v4045, %v4053
      %v4055 = vshrl.u32 %v3977, 16
      %v4057 = vrot.slane %v4055, 3
      %v4058 = vshll.u32 %v3977, 16
      %v4060 = vrot.slane %v4058, 4
      %v4061 = vor.u32 %v4057, %v4060
      %v4062 = vsel %vm4031, %v4053, %v4061
      %v4063 = vshrl.u32 %v3979, 16
      %v4065 = vrot.slane %v4063, 3
      %v4066 = vshll.u32 %v3979, 16
      %v4068 = vrot.slane %v4066, 4
      %v4069 = vor.u32 %v4065, %v4068
      %v4070 = vsel %vm4031, %v4061, %v4069
      %v4071 = vshrl.u32 %v3981, 16
      %v4073 = vrot.slane %v4071, 3
      %v4074 = vshll.u32 %v3981, 16
      %v4076 = vrot.slane %v4074, 4
      %v4077 = vor.u32 %v4073, %v4076
      %v4078 = vsel %vm4031, %v4069, %v4077
      %v4079 = vshrl.u32 %v3983, 16
      %v4081 = vrot.slane %v4079, 3
      %v4082 = vshll.u32 %v3983, 16
      %v4084 = vrot.slane %v4082, 4
      %v4085 = vor.u32 %v4081, %v4084
      %v4086 = vsel %vm4031, %v4077, %v4085
      %v4087 = vshrl.u32 %v3985, 16
      %v4089 = vrot.slane %v4087, 3
      %v4090 = vshll.u32 %v3985, 16
      %v4092 = vrot.slane %v4090, 4
      %v4093 = vor.u32 %v4089, %v4092
      %v4094 = vsel %vm4031, %v4085, %v4093
      %v4095 = vshrl.u32 %v3987, 16
      %v4097 = vrot.slane %v4095, 3
      %v4098 = vshll.u32 %v3987, 16
      %v4100 = vrot.slane %v4098, 4
      %v4101 = vor.u32 %v4097, %v4100
      %v4102 = vsel %vm4031, %v4093, %v4101
      %v4103 = vshrl.u32 %v3989, 16
      %v4105 = vrot.slane %v4103, 3
      %v4106 = vshll.u32 %v3989, 16
      %v4108 = vrot.slane %v4106, 4
      %v4109 = vor.u32 %v4105, %v4108
      %v4110 = vsel %vm4031, %v4101, %v4109
      %v4111 = vshrl.u32 %v3991, 16
      %v4113 = vrot.slane %v4111, 3
      %v4114 = vshll.u32 %v3991, 16
      %v4116 = vrot.slane %v4114, 4
      %v4117 = vor.u32 %v4113, %v4116
      %v4118 = vsel %vm4031, %v4109, %v4117
      %v4119 = vshrl.u32 %v3993, 16
      %v4121 = vrot.slane %v4119, 3
      %v4122 = vshll.u32 %v3993, 16
      %v4124 = vrot.slane %v4122, 4
      %v4125 = vor.u32 %v4121, %v4124
      %v4126 = vsel %vm4031, %v4117, %v4125
      %v4127 = vshrl.u32 %v3995, 16
      %v4129 = vrot.slane %v4127, 3
      %v4130 = vshll.u32 %v3995, 16
      %v4132 = vrot.slane %v4130, 4
      %v4133 = vor.u32 %v4129, %v4132
      %v4134 = vsel %vm4031, %v4125, %v4133
      %v4135 = vshrl.u32 %v3997, 16
      %v4137 = vrot.slane %v4135, 3
      %v4138 = vshll.u32 %v3997, 16
      %v4140 = vrot.slane %v4138, 4
      %v4141 = vor.u32 %v4137, %v4140
      %v4142 = vsel %vm4031, %v4133, %v4141
      %v4143 = vshrl.u32 %v3999, 16
      %v4145 = vrot.slane %v4143, 3
      %v4146 = vshll.u32 %v3999, 16
      %v4148 = vrot.slane %v4146, 4
      %v4149 = vor.u32 %v4145, %v4148
      %v4150 = vsel %vm4031, %v4141, %v4149
      %v4151 = vshrl.u32 %v4001, 16
      %v4153 = vrot.slane %v4151, 3
      %v4154 = vshll.u32 %v4001, 16
      %v4156 = vrot.slane %v4154, 4
      %v4157 = vor.u32 %v4153, %v4156
      %v4158 = vsel %vm4031, %v4149, %v4157
      %v4159 = vshrl.u32 %v4003, 16
      %v4161 = vrot.slane %v4159, 3
      %v4162 = vshll.u32 %v4003, 16
      %v4164 = vrot.slane %v4162, 4
      %v4165 = vor.u32 %v4161, %v4164
      %v4166 = vsel %vm4031, %v4157, %v4165
      %v4167 = vshrl.u32 %v4005, 16
      %v4169 = vrot.slane %v4167, 3
      %v4170 = vshll.u32 %v4005, 16
      %v4172 = vrot.slane %v4170, 4
      %v4173 = vor.u32 %v4169, %v4172
      %v4174 = vsel %vm4031, %v4165, %v4173
      %v4175 = vshrl.u32 %v4007, 16
      %v4177 = vrot.slane %v4175, 3
      %v4178 = vshll.u32 %v4007, 16
      %v4180 = vrot.slane %v4178, 4
      %v4181 = vor.u32 %v4177, %v4180
      %v4182 = vsel %vm4031, %v4173, %v4181
      %v4183 = vshrl.u32 %v4009, 16
      %v4185 = vrot.slane %v4183, 3
      %v4186 = vshll.u32 %v4009, 16
      %v4188 = vrot.slane %v4186, 4
      %v4189 = vor.u32 %v4185, %v4188
      %v4190 = vsel %vm4031, %v4181, %v4189
      %v4191 = vshrl.u32 %v4011, 16
      %v4193 = vrot.slane %v4191, 3
      %v4194 = vshll.u32 %v4011, 16
      %v4196 = vrot.slane %v4194, 4
      %v4197 = vor.u32 %v4193, %v4196
      %v4198 = vsel %vm4031, %v4189, %v4197
      %v4199 = vshrl.u32 %v4013, 16
      %v4201 = vrot.slane %v4199, 3
      %v4202 = vshll.u32 %v4013, 16
      %v4204 = vrot.slane %v4202, 4
      %v4205 = vor.u32 %v4201, %v4204
      %v4206 = vsel %vm4031, %v4197, %v4205
      %v4207 = vshrl.u32 %v4015, 16
      %v4209 = vrot.slane %v4207, 3
      %v4210 = vshll.u32 %v4015, 16
      %v4212 = vrot.slane %v4210, 4
      %v4213 = vor.u32 %v4209, %v4212
      %v4214 = vsel %vm4031, %v4205, %v4213
      %v4215 = vshrl.u32 %v4017, 16
      %v4217 = vrot.slane %v4215, 3
      %v4218 = vshll.u32 %v4017, 16
      %v4220 = vrot.slane %v4218, 4
      %v4221 = vor.u32 %v4217, %v4220
      %v4222 = vsel %vm4031, %v4213, %v4221
      %v4223 = vshrl.u32 %v4019, 16
      %v4225 = vrot.slane %v4223, 3
      %v4226 = vshll.u32 %v4019, 16
      %v4228 = vrot.slane %v4226, 4
      %v4229 = vor.u32 %v4225, %v4228
      %v4230 = vsel %vm4031, %v4221, %v4229
      %v4231 = vshrl.u32 %v4021, 16
      %v4233 = vrot.slane %v4231, 3
      %v4234 = vshll.u32 %v4021, 16
      %v4236 = vrot.slane %v4234, 4
      %v4237 = vor.u32 %v4233, %v4236
      %v4238 = vsel %vm4031, %v4229, %v4237
      %v4239 = vshrl.u32 %v4023, 16
      %v4241 = vrot.slane %v4239, 3
      %v4242 = vshll.u32 %v4023, 16
      %v4244 = vrot.slane %v4242, 4
      %v4245 = vor.u32 %v4241, %v4244
      %v4246 = vsel %vm4031, %v4237, %v4245
      %v4247 = vshrl.u32 %v4025, 16
      %v4249 = vrot.slane %v4247, 3
      %v4250 = vshll.u32 %v4025, 16
      %v4252 = vrot.slane %v4250, 4
      %v4253 = vor.u32 %v4249, %v4252
      %v4254 = vsel %vm4031, %v4245, %v4253
      %v4260 = vunpack.c.l.b16 %v4026
      %v4261 = vunpack.c.l.b16 %v4027
      %v4262 = vunpack.c.l.b16 %v4028
      %v4263 = vunpack.c.l.b16 %v4029
      %v4264 = vunpack.c.l.b16 %v4030
      %v4265 = vpack.c.b16 %v4261, %v4260
      %v4266 = vpack.c.b16 %v4263, %v4262
      %v4267 = vpack.c.b16 %v4264, %v4264
      %vm4270 = vcmask 293888
      %v4272 = vsel %vm4270, %v4046, 0
      %v4275 = vsel %vm4270, %v4054, 0
      %v4278 = vsel %vm4270, %v4062, 0
      %v4281 = vsel %vm4270, %v4070, 0
      %v4284 = vsel %vm4270, %v4078, 0
      %v4287 = vsel %vm4270, %v4086, 0
      %v4290 = vsel %vm4270, %v4094, 0
      %v4293 = vsel %vm4270, %v4102, 0
      %v4296 = vsel %vm4270, %v4110, 0
      %v4299 = vsel %vm4270, %v4118, 0
      %v4302 = vsel %vm4270, %v4126, 0
      %v4305 = vsel %vm4270, %v4134, 0
      %v4308 = vsel %vm4270, %v4142, 0
      %v4311 = vsel %vm4270, %v4150, 0
      %v4314 = vsel %vm4270, %v4158, 0
      %v4317 = vsel %vm4270, %v4166, 0
      %v4320 = vsel %vm4270, %v4174, 0
      %v4323 = vsel %vm4270, %v4182, 0
      %v4326 = vsel %vm4270, %v4190, 0
      %v4329 = vsel %vm4270, %v4198, 0
      %v4332 = vsel %vm4270, %v4206, 0
      %v4335 = vsel %vm4270, %v4214, 0
      %v4338 = vsel %vm4270, %v4222, 0
      %v4341 = vsel %vm4270, %v4230, 0
      %v4344 = vsel %vm4270, %v4238, 0
      %v4347 = vsel %vm4270, %v4246, 0
      %v4350 = vsel %vm4270, %v4254, 0
      %v4353 = vsel %vm1004, %v4267, 0
      %4355 = vmatprep.subr.bf16.mxu0 0
      %4356 = vmatpush1.bf16.msra.mxu0 %v4265
      %4357 = vmatprep.subr.bf16.mxu0 0
      %4358 = vmatpush1.bf16.msra.mxu0 %v4266
      %4359 = vmatprep.subr.bf16.mxu0 0
      %4360 = vmatpush1.bf16.msra.mxu0 %v4353
      %4361 = vmatprep.subr.bf16.mxu0 0
      %4362 = vmatpush1.bf16.msra.mxu0 0
      %4363 = vmatprep.subr.bf16.mxu0 0
      %4364 = vmatpush1.bf16.msra.mxu0 0
      %4365 = vmatprep.subr.bf16.mxu0 0
      %4366 = vmatpush1.bf16.msra.mxu0 0
      %4367 = vmatprep.subr.bf16.mxu0 0
      %4368 = vmatpush1.bf16.msra.mxu0 0
      %4369 = vmatprep.subr.bf16.mxu0 0
      %4370 = vmatpush1.bf16.msra.mxu0 0
      %4371 = vmatprep.subr.bf16.mxu0 0
      %4372 = vmatpush1.bf16.msra.mxu0 0
      %4373 = vmatprep.subr.bf16.mxu0 0
      %4374 = vmatpush1.bf16.msra.mxu0 0
      %4375 = vmatprep.subr.bf16.mxu0 0
      %4376 = vmatpush1.bf16.msra.mxu0 0
      %4377 = vmatprep.subr.bf16.mxu0 0
      %4378 = vmatpush1.bf16.msra.mxu0 0
      %4379 = vmatprep.subr.bf16.mxu0 0
      %4380 = vmatpush1.bf16.msra.mxu0 0
      %4381 = vmatprep.subr.bf16.mxu0 0
      %4382 = vmatpush1.bf16.msra.mxu0 0
      %4383 = vmatprep.subr.bf16.mxu0 0
      %4384 = vmatpush1.bf16.msra.mxu0 0
      %4385 = vmatprep.subr.bf16.mxu0 0
      %4386 = vmatpush1.bf16.msra.mxu0 0
      %4387 = vmatprep.mubr.bf16.mxu0 0
      %4388 = vmatmul.mubr.bf16.gmra.mrb[0].mxu0 %v4272
      %v4389 = vpop.f32.mrb[0].mxu0
      %v4390 = vadd.f32 0.0, %v4389
      %v4391 = vpop.f32.mrb[0].mxu0
      %v4392 = vpop.f32.mrb[0].mxu0
      %v4393 = vadd.f32 0.0, %v4392
      %v4394 = vpop.f32.mrb[0].mxu0
      %4395 = vmatprep.mubr.bf16.mxu0 0
      %4396 = vmatmul.mubr.bf16.gmra.mrb[0].mxu0 %v4275
      %v4397 = vpop.f32.mrb[0].mxu0
      %v4398 = vadd.f32 0.0, %v4397
      %v4399 = vpop.f32.mrb[0].mxu0
      %v4400 = vpop.f32.mrb[0].mxu0
      %v4401 = vadd.f32 0.0, %v4400
      %v4402 = vpop.f32.mrb[0].mxu0
      %4403 = vmatprep.mubr.bf16.mxu0 0
      %4404 = vmatmul.mubr.bf16.gmra.mrb[0].mxu0 %v4278
      %v4405 = vpop.f32.mrb[0].mxu0
      %v4406 = vadd.f32 0.0, %v4405
      %v4407 = vpop.f32.mrb[0].mxu0
      %v4408 = vpop.f32.mrb[0].mxu0
      %v4409 = vadd.f32 0.0, %v4408
      %v4410 = vpop.f32.mrb[0].mxu0
      %4411 = vmatprep.mubr.bf16.mxu0 0
      %4412 = vmatmul.mubr.bf16.gmra.mrb[0].mxu0 %v4281
      %v4413 = vpop.f32.mrb[0].mxu0
      %v4414 = vadd.f32 0.0, %v4413
      %v4415 = vpop.f32.mrb[0].mxu0
      %v4416 = vpop.f32.mrb[0].mxu0
      %v4417 = vadd.f32 0.0, %v4416
      %v4418 = vpop.f32.mrb[0].mxu0
      %4419 = vmatprep.mubr.bf16.mxu0 0
      %4420 = vmatmul.mubr.bf16.gmra.mrb[0].mxu0 %v4284
      %v4421 = vpop.f32.mrb[0].mxu0
      %v4422 = vadd.f32 0.0, %v4421
      %v4423 = vpop.f32.mrb[0].mxu0
      %v4424 = vpop.f32.mrb[0].mxu0
      %v4425 = vadd.f32 0.0, %v4424
      %v4426 = vpop.f32.mrb[0].mxu0
      %4427 = vmatprep.mubr.bf16.mxu0 0
      %4428 = vmatmul.mubr.bf16.gmra.mrb[0].mxu0 %v4287
      %v4429 = vpop.f32.mrb[0].mxu0
      %v4430 = vadd.f32 0.0, %v4429
      %v4431 = vpop.f32.mrb[0].mxu0
      %v4432 = vpop.f32.mrb[0].mxu0
      %v4433 = vadd.f32 0.0, %v4432
      %v4434 = vpop.f32.mrb[0].mxu0
      %4435 = vmatprep.mubr.bf16.mxu0 0
      %4436 = vmatmul.mubr.bf16.gmra.mrb[0].mxu0 %v4290
      %v4437 = vpop.f32.mrb[0].mxu0
      %v4438 = vadd.f32 0.0, %v4437
      %v4439 = vpop.f32.mrb[0].mxu0
      %v4440 = vpop.f32.mrb[0].mxu0
      %v4441 = vadd.f32 0.0, %v4440
      %v4442 = vpop.f32.mrb[0].mxu0
      %4443 = vmatprep.mubr.bf16.mxu0 0
      %4444 = vmatmul.mubr.bf16.gmra.mrb[0].mxu0 %v4293
      %v4445 = vpop.f32.mrb[0].mxu0
      %v4446 = vadd.f32 0.0, %v4445
      %v4447 = vpop.f32.mrb[0].mxu0
      %v4448 = vpop.f32.mrb[0].mxu0
      %v4449 = vadd.f32 0.0, %v4448
      %v4450 = vpop.f32.mrb[0].mxu0
      %4451 = vmatprep.mubr.bf16.mxu0 0
      %4452 = vmatmul.mubr.bf16.gmra.mrb[0].mxu0 %v4296
      %v4453 = vpop.f32.mrb[0].mxu0
      %v4454 = vadd.f32 0.0, %v4453
      %v4455 = vpop.f32.mrb[0].mxu0
      %v4456 = vpop.f32.mrb[0].mxu0
      %v4457 = vadd.f32 0.0, %v4456
      %v4458 = vpop.f32.mrb[0].mxu0
      %4459 = vmatprep.mubr.bf16.mxu0 0
      %4460 = vmatmul.mubr.bf16.gmra.mrb[0].mxu0 %v4299
      %v4461 = vpop.f32.mrb[0].mxu0
      %v4462 = vadd.f32 0.0, %v4461
      %v4463 = vpop.f32.mrb[0].mxu0
      %v4464 = vpop.f32.mrb[0].mxu0
      %v4465 = vadd.f32 0.0, %v4464
      %v4466 = vpop.f32.mrb[0].mxu0
      %4467 = vmatprep.mubr.bf16.mxu0 0
      %4468 = vmatmul.mubr.bf16.gmra.mrb[0].mxu0 %v4302
      %v4469 = vpop.f32.mrb[0].mxu0
      %v4470 = vadd.f32 0.0, %v4469
      %v4471 = vpop.f32.mrb[0].mxu0
      %v4472 = vpop.f32.mrb[0].mxu0
      %v4473 = vadd.f32 0.0, %v4472
      %v4474 = vpop.f32.mrb[0].mxu0
      %4475 = vmatprep.mubr.bf16.mxu0 0
      %4476 = vmatmul.mubr.bf16.gmra.mrb[0].mxu0 %v4305
      %v4477 = vpop.f32.mrb[0].mxu0
      %v4478 = vadd.f32 0.0, %v4477
      %v4479 = vpop.f32.mrb[0].mxu0
      %v4480 = vpop.f32.mrb[0].mxu0
      %v4481 = vadd.f32 0.0, %v4480
      %v4482 = vpop.f32.mrb[0].mxu0
      %4483 = vmatprep.mubr.bf16.mxu0 0
      %4484 = vmatmul.mubr.bf16.gmra.mrb[0].mxu0 %v4308
      %v4485 = vpop.f32.mrb[0].mxu0
      %v4486 = vadd.f32 0.0, %v4485
      %v4487 = vpop.f32.mrb[0].mxu0
      %v4488 = vpop.f32.mrb[0].mxu0
      %v4489 = vadd.f32 0.0, %v4488
      %v4490 = vpop.f32.mrb[0].mxu0
      %4491 = vmatprep.mubr.bf16.mxu0 0
      %4492 = vmatmul.mubr.bf16.gmra.mrb[0].mxu0 %v4311
      %v4493 = vpop.f32.mrb[0].mxu0
      %v4494 = vadd.f32 0.0, %v4493
      %v4495 = vpop.f32.mrb[0].mxu0
      %v4496 = vpop.f32.mrb[0].mxu0
      %v4497 = vadd.f32 0.0, %v4496
      %v4498 = vpop.f32.mrb[0].mxu0
      %4499 = vmatprep.mubr.bf16.mxu0 0
      %4500 = vmatmul.mubr.bf16.gmra.mrb[0].mxu0 %v4314
      %v4501 = vpop.f32.mrb[0].mxu0
      %v4502 = vadd.f32 0.0, %v4501
      %v4503 = vpop.f32.mrb[0].mxu0
      %v4504 = vpop.f32.mrb[0].mxu0
      %v4505 = vadd.f32 0.0, %v4504
      %v4506 = vpop.f32.mrb[0].mxu0
      %4507 = vmatprep.mubr.bf16.mxu0 0
      %4508 = vmatmul.mubr.bf16.gmra.mrb[0].mxu0 %v4317
      %v4509 = vpop.f32.mrb[0].mxu0
      %v4510 = vadd.f32 0.0, %v4509
      %v4511 = vpop.f32.mrb[0].mxu0
      %v4512 = vpop.f32.mrb[0].mxu0
      %v4513 = vadd.f32 0.0, %v4512
      %v4514 = vpop.f32.mrb[0].mxu0
      %4515 = vmatprep.mubr.bf16.mxu0 0
      %4516 = vmatmul.mubr.bf16.gmra.mrb[0].mxu0 %v4320
      %v4517 = vpop.f32.mrb[0].mxu0
      %v4518 = vadd.f32 0.0, %v4517
      %v4519 = vpop.f32.mrb[0].mxu0
      %v4520 = vpop.f32.mrb[0].mxu0
      %v4521 = vadd.f32 0.0, %v4520
      %v4522 = vpop.f32.mrb[0].mxu0
      %4523 = vmatprep.mubr.bf16.mxu0 0
      %4524 = vmatmul.mubr.bf16.gmra.mrb[0].mxu0 %v4323
      %v4525 = vpop.f32.mrb[0].mxu0
      %v4526 = vadd.f32 0.0, %v4525
      %v4527 = vpop.f32.mrb[0].mxu0
      %v4528 = vpop.f32.mrb[0].mxu0
      %v4529 = vadd.f32 0.0, %v4528
      %v4530 = vpop.f32.mrb[0].mxu0
      %4531 = vmatprep.mubr.bf16.mxu0 0
      %4532 = vmatmul.mubr.bf16.gmra.mrb[0].mxu0 %v4326
      %v4533 = vpop.f32.mrb[0].mxu0
      %v4534 = vadd.f32 0.0, %v4533
      %v4535 = vpop.f32.mrb[0].mxu0
      %v4536 = vpop.f32.mrb[0].mxu0
      %v4537 = vadd.f32 0.0, %v4536
      %v4538 = vpop.f32.mrb[0].mxu0
      %4539 = vmatprep.mubr.bf16.mxu0 0
      %4540 = vmatmul.mubr.bf16.gmra.mrb[0].mxu0 %v4329
      %v4541 = vpop.f32.mrb[0].mxu0
      %v4542 = vadd.f32 0.0, %v4541
      %v4543 = vpop.f32.mrb[0].mxu0
      %v4544 = vpop.f32.mrb[0].mxu0
      %v4545 = vadd.f32 0.0, %v4544
      %v4546 = vpop.f32.mrb[0].mxu0
      %4547 = vmatprep.mubr.bf16.mxu0 0
      %4548 = vmatmul.mubr.bf16.gmra.mrb[0].mxu0 %v4332
      %v4549 = vpop.f32.mrb[0].mxu0
      %v4550 = vadd.f32 0.0, %v4549
      %v4551 = vpop.f32.mrb[0].mxu0
      %v4552 = vpop.f32.mrb[0].mxu0
      %v4553 = vadd.f32 0.0, %v4552
      %v4554 = vpop.f32.mrb[0].mxu0
      %4555 = vmatprep.mubr.bf16.mxu0 0
      %4556 = vmatmul.mubr.bf16.gmra.mrb[0].mxu0 %v4335
      %v4557 = vpop.f32.mrb[0].mxu0
      %v4558 = vadd.f32 0.0, %v4557
      %v4559 = vpop.f32.mrb[0].mxu0
      %v4560 = vpop.f32.mrb[0].mxu0
      %v4561 = vadd.f32 0.0, %v4560
      %v4562 = vpop.f32.mrb[0].mxu0
      %4563 = vmatprep.mubr.bf16.mxu0 0
      %4564 = vmatmul.mubr.bf16.gmra.mrb[0].mxu0 %v4338
      %v4565 = vpop.f32.mrb[0].mxu0
      %v4566 = vadd.f32 0.0, %v4565
      %v4567 = vpop.f32.mrb[0].mxu0
      %v4568 = vpop.f32.mrb[0].mxu0
      %v4569 = vadd.f32 0.0, %v4568
      %v4570 = vpop.f32.mrb[0].mxu0
      %4571 = vmatprep.mubr.bf16.mxu0 0
      %4572 = vmatmul.mubr.bf16.gmra.mrb[0].mxu0 %v4341
      %v4573 = vpop.f32.mrb[0].mxu0
      %v4574 = vadd.f32 0.0, %v4573
      %v4575 = vpop.f32.mrb[0].mxu0
      %v4576 = vpop.f32.mrb[0].mxu0
      %v4577 = vadd.f32 0.0, %v4576
      %v4578 = vpop.f32.mrb[0].mxu0
      %4579 = vmatprep.mubr.bf16.mxu0 0
      %4580 = vmatmul.mubr.bf16.gmra.mrb[0].mxu0 %v4344
      %v4581 = vpop.f32.mrb[0].mxu0
      %v4582 = vadd.f32 0.0, %v4581
      %v4583 = vpop.f32.mrb[0].mxu0
      %v4584 = vpop.f32.mrb[0].mxu0
      %v4585 = vadd.f32 0.0, %v4584
      %v4586 = vpop.f32.mrb[0].mxu0
      %4587 = vmatprep.mubr.bf16.mxu0 0
      %4588 = vmatmul.mubr.bf16.gmra.mrb[0].mxu0 %v4347
      %v4589 = vpop.f32.mrb[0].mxu0
      %v4590 = vadd.f32 0.0, %v4589
      %v4591 = vpop.f32.mrb[0].mxu0
      %v4592 = vpop.f32.mrb[0].mxu0
      %v4593 = vadd.f32 0.0, %v4592
      %v4594 = vpop.f32.mrb[0].mxu0
      %4595 = vmatprep.mubr.bf16.mxu0 0
      %4596 = vmatmul.mubr.bf16.gmra.mrb[0].mxu0 %v4350
      %v4597 = vpop.f32.mrb[0].mxu0
      %v4598 = vadd.f32 0.0, %v4597
      %v4599 = vpop.f32.mrb[0].mxu0
      %v4600 = vpop.f32.mrb[0].mxu0
      %v4601 = vadd.f32 0.0, %v4600
      %v4602 = vpop.f32.mrb[0].mxu0
      %4603 = vdwg.mxu0
      %v4604 = vld [vmem:[%s10] sm:$0x1]
      %v4606 = vlaneseq
      %v4607 = vshrl.u32 %v4606, 7
      %v4608 = vsub.s32 0, %v4607
      %v4609 = vrot.slane %v4604, %v4608
      %v4611 = vmul.f32 %v4390, %v4609
      %v4612 = vmul.f32 %v4393, %v4609
      %v4613 = vmul.f32 %v4398, %v4609
      %v4614 = vmul.f32 %v4401, %v4609
      %v4615 = vmul.f32 %v4406, %v4609
      %v4616 = vmul.f32 %v4409, %v4609
      %v4617 = vmul.f32 %v4414, %v4609
      %v4618 = vmul.f32 %v4417, %v4609
      %v4619 = vmul.f32 %v4422, %v4609
      %v4620 = vmul.f32 %v4425, %v4609
      %v4621 = vmul.f32 %v4430, %v4609
      %v4622 = vmul.f32 %v4433, %v4609
      %v4623 = vmul.f32 %v4438, %v4609
      %v4624 = vmul.f32 %v4441, %v4609
      %v4625 = vmul.f32 %v4446, %v4609
      %v4626 = vmul.f32 %v4449, %v4609
      %v4627 = vmul.f32 %v4454, %v4609
      %v4628 = vmul.f32 %v4457, %v4609
      %v4629 = vmul.f32 %v4462, %v4609
      %v4630 = vmul.f32 %v4465, %v4609
      %v4631 = vmul.f32 %v4470, %v4609
      %v4632 = vmul.f32 %v4473, %v4609
      %v4633 = vmul.f32 %v4478, %v4609
      %v4634 = vmul.f32 %v4481, %v4609
      %v4635 = vmul.f32 %v4486, %v4609
      %v4636 = vmul.f32 %v4489, %v4609
      %v4637 = vmul.f32 %v4494, %v4609
      %v4638 = vmul.f32 %v4497, %v4609
      %v4639 = vmul.f32 %v4502, %v4609
      %v4640 = vmul.f32 %v4505, %v4609
      %v4641 = vmul.f32 %v4510, %v4609
      %v4642 = vmul.f32 %v4513, %v4609
      %v4643 = vmul.f32 %v4518, %v4609
      %v4644 = vmul.f32 %v4521, %v4609
      %v4645 = vmul.f32 %v4526, %v4609
      %v4646 = vmul.f32 %v4529, %v4609
      %v4647 = vmul.f32 %v4534, %v4609
      %v4648 = vmul.f32 %v4537, %v4609
      %v4649 = vmul.f32 %v4542, %v4609
      %v4650 = vmul.f32 %v4545, %v4609
      %v4651 = vmul.f32 %v4550, %v4609
      %v4652 = vmul.f32 %v4553, %v4609
      %v4653 = vmul.f32 %v4558, %v4609
      %v4654 = vmul.f32 %v4561, %v4609
      %v4655 = vmul.f32 %v4566, %v4609
      %v4656 = vmul.f32 %v4569, %v4609
      %v4657 = vmul.f32 %v4574, %v4609
      %v4658 = vmul.f32 %v4577, %v4609
      %v4659 = vmul.f32 %v4582, %v4609
      %v4660 = vmul.f32 %v4585, %v4609
      %v4661 = vmul.f32 %v4590, %v4609
      %v4662 = vmul.f32 %v4593, %v4609
      %v4663 = vmul.f32 %v4598, %v4609
      %v4664 = vmul.f32 %v4601, %v4609
      %v4665 = vld [vmem:[%s11] sm:$0x1]
      %v4667 = vlaneseq
      %v4668 = vshrl.u32 %v4667, 7
      %v4669 = vsub.s32 0, %v4668
      %v4670 = vrot.slane %v4665, %v4669
      %v4672 = vadd.f32 %v4611, %v4670
      %v4673 = vadd.f32 %v4612, %v4670
      %v4674 = vadd.f32 %v4613, %v4670
      %v4675 = vadd.f32 %v4614, %v4670
      %v4676 = vadd.f32 %v4615, %v4670
      %v4677 = vadd.f32 %v4616, %v4670
      %v4678 = vadd.f32 %v4617, %v4670
      %v4679 = vadd.f32 %v4618, %v4670
      %v4680 = vadd.f32 %v4619, %v4670
      %v4681 = vadd.f32 %v4620, %v4670
      %v4682 = vadd.f32 %v4621, %v4670
      %v4683 = vadd.f32 %v4622, %v4670
      %v4684 = vadd.f32 %v4623, %v4670
      %v4685 = vadd.f32 %v4624, %v4670
      %v4686 = vadd.f32 %v4625, %v4670
      %v4687 = vadd.f32 %v4626, %v4670
      %v4688 = vadd.f32 %v4627, %v4670
      %v4689 = vadd.f32 %v4628, %v4670
      %v4690 = vadd.f32 %v4629, %v4670
      %v4691 = vadd.f32 %v4630, %v4670
      %v4692 = vadd.f32 %v4631, %v4670
      %v4693 = vadd.f32 %v4632, %v4670
      %v4694 = vadd.f32 %v4633, %v4670
      %v4695 = vadd.f32 %v4634, %v4670
      %v4696 = vadd.f32 %v4635, %v4670
      %v4697 = vadd.f32 %v4636, %v4670
      %v4698 = vadd.f32 %v4637, %v4670
      %v4699 = vadd.f32 %v4638, %v4670
      %v4700 = vadd.f32 %v4639, %v4670
      %v4701 = vadd.f32 %v4640, %v4670
      %v4702 = vadd.f32 %v4641, %v4670
      %v4703 = vadd.f32 %v4642, %v4670
      %v4704 = vadd.f32 %v4643, %v4670
      %v4705 = vadd.f32 %v4644, %v4670
      %v4706 = vadd.f32 %v4645, %v4670
      %v4707 = vadd.f32 %v4646, %v4670
      %v4708 = vadd.f32 %v4647, %v4670
      %v4709 = vadd.f32 %v4648, %v4670
      %v4710 = vadd.f32 %v4649, %v4670
      %v4711 = vadd.f32 %v4650, %v4670
      %v4712 = vadd.f32 %v4651, %v4670
      %v4713 = vadd.f32 %v4652, %v4670
      %v4714 = vadd.f32 %v4653, %v4670
      %v4715 = vadd.f32 %v4654, %v4670
      %v4716 = vadd.f32 %v4655, %v4670
      %v4717 = vadd.f32 %v4656, %v4670
      %v4718 = vadd.f32 %v4657, %v4670
      %v4719 = vadd.f32 %v4658, %v4670
      %v4720 = vadd.f32 %v4659, %v4670
      %v4721 = vadd.f32 %v4660, %v4670
      %v4722 = vadd.f32 %v4661, %v4670
      %v4723 = vadd.f32 %v4662, %v4670
      %v4724 = vadd.f32 %v4663, %v4670
      %v4725 = vadd.f32 %v4664, %v4670
      %v4726 = vand.u32 2147483647, %v4672
      %v4727 = vand.u32 2147483647, %v4673
      %v4728 = vand.u32 2147483647, %v4674
      %v4729 = vand.u32 2147483647, %v4675
      %v4730 = vand.u32 2147483647, %v4676
      %v4731 = vand.u32 2147483647, %v4677
      %v4732 = vand.u32 2147483647, %v4678
      %v4733 = vand.u32 2147483647, %v4679
      %v4734 = vand.u32 2147483647, %v4680
      %v4735 = vand.u32 2147483647, %v4681
      %v4736 = vand.u32 2147483647, %v4682
      %v4737 = vand.u32 2147483647, %v4683
      %v4738 = vand.u32 2147483647, %v4684
      %v4739 = vand.u32 2147483647, %v4685
      %v4740 = vand.u32 2147483647, %v4686
      %v4741 = vand.u32 2147483647, %v4687
      %v4742 = vand.u32 2147483647, %v4688
      %v4743 = vand.u32 2147483647, %v4689
      %v4744 = vand.u32 2147483647, %v4690
      %v4745 = vand.u32 2147483647, %v4691
      %v4746 = vand.u32 2147483647, %v4692
      %v4747 = vand.u32 2147483647, %v4693
      %v4748 = vand.u32 2147483647, %v4694
      %v4749 = vand.u32 2147483647, %v4695
      %v4750 = vand.u32 2147483647, %v4696
      %v4751 = vand.u32 2147483647, %v4697
      %v4752 = vand.u32 2147483647, %v4698
      %v4753 = vand.u32 2147483647, %v4699
      %v4754 = vand.u32 2147483647, %v4700
      %v4755 = vand.u32 2147483647, %v4701
      %v4756 = vand.u32 2147483647, %v4702
      %v4757 = vand.u32 2147483647, %v4703
      %v4758 = vand.u32 2147483647, %v4704
      %v4759 = vand.u32 2147483647, %v4705
      %v4760 = vand.u32 2147483647, %v4706
      %v4761 = vand.u32 2147483647, %v4707
      %v4762 = vand.u32 2147483647, %v4708
      %v4763 = vand.u32 2147483647, %v4709
      %v4764 = vand.u32 2147483647, %v4710
      %v4765 = vand.u32 2147483647, %v4711
      %v4766 = vand.u32 2147483647, %v4712
      %v4767 = vand.u32 2147483647, %v4713
      %v4768 = vand.u32 2147483647, %v4714
      %v4769 = vand.u32 2147483647, %v4715
      %v4770 = vand.u32 2147483647, %v4716
      %v4771 = vand.u32 2147483647, %v4717
      %v4772 = vand.u32 2147483647, %v4718
      %v4773 = vand.u32 2147483647, %v4719
      %v4774 = vand.u32 2147483647, %v4720
      %v4775 = vand.u32 2147483647, %v4721
      %v4776 = vand.u32 2147483647, %v4722
      %v4777 = vand.u32 2147483647, %v4723
      %v4778 = vand.u32 2147483647, %v4724
      %v4779 = vand.u32 2147483647, %v4725
      %v4780 = vsub.f32 0.0, %v4726
      %v4781 = vsub.f32 0.0, %v4727
      %v4782 = vsub.f32 0.0, %v4728
      %v4783 = vsub.f32 0.0, %v4729
      %v4784 = vsub.f32 0.0, %v4730
      %v4785 = vsub.f32 0.0, %v4731
      %v4786 = vsub.f32 0.0, %v4732
      %v4787 = vsub.f32 0.0, %v4733
      %v4788 = vsub.f32 0.0, %v4734
      %v4789 = vsub.f32 0.0, %v4735
      %v4790 = vsub.f32 0.0, %v4736
      %v4791 = vsub.f32 0.0, %v4737
      %v4792 = vsub.f32 0.0, %v4738
      %v4793 = vsub.f32 0.0, %v4739
      %v4794 = vsub.f32 0.0, %v4740
      %v4795 = vsub.f32 0.0, %v4741
      %v4796 = vsub.f32 0.0, %v4742
      %v4797 = vsub.f32 0.0, %v4743
      %v4798 = vsub.f32 0.0, %v4744
      %v4799 = vsub.f32 0.0, %v4745
      %v4800 = vsub.f32 0.0, %v4746
      %v4801 = vsub.f32 0.0, %v4747
      %v4802 = vsub.f32 0.0, %v4748
      %v4803 = vsub.f32 0.0, %v4749
      %v4804 = vsub.f32 0.0, %v4750
      %v4805 = vsub.f32 0.0, %v4751
      %v4806 = vsub.f32 0.0, %v4752
      %v4807 = vsub.f32 0.0, %v4753
      %v4808 = vsub.f32 0.0, %v4754
      %v4809 = vsub.f32 0.0, %v4755
      %v4810 = vsub.f32 0.0, %v4756
      %v4811 = vsub.f32 0.0, %v4757
      %v4812 = vsub.f32 0.0, %v4758
      %v4813 = vsub.f32 0.0, %v4759
      %v4814 = vsub.f32 0.0, %v4760
      %v4815 = vsub.f32 0.0, %v4761
      %v4816 = vsub.f32 0.0, %v4762
      %v4817 = vsub.f32 0.0, %v4763
      %v4818 = vsub.f32 0.0, %v4764
      %v4819 = vsub.f32 0.0, %v4765
      %v4820 = vsub.f32 0.0, %v4766
      %v4821 = vsub.f32 0.0, %v4767
      %v4822 = vsub.f32 0.0, %v4768
      %v4823 = vsub.f32 0.0, %v4769
      %v4824 = vsub.f32 0.0, %v4770
      %v4825 = vsub.f32 0.0, %v4771
      %v4826 = vsub.f32 0.0, %v4772
      %v4827 = vsub.f32 0.0, %v4773
      %v4828 = vsub.f32 0.0, %v4774
      %v4829 = vsub.f32 0.0, %v4775
      %v4830 = vsub.f32 0.0, %v4776
      %v4831 = vsub.f32 0.0, %v4777
      %v4832 = vsub.f32 0.0, %v4778
      %v4833 = vsub.f32 0.0, %v4779
      %v4834 = vmul.f32 %v4780, 1.442695
      %v4835 = vpow.pop %v4834
      %v4836 = vmul.f32 %v4781, 1.442695
      %v4837 = vpow.pop %v4836
      %v4838 = vmul.f32 %v4782, 1.442695
      %v4839 = vpow.pop %v4838
      %v4840 = vmul.f32 %v4783, 1.442695
      %v4841 = vpow.pop %v4840
      %v4842 = vmul.f32 %v4784, 1.442695
      %v4843 = vpow.pop %v4842
      %v4844 = vmul.f32 %v4785, 1.442695
      %v4845 = vpow.pop %v4844
      %v4846 = vmul.f32 %v4786, 1.442695
      %v4847 = vpow.pop %v4846
      %v4848 = vmul.f32 %v4787, 1.442695
      %v4849 = vpow.pop %v4848
      %v4850 = vmul.f32 %v4788, 1.442695
      %v4851 = vpow.pop %v4850
      %v4852 = vmul.f32 %v4789, 1.442695
      %v4853 = vpow.pop %v4852
      %v4854 = vmul.f32 %v4790, 1.442695
      %v4855 = vpow.pop %v4854
      %v4856 = vmul.f32 %v4791, 1.442695
      %v4857 = vpow.pop %v4856
      %v4858 = vmul.f32 %v4792, 1.442695
      %v4859 = vpow.pop %v4858
      %v4860 = vmul.f32 %v4793, 1.442695
      %v4861 = vpow.pop %v4860
      %v4862 = vmul.f32 %v4794, 1.442695
      %v4863 = vpow.pop %v4862
      %v4864 = vmul.f32 %v4795, 1.442695
      %v4865 = vpow.pop %v4864
      %v4866 = vmul.f32 %v4796, 1.442695
      %v4867 = vpow.pop %v4866
      %v4868 = vmul.f32 %v4797, 1.442695
      %v4869 = vpow.pop %v4868
      %v4870 = vmul.f32 %v4798, 1.442695
      %v4871 = vpow.pop %v4870
      %v4872 = vmul.f32 %v4799, 1.442695
      %v4873 = vpow.pop %v4872
      %v4874 = vmul.f32 %v4800, 1.442695
      %v4875 = vpow.pop %v4874
      %v4876 = vmul.f32 %v4801, 1.442695
      %v4877 = vpow.pop %v4876
      %v4878 = vmul.f32 %v4802, 1.442695
      %v4879 = vpow.pop %v4878
      %v4880 = vmul.f32 %v4803, 1.442695
      %v4881 = vpow.pop %v4880
      %v4882 = vmul.f32 %v4804, 1.442695
      %v4883 = vpow.pop %v4882
      %v4884 = vmul.f32 %v4805, 1.442695
      %v4885 = vpow.pop %v4884
      %v4886 = vmul.f32 %v4806, 1.442695
      %v4887 = vpow.pop %v4886
      %v4888 = vmul.f32 %v4807, 1.442695
      %v4889 = vpow.pop %v4888
      %v4890 = vmul.f32 %v4808, 1.442695
      %v4891 = vpow.pop %v4890
      %v4892 = vmul.f32 %v4809, 1.442695
      %v4893 = vpow.pop %v4892
      %v4894 = vmul.f32 %v4810, 1.442695
      %v4895 = vpow.pop %v4894
      %v4896 = vmul.f32 %v4811, 1.442695
      %v4897 = vpow.pop %v4896
      %v4898 = vmul.f32 %v4812, 1.442695
      %v4899 = vpow.pop %v4898
      %v4900 = vmul.f32 %v4813, 1.442695
      %v4901 = vpow.pop %v4900
      %v4902 = vmul.f32 %v4814, 1.442695
      %v4903 = vpow.pop %v4902
      %v4904 = vmul.f32 %v4815, 1.442695
      %v4905 = vpow.pop %v4904
      %v4906 = vmul.f32 %v4816, 1.442695
      %v4907 = vpow.pop %v4906
      %v4908 = vmul.f32 %v4817, 1.442695
      %v4909 = vpow.pop %v4908
      %v4910 = vmul.f32 %v4818, 1.442695
      %v4911 = vpow.pop %v4910
      %v4912 = vmul.f32 %v4819, 1.442695
      %v4913 = vpow.pop %v4912
      %v4914 = vmul.f32 %v4820, 1.442695
      %v4915 = vpow.pop %v4914
      %v4916 = vmul.f32 %v4821, 1.442695
      %v4917 = vpow.pop %v4916
      %v4918 = vmul.f32 %v4822, 1.442695
      %v4919 = vpow.pop %v4918
      %v4920 = vmul.f32 %v4823, 1.442695
      %v4921 = vpow.pop %v4920
      %v4922 = vmul.f32 %v4824, 1.442695
      %v4923 = vpow.pop %v4922
      %v4924 = vmul.f32 %v4825, 1.442695
      %v4925 = vpow.pop %v4924
      %v4926 = vmul.f32 %v4826, 1.442695
      %v4927 = vpow.pop %v4926
      %v4928 = vmul.f32 %v4827, 1.442695
      %v4929 = vpow.pop %v4928
      %v4930 = vmul.f32 %v4828, 1.442695
      %v4931 = vpow.pop %v4930
      %v4932 = vmul.f32 %v4829, 1.442695
      %v4933 = vpow.pop %v4932
      %v4934 = vmul.f32 %v4830, 1.442695
      %v4935 = vpow.pop %v4934
      %v4936 = vmul.f32 %v4831, 1.442695
      %v4937 = vpow.pop %v4936
      %v4938 = vmul.f32 %v4832, 1.442695
      %v4939 = vpow.pop %v4938
      %v4940 = vmul.f32 %v4833, 1.442695
      %v4941 = vpow.pop %v4940
      %v4942 = vadd.f32 %v4835, 1.0
      %v4943 = vadd.f32 %v4837, 1.0
      %v4944 = vadd.f32 %v4839, 1.0
      %v4945 = vadd.f32 %v4841, 1.0
      %v4946 = vadd.f32 %v4843, 1.0
      %v4947 = vadd.f32 %v4845, 1.0
      %v4948 = vadd.f32 %v4847, 1.0
      %v4949 = vadd.f32 %v4849, 1.0
      %v4950 = vadd.f32 %v4851, 1.0
      %v4951 = vadd.f32 %v4853, 1.0
      %v4952 = vadd.f32 %v4855, 1.0
      %v4953 = vadd.f32 %v4857, 1.0
      %v4954 = vadd.f32 %v4859, 1.0
      %v4955 = vadd.f32 %v4861, 1.0
      %v4956 = vadd.f32 %v4863, 1.0
      %v4957 = vadd.f32 %v4865, 1.0
      %v4958 = vadd.f32 %v4867, 1.0
      %v4959 = vadd.f32 %v4869, 1.0
      %v4960 = vadd.f32 %v4871, 1.0
      %v4961 = vadd.f32 %v4873, 1.0
      %v4962 = vadd.f32 %v4875, 1.0
      %v4963 = vadd.f32 %v4877, 1.0
      %v4964 = vadd.f32 %v4879, 1.0
      %v4965 = vadd.f32 %v4881, 1.0
      %v4966 = vadd.f32 %v4883, 1.0
      %v4967 = vadd.f32 %v4885, 1.0
      %v4968 = vadd.f32 %v4887, 1.0
      %v4969 = vadd.f32 %v4889, 1.0
      %v4970 = vadd.f32 %v4891, 1.0
      %v4971 = vadd.f32 %v4893, 1.0
      %v4972 = vadd.f32 %v4895, 1.0
      %v4973 = vadd.f32 %v4897, 1.0
      %v4974 = vadd.f32 %v4899, 1.0
      %v4975 = vadd.f32 %v4901, 1.0
      %v4976 = vadd.f32 %v4903, 1.0
      %v4977 = vadd.f32 %v4905, 1.0
      %v4978 = vadd.f32 %v4907, 1.0
      %v4979 = vadd.f32 %v4909, 1.0
      %v4980 = vadd.f32 %v4911, 1.0
      %v4981 = vadd.f32 %v4913, 1.0
      %v4982 = vadd.f32 %v4915, 1.0
      %v4983 = vadd.f32 %v4917, 1.0
      %v4984 = vadd.f32 %v4919, 1.0
      %v4985 = vadd.f32 %v4921, 1.0
      %v4986 = vadd.f32 %v4923, 1.0
      %v4987 = vadd.f32 %v4925, 1.0
      %v4988 = vadd.f32 %v4927, 1.0
      %v4989 = vadd.f32 %v4929, 1.0
      %v4990 = vadd.f32 %v4931, 1.0
      %v4991 = vadd.f32 %v4933, 1.0
      %v4992 = vadd.f32 %v4935, 1.0
      %v4993 = vadd.f32 %v4937, 1.0
      %v4994 = vadd.f32 %v4939, 1.0
      %v4995 = vadd.f32 %v4941, 1.0
      %v4996 = vrcp.pop %v4942
      %v4997 = vrcp.pop %v4943
      %v4998 = vrcp.pop %v4944
      %v4999 = vrcp.pop %v4945
      %v5000 = vrcp.pop %v4946
      %v5001 = vrcp.pop %v4947
      %v5002 = vrcp.pop %v4948
      %v5003 = vrcp.pop %v4949
      %v5004 = vrcp.pop %v4950
      %v5005 = vrcp.pop %v4951
      %v5006 = vrcp.pop %v4952
      %v5007 = vrcp.pop %v4953
      %v5008 = vrcp.pop %v4954
      %v5009 = vrcp.pop %v4955
      %v5010 = vrcp.pop %v4956
      %v5011 = vrcp.pop %v4957
      %v5012 = vrcp.pop %v4958
      %v5013 = vrcp.pop %v4959
      %v5014 = vrcp.pop %v4960
      %v5015 = vrcp.pop %v4961
      %v5016 = vrcp.pop %v4962
      %v5017 = vrcp.pop %v4963
      %v5018 = vrcp.pop %v4964
      %v5019 = vrcp.pop %v4965
      %v5020 = vrcp.pop %v4966
      %v5021 = vrcp.pop %v4967
      %v5022 = vrcp.pop %v4968
      %v5023 = vrcp.pop %v4969
      %v5024 = vrcp.pop %v4970
      %v5025 = vrcp.pop %v4971
      %v5026 = vrcp.pop %v4972
      %v5027 = vrcp.pop %v4973
      %v5028 = vrcp.pop %v4974
      %v5029 = vrcp.pop %v4975
      %v5030 = vrcp.pop %v4976
      %v5031 = vrcp.pop %v4977
      %v5032 = vrcp.pop %v4978
      %v5033 = vrcp.pop %v4979
      %v5034 = vrcp.pop %v4980
      %v5035 = vrcp.pop %v4981
      %v5036 = vrcp.pop %v4982
      %v5037 = vrcp.pop %v4983
      %v5038 = vrcp.pop %v4984
      %v5039 = vrcp.pop %v4985
      %v5040 = vrcp.pop %v4986
      %v5041 = vrcp.pop %v4987
      %v5042 = vrcp.pop %v4988
      %v5043 = vrcp.pop %v4989
      %v5044 = vrcp.pop %v4990
      %v5045 = vrcp.pop %v4991
      %v5046 = vrcp.pop %v4992
      %v5047 = vrcp.pop %v4993
      %v5048 = vrcp.pop %v4994
      %v5049 = vrcp.pop %v4995
      %vm5050 = vcmp.ge.f32.partialorder %v4672, 0.0
      %vm5051 = vcmp.ge.f32.partialorder %v4673, 0.0
      %vm5052 = vcmp.ge.f32.partialorder %v4674, 0.0
      %vm5053 = vcmp.ge.f32.partialorder %v4675, 0.0
      %vm5054 = vcmp.ge.f32.partialorder %v4676, 0.0
      %vm5055 = vcmp.ge.f32.partialorder %v4677, 0.0
      %vm5056 = vcmp.ge.f32.partialorder %v4678, 0.0
      %vm5057 = vcmp.ge.f32.partialorder %v4679, 0.0
      %vm5058 = vcmp.ge.f32.partialorder %v4680, 0.0
      %vm5059 = vcmp.ge.f32.partialorder %v4681, 0.0
      %vm5060 = vcmp.ge.f32.partialorder %v4682, 0.0
      %vm5061 = vcmp.ge.f32.partialorder %v4683, 0.0
      %vm5062 = vcmp.ge.f32.partialorder %v4684, 0.0
      %vm5063 = vcmp.ge.f32.partialorder %v4685, 0.0
      %vm5064 = vcmp.ge.f32.partialorder %v4686, 0.0
      %vm5065 = vcmp.ge.f32.partialorder %v4687, 0.0
      %vm5066 = vcmp.ge.f32.partialorder %v4688, 0.0
      %vm5067 = vcmp.ge.f32.partialorder %v4689, 0.0
      %vm5068 = vcmp.ge.f32.partialorder %v4690, 0.0
      %vm5069 = vcmp.ge.f32.partialorder %v4691, 0.0
      %vm5070 = vcmp.ge.f32.partialorder %v4692, 0.0
      %vm5071 = vcmp.ge.f32.partialorder %v4693, 0.0
      %vm5072 = vcmp.ge.f32.partialorder %v4694, 0.0
      %vm5073 = vcmp.ge.f32.partialorder %v4695, 0.0
      %vm5074 = vcmp.ge.f32.partialorder %v4696, 0.0
      %vm5075 = vcmp.ge.f32.partialorder %v4697, 0.0
      %vm5076 = vcmp.ge.f32.partialorder %v4698, 0.0
      %vm5077 = vcmp.ge.f32.partialorder %v4699, 0.0
      %vm5078 = vcmp.ge.f32.partialorder %v4700, 0.0
      %vm5079 = vcmp.ge.f32.partialorder %v4701, 0.0
      %vm5080 = vcmp.ge.f32.partialorder %v4702, 0.0
      %vm5081 = vcmp.ge.f32.partialorder %v4703, 0.0
      %vm5082 = vcmp.ge.f32.partialorder %v4704, 0.0
      %vm5083 = vcmp.ge.f32.partialorder %v4705, 0.0
      %vm5084 = vcmp.ge.f32.partialorder %v4706, 0.0
      %vm5085 = vcmp.ge.f32.partialorder %v4707, 0.0
      %vm5086 = vcmp.ge.f32.partialorder %v4708, 0.0
      %vm5087 = vcmp.ge.f32.partialorder %v4709, 0.0
      %vm5088 = vcmp.ge.f32.partialorder %v4710, 0.0
      %vm5089 = vcmp.ge.f32.partialorder %v4711, 0.0
      %vm5090 = vcmp.ge.f32.partialorder %v4712, 0.0
      %vm5091 = vcmp.ge.f32.partialorder %v4713, 0.0
      %vm5092 = vcmp.ge.f32.partialorder %v4714, 0.0
      %vm5093 = vcmp.ge.f32.partialorder %v4715, 0.0
      %vm5094 = vcmp.ge.f32.partialorder %v4716, 0.0
      %vm5095 = vcmp.ge.f32.partialorder %v4717, 0.0
      %vm5096 = vcmp.ge.f32.partialorder %v4718, 0.0
      %vm5097 = vcmp.ge.f32.partialorder %v4719, 0.0
      %vm5098 = vcmp.ge.f32.partialorder %v4720, 0.0
      %vm5099 = vcmp.ge.f32.partialorder %v4721, 0.0
      %vm5100 = vcmp.ge.f32.partialorder %v4722, 0.0
      %vm5101 = vcmp.ge.f32.partialorder %v4723, 0.0
      %vm5102 = vcmp.ge.f32.partialorder %v4724, 0.0
      %vm5103 = vcmp.ge.f32.partialorder %v4725, 0.0
      %v5104 = vmul.f32 %v4835, %v4996
      %v5105 = vmul.f32 %v4837, %v4997
      %v5106 = vmul.f32 %v4839, %v4998
      %v5107 = vmul.f32 %v4841, %v4999
      %v5108 = vmul.f32 %v4843, %v5000
      %v5109 = vmul.f32 %v4845, %v5001
      %v5110 = vmul.f32 %v4847, %v5002
      %v5111 = vmul.f32 %v4849, %v5003
      %v5112 = vmul.f32 %v4851, %v5004
      %v5113 = vmul.f32 %v4853, %v5005
      %v5114 = vmul.f32 %v4855, %v5006
      %v5115 = vmul.f32 %v4857, %v5007
      %v5116 = vmul.f32 %v4859, %v5008
      %v5117 = vmul.f32 %v4861, %v5009
      %v5118 = vmul.f32 %v4863, %v5010
      %v5119 = vmul.f32 %v4865, %v5011
      %v5120 = vmul.f32 %v4867, %v5012
      %v5121 = vmul.f32 %v4869, %v5013
      %v5122 = vmul.f32 %v4871, %v5014
      %v5123 = vmul.f32 %v4873, %v5015
      %v5124 = vmul.f32 %v4875, %v5016
      %v5125 = vmul.f32 %v4877, %v5017
      %v5126 = vmul.f32 %v4879, %v5018
      %v5127 = vmul.f32 %v4881, %v5019
      %v5128 = vmul.f32 %v4883, %v5020
      %v5129 = vmul.f32 %v4885, %v5021
      %v5130 = vmul.f32 %v4887, %v5022
      %v5131 = vmul.f32 %v4889, %v5023
      %v5132 = vmul.f32 %v4891, %v5024
      %v5133 = vmul.f32 %v4893, %v5025
      %v5134 = vmul.f32 %v4895, %v5026
      %v5135 = vmul.f32 %v4897, %v5027
      %v5136 = vmul.f32 %v4899, %v5028
      %v5137 = vmul.f32 %v4901, %v5029
      %v5138 = vmul.f32 %v4903, %v5030
      %v5139 = vmul.f32 %v4905, %v5031
      %v5140 = vmul.f32 %v4907, %v5032
      %v5141 = vmul.f32 %v4909, %v5033
      %v5142 = vmul.f32 %v4911, %v5034
      %v5143 = vmul.f32 %v4913, %v5035
      %v5144 = vmul.f32 %v4915, %v5036
      %v5145 = vmul.f32 %v4917, %v5037
      %v5146 = vmul.f32 %v4919, %v5038
      %v5147 = vmul.f32 %v4921, %v5039
      %v5148 = vmul.f32 %v4923, %v5040
      %v5149 = vmul.f32 %v4925, %v5041
      %v5150 = vmul.f32 %v4927, %v5042
      %v5151 = vmul.f32 %v4929, %v5043
      %v5152 = vmul.f32 %v4931, %v5044
      %v5153 = vmul.f32 %v4933, %v5045
      %v5154 = vmul.f32 %v4935, %v5046
      %v5155 = vmul.f32 %v4937, %v5047
      %v5156 = vmul.f32 %v4939, %v5048
      %v5157 = vmul.f32 %v4941, %v5049
      %v5158 = vsel %vm5050, %v4996, %v5104
      %v5159 = vsel %vm5051, %v4997, %v5105
      %v5160 = vsel %vm5052, %v4998, %v5106
      %v5161 = vsel %vm5053, %v4999, %v5107
      %v5162 = vsel %vm5054, %v5000, %v5108
      %v5163 = vsel %vm5055, %v5001, %v5109
      %v5164 = vsel %vm5056, %v5002, %v5110
      %v5165 = vsel %vm5057, %v5003, %v5111
      %v5166 = vsel %vm5058, %v5004, %v5112
      %v5167 = vsel %vm5059, %v5005, %v5113
      %v5168 = vsel %vm5060, %v5006, %v5114
      %v5169 = vsel %vm5061, %v5007, %v5115
      %v5170 = vsel %vm5062, %v5008, %v5116
      %v5171 = vsel %vm5063, %v5009, %v5117
      %v5172 = vsel %vm5064, %v5010, %v5118
      %v5173 = vsel %vm5065, %v5011, %v5119
      %v5174 = vsel %vm5066, %v5012, %v5120
      %v5175 = vsel %vm5067, %v5013, %v5121
      %v5176 = vsel %vm5068, %v5014, %v5122
      %v5177 = vsel %vm5069, %v5015, %v5123
      %v5178 = vsel %vm5070, %v5016, %v5124
      %v5179 = vsel %vm5071, %v5017, %v5125
      %v5180 = vsel %vm5072, %v5018, %v5126
      %v5181 = vsel %vm5073, %v5019, %v5127
      %v5182 = vsel %vm5074, %v5020, %v5128
      %v5183 = vsel %vm5075, %v5021, %v5129
      %v5184 = vsel %vm5076, %v5022, %v5130
      %v5185 = vsel %vm5077, %v5023, %v5131
      %v5186 = vsel %vm5078, %v5024, %v5132
      %v5187 = vsel %vm5079, %v5025, %v5133
      %v5188 = vsel %vm5080, %v5026, %v5134
      %v5189 = vsel %vm5081, %v5027, %v5135
      %v5190 = vsel %vm5082, %v5028, %v5136
      %v5191 = vsel %vm5083, %v5029, %v5137
      %v5192 = vsel %vm5084, %v5030, %v5138
      %v5193 = vsel %vm5085, %v5031, %v5139
      %v5194 = vsel %vm5086, %v5032, %v5140
      %v5195 = vsel %vm5087, %v5033, %v5141
      %v5196 = vsel %vm5088, %v5034, %v5142
      %v5197 = vsel %vm5089, %v5035, %v5143
      %v5198 = vsel %vm5090, %v5036, %v5144
      %v5199 = vsel %vm5091, %v5037, %v5145
      %v5200 = vsel %vm5092, %v5038, %v5146
      %v5201 = vsel %vm5093, %v5039, %v5147
      %v5202 = vsel %vm5094, %v5040, %v5148
      %v5203 = vsel %vm5095, %v5041, %v5149
      %v5204 = vsel %vm5096, %v5042, %v5150
      %v5205 = vsel %vm5097, %v5043, %v5151
      %v5206 = vsel %vm5098, %v5044, %v5152
      %v5207 = vsel %vm5099, %v5045, %v5153
      %v5208 = vsel %vm5100, %v5046, %v5154
      %v5209 = vsel %vm5101, %v5047, %v5155
      %v5210 = vsel %vm5102, %v5048, %v5156
      %v5211 = vsel %vm5103, %v5049, %v5157
      %v5212 = vmul.f32 %v4672, %v5158
      %v5213 = vmul.f32 %v4673, %v5159
      %v5214 = vmul.f32 %v4674, %v5160
      %v5215 = vmul.f32 %v4675, %v5161
      %v5216 = vmul.f32 %v4676, %v5162
      %v5217 = vmul.f32 %v4677, %v5163
      %v5218 = vmul.f32 %v4678, %v5164
      %v5219 = vmul.f32 %v4679, %v5165
      %v5220 = vmul.f32 %v4680, %v5166
      %v5221 = vmul.f32 %v4681, %v5167
      %v5222 = vmul.f32 %v4682, %v5168
      %v5223 = vmul.f32 %v4683, %v5169
      %v5224 = vmul.f32 %v4684, %v5170
      %v5225 = vmul.f32 %v4685, %v5171
      %v5226 = vmul.f32 %v4686, %v5172
      %v5227 = vmul.f32 %v4687, %v5173
      %v5228 = vmul.f32 %v4688, %v5174
      %v5229 = vmul.f32 %v4689, %v5175
      %v5230 = vmul.f32 %v4690, %v5176
      %v5231 = vmul.f32 %v4691, %v5177
      %v5232 = vmul.f32 %v4692, %v5178
      %v5233 = vmul.f32 %v4693, %v5179
      %v5234 = vmul.f32 %v4694, %v5180
      %v5235 = vmul.f32 %v4695, %v5181
      %v5236 = vmul.f32 %v4696, %v5182
      %v5237 = vmul.f32 %v4697, %v5183
      %v5238 = vmul.f32 %v4698, %v5184
      %v5239 = vmul.f32 %v4699, %v5185
      %v5240 = vmul.f32 %v4700, %v5186
      %v5241 = vmul.f32 %v4701, %v5187
      %v5242 = vmul.f32 %v4702, %v5188
      %v5243 = vmul.f32 %v4703, %v5189
      %v5244 = vmul.f32 %v4704, %v5190
      %v5245 = vmul.f32 %v4705, %v5191
      %v5246 = vmul.f32 %v4706, %v5192
      %v5247 = vmul.f32 %v4707, %v5193
      %v5248 = vmul.f32 %v4708, %v5194
      %v5249 = vmul.f32 %v4709, %v5195
      %v5250 = vmul.f32 %v4710, %v5196
      %v5251 = vmul.f32 %v4711, %v5197
      %v5252 = vmul.f32 %v4712, %v5198
      %v5253 = vmul.f32 %v4713, %v5199
      %v5254 = vmul.f32 %v4714, %v5200
      %v5255 = vmul.f32 %v4715, %v5201
      %v5256 = vmul.f32 %v4716, %v5202
      %v5257 = vmul.f32 %v4717, %v5203
      %v5258 = vmul.f32 %v4718, %v5204
      %v5259 = vmul.f32 %v4719, %v5205
      %v5260 = vmul.f32 %v4720, %v5206
      %v5261 = vmul.f32 %v4721, %v5207
      %v5262 = vmul.f32 %v4722, %v5208
      %v5263 = vmul.f32 %v4723, %v5209
      %v5264 = vmul.f32 %v4724, %v5210
      %v5265 = vmul.f32 %v4725, %v5211
      %v5266 = vmul.f32 %v5212, %v1920
      %v5267 = vmul.f32 %v5213, %v1925
      %v5268 = vmul.f32 %v5214, %v1930
      %v5269 = vmul.f32 %v5215, %v1935
      %v5270 = vmul.f32 %v5216, %v1940
      %v5271 = vmul.f32 %v5217, %v1945
      %v5272 = vmul.f32 %v5218, %v1950
      %v5273 = vmul.f32 %v5219, %v1955
      %v5274 = vmul.f32 %v5220, %v1960
      %v5275 = vmul.f32 %v5221, %v1965
      %v5276 = vmul.f32 %v5222, %v1970
      %v5277 = vmul.f32 %v5223, %v1975
      %v5278 = vmul.f32 %v5224, %v1980
      %v5279 = vmul.f32 %v5225, %v1985
      %v5280 = vmul.f32 %v5226, %v1990
      %v5281 = vmul.f32 %v5227, %v1995
      %v5282 = vmul.f32 %v5228, %v2000
      %v5283 = vmul.f32 %v5229, %v2005
      %v5284 = vmul.f32 %v5230, %v2010
      %v5285 = vmul.f32 %v5231, %v2015
      %v5286 = vmul.f32 %v5232, %v2020
      %v5287 = vmul.f32 %v5233, %v2025
      %v5288 = vmul.f32 %v5234, %v2030
      %v5289 = vmul.f32 %v5235, %v2035
      %v5290 = vmul.f32 %v5236, %v2040
      %v5291 = vmul.f32 %v5237, %v2045
      %v5292 = vmul.f32 %v5238, %v2050
      %v5293 = vmul.f32 %v5239, %v2055
      %v5294 = vmul.f32 %v5240, %v2060
      %v5295 = vmul.f32 %v5241, %v2065
      %v5296 = vmul.f32 %v5242, %v2070
      %v5297 = vmul.f32 %v5243, %v2075
      %v5298 = vmul.f32 %v5244, %v2080
      %v5299 = vmul.f32 %v5245, %v2085
      %v5300 = vmul.f32 %v5246, %v2090
      %v5301 = vmul.f32 %v5247, %v2095
      %v5302 = vmul.f32 %v5248, %v2100
      %v5303 = vmul.f32 %v5249, %v2105
      %v5304 = vmul.f32 %v5250, %v2110
      %v5305 = vmul.f32 %v5251, %v2115
      %v5306 = vmul.f32 %v5252, %v2120
      %v5307 = vmul.f32 %v5253, %v2125
      %v5308 = vmul.f32 %v5254, %v2130
      %v5309 = vmul.f32 %v5255, %v2135
      %v5310 = vmul.f32 %v5256, %v2140
      %v5311 = vmul.f32 %v5257, %v2145
      %v5312 = vmul.f32 %v5258, %v2150
      %v5313 = vmul.f32 %v5259, %v2155
      %v5314 = vmul.f32 %v5260, %v2160
      %v5315 = vmul.f32 %v5261, %v2165
      %v5316 = vmul.f32 %v5262, %v2170
      %v5317 = vmul.f32 %v5263, %v2175
      %v5318 = vmul.f32 %v5264, %v2180
      %v5319 = vmul.f32 %v5265, %v2185
      %v5320 = vunpack.c.l.bf16 %v676
      %v5321 = vunpack.c.l.bf16 %v677
      %v5322 = vunpack.c.l.bf16 %v678
      %v5323 = vunpack.c.l.bf16 %v679
      %v5324 = vunpack.c.l.bf16 %v680
      %v5325 = vunpack.c.l.bf16 %v681
      %v5326 = vunpack.c.l.bf16 %v682
      %v5327 = vunpack.c.l.bf16 %v683
      %v5328 = vunpack.c.l.bf16 %v684
      %v5329 = vunpack.c.l.bf16 %v685
      %v5330 = vunpack.c.l.bf16 %v686
      %v5331 = vunpack.c.l.bf16 %v687
      %v5332 = vunpack.c.l.bf16 %v688
      %v5333 = vunpack.c.l.bf16 %v689
      %v5334 = vunpack.c.l.bf16 %v690
      %v5335 = vunpack.c.l.bf16 %v691
      %v5336 = vunpack.c.l.bf16 %v692
      %v5337 = vunpack.c.l.bf16 %v693
      %v5338 = vunpack.c.l.bf16 %v694
      %v5339 = vunpack.c.l.bf16 %v695
      %v5340 = vunpack.c.l.bf16 %v696
      %v5341 = vunpack.c.l.bf16 %v697
      %v5342 = vunpack.c.l.bf16 %v698
      %v5343 = vunpack.c.l.bf16 %v699
      %v5344 = vunpack.c.l.bf16 %v700
      %v5345 = vunpack.c.l.bf16 %v701
      %v5346 = vunpack.c.l.bf16 %v702
      %v5347 = vunpack.c.l.bf16 %v703
      %v5348 = vunpack.c.l.bf16 %v704
      %v5349 = vunpack.c.l.bf16 %v705
      %v5350 = vunpack.c.l.bf16 %v706
      %v5351 = vunpack.c.l.bf16 %v707
      %v5352 = vunpack.c.l.bf16 %v708
      %v5353 = vunpack.c.l.bf16 %v709
      %v5354 = vunpack.c.l.bf16 %v710
      %v5355 = vunpack.c.l.bf16 %v711
      %v5356 = vunpack.c.l.bf16 %v712
      %v5357 = vunpack.c.l.bf16 %v713
      %v5358 = vunpack.c.l.bf16 %v714
      %v5359 = vunpack.c.l.bf16 %v715
      %v5360 = vunpack.c.l.bf16 %v716
      %v5361 = vunpack.c.l.bf16 %v717
      %v5362 = vunpack.c.l.bf16 %v718
      %v5363 = vunpack.c.l.bf16 %v719
      %v5364 = vunpack.c.l.bf16 %v720
      %v5365 = vunpack.c.l.bf16 %v721
      %v5366 = vunpack.c.l.bf16 %v722
      %v5367 = vunpack.c.l.bf16 %v723
      %v5368 = vunpack.c.l.bf16 %v724
      %v5369 = vunpack.c.l.bf16 %v725
      %v5370 = vunpack.c.l.bf16 %v726
      %v5371 = vunpack.c.l.bf16 %v727
      %v5372 = vunpack.c.l.bf16 %v728
      %v5373 = vunpack.c.l.bf16 %v729
      %v5374 = vadd.f32 %v5266, %v5320
      %v5375 = vadd.f32 %v5267, %v5321
      %v5376 = vadd.f32 %v5268, %v5322
      %v5377 = vadd.f32 %v5269, %v5323
      %v5378 = vadd.f32 %v5270, %v5324
      %v5379 = vadd.f32 %v5271, %v5325
      %v5380 = vadd.f32 %v5272, %v5326
      %v5381 = vadd.f32 %v5273, %v5327
      %v5382 = vadd.f32 %v5274, %v5328
      %v5383 = vadd.f32 %v5275, %v5329
      %v5384 = vadd.f32 %v5276, %v5330
      %v5385 = vadd.f32 %v5277, %v5331
      %v5386 = vadd.f32 %v5278, %v5332
      %v5387 = vadd.f32 %v5279, %v5333
      %v5388 = vadd.f32 %v5280, %v5334
      %v5389 = vadd.f32 %v5281, %v5335
      %v5390 = vadd.f32 %v5282, %v5336
      %v5391 = vadd.f32 %v5283, %v5337
      %v5392 = vadd.f32 %v5284, %v5338
      %v5393 = vadd.f32 %v5285, %v5339
      %v5394 = vadd.f32 %v5286, %v5340
      %v5395 = vadd.f32 %v5287, %v5341
      %v5396 = vadd.f32 %v5288, %v5342
      %v5397 = vadd.f32 %v5289, %v5343
      %v5398 = vadd.f32 %v5290, %v5344
      %v5399 = vadd.f32 %v5291, %v5345
      %v5400 = vadd.f32 %v5292, %v5346
      %v5401 = vadd.f32 %v5293, %v5347
      %v5402 = vadd.f32 %v5294, %v5348
      %v5403 = vadd.f32 %v5295, %v5349
      %v5404 = vadd.f32 %v5296, %v5350
      %v5405 = vadd.f32 %v5297, %v5351
      %v5406 = vadd.f32 %v5298, %v5352
      %v5407 = vadd.f32 %v5299, %v5353
      %v5408 = vadd.f32 %v5300, %v5354
      %v5409 = vadd.f32 %v5301, %v5355
      %v5410 = vadd.f32 %v5302, %v5356
      %v5411 = vadd.f32 %v5303, %v5357
      %v5412 = vadd.f32 %v5304, %v5358
      %v5413 = vadd.f32 %v5305, %v5359
      %v5414 = vadd.f32 %v5306, %v5360
      %v5415 = vadd.f32 %v5307, %v5361
      %v5416 = vadd.f32 %v5308, %v5362
      %v5417 = vadd.f32 %v5309, %v5363
      %v5418 = vadd.f32 %v5310, %v5364
      %v5419 = vadd.f32 %v5311, %v5365
      %v5420 = vadd.f32 %v5312, %v5366
      %v5421 = vadd.f32 %v5313, %v5367
      %v5422 = vadd.f32 %v5314, %v5368
      %v5423 = vadd.f32 %v5315, %v5369
      %v5424 = vadd.f32 %v5316, %v5370
      %v5425 = vadd.f32 %v5317, %v5371
      %v5426 = vadd.f32 %v5318, %v5372
      %v5427 = vadd.f32 %v5319, %v5373
      %v5428 = vpack.c.bf16 %v5375, %v5374
      %v5429 = vpack.c.bf16 %v5377, %v5376
      %v5430 = vpack.c.bf16 %v5379, %v5378
      %v5431 = vpack.c.bf16 %v5381, %v5380
      %v5432 = vpack.c.bf16 %v5383, %v5382
      %v5433 = vpack.c.bf16 %v5385, %v5384
      %v5434 = vpack.c.bf16 %v5387, %v5386
      %v5435 = vpack.c.bf16 %v5389, %v5388
      %v5436 = vpack.c.bf16 %v5391, %v5390
      %v5437 = vpack.c.bf16 %v5393, %v5392
      %v5438 = vpack.c.bf16 %v5395, %v5394
      %v5439 = vpack.c.bf16 %v5397, %v5396
      %v5440 = vpack.c.bf16 %v5399, %v5398
      %v5441 = vpack.c.bf16 %v5401, %v5400
      %v5442 = vpack.c.bf16 %v5403, %v5402
      %v5443 = vpack.c.bf16 %v5405, %v5404
      %v5444 = vpack.c.bf16 %v5407, %v5406
      %v5445 = vpack.c.bf16 %v5409, %v5408
      %v5446 = vpack.c.bf16 %v5411, %v5410
      %v5447 = vpack.c.bf16 %v5413, %v5412
      %v5448 = vpack.c.bf16 %v5415, %v5414
      %v5449 = vpack.c.bf16 %v5417, %v5416
      %v5450 = vpack.c.bf16 %v5419, %v5418
      %v5451 = vpack.c.bf16 %v5421, %v5420
      %v5452 = vpack.c.bf16 %v5423, %v5422
      %v5453 = vpack.c.bf16 %v5425, %v5424
      %v5454 = vpack.c.bf16 %v5427, %v5426
      %v5456 = vsel %vm922, %v5428, %v895
      %v5458 = vsel %vm922, %v5429, %v896
      %v5460 = vsel %vm922, %v5430, %v897
      %v5462 = vsel %vm922, %v5431, %v898
      %v5464 = vsel %vm922, %v5432, %v899
      %v5466 = vsel %vm922, %v5433, %v900
      %v5468 = vsel %vm922, %v5434, %v901
      %v5470 = vsel %vm922, %v5435, %v902
      %v5472 = vsel %vm922, %v5436, %v903
      %v5474 = vsel %vm922, %v5437, %v904
      %v5476 = vsel %vm922, %v5438, %v905
      %v5478 = vsel %vm922, %v5439, %v906
      %v5480 = vsel %vm922, %v5440, %v907
      %v5482 = vsel %vm922, %v5441, %v908
      %v5484 = vsel %vm922, %v5442, %v909
      %v5486 = vsel %vm922, %v5443, %v910
      %v5488 = vsel %vm922, %v5444, %v911
      %v5490 = vsel %vm922, %v5445, %v912
      %v5492 = vsel %vm922, %v5446, %v913
      %v5494 = vsel %vm922, %v5447, %v914
      %v5496 = vsel %vm922, %v5448, %v915
      %v5498 = vsel %vm922, %v5449, %v916
      %v5500 = vsel %vm922, %v5450, %v917
      %v5502 = vsel %vm922, %v5451, %v918
      %v5504 = vsel %vm922, %v5452, %v919
      %v5506 = vsel %vm922, %v5453, %v920
      %v5508 = vsel %vm922, %v5454, %v921
      %v5536 = vunpack.c.l.b16 %v5456
      %v5537 = vunpack.c.h.b16 %v5456
      %v5538 = vunpack.c.l.b16 %v5458
      %v5539 = vunpack.c.h.b16 %v5458
      %v5540 = vunpack.c.l.b16 %v5460
      %v5541 = vunpack.c.h.b16 %v5460
      %v5542 = vunpack.c.l.b16 %v5462
      %v5543 = vunpack.c.h.b16 %v5462
      %v5544 = vunpack.c.l.b16 %v5464
      %v5545 = vunpack.c.h.b16 %v5464
      %v5546 = vunpack.c.l.b16 %v5466
      %v5547 = vunpack.c.h.b16 %v5466
      %v5548 = vunpack.c.l.b16 %v5468
      %v5549 = vunpack.c.h.b16 %v5468
      %v5550 = vunpack.c.l.b16 %v5470
      %v5551 = vunpack.c.h.b16 %v5470
      %v5552 = vunpack.c.l.b16 %v5472
      %v5553 = vunpack.c.h.b16 %v5472
      %v5554 = vunpack.c.l.b16 %v5474
      %v5555 = vunpack.c.h.b16 %v5474
      %v5556 = vunpack.c.l.b16 %v5476
      %v5557 = vunpack.c.h.b16 %v5476
      %v5558 = vunpack.c.l.b16 %v5478
      %v5559 = vunpack.c.h.b16 %v5478
      %v5560 = vunpack.c.l.b16 %v5480
      %v5561 = vunpack.c.h.b16 %v5480
      %v5562 = vunpack.c.l.b16 %v5482
      %v5563 = vunpack.c.h.b16 %v5482
      %v5564 = vunpack.c.l.b16 %v5484
      %v5565 = vunpack.c.h.b16 %v5484
      %v5566 = vunpack.c.l.b16 %v5486
      %v5567 = vunpack.c.h.b16 %v5486
      %v5568 = vunpack.c.l.b16 %v5488
      %v5569 = vunpack.c.h.b16 %v5488
      %v5570 = vunpack.c.l.b16 %v5490
      %v5571 = vunpack.c.h.b16 %v5490
      %v5572 = vunpack.c.l.b16 %v5492
      %v5573 = vunpack.c.h.b16 %v5492
      %v5574 = vunpack.c.l.b16 %v5494
      %v5575 = vunpack.c.h.b16 %v5494
      %v5576 = vunpack.c.l.b16 %v5496
      %v5577 = vunpack.c.h.b16 %v5496
      %v5578 = vunpack.c.l.b16 %v5498
      %v5579 = vunpack.c.h.b16 %v5498
      %v5580 = vunpack.c.l.b16 %v5500
      %v5581 = vunpack.c.h.b16 %v5500
      %v5582 = vunpack.c.l.b16 %v5502
      %v5583 = vunpack.c.h.b16 %v5502
      %v5584 = vunpack.c.l.b16 %v5504
      %v5585 = vunpack.c.h.b16 %v5504
      %v5586 = vunpack.c.l.b16 %v5506
      %v5587 = vunpack.c.h.b16 %v5506
      %v5588 = vunpack.c.l.b16 %v5508
      %v5589 = vunpack.c.h.b16 %v5508
      %v5590 = vpack.c.b16 %v5536, %v5536
      %v5591 = vpack.c.b16 %v5537, %v5537
      %v5592 = vpack.c.b16 %v5538, %v5538
      %v5593 = vpack.c.b16 %v5539, %v5539
      %v5594 = vpack.c.b16 %v5540, %v5540
      %v5595 = vpack.c.b16 %v5541, %v5541
      %v5596 = vpack.c.b16 %v5542, %v5542
      %v5597 = vpack.c.b16 %v5543, %v5543
      %v5598 = vpack.c.b16 %v5544, %v5544
      %v5599 = vpack.c.b16 %v5545, %v5545
      %v5600 = vpack.c.b16 %v5546, %v5546
      %v5601 = vpack.c.b16 %v5547, %v5547
      %v5602 = vpack.c.b16 %v5548, %v5548
      %v5603 = vpack.c.b16 %v5549, %v5549
      %v5604 = vpack.c.b16 %v5550, %v5550
      %v5605 = vpack.c.b16 %v5551, %v5551
      %v5606 = vpack.c.b16 %v5552, %v5552
      %v5607 = vpack.c.b16 %v5553, %v5553
      %v5608 = vpack.c.b16 %v5554, %v5554
      %v5609 = vpack.c.b16 %v5555, %v5555
      %v5610 = vpack.c.b16 %v5556, %v5556
      %v5611 = vpack.c.b16 %v5557, %v5557
      %v5612 = vpack.c.b16 %v5558, %v5558
      %v5613 = vpack.c.b16 %v5559, %v5559
      %v5614 = vpack.c.b16 %v5560, %v5560
      %v5615 = vpack.c.b16 %v5561, %v5561
      %v5616 = vpack.c.b16 %v5562, %v5562
      %v5617 = vpack.c.b16 %v5563, %v5563
      %v5618 = vpack.c.b16 %v5564, %v5564
      %v5619 = vpack.c.b16 %v5565, %v5565
      %v5620 = vpack.c.b16 %v5566, %v5566
      %v5621 = vpack.c.b16 %v5567, %v5567
      %v5622 = vpack.c.b16 %v5568, %v5568
      %v5623 = vpack.c.b16 %v5569, %v5569
      %v5624 = vpack.c.b16 %v5570, %v5570
      %v5625 = vpack.c.b16 %v5571, %v5571
      %v5626 = vpack.c.b16 %v5572, %v5572
      %v5627 = vpack.c.b16 %v5573, %v5573
      %v5628 = vpack.c.b16 %v5574, %v5574
      %v5629 = vpack.c.b16 %v5575, %v5575
      %v5630 = vpack.c.b16 %v5576, %v5576
      %v5631 = vpack.c.b16 %v5577, %v5577
      %v5632 = vpack.c.b16 %v5578, %v5578
      %v5633 = vpack.c.b16 %v5579, %v5579
      %v5634 = vpack.c.b16 %v5580, %v5580
      %v5635 = vpack.c.b16 %v5581, %v5581
      %v5636 = vpack.c.b16 %v5582, %v5582
      %v5637 = vpack.c.b16 %v5583, %v5583
      %v5638 = vpack.c.b16 %v5584, %v5584
      %v5639 = vpack.c.b16 %v5585, %v5585
      %v5640 = vpack.c.b16 %v5586, %v5586
      %v5641 = vpack.c.b16 %v5587, %v5587
      %v5642 = vpack.c.b16 %v5588, %v5588
      %v5643 = vpack.c.b16 %v5589, %v5589
      %vm5698 = vcmask 60416
      %5699 = vst.msk [vmem:[%s673] sm:$0xf] %vm5698, %v5590
      %5700 = vst.msk [vmem:[%s673 + $0x4] sm:$0xf] %vm5698, %v5591
      %5701 = vst.msk [vmem:[%s673 + $0x8] sm:$0xf] %vm5698, %v5592
      %5702 = vst.msk [vmem:[%s673 + $0xc] sm:$0xf] %vm5698, %v5593
      %5703 = vst.msk [vmem:[%s673 + $0x10] sm:$0xf] %vm5698, %v5594
      %5704 = vst.msk [vmem:[%s673 + $0x14] sm:$0xf] %vm5698, %v5595
      %5705 = vst.msk [vmem:[%s673 + $0x18] sm:$0xf] %vm5698, %v5596
      %5706 = vst.msk [vmem:[%s673 + $0x1c] sm:$0xf] %vm5698, %v5597
      %5707 = vst.msk [vmem:[%s673 + $0x20] sm:$0xf] %vm5698, %v5598
      %5708 = vst.msk [vmem:[%s673 + $0x24] sm:$0xf] %vm5698, %v5599
      %5709 = vst.msk [vmem:[%s673 + $0x28] sm:$0xf] %vm5698, %v5600
      %5710 = vst.msk [vmem:[%s673 + $0x2c] sm:$0xf] %vm5698, %v5601
      %5711 = vst.msk [vmem:[%s673 + $0x30] sm:$0xf] %vm5698, %v5602
      %5712 = vst.msk [vmem:[%s673 + $0x34] sm:$0xf] %vm5698, %v5603
      %5713 = vst.msk [vmem:[%s673 + $0x38] sm:$0xf] %vm5698, %v5604
      %5714 = vst.msk [vmem:[%s673 + $0x3c] sm:$0xf] %vm5698, %v5605
      %5715 = vst.msk [vmem:[%s673 + $0x40] sm:$0xf] %vm5698, %v5606
      %5716 = vst.msk [vmem:[%s673 + $0x44] sm:$0xf] %vm5698, %v5607
      %5717 = vst.msk [vmem:[%s673 + $0x48] sm:$0xf] %vm5698, %v5608
      %5718 = vst.msk [vmem:[%s673 + $0x4c] sm:$0xf] %vm5698, %v5609
      %5719 = vst.msk [vmem:[%s673 + $0x50] sm:$0xf] %vm5698, %v5610
      %5720 = vst.msk [vmem:[%s673 + $0x54] sm:$0xf] %vm5698, %v5611
      %5721 = vst.msk [vmem:[%s673 + $0x58] sm:$0xf] %vm5698, %v5612
      %5722 = vst.msk [vmem:[%s673 + $0x5c] sm:$0xf] %vm5698, %v5613
      %5723 = vst.msk [vmem:[%s673 + $0x60] sm:$0xf] %vm5698, %v5614
      %5724 = vst.msk [vmem:[%s673 + $0x64] sm:$0xf] %vm5698, %v5615
      %5725 = vst.msk [vmem:[%s673 + $0x68] sm:$0xf] %vm5698, %v5616
      %5726 = vst.msk [vmem:[%s673 + $0x6c] sm:$0xf] %vm5698, %v5617
      %5727 = vst.msk [vmem:[%s673 + $0x70] sm:$0xf] %vm5698, %v5618
      %5728 = vst.msk [vmem:[%s673 + $0x74] sm:$0xf] %vm5698, %v5619
      %5729 = vst.msk [vmem:[%s673 + $0x78] sm:$0xf] %vm5698, %v5620
      %5730 = vst.msk [vmem:[%s673 + $0x7c] sm:$0xf] %vm5698, %v5621
      %5731 = vst.msk [vmem:[%s673 + $0x80] sm:$0xf] %vm5698, %v5622
      %5732 = vst.msk [vmem:[%s673 + $0x84] sm:$0xf] %vm5698, %v5623
      %5733 = vst.msk [vmem:[%s673 + $0x88] sm:$0xf] %vm5698, %v5624
      %5734 = vst.msk [vmem:[%s673 + $0x8c] sm:$0xf] %vm5698, %v5625
      %5735 = vst.msk [vmem:[%s673 + $0x90] sm:$0xf] %vm5698, %v5626
      %5736 = vst.msk [vmem:[%s673 + $0x94] sm:$0xf] %vm5698, %v5627
      %5737 = vst.msk [vmem:[%s673 + $0x98] sm:$0xf] %vm5698, %v5628
      %5738 = vst.msk [vmem:[%s673 + $0x9c] sm:$0xf] %vm5698, %v5629
      %5739 = vst.msk [vmem:[%s673 + $0xa0] sm:$0xf] %vm5698, %v5630
      %5740 = vst.msk [vmem:[%s673 + $0xa4] sm:$0xf] %vm5698, %v5631
      %5741 = vst.msk [vmem:[%s673 + $0xa8] sm:$0xf] %vm5698, %v5632
      %5742 = vst.msk [vmem:[%s673 + $0xac] sm:$0xf] %vm5698, %v5633
      %5743 = vst.msk [vmem:[%s673 + $0xb0] sm:$0xf] %vm5698, %v5634
      %5744 = vst.msk [vmem:[%s673 + $0xb4] sm:$0xf] %vm5698, %v5635
      %5745 = vst.msk [vmem:[%s673 + $0xb8] sm:$0xf] %vm5698, %v5636
      %5746 = vst.msk [vmem:[%s673 + $0xbc] sm:$0xf] %vm5698, %v5637
      %5747 = vst.msk [vmem:[%s673 + $0xc0] sm:$0xf] %vm5698, %v5638
      %5748 = vst.msk [vmem:[%s673 + $0xc4] sm:$0xf] %vm5698, %v5639
      %5749 = vst.msk [vmem:[%s673 + $0xc8] sm:$0xf] %vm5698, %v5640
      %5750 = vst.msk [vmem:[%s673 + $0xcc] sm:$0xf] %vm5698, %v5641
      %5751 = vst.msk [vmem:[%s673 + $0xd0] sm:$0xf] %vm5698, %v5642
      %5752 = vst.msk [vmem:[%s673 + $0xd4] sm:$0xf] %vm5698, %v5643
      %s5753 = smul.u32 54, %s28
      %p5754 = scmp.lt.s32.totalorder %s27, 1
      %s5755 = scalar_select %p5754, %s27, 1
      %p5756 = scmp.lt.s32.totalorder %s5753, 53
      %s5757 = scalar_select %p5756, %s5753, 53
      %s5758 = smul.addr %s5755, 54
      %s5759 = sadd.s32 %s5757, %s5758
      %s5760 = smul.addr %s5759, 4
      %s5761 = scalar_lea.vmem %s12, %s5760
      // Predicated region
      $region69: #{c3_forward.4} parent=67 // pred_check
        %p5762 = pneg %p367
      $region70: #{c3_forward.4} parent=67 // pred_check_branch
        %5764 = sbr.rel (%p5762) target = $region72
      $region71: #{c3_forward.4} parent=67 // pred_region
        %s5765 = smul.u32 54, %s28
      $region72: #{c3_forward.4} parent=67 // pred_fallthru
        _
    $region68: #{c3_forward.4} parent=5 // pred_fallthru
      _
    %p5766 = scmp.le.s32.totalorder 2, %s18
    // Predicated region
    $region73: #{c3_forward.4} parent=5 // pred_check
      %p5767 = pneg %p5766
    $region74: #{c3_forward.4} parent=5 // pred_check_branch
      %5769 = sbr.rel (%p5767) target = $region76
    $region75: #{c3_forward.4} parent=5 // pred_region
      %s5770 = ssub.s32 %s18, 2
      // Predicated region
      $region77: #{c3_forward.4} parent=75 // pred_check
        %p5771 = pneg %p373
      $region78: #{c3_forward.4} parent=75 // pred_check_branch
        %5773 = sbr.rel (%p5771) target = $region80
      $region79: #{c3_forward.4} parent=75 // pred_region
        %s5774 = smul.u32 54, %s30
        %p5775 = scmp.lt.s32.totalorder %s29, 1
        %s5776 = scalar_select %p5775, %s29, 1
        %p5777 = scmp.lt.s32.totalorder %s5774, 53
        %s5778 = scalar_select %p5777, %s5774, 53
        %s5779 = smul.addr %s5776, 54
        %s5780 = sadd.s32 %s5778, %s5779
        %s5781 = smul.addr %s5780, 4
        %s5782 = scalar_lea.vmem %s12, %s5781
      $region80: #{c3_forward.4} parent=75 // pred_fallthru
        _
    $region76: #{c3_forward.4} parent=5 // pred_fallthru
      _
  $region6: #{c3_forward.4} parent=0 // loop_footer
    %s22 = sadd.s32 1, %s18
  $region7: #{c3_forward.4} parent=0 // loop_footer_branch
    %17 = sbr.rel target = $region3
  $region8: #{c3_forward.4} parent=0 // loop_exit
    _

</llo_original>
